<compile_context>
chip_gen: v7x
topology: tpu7x:2x2x1
jax: 0.10.0
libtpu: 0.0.40
codegen_flags: <defaults>
</compile_context>

<pallas_src>
import functools

import jax
import jax.numpy as jnp
from jax.experimental import pallas as pl
from jax.experimental.pallas import tpu as pltpu

EPS = 1e-5


def _conv_bn_relu_kernel(x_ref, w_ref, gamma_ref, beta_ref, o_ref, xp_ref):
    """One channel group per grid step.

    x_ref:     (N, 1, Cg, H, W)     f32  per-group tile (free reshape of NCHW, no pad)
    w_ref:     (1, Cg, 9*Cg)        f32  weights, K ordered (kh, kw, ci): long K on lanes
    gamma_ref: (1, Cg, 1)           f32
    beta_ref:  (1, Cg, 1)           f32
    o_ref:     (N, 1, Cg, H*W)      f32  channels-first output, written with no transpose
    xp_ref:    (N, Cg, H+2, W+2)    f32  VMEM scratch: zero-padded per-group tile
    """
    N = x_ref.shape[0]
    Cg = x_ref.shape[2]
    H = x_ref.shape[3]
    W = x_ref.shape[4]
    HW = H * W

    # ---- zero ONLY the 1-pixel halo; the interior is fully overwritten below ----
    zrow = jnp.zeros((N, Cg, 1, W + 2), xp_ref.dtype)
    xp_ref[:, :, 0:1, :] = zrow
    xp_ref[:, :, H + 1:H + 2, :] = zrow
    zcol = jnp.zeros((N, Cg, H, 1), xp_ref.dtype)
    xp_ref[:, :, 1:H + 1, 0:1] = zcol
    xp_ref[:, :, 1:H + 1, W + 1:W + 2] = zcol

    # interior: channels stay first (no NCHW->NHWC relayout, no wrapper jnp.pad)
    xp_ref[:, :, 1:H + 1, 1:W + 1] = x_ref[:, 0]

    w = w_ref[0]                                         # (Cg_out, 9*Cg_in)

    # ---- conv: 9 accumulated (Cg_out, Cg_in) x (Cg_in, H*W) MXU matmuls per image ----
    ys = []
    for n in range(N):                                   # N small & static -> unrolled
        acc = jnp.zeros((Cg, HW), jnp.float32)
        for kh in range(3):
            for kw in range(3):
                t = kh * 3 + kw
                w_t = w[:, t * Cg:(t + 1) * Cg]                            # (Cg_out, Cg_in)
                tap = xp_ref[n, :, kh:kh + H, kw:kw + W].reshape(Cg, HW)   # (Cg_in, H*W)
                acc = acc + jnp.dot(w_t, tap, preferred_element_type=jnp.float32)
        ys.append(acc)

    # ---- BatchNorm (training-mode batch stats, biased variance) + affine + ReLU ----
    inv_count = 1.0 / (N * HW)
    mean = sum(jnp.sum(y, axis=1, keepdims=True) for y in ys) * inv_count      # (Cg, 1)
    var = sum(jnp.sum((y - mean) ** 2, axis=1, keepdims=True) for y in ys) * inv_count
    scale = jax.lax.rsqrt(var + EPS) * gamma_ref[0]                            # (Cg, 1)
    shift = beta_ref[0] - mean * scale
    for n in range(N):
        o_ref[n, 0] = jnp.maximum(ys[n] * scale + shift, 0.0).astype(o_ref.dtype)


def pack_weights(w_oihw, groups):
    """(C, C//G, 3, 3) -> (G, Cg_out, 9*Cg_in), K ordered (kh, kw, ci).

    Call ONCE at parameter-setup time and keep the parameter stored in this layout
    (review: the per-call weight relayout read+rewrote the full weight tensor in HBM,
    roughly doubling total HBM traffic of a weight-bandwidth-bound op)."""
    C_out, Cg_in, KH, KW = w_oihw.shape
    G = groups
    Cg_out = C_out // G
    assert Cg_out == Cg_in, "kernel assumes equal in/out channels per group"
    return (
        w_oihw.reshape(G, Cg_out, Cg_in, KH, KW)
        .transpose(0, 1, 3, 4, 2)                 # (G, Cg_out, kh, kw, ci)
        .reshape(G, Cg_out, KH * KW * Cg_in)      # long K axis on lanes
        .astype(jnp.float32)
    )


@functools.partial(jax.jit, static_argnames=("groups",))
def conv_bn_relu(x_nchw, wg, gamma, beta, *, groups):
    """x_nchw: (N, C, H, W) f32; wg: pack_weights() output; gamma/beta: (C,)."""
    N, C, H, W = x_nchw.shape
    G = groups
    Cg = C // G
    HW = H * W

    # NCHW -> (N, G, Cg, H, W) is a pure (free) reshape; per-group gather is done by
    # the BlockSpec index_map.  No wrapper transpose, no wrapper pad, no per-call cast.
    xg = x_nchw.reshape(N, G, Cg, H, W)
    gamma_g = gamma.astype(jnp.float32).reshape(G, Cg, 1)
    beta_g = beta.astype(jnp.float32).reshape(G, Cg, 1)

    flops = 2 * G * N * HW * (9 * Cg) * Cg
    bytes_accessed = xg.size * 4 + wg.size * 4 + N * C * HW * 4 + 2 * C * 4

    out = pl.pallas_call(
        _conv_bn_relu_kernel,
        out_shape=jax.ShapeDtypeStruct((N, G, Cg, HW), x_nchw.dtype),
        grid_spec=pltpu.PrefetchScalarGridSpec(
            num_scalar_prefetch=0,
            grid=(G,),
            in_specs=[
                pl.BlockSpec((N, 1, Cg, H, W), lambda g: (0, g, 0, 0, 0)),
                pl.BlockSpec((1, Cg, 9 * Cg), lambda g: (g, 0, 0)),
                pl.BlockSpec((1, Cg, 1), lambda g: (g, 0, 0)),
                pl.BlockSpec((1, Cg, 1), lambda g: (g, 0, 0)),
            ],
            out_specs=pl.BlockSpec((N, 1, Cg, HW), lambda g: (0, g, 0, 0)),
            scratch_shapes=[pltpu.VMEM((N, Cg, H + 2, W + 2), jnp.float32)],
        ),
        compiler_params=pltpu.CompilerParams(
            # BN needs the whole group in one step; the G steps are split across cores.
            dimension_semantics=("parallel",),
            vmem_limit_bytes=20 * 1024 * 1024,
        ),
        cost_estimate=pl.CostEstimate(
            flops=flops, transcendentals=C, bytes_accessed=bytes_accessed
        ),
    )(xg, wg, gamma_g, beta_g)

    # (N, G, Cg, H*W) -> (N, C, H, W): pure reshape for ANY batch size.
    return out.reshape(N, C, H, W)


def _reference(x_nchw, w_oihw, gamma, beta, groups):
    """Pure-JAX f32 reference matching the PyTorch training-mode forward."""
    conv = jax.lax.conv_general_dilated(
        x_nchw,
        w_oihw,
        window_strides=(1, 1),
        padding=((1, 1), (1, 1)),
        dimension_numbers=("NCHW", "OIHW", "NCHW"),
        feature_group_count=groups,
    )
    mean = jnp.mean(conv, axis=(0, 2, 3), keepdims=True)
    var = jnp.mean((conv - mean) ** 2, axis=(0, 2, 3), keepdims=True)
    y = (conv - mean) * jax.lax.rsqrt(var + EPS)
    y = y * gamma[None, :, None, None] + beta[None, :, None, None]
    return jnp.maximum(y, 0.0)


if __name__ == "__main__":
    # Small shapes consistent with the module: batch=1 and 14x14 spatial as in the
    # original forward; groups=11 kept, channels scaled 2904 -> 176 (Cg 264 -> 16).
    G = 11
    Cg = 16
    C = G * Cg
    N, H, W = 1, 14, 14

    key = jax.random.PRNGKey(0)
    kx, kw, kg, kb = jax.random.split(key, 4)
    x = jax.random.normal(kx, (N, C, H, W), jnp.float32)
    w = jax.random.normal(kw, (C, Cg, 3, 3), jnp.float32) * 0.05
    gamma = 1.0 + 0.1 * jax.random.normal(kg, (C,), jnp.float32)
    beta = 0.1 * jax.random.normal(kb, (C,), jnp.float32)

    # One-time parameter relayout (kept in kernel layout, not redone per call).
    wg = pack_weights(w, G)

    out = conv_bn_relu(x, wg, gamma, beta, groups=G)
    out = jax.block_until_ready(out)

    ref = _reference(x, w, gamma, beta, G)
    assert out.shape == (N, C, H, W), out.shape
    max_err = float(jnp.max(jnp.abs(out - ref)))
    assert jnp.allclose(out, ref, rtol=1e-3, atol=1e-3), max_err

    print("KERNEL_OK")
</pallas_src>

<mosaic_0001>
module attributes {stable_mosaic.version = 11 : i64} {
  func.func @_conv_bn_relu_kernel(%arg0: i32, %arg1: memref<1x1x16x14x14xf32, #tpu.memory_space<vmem>>, %arg2: memref<1x16x144xf32, #tpu.memory_space<vmem>>, %arg3: memref<1x16x1xf32, #tpu.memory_space<vmem>>, %arg4: memref<1x16x1xf32, #tpu.memory_space<vmem>>, %arg5: memref<1x1x16x196xf32, #tpu.memory_space<vmem>>, %arg6: memref<1x16x16x16xf32, #tpu.memory_space<vmem>>) attributes {dimension_semantics = [#tpu.dimension_semantics<parallel>], iteration_bounds = array<i64: 11>, scalar_prefetch = 0 : i64, scratch_operands = 1 : i64, tpu.core_type = #tpu.core_type<tc>, window_params = [{transform_indices = @transform_0, window_bounds = array<i64: 1, 1, 16, 14, 14>}, {transform_indices = @transform_1, window_bounds = array<i64: 1, 16, 144>}, {transform_indices = @transform_2, window_bounds = array<i64: 1, 16, 1>}, {transform_indices = @transform_3, window_bounds = array<i64: 1, 16, 1>}, {transform_indices = @transform_4, window_bounds = array<i64: 1, 1, 16, 196>}]} {
    %cst = arith.constant 0.000000e+00 : f32
    %0 = vector.broadcast %cst : f32 to vector<1x16x1x16xf32>
    %c0 = arith.constant 0 : index
    %c0_0 = arith.constant 0 : index
    %c0_1 = arith.constant 0 : index
    %c0_2 = arith.constant 0 : index
    %1 = vector.load %arg6[%c0, %c0_0, %c0_1, %c0_2] : memref<1x16x16x16xf32, #tpu.memory_space<vmem>>, vector<1x16x1x16xf32>
    tpu.vector_store %arg6[%c0, %c0_0, %c0_1, %c0_2], %0 {strides = array<i32>} : memref<1x16x16x16xf32, #tpu.memory_space<vmem>>, vector<1x16x1x16xf32>,
    %c0_3 = arith.constant 0 : index
    %c0_4 = arith.constant 0 : index
    %c15 = arith.constant 15 : index
    %c0_5 = arith.constant 0 : index
    %2 = vector.load %arg6[%c0_3, %c0_4, %c15, %c0_5] : memref<1x16x16x16xf32, #tpu.memory_space<vmem>>, vector<1x16x1x16xf32>
    tpu.vector_store %arg6[%c0_3, %c0_4, %c15, %c0_5], %0 {strides = array<i32>} : memref<1x16x16x16xf32, #tpu.memory_space<vmem>>, vector<1x16x1x16xf32>,
    %cst_6 = arith.constant 0.000000e+00 : f32
    %3 = vector.broadcast %cst_6 : f32 to vector<1x16x14x1xf32>
    %c0_7 = arith.constant 0 : index
    %c0_8 = arith.constant 0 : index
    %c1 = arith.constant 1 : index
    %c0_9 = arith.constant 0 : index
    %4 = vector.load %arg6[%c0_7, %c0_8, %c1, %c0_9] : memref<1x16x16x16xf32, #tpu.memory_space<vmem>>, vector<1x16x14x1xf32>
    tpu.vector_store %arg6[%c0_7, %c0_8, %c1, %c0_9], %3 {strides = array<i32>} : memref<1x16x16x16xf32, #tpu.memory_space<vmem>>, vector<1x16x14x1xf32>,
    %c0_10 = arith.constant 0 : index
    %c0_11 = arith.constant 0 : index
    %c1_12 = arith.constant 1 : index
    %c15_13 = arith.constant 15 : index
    %5 = vector.load %arg6[%c0_10, %c0_11, %c1_12, %c15_13] : memref<1x16x16x16xf32, #tpu.memory_space<vmem>>, vector<1x16x14x1xf32>
    tpu.vector_store %arg6[%c0_10, %c0_11, %c1_12, %c15_13], %3 {strides = array<i32>} : memref<1x16x16x16xf32, #tpu.memory_space<vmem>>, vector<1x16x14x1xf32>,
    %c0_14 = arith.constant 0 : index
    %c0_15 = arith.constant 0 : index
    %c0_16 = arith.constant 0 : index
    %c0_17 = arith.constant 0 : index
    %c0_18 = arith.constant 0 : index
    %6 = vector.load %arg1[%c0_14, %c0_15, %c0_16, %c0_17, %c0_18] : memref<1x1x16x14x14xf32, #tpu.memory_space<vmem>>, vector<1x1x16x14x14xf32>
    %7 = vector.shape_cast %6 : vector<1x1x16x14x14xf32> to vector<1x16x14x14xf32>
    %c0_19 = arith.constant 0 : index
    %c0_20 = arith.constant 0 : index
    %c1_21 = arith.constant 1 : index
    %c1_22 = arith.constant 1 : index
    %8 = vector.load %arg6[%c0_19, %c0_20, %c1_21, %c1_22] : memref<1x16x16x16xf32, #tpu.memory_space<vmem>>, vector<1x16x14x14xf32>
    tpu.vector_store %arg6[%c0_19, %c0_20, %c1_21, %c1_22], %7 {strides = array<i32>} : memref<1x16x16x16xf32, #tpu.memory_space<vmem>>, vector<1x16x14x14xf32>,
    %c0_23 = arith.constant 0 : index
    %c0_24 = arith.constant 0 : index
    %c0_25 = arith.constant 0 : index
    %9 = vector.load %arg2[%c0_23, %c0_24, %c0_25] : memref<1x16x144xf32, #tpu.memory_space<vmem>>, vector<1x16x144xf32>
    %10 = vector.shape_cast %9 : vector<1x16x144xf32> to vector<16x144xf32>
    %cst_26 = arith.constant 0.000000e+00 : f32
    %11 = vector.broadcast %cst_26 : f32 to vector<16x196xf32>
    %12 = vector.extract_strided_slice %10 {offsets = [0, 0], sizes = [16, 16], strides = [1, 1]} : vector<16x144xf32> to vector<16x16xf32>
    %c0_27 = arith.constant 0 : index
    %c0_28 = arith.constant 0 : index
    %c0_29 = arith.constant 0 : index
    %c0_30 = arith.constant 0 : index
    %13 = vector.load %arg6[%c0_27, %c0_28, %c0_29, %c0_30] : memref<1x16x16x16xf32, #tpu.memory_space<vmem>>, vector<1x16x14x14xf32>
    %14 = vector.shape_cast %13 : vector<1x16x14x14xf32> to vector<16x14x14xf32>
    %15 = vector.shape_cast %14 : vector<16x14x14xf32> to vector<16x196xf32>
    %cst_31 = arith.constant dense<0.000000e+00> : vector<16x196xf32>
    %16 = tpu.matmul %12, %15, %cst_31 {dimension_numbers = #tpu.dot_dimension_numbers<[1], [0], [0], [1], [0, 0, 1, 1], [], []>} : vector<16x16xf32>, vector<16x196xf32>, vector<16x196xf32> -> vector<16x196xf32>
    %17 = arith.addf %11, %16 : vector<16x196xf32>
    %18 = vector.extract_strided_slice %10 {offsets = [0, 16], sizes = [16, 16], strides = [1, 1]} : vector<16x144xf32> to vector<16x16xf32>
    %c0_32 = arith.constant 0 : index
    %c0_33 = arith.constant 0 : index
    %c0_34 = arith.constant 0 : index
    %c1_35 = arith.constant 1 : index
    %19 = vector.load %arg6[%c0_32, %c0_33, %c0_34, %c1_35] : memref<1x16x16x16xf32, #tpu.memory_space<vmem>>, vector<1x16x14x14xf32>
    %20 = vector.shape_cast %19 : vector<1x16x14x14xf32> to vector<16x14x14xf32>
    %21 = vector.shape_cast %20 : vector<16x14x14xf32> to vector<16x196xf32>
    %cst_36 = arith.constant dense<0.000000e+00> : vector<16x196xf32>
    %22 = tpu.matmul %18, %21, %cst_36 {dimension_numbers = #tpu.dot_dimension_numbers<[1], [0], [0], [1], [0, 0, 1, 1], [], []>} : vector<16x16xf32>, vector<16x196xf32>, vector<16x196xf32> -> vector<16x196xf32>
    %23 = arith.addf %17, %22 : vector<16x196xf32>
    %24 = vector.extract_strided_slice %10 {offsets = [0, 32], sizes = [16, 16], strides = [1, 1]} : vector<16x144xf32> to vector<16x16xf32>
    %c0_37 = arith.constant 0 : index
    %c0_38 = arith.constant 0 : index
    %c0_39 = arith.constant 0 : index
    %c2 = arith.constant 2 : index
    %25 = vector.load %arg6[%c0_37, %c0_38, %c0_39, %c2] : memref<1x16x16x16xf32, #tpu.memory_space<vmem>>, vector<1x16x14x14xf32>
    %26 = vector.shape_cast %25 : vector<1x16x14x14xf32> to vector<16x14x14xf32>
    %27 = vector.shape_cast %26 : vector<16x14x14xf32> to vector<16x196xf32>
    %cst_40 = arith.constant dense<0.000000e+00> : vector<16x196xf32>
    %28 = tpu.matmul %24, %27, %cst_40 {dimension_numbers = #tpu.dot_dimension_numbers<[1], [0], [0], [1], [0, 0, 1, 1], [], []>} : vector<16x16xf32>, vector<16x196xf32>, vector<16x196xf32> -> vector<16x196xf32>
    %29 = arith.addf %23, %28 : vector<16x196xf32>
    %30 = vector.extract_strided_slice %10 {offsets = [0, 48], sizes = [16, 16], strides = [1, 1]} : vector<16x144xf32> to vector<16x16xf32>
    %c0_41 = arith.constant 0 : index
    %c0_42 = arith.constant 0 : index
    %c1_43 = arith.constant 1 : index
    %c0_44 = arith.constant 0 : index
    %31 = vector.load %arg6[%c0_41, %c0_42, %c1_43, %c0_44] : memref<1x16x16x16xf32, #tpu.memory_space<vmem>>, vector<1x16x14x14xf32>
    %32 = vector.shape_cast %31 : vector<1x16x14x14xf32> to vector<16x14x14xf32>
    %33 = vector.shape_cast %32 : vector<16x14x14xf32> to vector<16x196xf32>
    %cst_45 = arith.constant dense<0.000000e+00> : vector<16x196xf32>
    %34 = tpu.matmul %30, %33, %cst_45 {dimension_numbers = #tpu.dot_dimension_numbers<[1], [0], [0], [1], [0, 0, 1, 1], [], []>} : vector<16x16xf32>, vector<16x196xf32>, vector<16x196xf32> -> vector<16x196xf32>
    %35 = arith.addf %29, %34 : vector<16x196xf32>
    %36 = vector.extract_strided_slice %10 {offsets = [0, 64], sizes = [16, 16], strides = [1, 1]} : vector<16x144xf32> to vector<16x16xf32>
    %c0_46 = arith.constant 0 : index
    %c0_47 = arith.constant 0 : index
    %c1_48 = arith.constant 1 : index
    %c1_49 = arith.constant 1 : index
    %37 = vector.load %arg6[%c0_46, %c0_47, %c1_48, %c1_49] : memref<1x16x16x16xf32, #tpu.memory_space<vmem>>, vector<1x16x14x14xf32>
    %38 = vector.shape_cast %37 : vector<1x16x14x14xf32> to vector<16x14x14xf32>
    %39 = vector.shape_cast %38 : vector<16x14x14xf32> to vector<16x196xf32>
    %cst_50 = arith.constant dense<0.000000e+00> : vector<16x196xf32>
    %40 = tpu.matmul %36, %39, %cst_50 {dimension_numbers = #tpu.dot_dimension_numbers<[1], [0], [0], [1], [0, 0, 1, 1], [], []>} : vector<16x16xf32>, vector<16x196xf32>, vector<16x196xf32> -> vector<16x196xf32>
    %41 = arith.addf %35, %40 : vector<16x196xf32>
    %42 = vector.extract_strided_slice %10 {offsets = [0, 80], sizes = [16, 16], strides = [1, 1]} : vector<16x144xf32> to vector<16x16xf32>
    %c0_51 = arith.constant 0 : index
    %c0_52 = arith.constant 0 : index
    %c1_53 = arith.constant 1 : index
    %c2_54 = arith.constant 2 : index
    %43 = vector.load %arg6[%c0_51, %c0_52, %c1_53, %c2_54] : memref<1x16x16x16xf32, #tpu.memory_space<vmem>>, vector<1x16x14x14xf32>
    %44 = vector.shape_cast %43 : vector<1x16x14x14xf32> to vector<16x14x14xf32>
    %45 = vector.shape_cast %44 : vector<16x14x14xf32> to vector<16x196xf32>
    %cst_55 = arith.constant dense<0.000000e+00> : vector<16x196xf32>
    %46 = tpu.matmul %42, %45, %cst_55 {dimension_numbers = #tpu.dot_dimension_numbers<[1], [0], [0], [1], [0, 0, 1, 1], [], []>} : vector<16x16xf32>, vector<16x196xf32>, vector<16x196xf32> -> vector<16x196xf32>
    %47 = arith.addf %41, %46 : vector<16x196xf32>
    %48 = vector.extract_strided_slice %10 {offsets = [0, 96], sizes = [16, 16], strides = [1, 1]} : vector<16x144xf32> to vector<16x16xf32>
    %c0_56 = arith.constant 0 : index
    %c0_57 = arith.constant 0 : index
    %c2_58 = arith.constant 2 : index
    %c0_59 = arith.constant 0 : index
    %49 = vector.load %arg6[%c0_56, %c0_57, %c2_58, %c0_59] : memref<1x16x16x16xf32, #tpu.memory_space<vmem>>, vector<1x16x14x14xf32>
    %50 = vector.shape_cast %49 : vector<1x16x14x14xf32> to vector<16x14x14xf32>
    %51 = vector.shape_cast %50 : vector<16x14x14xf32> to vector<16x196xf32>
    %cst_60 = arith.constant dense<0.000000e+00> : vector<16x196xf32>
    %52 = tpu.matmul %48, %51, %cst_60 {dimension_numbers = #tpu.dot_dimension_numbers<[1], [0], [0], [1], [0, 0, 1, 1], [], []>} : vector<16x16xf32>, vector<16x196xf32>, vector<16x196xf32> -> vector<16x196xf32>
    %53 = arith.addf %47, %52 : vector<16x196xf32>
    %54 = vector.extract_strided_slice %10 {offsets = [0, 112], sizes = [16, 16], strides = [1, 1]} : vector<16x144xf32> to vector<16x16xf32>
    %c0_61 = arith.constant 0 : index
    %c0_62 = arith.constant 0 : index
    %c2_63 = arith.constant 2 : index
    %c1_64 = arith.constant 1 : index
    %55 = vector.load %arg6[%c0_61, %c0_62, %c2_63, %c1_64] : memref<1x16x16x16xf32, #tpu.memory_space<vmem>>, vector<1x16x14x14xf32>
    %56 = vector.shape_cast %55 : vector<1x16x14x14xf32> to vector<16x14x14xf32>
    %57 = vector.shape_cast %56 : vector<16x14x14xf32> to vector<16x196xf32>
    %cst_65 = arith.constant dense<0.000000e+00> : vector<16x196xf32>
    %58 = tpu.matmul %54, %57, %cst_65 {dimension_numbers = #tpu.dot_dimension_numbers<[1], [0], [0], [1], [0, 0, 1, 1], [], []>} : vector<16x16xf32>, vector<16x196xf32>, vector<16x196xf32> -> vector<16x196xf32>
    %59 = arith.addf %53, %58 : vector<16x196xf32>
    %60 = vector.extract_strided_slice %10 {offsets = [0, 128], sizes = [16, 16], strides = [1, 1]} : vector<16x144xf32> to vector<16x16xf32>
    %c0_66 = arith.constant 0 : index
    %c0_67 = arith.constant 0 : index
    %c2_68 = arith.constant 2 : index
    %c2_69 = arith.constant 2 : index
    %61 = vector.load %arg6[%c0_66, %c0_67, %c2_68, %c2_69] : memref<1x16x16x16xf32, #tpu.memory_space<vmem>>, vector<1x16x14x14xf32>
    %62 = vector.shape_cast %61 : vector<1x16x14x14xf32> to vector<16x14x14xf32>
    %63 = vector.shape_cast %62 : vector<16x14x14xf32> to vector<16x196xf32>
    %cst_70 = arith.constant dense<0.000000e+00> : vector<16x196xf32>
    %64 = tpu.matmul %60, %63, %cst_70 {dimension_numbers = #tpu.dot_dimension_numbers<[1], [0], [0], [1], [0, 0, 1, 1], [], []>} : vector<16x16xf32>, vector<16x196xf32>, vector<16x196xf32> -> vector<16x196xf32>
    %65 = arith.addf %59, %64 : vector<16x196xf32>
    %cst_71 = arith.constant dense<0.000000e+00> : vector<16xf32>
    %66 = vector.multi_reduction <add>, %65, %cst_71 [1] : vector<16x196xf32> to vector<16xf32>
    %67 = vector.shape_cast %66 : vector<16xf32> to vector<16x1xf32>
    %cst_72 = arith.constant 0.000000e+00 : f32
    %68 = vector.broadcast %cst_72 : f32 to vector<16x1xf32>
    %69 = arith.addf %68, %67 : vector<16x1xf32>
    %cst_73 = arith.constant 0.00510204071 : f32
    %70 = vector.broadcast %cst_73 : f32 to vector<16x1xf32>
    %71 = arith.mulf %69, %70 : vector<16x1xf32>
    %72 = vector.broadcast %71 : vector<16x1xf32> to vector<16x196xf32>
    %73 = arith.subf %65, %72 : vector<16x196xf32>
    %74 = arith.mulf %73, %73 : vector<16x196xf32>
    %cst_74 = arith.constant dense<0.000000e+00> : vector<16xf32>
    %75 = vector.multi_reduction <add>, %74, %cst_74 [1] : vector<16x196xf32> to vector<16xf32>
    %76 = vector.shape_cast %75 : vector<16xf32> to vector<16x1xf32>
    %cst_75 = arith.constant 0.000000e+00 : f32
    %77 = vector.broadcast %cst_75 : f32 to vector<16x1xf32>
    %78 = arith.addf %77, %76 : vector<16x1xf32>
    %cst_76 = arith.constant 0.00510204071 : f32
    %79 = vector.broadcast %cst_76 : f32 to vector<16x1xf32>
    %80 = arith.mulf %78, %79 : vector<16x1xf32>
    %cst_77 = arith.constant 9.99999974E-6 : f32
    %81 = vector.broadcast %cst_77 : f32 to vector<16x1xf32>
    %82 = arith.addf %80, %81 : vector<16x1xf32>
    %83 = math.rsqrt %82 : vector<16x1xf32>
    %c0_78 = arith.constant 0 : index
    %c0_79 = arith.constant 0 : index
    %c0_80 = arith.constant 0 : index
    %84 = vector.load %arg3[%c0_78, %c0_79, %c0_80] : memref<1x16x1xf32, #tpu.memory_space<vmem>>, vector<1x16x1xf32>
    %85 = vector.shape_cast %84 : vector<1x16x1xf32> to vector<16x1xf32>
    %86 = arith.mulf %83, %85 : vector<16x1xf32>
    %c0_81 = arith.constant 0 : index
    %c0_82 = arith.constant 0 : index
    %c0_83 = arith.constant 0 : index
    %87 = vector.load %arg4[%c0_81, %c0_82, %c0_83] : memref<1x16x1xf32, #tpu.memory_space<vmem>>, vector<1x16x1xf32>
    %88 = vector.shape_cast %87 : vector<1x16x1xf32> to vector<16x1xf32>
    %89 = arith.mulf %71, %86 : vector<16x1xf32>
    %90 = arith.subf %88, %89 : vector<16x1xf32>
    %91 = vector.broadcast %86 : vector<16x1xf32> to vector<16x196xf32>
    %92 = arith.mulf %65, %91 : vector<16x196xf32>
    %93 = vector.broadcast %90 : vector<16x1xf32> to vector<16x196xf32>
    %94 = arith.addf %92, %93 : vector<16x196xf32>
    %cst_84 = arith.constant 0.000000e+00 : f32
    %95 = vector.broadcast %cst_84 : f32 to vector<16x196xf32>
    %96 = arith.maximumf %94, %95 : vector<16x196xf32>
    %c0_85 = arith.constant 0 : index
    %c0_86 = arith.constant 0 : index
    %c0_87 = arith.constant 0 : index
    %c0_88 = arith.constant 0 : index
    %97 = vector.load %arg5[%c0_85, %c0_86, %c0_87, %c0_88] : memref<1x1x16x196xf32, #tpu.memory_space<vmem>>, vector<1x1x16x196xf32>
    %98 = vector.shape_cast %97 : vector<1x1x16x196xf32> to vector<16x196xf32>
    %99 = vector.shape_cast %96 : vector<16x196xf32> to vector<1x1x16x196xf32>
    tpu.vector_store %arg5[%c0_85, %c0_86, %c0_87, %c0_88], %99 {strides = array<i32>} : memref<1x1x16x196xf32, #tpu.memory_space<vmem>>, vector<1x1x16x196xf32>,
    return
  }
  func.func @transform_0(%arg0: i32) -> (i32, i32, i32, i32, i32) {
    %c0_i32 = arith.constant 0 : i32
    %c0_i32_0 = arith.constant 0 : i32
    %c0_i32_1 = arith.constant 0 : i32
    %c0_i32_2 = arith.constant 0 : i32
    %c0_i32_3 = arith.constant 0 : i32
    return %c0_i32, %arg0, %c0_i32_0, %c0_i32_1, %c0_i32_2 : i32, i32, i32, i32, i32
  }
  func.func @transform_1(%arg0: i32) -> (i32, i32, i32) {
    %c0_i32 = arith.constant 0 : i32
    %c0_i32_0 = arith.constant 0 : i32
    %c0_i32_1 = arith.constant 0 : i32
    return %arg0, %c0_i32, %c0_i32_0 : i32, i32, i32
  }
  func.func @transform_2(%arg0: i32) -> (i32, i32, i32) {
    %c0_i32 = arith.constant 0 : i32
    %c0_i32_0 = arith.constant 0 : i32
    %c0_i32_1 = arith.constant 0 : i32
    return %arg0, %c0_i32, %c0_i32_0 : i32, i32, i32
  }
  func.func @transform_3(%arg0: i32) -> (i32, i32, i32) {
    %c0_i32 = arith.constant 0 : i32
    %c0_i32_0 = arith.constant 0 : i32
    %c0_i32_1 = arith.constant 0 : i32
    return %arg0, %c0_i32, %c0_i32_0 : i32, i32, i32
  }
  func.func @transform_4(%arg0: i32) -> (i32, i32, i32, i32) {
    %c0_i32 = arith.constant 0 : i32
    %c0_i32_0 = arith.constant 0 : i32
    %c0_i32_1 = arith.constant 0 : i32
    %c0_i32_2 = arith.constant 0 : i32
    return %c0_i32, %arg0, %c0_i32_0, %c0_i32_1 : i32, i32, i32, i32
  }
}

</mosaic_0001>

<llo_original>
// kernel: conv_bn_relu.1
$region0: #{conv_bn_relu.1}
  #allocation0 [shape = 'u32[]', space=smem, size = 0x4, offset = 0x4, fixed_abs, tag = 'smem constant byte address 0x4 - core index']
  #allocation1 [shape = 'u32[144,128]{1,0:T(1,128)}', space=vmem, size = 0x12000, scoped, tag = 'internal scratch']
  #allocation2 [shape = 'f32[1,16,16,16]{3,2,1,0:T(8,128)}', space=vmem, size = 0x20000, scoped, tag = 'scratch operand']
  %s0 = inlined_call_operand.vmem [shape: f32[1,11,16,14,14], index: 0, kind: input, shape index: {}]
  %s1 = inlined_call_operand.vmem [shape: f32[11,16,144], index: 1, kind: input, shape index: {}]
  %s2 = inlined_call_operand.vmem [shape: f32[11,16,1], index: 2, kind: input, shape index: {}]
  %s3 = inlined_call_operand.vmem [shape: f32[11,16,1], index: 3, kind: input, shape index: {}]
  %s4 = inlined_call_operand.vmem [shape: f32[1,11,16,196], index: 4, kind: output, shape index: {}]
  %s5 = sld [smem:[#allocation0]]
  $region49: #{conv_bn_relu.1} parent=0
    _
  %s7 = ssub.s32 1, %s5
  %s8 = scalar_select 0, %s7, %s5
  loop: start=0, step=1, limit=13
  $region2: #{conv_bn_relu.1} parent=0 // loop_pre_header
    _
  $region3: #{conv_bn_relu.1} parent=0 // loop_header
    %s10 = sphi 0, %s14
    %p11 = scmp.ge.s32.totalorder %s10, 13
    %s20 = sphi 0, %s22
    %s23 = sphi 0, %s20
    %s24 = sphi 0, %s23
    %s40 = sphi 0, %s24
    %s46 = sphi 0, %s48
    %s49 = sphi 0, %s46
    %s50 = sphi 0, %s49
    %s66 = sphi 0, %s50
    %s72 = sphi 0, %s74
    %s75 = sphi 0, %s72
    %s76 = sphi 0, %s75
    %s92 = sphi 0, %s76
    %s98 = sphi 0, %s100
    %s101 = sphi 0, %s98
    %s102 = sphi 0, %s101
    %s118 = sphi 0, %s102
    %s124 = sphi 0, %s126
    %s127 = sphi 0, %s124
    %s128 = sphi 0, %s127
    %s144 = sphi 0, %s128
  $region4: #{conv_bn_relu.1} parent=0 // loop_header_branch
    %13 = sbr.rel (%p11) target = $region8
  $region5: #{conv_bn_relu.1} parent=0 // loop_body
    %s15 = ssub.s32 %s10, 1
    %s16 = ssub.s32 %s10, 2
    %s17 = sadd.s32 %s10, 1
    %s18 = ssub.s32 %s10, %s17
    %p19 = scmp.eq.s32.totalorder %s18, 0
    %s21 = sadd.s32 %s20, 1
    %s22 = scalar_select %p19, %s20, %s21
    %p25 = pneg %p19
    %p26 = scmp.eq.s32.totalorder %s10, 10
    %p27 = por %p25, %p26
    %p28 = scmp.ne.s32.totalorder %s20, %s23
    %p29 = scmp.eq.s32.totalorder %s10, 0
    %p30 = por %p28, %p29
    %p31 = scmp.ne.s32.totalorder %s20, %s23
    %p32 = scmp.eq.s32.totalorder %s15, 10
    %p33 = por %p31, %p32
    %p34 = scmp.ne.s32.totalorder %s23, %s24
    %p35 = scmp.eq.s32.totalorder %s15, 0
    %p36 = por %p34, %p35
    %p37 = scmp.ne.s32.totalorder %s23, %s24
    %p38 = scmp.eq.s32.totalorder %s16, 10
    %p39 = por %p37, %p38
    %p41 = scmp.ne.s32.totalorder %s24, %s40
    %p42 = scmp.eq.s32.totalorder %s16, 0
    %p43 = por %p41, %p42
    %s44 = ssub.s32 %s10, %s17
    %p45 = scmp.eq.s32.totalorder %s44, 0
    %s47 = sadd.s32 %s46, 1
    %s48 = scalar_select %p45, %s46, %s47
    %p51 = pneg %p45
    %p52 = scmp.eq.s32.totalorder %s10, 10
    %p53 = por %p51, %p52
    %p54 = scmp.ne.s32.totalorder %s46, %s49
    %p55 = scmp.eq.s32.totalorder %s10, 0
    %p56 = por %p54, %p55
    %p57 = scmp.ne.s32.totalorder %s46, %s49
    %p58 = scmp.eq.s32.totalorder %s15, 10
    %p59 = por %p57, %p58
    %p60 = scmp.ne.s32.totalorder %s49, %s50
    %p61 = scmp.eq.s32.totalorder %s15, 0
    %p62 = por %p60, %p61
    %p63 = scmp.ne.s32.totalorder %s49, %s50
    %p64 = scmp.eq.s32.totalorder %s16, 10
    %p65 = por %p63, %p64
    %p67 = scmp.ne.s32.totalorder %s50, %s66
    %p68 = scmp.eq.s32.totalorder %s16, 0
    %p69 = por %p67, %p68
    %s70 = ssub.s32 %s10, %s17
    %p71 = scmp.eq.s32.totalorder %s70, 0
    %s73 = sadd.s32 %s72, 1
    %s74 = scalar_select %p71, %s72, %s73
    %p77 = pneg %p71
    %p78 = scmp.eq.s32.totalorder %s10, 10
    %p79 = por %p77, %p78
    %p80 = scmp.ne.s32.totalorder %s72, %s75
    %p81 = scmp.eq.s32.totalorder %s10, 0
    %p82 = por %p80, %p81
    %p83 = scmp.ne.s32.totalorder %s72, %s75
    %p84 = scmp.eq.s32.totalorder %s15, 10
    %p85 = por %p83, %p84
    %p86 = scmp.ne.s32.totalorder %s75, %s76
    %p87 = scmp.eq.s32.totalorder %s15, 0
    %p88 = por %p86, %p87
    %p89 = scmp.ne.s32.totalorder %s75, %s76
    %p90 = scmp.eq.s32.totalorder %s16, 10
    %p91 = por %p89, %p90
    %p93 = scmp.ne.s32.totalorder %s76, %s92
    %p94 = scmp.eq.s32.totalorder %s16, 0
    %p95 = por %p93, %p94
    %s96 = ssub.s32 %s10, %s17
    %p97 = scmp.eq.s32.totalorder %s96, 0
    %s99 = sadd.s32 %s98, 1
    %s100 = scalar_select %p97, %s98, %s99
    %p103 = pneg %p97
    %p104 = scmp.eq.s32.totalorder %s10, 10
    %p105 = por %p103, %p104
    %p106 = scmp.ne.s32.totalorder %s98, %s101
    %p107 = scmp.eq.s32.totalorder %s10, 0
    %p108 = por %p106, %p107
    %p109 = scmp.ne.s32.totalorder %s98, %s101
    %p110 = scmp.eq.s32.totalorder %s15, 10
    %p111 = por %p109, %p110
    %p112 = scmp.ne.s32.totalorder %s101, %s102
    %p113 = scmp.eq.s32.totalorder %s15, 0
    %p114 = por %p112, %p113
    %p115 = scmp.ne.s32.totalorder %s101, %s102
    %p116 = scmp.eq.s32.totalorder %s16, 10
    %p117 = por %p115, %p116
    %p119 = scmp.ne.s32.totalorder %s102, %s118
    %p120 = scmp.eq.s32.totalorder %s16, 0
    %p121 = por %p119, %p120
    %s122 = ssub.s32 %s10, %s17
    %p123 = scmp.eq.s32.totalorder %s122, 0
    %s125 = sadd.s32 %s124, 1
    %s126 = scalar_select %p123, %s124, %s125
    %p129 = pneg %p123
    %p130 = scmp.eq.s32.totalorder %s10, 10
    %p131 = por %p129, %p130
    %p132 = scmp.ne.s32.totalorder %s124, %s127
    %p133 = scmp.eq.s32.totalorder %s10, 0
    %p134 = por %p132, %p133
    %p135 = scmp.ne.s32.totalorder %s124, %s127
    %p136 = scmp.eq.s32.totalorder %s15, 10
    %p137 = por %p135, %p136
    %p138 = scmp.ne.s32.totalorder %s127, %s128
    %p139 = scmp.eq.s32.totalorder %s15, 0
    %p140 = por %p138, %p139
    %p141 = scmp.ne.s32.totalorder %s127, %s128
    %p142 = scmp.eq.s32.totalorder %s16, 10
    %p143 = por %p141, %p142
    %p145 = scmp.ne.s32.totalorder %s128, %s144
    %p146 = scmp.eq.s32.totalorder %s16, 0
    %p147 = por %p145, %p146
    %p148 = scmp.le.s32.totalorder 1, %s10
    %p149 = scmp.lt.s32.totalorder %s10, 12
    %p150 = pnand %p148, %p149
    %p151 = pneg %p150
    // Predicated region
    $region9: #{conv_bn_relu.1} parent=5 // pred_check
      _
    $region10: #{conv_bn_relu.1} parent=5 // pred_check_branch
      %153 = sbr.rel (%p150) target = $region12
    $region11: #{conv_bn_relu.1} parent=5 // pred_region
      %s154 = ssub.s32 %s10, 1
    $region12: #{conv_bn_relu.1} parent=5 // pred_fallthru
      _
    %p155 = scmp.lt.s32.totalorder %s10, 11
    // Predicated region
    $region13: #{conv_bn_relu.1} parent=5 // pred_check
      %p156 = pneg %p155
    $region14: #{conv_bn_relu.1} parent=5 // pred_check_branch
      %158 = sbr.rel (%p156) target = $region16
    $region15: #{conv_bn_relu.1} parent=5 // pred_region
      // Predicated region
      $region17: #{conv_bn_relu.1} parent=15 // pred_check
        %p159 = pneg %p30
      $region18: #{conv_bn_relu.1} parent=15 // pred_check_branch
        %161 = sbr.rel (%p159) target = $region20
      $region19: #{conv_bn_relu.1} parent=15 // pred_region
        %p162 = scmp.lt.s32.totalorder %s10, 10
        %s163 = scalar_select %p162, %s10, 10
        %s164 = smul.addr %s163, 32
        %s165 = smul.addr %s164, 8
        %s166 = scalar_lea.vmem %s0, %s165
      $region20: #{conv_bn_relu.1} parent=15 // pred_fallthru
        _
      // Predicated region
      $region21: #{conv_bn_relu.1} parent=15 // pred_check
        %p167 = pneg %p56
      $region22: #{conv_bn_relu.1} parent=15 // pred_check_branch
        %169 = sbr.rel (%p167) target = $region24
      $region23: #{conv_bn_relu.1} parent=15 // pred_region
        %p170 = scmp.lt.s32.totalorder %s10, 10
        %s171 = scalar_select %p170, %s10, 10
        %s172 = smul.addr %s171, 4
        %s173 = smul.addr %s172, 8
        %s174 = scalar_lea.vmem %s1, %s173
      $region24: #{conv_bn_relu.1} parent=15 // pred_fallthru
        _
      // Predicated region
      $region25: #{conv_bn_relu.1} parent=15 // pred_check
        %p175 = pneg %p82
      $region26: #{conv_bn_relu.1} parent=15 // pred_check_branch
        %177 = sbr.rel (%p175) target = $region28
      $region27: #{conv_bn_relu.1} parent=15 // pred_region
        %p178 = scmp.lt.s32.totalorder %s10, 10
        %s179 = scalar_select %p178, %s10, 10
        %s180 = smul.addr %s179, 2
        %s181 = smul.addr %s180, 8
        %s182 = scalar_lea.vmem %s2, %s181
      $region28: #{conv_bn_relu.1} parent=15 // pred_fallthru
        _
      // Predicated region
      $region29: #{conv_bn_relu.1} parent=15 // pred_check
        %p183 = pneg %p108
      $region30: #{conv_bn_relu.1} parent=15 // pred_check_branch
        %185 = sbr.rel (%p183) target = $region32
      $region31: #{conv_bn_relu.1} parent=15 // pred_region
        %p186 = scmp.lt.s32.totalorder %s10, 10
        %s187 = scalar_select %p186, %s10, 10
        %s188 = smul.addr %s187, 2
        %s189 = smul.addr %s188, 8
        %s190 = scalar_lea.vmem %s3, %s189
      $region32: #{conv_bn_relu.1} parent=15 // pred_fallthru
        _
    $region16: #{conv_bn_relu.1} parent=5 // pred_fallthru
      _
    %p191 = scmp.le.s32.totalorder 1, %s10
    %p192 = scmp.lt.s32.totalorder %s10, 12
    %p193 = pnand %p191, %p192
    %p194 = pneg %p193
    // Predicated region
    $region33: #{conv_bn_relu.1} parent=5 // pred_check
      _
    $region34: #{conv_bn_relu.1} parent=5 // pred_check_branch
      %196 = sbr.rel (%p193) target = $region36
    $region35: #{conv_bn_relu.1} parent=5 // pred_region
      %s197 = ssub.s32 %s10, 1
      %p198 = scmp.lt.s32.totalorder %s15, 10
      %s199 = scalar_select %p198, %s15, 10
      %s200 = smul.addr %s199, 32
      %s201 = smul.addr %s200, 8
      %s202 = scalar_lea.vmem %s0, %s201
      %p203 = pneg %p36
      %p204 = pneg %p33
      %p205 = scmp.lt.s32.totalorder %s15, 10
      %s206 = scalar_select %p205, %s15, 10
      %s207 = smul.addr %s206, 4
      %s208 = smul.addr %s207, 8
      %s209 = scalar_lea.vmem %s1, %s208
      %p210 = pneg %p62
      %p211 = pneg %p59
      %p212 = scmp.lt.s32.totalorder %s15, 10
      %s213 = scalar_select %p212, %s15, 10
      %s214 = smul.addr %s213, 2
      %s215 = smul.addr %s214, 8
      %s216 = scalar_lea.vmem %s2, %s215
      %p217 = pneg %p88
      %p218 = pneg %p85
      %p219 = scmp.lt.s32.totalorder %s15, 10
      %s220 = scalar_select %p219, %s15, 10
      %s221 = smul.addr %s220, 2
      %s222 = smul.addr %s221, 8
      %s223 = scalar_lea.vmem %s3, %s222
      %p224 = pneg %p114
      %p225 = pneg %p111
      %p226 = pneg %p140
      %p227 = pneg %p137
      %p228 = scmp.lt.s32.totalorder %s15, 10
      %s229 = scalar_select %p228, %s15, 10
      %s230 = smul.addr %s229, 4
      %s231 = smul.addr %s230, 8
      %s232 = scalar_lea.vmem %s4, %s231
      %p233 = scmp.lt.s32.totalorder %s15, 10
      %s234 = scalar_select %p233, %s15, 10
      %s235 = smul.addr %s234, 32
      %s236 = smul.addr %s235, 8
      %s237 = scalar_lea.vmem %s0, %s236
      %p238 = scmp.lt.s32.totalorder %s15, 10
      %s239 = scalar_select %p238, %s15, 10
      %s240 = smul.addr %s239, 4
      %s241 = smul.addr %s240, 8
      %s242 = scalar_lea.vmem %s1, %s241
      %p243 = scmp.lt.s32.totalorder %s15, 10
      %s244 = scalar_select %p243, %s15, 10
      %s245 = smul.addr %s244, 2
      %s246 = smul.addr %s245, 8
      %s247 = scalar_lea.vmem %s2, %s246
      %p248 = scmp.lt.s32.totalorder %s15, 10
      %s249 = scalar_select %p248, %s15, 10
      %s250 = smul.addr %s249, 2
      %s251 = smul.addr %s250, 8
      %s252 = scalar_lea.vmem %s3, %s251
      %p253 = scmp.lt.s32.totalorder %s15, 10
      %s254 = scalar_select %p253, %s15, 10
      %s255 = smul.addr %s254, 4
      %s256 = smul.addr %s255, 8
      %s257 = scalar_lea.vmem %s4, %s256
      %vm258 = vcmask 122880
      %259 = vst.msk [vmem:[#allocation2] sm:$0x1] %vm258, 0.0
      %260 = vst.msk [vmem:[#allocation2 + $0x10] sm:$0x1] %vm258, 0.0
      %261 = vst.msk [vmem:[#allocation2 + $0x20] sm:$0x1] %vm258, 0.0
      %262 = vst.msk [vmem:[#allocation2 + $0x30] sm:$0x1] %vm258, 0.0
      %263 = vst.msk [vmem:[#allocation2 + $0x40] sm:$0x1] %vm258, 0.0
      %264 = vst.msk [vmem:[#allocation2 + $0x50] sm:$0x1] %vm258, 0.0
      %265 = vst.msk [vmem:[#allocation2 + $0x60] sm:$0x1] %vm258, 0.0
      %266 = vst.msk [vmem:[#allocation2 + $0x70] sm:$0x1] %vm258, 0.0
      %267 = vst.msk [vmem:[#allocation2 + $0x80] sm:$0x1] %vm258, 0.0
      %268 = vst.msk [vmem:[#allocation2 + $0x90] sm:$0x1] %vm258, 0.0
      %269 = vst.msk [vmem:[#allocation2 + $0xa0] sm:$0x1] %vm258, 0.0
      %270 = vst.msk [vmem:[#allocation2 + $0xb0] sm:$0x1] %vm258, 0.0
      %271 = vst.msk [vmem:[#allocation2 + $0xc0] sm:$0x1] %vm258, 0.0
      %272 = vst.msk [vmem:[#allocation2 + $0xd0] sm:$0x1] %vm258, 0.0
      %273 = vst.msk [vmem:[#allocation2 + $0xe0] sm:$0x1] %vm258, 0.0
      %274 = vst.msk [vmem:[#allocation2 + $0xf0] sm:$0x1] %vm258, 0.0
      %275 = vst.msk [vmem:[#allocation2 + $0xf] sm:$0x1] %vm258, 0.0
      %276 = vst.msk [vmem:[#allocation2 + $0x1f] sm:$0x1] %vm258, 0.0
      %277 = vst.msk [vmem:[#allocation2 + $0x2f] sm:$0x1] %vm258, 0.0
      %278 = vst.msk [vmem:[#allocation2 + $0x3f] sm:$0x1] %vm258, 0.0
      %279 = vst.msk [vmem:[#allocation2 + $0x4f] sm:$0x1] %vm258, 0.0
      %280 = vst.msk [vmem:[#allocation2 + $0x5f] sm:$0x1] %vm258, 0.0
      %281 = vst.msk [vmem:[#allocation2 + $0x6f] sm:$0x1] %vm258, 0.0
      %282 = vst.msk [vmem:[#allocation2 + $0x7f] sm:$0x1] %vm258, 0.0
      %283 = vst.msk [vmem:[#allocation2 + $0x8f] sm:$0x1] %vm258, 0.0
      %284 = vst.msk [vmem:[#allocation2 + $0x9f] sm:$0x1] %vm258, 0.0
      %285 = vst.msk [vmem:[#allocation2 + $0xaf] sm:$0x1] %vm258, 0.0
      %286 = vst.msk [vmem:[#allocation2 + $0xbf] sm:$0x1] %vm258, 0.0
      %287 = vst.msk [vmem:[#allocation2 + $0xcf] sm:$0x1] %vm258, 0.0
      %288 = vst.msk [vmem:[#allocation2 + $0xdf] sm:$0x1] %vm258, 0.0
      %289 = vst.msk [vmem:[#allocation2 + $0xef] sm:$0x1] %vm258, 0.0
      %290 = vst.msk [vmem:[#allocation2 + $0xff] sm:$0x1] %vm258, 0.0
      %vm291 = vcmask 7168
      %292 = vst.msk [vmem:[#allocation2 + $0x1] sm:$0xff] %vm291, 0.0
      %vm293 = vcmask 5120
      %294 = vst.msk [vmem:[#allocation2 + $0x9] sm:$0x3f] %vm293, 0.0
      %295 = vst.msk [vmem:[#allocation2 + $0x11] sm:$0xff] %vm291, 0.0
      %296 = vst.msk [vmem:[#allocation2 + $0x19] sm:$0x3f] %vm293, 0.0
      %297 = vst.msk [vmem:[#allocation2 + $0x21] sm:$0xff] %vm291, 0.0
      %298 = vst.msk [vmem:[#allocation2 + $0x29] sm:$0x3f] %vm293, 0.0
      %299 = vst.msk [vmem:[#allocation2 + $0x31] sm:$0xff] %vm291, 0.0
      %300 = vst.msk [vmem:[#allocation2 + $0x39] sm:$0x3f] %vm293, 0.0
      %301 = vst.msk [vmem:[#allocation2 + $0x41] sm:$0xff] %vm291, 0.0
      %302 = vst.msk [vmem:[#allocation2 + $0x49] sm:$0x3f] %vm293, 0.0
      %303 = vst.msk [vmem:[#allocation2 + $0x51] sm:$0xff] %vm291, 0.0
      %304 = vst.msk [vmem:[#allocation2 + $0x59] sm:$0x3f] %vm293, 0.0
      %305 = vst.msk [vmem:[#allocation2 + $0x61] sm:$0xff] %vm291, 0.0
      %306 = vst.msk [vmem:[#allocation2 + $0x69] sm:$0x3f] %vm293, 0.0
      %307 = vst.msk [vmem:[#allocation2 + $0x71] sm:$0xff] %vm291, 0.0
      %308 = vst.msk [vmem:[#allocation2 + $0x79] sm:$0x3f] %vm293, 0.0
      %309 = vst.msk [vmem:[#allocation2 + $0x81] sm:$0xff] %vm291, 0.0
      %310 = vst.msk [vmem:[#allocation2 + $0x89] sm:$0x3f] %vm293, 0.0
      %311 = vst.msk [vmem:[#allocation2 + $0x91] sm:$0xff] %vm291, 0.0
      %312 = vst.msk [vmem:[#allocation2 + $0x99] sm:$0x3f] %vm293, 0.0
      %313 = vst.msk [vmem:[#allocation2 + $0xa1] sm:$0xff] %vm291, 0.0
      %314 = vst.msk [vmem:[#allocation2 + $0xa9] sm:$0x3f] %vm293, 0.0
      %315 = vst.msk [vmem:[#allocation2 + $0xb1] sm:$0xff] %vm291, 0.0
      %316 = vst.msk [vmem:[#allocation2 + $0xb9] sm:$0x3f] %vm293, 0.0
      %317 = vst.msk [vmem:[#allocation2 + $0xc1] sm:$0xff] %vm291, 0.0
      %318 = vst.msk [vmem:[#allocation2 + $0xc9] sm:$0x3f] %vm293, 0.0
      %319 = vst.msk [vmem:[#allocation2 + $0xd1] sm:$0xff] %vm291, 0.0
      %320 = vst.msk [vmem:[#allocation2 + $0xd9] sm:$0x3f] %vm293, 0.0
      %321 = vst.msk [vmem:[#allocation2 + $0xe1] sm:$0xff] %vm291, 0.0
      %322 = vst.msk [vmem:[#allocation2 + $0xe9] sm:$0x3f] %vm293, 0.0
      %323 = vst.msk [vmem:[#allocation2 + $0xf1] sm:$0xff] %vm291, 0.0
      %324 = vst.msk [vmem:[#allocation2 + $0xf9] sm:$0x3f] %vm293, 0.0
      %vm325 = vcmask 130168
      %326 = vst.msk [vmem:[#allocation2 + $0x1] sm:$0xff] %vm325, 0.0
      %vm327 = vcmask 128120
      %328 = vst.msk [vmem:[#allocation2 + $0x9] sm:$0x3f] %vm327, 0.0
      %329 = vst.msk [vmem:[#allocation2 + $0x11] sm:$0xff] %vm325, 0.0
      %330 = vst.msk [vmem:[#allocation2 + $0x19] sm:$0x3f] %vm327, 0.0
      %331 = vst.msk [vmem:[#allocation2 + $0x21] sm:$0xff] %vm325, 0.0
      %332 = vst.msk [vmem:[#allocation2 + $0x29] sm:$0x3f] %vm327, 0.0
      %333 = vst.msk [vmem:[#allocation2 + $0x31] sm:$0xff] %vm325, 0.0
      %334 = vst.msk [vmem:[#allocation2 + $0x39] sm:$0x3f] %vm327, 0.0
      %335 = vst.msk [vmem:[#allocation2 + $0x41] sm:$0xff] %vm325, 0.0
      %336 = vst.msk [vmem:[#allocation2 + $0x49] sm:$0x3f] %vm327, 0.0
      %337 = vst.msk [vmem:[#allocation2 + $0x51] sm:$0xff] %vm325, 0.0
      %338 = vst.msk [vmem:[#allocation2 + $0x59] sm:$0x3f] %vm327, 0.0
      %339 = vst.msk [vmem:[#allocation2 + $0x61] sm:$0xff] %vm325, 0.0
      %340 = vst.msk [vmem:[#allocation2 + $0x69] sm:$0x3f] %vm327, 0.0
      %341 = vst.msk [vmem:[#allocation2 + $0x71] sm:$0xff] %vm325, 0.0
      %342 = vst.msk [vmem:[#allocation2 + $0x79] sm:$0x3f] %vm327, 0.0
      %343 = vst.msk [vmem:[#allocation2 + $0x81] sm:$0xff] %vm325, 0.0
      %344 = vst.msk [vmem:[#allocation2 + $0x89] sm:$0x3f] %vm327, 0.0
      %345 = vst.msk [vmem:[#allocation2 + $0x91] sm:$0xff] %vm325, 0.0
      %346 = vst.msk [vmem:[#allocation2 + $0x99] sm:$0x3f] %vm327, 0.0
      %347 = vst.msk [vmem:[#allocation2 + $0xa1] sm:$0xff] %vm325, 0.0
      %348 = vst.msk [vmem:[#allocation2 + $0xa9] sm:$0x3f] %vm327, 0.0
      %349 = vst.msk [vmem:[#allocation2 + $0xb1] sm:$0xff] %vm325, 0.0
      %350 = vst.msk [vmem:[#allocation2 + $0xb9] sm:$0x3f] %vm327, 0.0
      %351 = vst.msk [vmem:[#allocation2 + $0xc1] sm:$0xff] %vm325, 0.0
      %352 = vst.msk [vmem:[#allocation2 + $0xc9] sm:$0x3f] %vm327, 0.0
      %353 = vst.msk [vmem:[#allocation2 + $0xd1] sm:$0xff] %vm325, 0.0
      %354 = vst.msk [vmem:[#allocation2 + $0xd9] sm:$0x3f] %vm327, 0.0
      %355 = vst.msk [vmem:[#allocation2 + $0xe1] sm:$0xff] %vm325, 0.0
      %356 = vst.msk [vmem:[#allocation2 + $0xe9] sm:$0x3f] %vm327, 0.0
      %357 = vst.msk [vmem:[#allocation2 + $0xf1] sm:$0xff] %vm325, 0.0
      %358 = vst.msk [vmem:[#allocation2 + $0xf9] sm:$0x3f] %vm327, 0.0
      %v359 = vld [vmem:[%s237] sm:$0xff]
      %v360 = vld [vmem:[%s237 + $0x8] sm:$0x3f]
      %v361 = vld [vmem:[%s237 + $0x10] sm:$0xff]
      %v362 = vld [vmem:[%s237 + $0x18] sm:$0x3f]
      %v363 = vld [vmem:[%s237 + $0x20] sm:$0xff]
      %v364 = vld [vmem:[%s237 + $0x28] sm:$0x3f]
      %v365 = vld [vmem:[%s237 + $0x30] sm:$0xff]
      %v366 = vld [vmem:[%s237 + $0x38] sm:$0x3f]
      %v367 = vld [vmem:[%s237 + $0x40] sm:$0xff]
      %v368 = vld [vmem:[%s237 + $0x48] sm:$0x3f]
      %v369 = vld [vmem:[%s237 + $0x50] sm:$0xff]
      %v370 = vld [vmem:[%s237 + $0x58] sm:$0x3f]
      %v371 = vld [vmem:[%s237 + $0x60] sm:$0xff]
      %v372 = vld [vmem:[%s237 + $0x68] sm:$0x3f]
      %v373 = vld [vmem:[%s237 + $0x70] sm:$0xff]
      %v374 = vld [vmem:[%s237 + $0x78] sm:$0x3f]
      %v375 = vld [vmem:[%s237 + $0x80] sm:$0xff]
      %v376 = vld [vmem:[%s237 + $0x88] sm:$0x3f]
      %v377 = vld [vmem:[%s237 + $0x90] sm:$0xff]
      %v378 = vld [vmem:[%s237 + $0x98] sm:$0x3f]
      %v379 = vld [vmem:[%s237 + $0xa0] sm:$0xff]
      %v380 = vld [vmem:[%s237 + $0xa8] sm:$0x3f]
      %v381 = vld [vmem:[%s237 + $0xb0] sm:$0xff]
      %v382 = vld [vmem:[%s237 + $0xb8] sm:$0x3f]
      %v383 = vld [vmem:[%s237 + $0xc0] sm:$0xff]
      %v384 = vld [vmem:[%s237 + $0xc8] sm:$0x3f]
      %v385 = vld [vmem:[%s237 + $0xd0] sm:$0xff]
      %v386 = vld [vmem:[%s237 + $0xd8] sm:$0x3f]
      %v387 = vld [vmem:[%s237 + $0xe0] sm:$0xff]
      %v388 = vld [vmem:[%s237 + $0xe8] sm:$0x3f]
      %v389 = vld [vmem:[%s237 + $0xf0] sm:$0xff]
      %v390 = vld [vmem:[%s237 + $0xf8] sm:$0x3f]
      %423 = vrot.lane.b32.xlu0 %v359, 1
      %v424 = vpop.permute.xlu0 %423
      %425 = vrot.lane.b32.xlu0 %v360, 1
      %v426 = vpop.permute.xlu0 %425
      %427 = vrot.lane.b32.xlu0 %v361, 1
      %v428 = vpop.permute.xlu0 %427
      %429 = vrot.lane.b32.xlu0 %v362, 1
      %v430 = vpop.permute.xlu0 %429
      %431 = vrot.lane.b32.xlu0 %v363, 1
      %v432 = vpop.permute.xlu0 %431
      %433 = vrot.lane.b32.xlu0 %v364, 1
      %v434 = vpop.permute.xlu0 %433
      %435 = vrot.lane.b32.xlu0 %v365, 1
      %v436 = vpop.permute.xlu0 %435
      %437 = vrot.lane.b32.xlu0 %v366, 1
      %v438 = vpop.permute.xlu0 %437
      %439 = vrot.lane.b32.xlu0 %v367, 1
      %v440 = vpop.permute.xlu0 %439
      %441 = vrot.lane.b32.xlu0 %v368, 1
      %v442 = vpop.permute.xlu0 %441
      %443 = vrot.lane.b32.xlu0 %v369, 1
      %v444 = vpop.permute.xlu0 %443
      %445 = vrot.lane.b32.xlu0 %v370, 1
      %v446 = vpop.permute.xlu0 %445
      %447 = vrot.lane.b32.xlu0 %v371, 1
      %v448 = vpop.permute.xlu0 %447
      %449 = vrot.lane.b32.xlu0 %v372, 1
      %v450 = vpop.permute.xlu0 %449
      %451 = vrot.lane.b32.xlu0 %v373, 1
      %v452 = vpop.permute.xlu0 %451
      %453 = vrot.lane.b32.xlu0 %v374, 1
      %v454 = vpop.permute.xlu0 %453
      %455 = vrot.lane.b32.xlu0 %v375, 1
      %v456 = vpop.permute.xlu0 %455
      %457 = vrot.lane.b32.xlu0 %v376, 1
      %v458 = vpop.permute.xlu0 %457
      %459 = vrot.lane.b32.xlu0 %v377, 1
      %v460 = vpop.permute.xlu0 %459
      %461 = vrot.lane.b32.xlu0 %v378, 1
      %v462 = vpop.permute.xlu0 %461
      %463 = vrot.lane.b32.xlu0 %v379, 1
      %v464 = vpop.permute.xlu0 %463
      %465 = vrot.lane.b32.xlu0 %v380, 1
      %v466 = vpop.permute.xlu0 %465
      %467 = vrot.lane.b32.xlu0 %v381, 1
      %v468 = vpop.permute.xlu0 %467
      %469 = vrot.lane.b32.xlu0 %v382, 1
      %v470 = vpop.permute.xlu0 %469
      %471 = vrot.lane.b32.xlu0 %v383, 1
      %v472 = vpop.permute.xlu0 %471
      %473 = vrot.lane.b32.xlu0 %v384, 1
      %v474 = vpop.permute.xlu0 %473
      %475 = vrot.lane.b32.xlu0 %v385, 1
      %v476 = vpop.permute.xlu0 %475
      %477 = vrot.lane.b32.xlu0 %v386, 1
      %v478 = vpop.permute.xlu0 %477
      %479 = vrot.lane.b32.xlu0 %v387, 1
      %v480 = vpop.permute.xlu0 %479
      %481 = vrot.lane.b32.xlu0 %v388, 1
      %v482 = vpop.permute.xlu0 %481
      %483 = vrot.lane.b32.xlu0 %v389, 1
      %v484 = vpop.permute.xlu0 %483
      %485 = vrot.lane.b32.xlu0 %v390, 1
      %v486 = vpop.permute.xlu0 %485
      %vm519 = vcmask 121864
      %520 = vst.msk [vmem:[#allocation2 + $0x1] sm:$0xff] %vm519, %v424
      %vm521 = vcmask 119816
      %522 = vst.msk [vmem:[#allocation2 + $0x9] sm:$0x3f] %vm521, %v426
      %523 = vst.msk [vmem:[#allocation2 + $0x11] sm:$0xff] %vm519, %v428
      %524 = vst.msk [vmem:[#allocation2 + $0x19] sm:$0x3f] %vm521, %v430
      %525 = vst.msk [vmem:[#allocation2 + $0x21] sm:$0xff] %vm519, %v432
      %526 = vst.msk [vmem:[#allocation2 + $0x29] sm:$0x3f] %vm521, %v434
      %527 = vst.msk [vmem:[#allocation2 + $0x31] sm:$0xff] %vm519, %v436
      %528 = vst.msk [vmem:[#allocation2 + $0x39] sm:$0x3f] %vm521, %v438
      %529 = vst.msk [vmem:[#allocation2 + $0x41] sm:$0xff] %vm519, %v440
      %530 = vst.msk [vmem:[#allocation2 + $0x49] sm:$0x3f] %vm521, %v442
      %531 = vst.msk [vmem:[#allocation2 + $0x51] sm:$0xff] %vm519, %v444
      %532 = vst.msk [vmem:[#allocation2 + $0x59] sm:$0x3f] %vm521, %v446
      %533 = vst.msk [vmem:[#allocation2 + $0x61] sm:$0xff] %vm519, %v448
      %534 = vst.msk [vmem:[#allocation2 + $0x69] sm:$0x3f] %vm521, %v450
      %535 = vst.msk [vmem:[#allocation2 + $0x71] sm:$0xff] %vm519, %v452
      %536 = vst.msk [vmem:[#allocation2 + $0x79] sm:$0x3f] %vm521, %v454
      %537 = vst.msk [vmem:[#allocation2 + $0x81] sm:$0xff] %vm519, %v456
      %538 = vst.msk [vmem:[#allocation2 + $0x89] sm:$0x3f] %vm521, %v458
      %539 = vst.msk [vmem:[#allocation2 + $0x91] sm:$0xff] %vm519, %v460
      %540 = vst.msk [vmem:[#allocation2 + $0x99] sm:$0x3f] %vm521, %v462
      %541 = vst.msk [vmem:[#allocation2 + $0xa1] sm:$0xff] %vm519, %v464
      %542 = vst.msk [vmem:[#allocation2 + $0xa9] sm:$0x3f] %vm521, %v466
      %543 = vst.msk [vmem:[#allocation2 + $0xb1] sm:$0xff] %vm519, %v468
      %544 = vst.msk [vmem:[#allocation2 + $0xb9] sm:$0x3f] %vm521, %v470
      %545 = vst.msk [vmem:[#allocation2 + $0xc1] sm:$0xff] %vm519, %v472
      %546 = vst.msk [vmem:[#allocation2 + $0xc9] sm:$0x3f] %vm521, %v474
      %547 = vst.msk [vmem:[#allocation2 + $0xd1] sm:$0xff] %vm519, %v476
      %548 = vst.msk [vmem:[#allocation2 + $0xd9] sm:$0x3f] %vm521, %v478
      %549 = vst.msk [vmem:[#allocation2 + $0xe1] sm:$0xff] %vm519, %v480
      %550 = vst.msk [vmem:[#allocation2 + $0xe9] sm:$0x3f] %vm521, %v482
      %551 = vst.msk [vmem:[#allocation2 + $0xf1] sm:$0xff] %vm519, %v484
      %552 = vst.msk [vmem:[#allocation2 + $0xf9] sm:$0x3f] %vm521, %v486
      %v553 = vld [vmem:[%s242] sm:$0xff]
      %v554 = vld [vmem:[%s242 + $0x8] sm:$0xff]
      %v555 = vld [vmem:[%s242 + $0x10] sm:$0xff]
      %v556 = vld [vmem:[%s242 + $0x18] sm:$0xff]
      %v557 = vld [vmem:[#allocation2] sm:$0xff]
      %v558 = vld [vmem:[#allocation2 + $0x8] sm:$0x3f]
      %v559 = vld [vmem:[#allocation2 + $0x10] sm:$0xff]
      %v560 = vld [vmem:[#allocation2 + $0x18] sm:$0x3f]
      %v561 = vld [vmem:[#allocation2 + $0x20] sm:$0xff]
      %v562 = vld [vmem:[#allocation2 + $0x28] sm:$0x3f]
      %v563 = vld [vmem:[#allocation2 + $0x30] sm:$0xff]
      %v564 = vld [vmem:[#allocation2 + $0x38] sm:$0x3f]
      %v565 = vld [vmem:[#allocation2 + $0x40] sm:$0xff]
      %v566 = vld [vmem:[#allocation2 + $0x48] sm:$0x3f]
      %v567 = vld [vmem:[#allocation2 + $0x50] sm:$0xff]
      %v568 = vld [vmem:[#allocation2 + $0x58] sm:$0x3f]
      %v569 = vld [vmem:[#allocation2 + $0x60] sm:$0xff]
      %v570 = vld [vmem:[#allocation2 + $0x68] sm:$0x3f]
      %v571 = vld [vmem:[#allocation2 + $0x70] sm:$0xff]
      %v572 = vld [vmem:[#allocation2 + $0x78] sm:$0x3f]
      %v573 = vld [vmem:[#allocation2 + $0x80] sm:$0xff]
      %v574 = vld [vmem:[#allocation2 + $0x88] sm:$0x3f]
      %v575 = vld [vmem:[#allocation2 + $0x90] sm:$0xff]
      %v576 = vld [vmem:[#allocation2 + $0x98] sm:$0x3f]
      %v577 = vld [vmem:[#allocation2 + $0xa0] sm:$0xff]
      %v578 = vld [vmem:[#allocation2 + $0xa8] sm:$0x3f]
      %v579 = vld [vmem:[#allocation2 + $0xb0] sm:$0xff]
      %v580 = vld [vmem:[#allocation2 + $0xb8] sm:$0x3f]
      %v581 = vld [vmem:[#allocation2 + $0xc0] sm:$0xff]
      %v582 = vld [vmem:[#allocation2 + $0xc8] sm:$0x3f]
      %v583 = vld [vmem:[#allocation2 + $0xd0] sm:$0xff]
      %v584 = vld [vmem:[#allocation2 + $0xd8] sm:$0x3f]
      %v585 = vld [vmem:[#allocation2 + $0xe0] sm:$0xff]
      %v586 = vld [vmem:[#allocation2 + $0xe8] sm:$0x3f]
      %v587 = vld [vmem:[#allocation2 + $0xf0] sm:$0xff]
      %v588 = vld [vmem:[#allocation2 + $0xf8] sm:$0x3f]
      %v589 = vcombine.low %v557, %v561
      %v590 = vcombine.high %v557, %v561
      %v592 = vunpack.c.l.s4 1983009808
      %v593 = vunpack.c.0.s8 %v592
      %v594 = vlaneseq
      %v595 = vshrl.u32 %v594, 7
      %v596 = vsub.s32 %v593, %v595
      %v597 = vrot.slane %v589, %v596
      %v599 = vunpack.c.l.s4 1983009808
      %v600 = vunpack.c.0.s8 %v599
      %v601 = vlaneseq
      %v602 = vshrl.u32 %v601, 7
      %v603 = vsub.s32 %v600, %v602
      %v604 = vrot.slane %v590, %v603
      %v605 = vcombine.low %v559, %v563
      %v606 = vcombine.high %v559, %v563
      %v608 = vunpack.c.l.s4 1983009808
      %v609 = vunpack.c.0.s8 %v608
      %v610 = vlaneseq
      %v611 = vshrl.u32 %v610, 7
      %v612 = vsub.s32 %v609, %v611
      %v613 = vrot.slane %v605, %v612
      %v615 = vunpack.c.l.s4 1983009808
      %v616 = vunpack.c.0.s8 %v615
      %v617 = vlaneseq
      %v618 = vshrl.u32 %v617, 7
      %v619 = vsub.s32 %v616, %v618
      %v620 = vrot.slane %v606, %v619
      %v621 = vcombine.low %v565, %v569
      %v622 = vcombine.high %v565, %v569
      %v624 = vunpack.c.l.s4 1983009808
      %v625 = vunpack.c.0.s8 %v624
      %v626 = vlaneseq
      %v627 = vshrl.u32 %v626, 7
      %v628 = vsub.s32 %v625, %v627
      %v629 = vrot.slane %v621, %v628
      %v631 = vunpack.c.l.s4 1983009808
      %v632 = vunpack.c.0.s8 %v631
      %v633 = vlaneseq
      %v634 = vshrl.u32 %v633, 7
      %v635 = vsub.s32 %v632, %v634
      %v636 = vrot.slane %v622, %v635
      %v637 = vcombine.low %v567, %v571
      %v638 = vcombine.high %v567, %v571
      %v640 = vunpack.c.l.s4 1983009808
      %v641 = vunpack.c.0.s8 %v640
      %v642 = vlaneseq
      %v643 = vshrl.u32 %v642, 7
      %v644 = vsub.s32 %v641, %v643
      %v645 = vrot.slane %v637, %v644
      %v647 = vunpack.c.l.s4 1983009808
      %v648 = vunpack.c.0.s8 %v647
      %v649 = vlaneseq
      %v650 = vshrl.u32 %v649, 7
      %v651 = vsub.s32 %v648, %v650
      %v652 = vrot.slane %v638, %v651
      %v653 = vcombine.low %v597, %v613
      %v654 = vcombine.high %v597, %v613
      %v656 = vunpack.c.l.s4 1934713408
      %v657 = vunpack.c.0.s8 %v656
      %v658 = vlaneseq
      %v659 = vshrl.u32 %v658, 7
      %v660 = vsub.s32 %v657, %v659
      %v661 = vrot.slane %v653, %v660
      %v663 = vunpack.c.l.s4 1934713408
      %v664 = vunpack.c.0.s8 %v663
      %v665 = vlaneseq
      %v666 = vshrl.u32 %v665, 7
      %v667 = vsub.s32 %v664, %v666
      %v668 = vrot.slane %v654, %v667
      %v669 = vcombine.low %v604, %v620
      %v670 = vcombine.high %v604, %v620
      %v672 = vunpack.c.l.s4 1934713408
      %v673 = vunpack.c.0.s8 %v672
      %v674 = vlaneseq
      %v675 = vshrl.u32 %v674, 7
      %v676 = vsub.s32 %v673, %v675
      %v677 = vrot.slane %v669, %v676
      %v679 = vunpack.c.l.s4 1934713408
      %v680 = vunpack.c.0.s8 %v679
      %v681 = vlaneseq
      %v682 = vshrl.u32 %v681, 7
      %v683 = vsub.s32 %v680, %v682
      %v684 = vrot.slane %v670, %v683
      %v685 = vcombine.low %v629, %v645
      %v686 = vcombine.high %v629, %v645
      %v688 = vunpack.c.l.s4 1934713408
      %v689 = vunpack.c.0.s8 %v688
      %v690 = vlaneseq
      %v691 = vshrl.u32 %v690, 7
      %v692 = vsub.s32 %v689, %v691
      %v693 = vrot.slane %v685, %v692
      %v695 = vunpack.c.l.s4 1934713408
      %v696 = vunpack.c.0.s8 %v695
      %v697 = vlaneseq
      %v698 = vshrl.u32 %v697, 7
      %v699 = vsub.s32 %v696, %v698
      %v700 = vrot.slane %v686, %v699
      %v701 = vcombine.low %v636, %v652
      %v702 = vcombine.high %v636, %v652
      %v704 = vunpack.c.l.s4 1934713408
      %v705 = vunpack.c.0.s8 %v704
      %v706 = vlaneseq
      %v707 = vshrl.u32 %v706, 7
      %v708 = vsub.s32 %v705, %v707
      %v709 = vrot.slane %v701, %v708
      %v711 = vunpack.c.l.s4 1934713408
      %v712 = vunpack.c.0.s8 %v711
      %v713 = vlaneseq
      %v714 = vshrl.u32 %v713, 7
      %v715 = vsub.s32 %v712, %v714
      %v716 = vrot.slane %v702, %v715
      %v717 = vcombine.low %v661, %v693
      %v718 = vcombine.high %v661, %v693
      %v719 = vcombine.low %v668, %v700
      %v720 = vcombine.high %v668, %v700
      %v721 = vcombine.low %v677, %v709
      %v722 = vcombine.high %v677, %v709
      %v723 = vcombine.low %v684, %v716
      %v724 = vcombine.high %v684, %v716
      %v725 = vcombine.low %v573, %v577
      %v726 = vcombine.high %v573, %v577
      %v728 = vunpack.c.l.s4 1983009808
      %v729 = vunpack.c.0.s8 %v728
      %v730 = vlaneseq
      %v731 = vshrl.u32 %v730, 7
      %v732 = vsub.s32 %v729, %v731
      %v733 = vrot.slane %v725, %v732
      %v735 = vunpack.c.l.s4 1983009808
      %v736 = vunpack.c.0.s8 %v735
      %v737 = vlaneseq
      %v738 = vshrl.u32 %v737, 7
      %v739 = vsub.s32 %v736, %v738
      %v740 = vrot.slane %v726, %v739
      %v741 = vcombine.low %v575, %v579
      %v742 = vcombine.high %v575, %v579
      %v744 = vunpack.c.l.s4 1983009808
      %v745 = vunpack.c.0.s8 %v744
      %v746 = vlaneseq
      %v747 = vshrl.u32 %v746, 7
      %v748 = vsub.s32 %v745, %v747
      %v749 = vrot.slane %v741, %v748
      %v751 = vunpack.c.l.s4 1983009808
      %v752 = vunpack.c.0.s8 %v751
      %v753 = vlaneseq
      %v754 = vshrl.u32 %v753, 7
      %v755 = vsub.s32 %v752, %v754
      %v756 = vrot.slane %v742, %v755
      %v757 = vcombine.low %v581, %v585
      %v758 = vcombine.high %v581, %v585
      %v760 = vunpack.c.l.s4 1983009808
      %v761 = vunpack.c.0.s8 %v760
      %v762 = vlaneseq
      %v763 = vshrl.u32 %v762, 7
      %v764 = vsub.s32 %v761, %v763
      %v765 = vrot.slane %v757, %v764
      %v767 = vunpack.c.l.s4 1983009808
      %v768 = vunpack.c.0.s8 %v767
      %v769 = vlaneseq
      %v770 = vshrl.u32 %v769, 7
      %v771 = vsub.s32 %v768, %v770
      %v772 = vrot.slane %v758, %v771
      %v773 = vcombine.low %v583, %v587
      %v774 = vcombine.high %v583, %v587
      %v776 = vunpack.c.l.s4 1983009808
      %v777 = vunpack.c.0.s8 %v776
      %v778 = vlaneseq
      %v779 = vshrl.u32 %v778, 7
      %v780 = vsub.s32 %v777, %v779
      %v781 = vrot.slane %v773, %v780
      %v783 = vunpack.c.l.s4 1983009808
      %v784 = vunpack.c.0.s8 %v783
      %v785 = vlaneseq
      %v786 = vshrl.u32 %v785, 7
      %v787 = vsub.s32 %v784, %v786
      %v788 = vrot.slane %v774, %v787
      %v789 = vcombine.low %v733, %v749
      %v790 = vcombine.high %v733, %v749
      %v792 = vunpack.c.l.s4 1934713408
      %v793 = vunpack.c.0.s8 %v792
      %v794 = vlaneseq
      %v795 = vshrl.u32 %v794, 7
      %v796 = vsub.s32 %v793, %v795
      %v797 = vrot.slane %v789, %v796
      %v799 = vunpack.c.l.s4 1934713408
      %v800 = vunpack.c.0.s8 %v799
      %v801 = vlaneseq
      %v802 = vshrl.u32 %v801, 7
      %v803 = vsub.s32 %v800, %v802
      %v804 = vrot.slane %v790, %v803
      %v805 = vcombine.low %v740, %v756
      %v806 = vcombine.high %v740, %v756
      %v808 = vunpack.c.l.s4 1934713408
      %v809 = vunpack.c.0.s8 %v808
      %v810 = vlaneseq
      %v811 = vshrl.u32 %v810, 7
      %v812 = vsub.s32 %v809, %v811
      %v813 = vrot.slane %v805, %v812
      %v815 = vunpack.c.l.s4 1934713408
      %v816 = vunpack.c.0.s8 %v815
      %v817 = vlaneseq
      %v818 = vshrl.u32 %v817, 7
      %v819 = vsub.s32 %v816, %v818
      %v820 = vrot.slane %v806, %v819
      %v821 = vcombine.low %v765, %v781
      %v822 = vcombine.high %v765, %v781
      %v824 = vunpack.c.l.s4 1934713408
      %v825 = vunpack.c.0.s8 %v824
      %v826 = vlaneseq
      %v827 = vshrl.u32 %v826, 7
      %v828 = vsub.s32 %v825, %v827
      %v829 = vrot.slane %v821, %v828
      %v831 = vunpack.c.l.s4 1934713408
      %v832 = vunpack.c.0.s8 %v831
      %v833 = vlaneseq
      %v834 = vshrl.u32 %v833, 7
      %v835 = vsub.s32 %v832, %v834
      %v836 = vrot.slane %v822, %v835
      %v837 = vcombine.low %v772, %v788
      %v838 = vcombine.high %v772, %v788
      %v840 = vunpack.c.l.s4 1934713408
      %v841 = vunpack.c.0.s8 %v840
      %v842 = vlaneseq
      %v843 = vshrl.u32 %v842, 7
      %v844 = vsub.s32 %v841, %v843
      %v845 = vrot.slane %v837, %v844
      %v847 = vunpack.c.l.s4 1934713408
      %v848 = vunpack.c.0.s8 %v847
      %v849 = vlaneseq
      %v850 = vshrl.u32 %v849, 7
      %v851 = vsub.s32 %v848, %v850
      %v852 = vrot.slane %v838, %v851
      %v853 = vcombine.low %v797, %v829
      %v854 = vcombine.high %v797, %v829
      %v855 = vcombine.low %v804, %v836
      %v856 = vcombine.high %v804, %v836
      %v857 = vcombine.low %v813, %v845
      %v858 = vcombine.high %v813, %v845
      %v859 = vcombine.low %v820, %v852
      %v860 = vcombine.high %v820, %v852
      %v861 = vcombine.low %v558, %v562
      %v862 = vcombine.high %v558, %v562
      %v864 = vunpack.c.l.s4 1983009808
      %v865 = vunpack.c.0.s8 %v864
      %v866 = vlaneseq
      %v867 = vshrl.u32 %v866, 7
      %v868 = vsub.s32 %v865, %v867
      %v869 = vrot.slane %v861, %v868
      %v871 = vunpack.c.l.s4 1983009808
      %v872 = vunpack.c.0.s8 %v871
      %v873 = vlaneseq
      %v874 = vshrl.u32 %v873, 7
      %v875 = vsub.s32 %v872, %v874
      %v876 = vrot.slane %v862, %v875
      %v877 = vcombine.low %v560, %v564
      %v878 = vcombine.high %v560, %v564
      %v880 = vunpack.c.l.s4 1983009808
      %v881 = vunpack.c.0.s8 %v880
      %v882 = vlaneseq
      %v883 = vshrl.u32 %v882, 7
      %v884 = vsub.s32 %v881, %v883
      %v885 = vrot.slane %v877, %v884
      %v887 = vunpack.c.l.s4 1983009808
      %v888 = vunpack.c.0.s8 %v887
      %v889 = vlaneseq
      %v890 = vshrl.u32 %v889, 7
      %v891 = vsub.s32 %v888, %v890
      %v892 = vrot.slane %v878, %v891
      %v893 = vcombine.low %v566, %v570
      %v894 = vcombine.high %v566, %v570
      %v896 = vunpack.c.l.s4 1983009808
      %v897 = vunpack.c.0.s8 %v896
      %v898 = vlaneseq
      %v899 = vshrl.u32 %v898, 7
      %v900 = vsub.s32 %v897, %v899
      %v901 = vrot.slane %v893, %v900
      %v903 = vunpack.c.l.s4 1983009808
      %v904 = vunpack.c.0.s8 %v903
      %v905 = vlaneseq
      %v906 = vshrl.u32 %v905, 7
      %v907 = vsub.s32 %v904, %v906
      %v908 = vrot.slane %v894, %v907
      %v909 = vcombine.low %v568, %v572
      %v910 = vcombine.high %v568, %v572
      %v912 = vunpack.c.l.s4 1983009808
      %v913 = vunpack.c.0.s8 %v912
      %v914 = vlaneseq
      %v915 = vshrl.u32 %v914, 7
      %v916 = vsub.s32 %v913, %v915
      %v917 = vrot.slane %v909, %v916
      %v919 = vunpack.c.l.s4 1983009808
      %v920 = vunpack.c.0.s8 %v919
      %v921 = vlaneseq
      %v922 = vshrl.u32 %v921, 7
      %v923 = vsub.s32 %v920, %v922
      %v924 = vrot.slane %v910, %v923
      %v925 = vcombine.low %v869, %v885
      %v926 = vcombine.high %v869, %v885
      %v928 = vunpack.c.l.s4 1934713408
      %v929 = vunpack.c.0.s8 %v928
      %v930 = vlaneseq
      %v931 = vshrl.u32 %v930, 7
      %v932 = vsub.s32 %v929, %v931
      %v933 = vrot.slane %v925, %v932
      %v935 = vunpack.c.l.s4 1934713408
      %v936 = vunpack.c.0.s8 %v935
      %v937 = vlaneseq
      %v938 = vshrl.u32 %v937, 7
      %v939 = vsub.s32 %v936, %v938
      %v940 = vrot.slane %v926, %v939
      %v941 = vcombine.low %v876, %v892
      %v943 = vunpack.c.l.s4 1934713408
      %v944 = vunpack.c.0.s8 %v943
      %v945 = vlaneseq
      %v946 = vshrl.u32 %v945, 7
      %v947 = vsub.s32 %v944, %v946
      %v948 = vrot.slane %v941, %v947
      %v949 = vcombine.low %v901, %v917
      %v950 = vcombine.high %v901, %v917
      %v952 = vunpack.c.l.s4 1934713408
      %v953 = vunpack.c.0.s8 %v952
      %v954 = vlaneseq
      %v955 = vshrl.u32 %v954, 7
      %v956 = vsub.s32 %v953, %v955
      %v957 = vrot.slane %v949, %v956
      %v959 = vunpack.c.l.s4 1934713408
      %v960 = vunpack.c.0.s8 %v959
      %v961 = vlaneseq
      %v962 = vshrl.u32 %v961, 7
      %v963 = vsub.s32 %v960, %v962
      %v964 = vrot.slane %v950, %v963
      %v965 = vcombine.low %v908, %v924
      %v967 = vunpack.c.l.s4 1934713408
      %v968 = vunpack.c.0.s8 %v967
      %v969 = vlaneseq
      %v970 = vshrl.u32 %v969, 7
      %v971 = vsub.s32 %v968, %v970
      %v972 = vrot.slane %v965, %v971
      %v973 = vcombine.low %v933, %v957
      %v974 = vcombine.high %v933, %v957
      %v975 = vcombine.low %v940, %v964
      %v976 = vcombine.high %v940, %v964
      %v977 = vcombine.low %v948, %v972
      %v978 = vcombine.high %v948, %v972
      %v979 = vcombine.low %v574, %v578
      %v980 = vcombine.high %v574, %v578
      %v982 = vunpack.c.l.s4 1983009808
      %v983 = vunpack.c.0.s8 %v982
      %v984 = vlaneseq
      %v985 = vshrl.u32 %v984, 7
      %v986 = vsub.s32 %v983, %v985
      %v987 = vrot.slane %v979, %v986
      %v989 = vunpack.c.l.s4 1983009808
      %v990 = vunpack.c.0.s8 %v989
      %v991 = vlaneseq
      %v992 = vshrl.u32 %v991, 7
      %v993 = vsub.s32 %v990, %v992
      %v994 = vrot.slane %v980, %v993
      %v995 = vcombine.low %v576, %v580
      %v996 = vcombine.high %v576, %v580
      %v998 = vunpack.c.l.s4 1983009808
      %v999 = vunpack.c.0.s8 %v998
      %v1000 = vlaneseq
      %v1001 = vshrl.u32 %v1000, 7
      %v1002 = vsub.s32 %v999, %v1001
      %v1003 = vrot.slane %v995, %v1002
      %v1005 = vunpack.c.l.s4 1983009808
      %v1006 = vunpack.c.0.s8 %v1005
      %v1007 = vlaneseq
      %v1008 = vshrl.u32 %v1007, 7
      %v1009 = vsub.s32 %v1006, %v1008
      %v1010 = vrot.slane %v996, %v1009
      %v1011 = vcombine.low %v582, %v586
      %v1012 = vcombine.high %v582, %v586
      %v1014 = vunpack.c.l.s4 1983009808
      %v1015 = vunpack.c.0.s8 %v1014
      %v1016 = vlaneseq
      %v1017 = vshrl.u32 %v1016, 7
      %v1018 = vsub.s32 %v1015, %v1017
      %v1019 = vrot.slane %v1011, %v1018
      %v1021 = vunpack.c.l.s4 1983009808
      %v1022 = vunpack.c.0.s8 %v1021
      %v1023 = vlaneseq
      %v1024 = vshrl.u32 %v1023, 7
      %v1025 = vsub.s32 %v1022, %v1024
      %v1026 = vrot.slane %v1012, %v1025
      %v1027 = vcombine.low %v584, %v588
      %v1028 = vcombine.high %v584, %v588
      %v1030 = vunpack.c.l.s4 1983009808
      %v1031 = vunpack.c.0.s8 %v1030
      %v1032 = vlaneseq
      %v1033 = vshrl.u32 %v1032, 7
      %v1034 = vsub.s32 %v1031, %v1033
      %v1035 = vrot.slane %v1027, %v1034
      %v1037 = vunpack.c.l.s4 1983009808
      %v1038 = vunpack.c.0.s8 %v1037
      %v1039 = vlaneseq
      %v1040 = vshrl.u32 %v1039, 7
      %v1041 = vsub.s32 %v1038, %v1040
      %v1042 = vrot.slane %v1028, %v1041
      %v1043 = vcombine.low %v987, %v1003
      %v1044 = vcombine.high %v987, %v1003
      %v1046 = vunpack.c.l.s4 1934713408
      %v1047 = vunpack.c.0.s8 %v1046
      %v1048 = vlaneseq
      %v1049 = vshrl.u32 %v1048, 7
      %v1050 = vsub.s32 %v1047, %v1049
      %v1051 = vrot.slane %v1043, %v1050
      %v1053 = vunpack.c.l.s4 1934713408
      %v1054 = vunpack.c.0.s8 %v1053
      %v1055 = vlaneseq
      %v1056 = vshrl.u32 %v1055, 7
      %v1057 = vsub.s32 %v1054, %v1056
      %v1058 = vrot.slane %v1044, %v1057
      %v1059 = vcombine.low %v994, %v1010
      %v1061 = vunpack.c.l.s4 1934713408
      %v1062 = vunpack.c.0.s8 %v1061
      %v1063 = vlaneseq
      %v1064 = vshrl.u32 %v1063, 7
      %v1065 = vsub.s32 %v1062, %v1064
      %v1066 = vrot.slane %v1059, %v1065
      %v1067 = vcombine.low %v1019, %v1035
      %v1068 = vcombine.high %v1019, %v1035
      %v1070 = vunpack.c.l.s4 1934713408
      %v1071 = vunpack.c.0.s8 %v1070
      %v1072 = vlaneseq
      %v1073 = vshrl.u32 %v1072, 7
      %v1074 = vsub.s32 %v1071, %v1073
      %v1075 = vrot.slane %v1067, %v1074
      %v1077 = vunpack.c.l.s4 1934713408
      %v1078 = vunpack.c.0.s8 %v1077
      %v1079 = vlaneseq
      %v1080 = vshrl.u32 %v1079, 7
      %v1081 = vsub.s32 %v1078, %v1080
      %v1082 = vrot.slane %v1068, %v1081
      %v1083 = vcombine.low %v1026, %v1042
      %v1085 = vunpack.c.l.s4 1934713408
      %v1086 = vunpack.c.0.s8 %v1085
      %v1087 = vlaneseq
      %v1088 = vshrl.u32 %v1087, 7
      %v1089 = vsub.s32 %v1086, %v1088
      %v1090 = vrot.slane %v1083, %v1089
      %v1091 = vcombine.low %v1051, %v1075
      %v1092 = vcombine.high %v1051, %v1075
      %v1093 = vcombine.low %v1058, %v1082
      %v1094 = vcombine.high %v1058, %v1082
      %v1095 = vcombine.low %v1066, %v1090
      %v1096 = vcombine.high %v1066, %v1090
      %1099 = vrot.lane.b32.xlu0 %v718, 14
      %v1100 = vpop.permute.xlu0 %1099
      %1101 = vrot.lane.b32.xlu0 %v854, 14
      %v1102 = vpop.permute.xlu0 %1101
      %1107 = vrot.lane.b32.xlu0 %v719, 28
      %v1108 = vpop.permute.xlu0 %1107
      %1109 = vrot.lane.b32.xlu0 %v855, 28
      %v1110 = vpop.permute.xlu0 %1109
      %1115 = vrot.lane.b32.xlu0 %v720, 42
      %v1116 = vpop.permute.xlu0 %1115
      %1117 = vrot.lane.b32.xlu0 %v856, 42
      %v1118 = vpop.permute.xlu0 %1117
      %1123 = vrot.lane.b32.xlu0 %v721, 56
      %v1124 = vpop.permute.xlu0 %1123
      %1125 = vrot.lane.b32.xlu0 %v857, 56
      %v1126 = vpop.permute.xlu0 %1125
      %1131 = vrot.lane.b32.xlu0 %v722, 70
      %v1132 = vpop.permute.xlu0 %1131
      %1133 = vrot.lane.b32.xlu0 %v858, 70
      %v1134 = vpop.permute.xlu0 %1133
      %1139 = vrot.lane.b32.xlu0 %v723, 84
      %v1140 = vpop.permute.xlu0 %1139
      %1141 = vrot.lane.b32.xlu0 %v859, 84
      %v1142 = vpop.permute.xlu0 %1141
      %1147 = vrot.lane.b32.xlu0 %v724, 98
      %v1148 = vpop.permute.xlu0 %1147
      %1149 = vrot.lane.b32.xlu0 %v860, 98
      %v1150 = vpop.permute.xlu0 %1149
      %1155 = vrot.lane.b32.xlu0 %v973, 112
      %v1156 = vpop.permute.xlu0 %1155
      %1157 = vrot.lane.b32.xlu0 %v1091, 112
      %v1158 = vpop.permute.xlu0 %1157
      %1163 = vrot.lane.b32.xlu0 %v974, 126
      %v1164 = vpop.permute.xlu0 %1163
      %1165 = vrot.lane.b32.xlu0 %v1092, 126
      %v1166 = vpop.permute.xlu0 %1165
      %1171 = vrot.lane.b32.xlu0 %v975, 12
      %v1172 = vpop.permute.xlu0 %1171
      %1173 = vrot.lane.b32.xlu0 %v1093, 12
      %v1174 = vpop.permute.xlu0 %1173
      %1179 = vrot.lane.b32.xlu0 %v976, 26
      %v1180 = vpop.permute.xlu0 %1179
      %1181 = vrot.lane.b32.xlu0 %v1094, 26
      %v1182 = vpop.permute.xlu0 %1181
      %1187 = vrot.lane.b32.xlu0 %v977, 40
      %v1188 = vpop.permute.xlu0 %1187
      %1189 = vrot.lane.b32.xlu0 %v1095, 40
      %v1190 = vpop.permute.xlu0 %1189
      %1195 = vrot.lane.b32.xlu0 %v978, 54
      %v1196 = vpop.permute.xlu0 %1195
      %1197 = vrot.lane.b32.xlu0 %v1096, 54
      %v1198 = vpop.permute.xlu0 %1197
      %vm1201 = vcmask 113664
      %v1202 = vsel %vm1201, %v717, %v1100
      %v1203 = vsel %vm1201, %v853, %v1102
      %vm1204 = vcmask 228352
      %v1205 = vsel %vm1204, %v1202, %v1108
      %v1206 = vsel %vm1204, %v1203, %v1110
      %vm1207 = vcmask 343040
      %v1208 = vsel %vm1207, %v1205, %v1116
      %v1209 = vsel %vm1207, %v1206, %v1118
      %vm1210 = vcmask 457728
      %v1211 = vsel %vm1210, %v1208, %v1124
      %v1212 = vsel %vm1210, %v1209, %v1126
      %vm1213 = vcmask 572416
      %v1214 = vsel %vm1213, %v1211, %v1132
      %v1215 = vsel %vm1213, %v1212, %v1134
      %vm1216 = vcmask 687104
      %v1217 = vsel %vm1216, %v1214, %v1140
      %v1218 = vsel %vm1216, %v1215, %v1142
      %vm1219 = vcmask 801792
      %v1220 = vsel %vm1219, %v1217, %v1148
      %v1221 = vsel %vm1219, %v1218, %v1150
      %vm1222 = vcmask 916480
      %v1223 = vsel %vm1222, %v1220, %v1156
      %v1224 = vsel %vm1222, %v1221, %v1158
      %vm1225 = vcmask 1031168
      %v1226 = vsel %vm1225, %v1223, %v1164
      %v1227 = vsel %vm1225, %v1224, %v1166
      %vm1228 = vcmask 97280
      %v1229 = vsel %vm1228, %v1164, %v1172
      %v1230 = vsel %vm1228, %v1166, %v1174
      %vm1231 = vcmask 211968
      %v1232 = vsel %vm1231, %v1229, %v1180
      %v1233 = vsel %vm1231, %v1230, %v1182
      %vm1234 = vcmask 326656
      %v1235 = vsel %vm1234, %v1232, %v1188
      %v1236 = vsel %vm1234, %v1233, %v1190
      %vm1237 = vcmask 441344
      %v1238 = vsel %vm1237, %v1235, %v1196
      %v1239 = vsel %vm1237, %v1236, %v1198
      %1272 = vrot.lane.b32.xlu0 %v557, 127
      %v1273 = vpop.permute.xlu0 %1272
      %1274 = vrot.lane.b32.xlu0 %v558, 127
      %v1275 = vpop.permute.xlu0 %1274
      %1276 = vrot.lane.b32.xlu0 %v559, 127
      %v1277 = vpop.permute.xlu0 %1276
      %1278 = vrot.lane.b32.xlu0 %v560, 127
      %v1279 = vpop.permute.xlu0 %1278
      %1280 = vrot.lane.b32.xlu0 %v561, 127
      %v1281 = vpop.permute.xlu0 %1280
      %1282 = vrot.lane.b32.xlu0 %v562, 127
      %v1283 = vpop.permute.xlu0 %1282
      %1284 = vrot.lane.b32.xlu0 %v563, 127
      %v1285 = vpop.permute.xlu0 %1284
      %1286 = vrot.lane.b32.xlu0 %v564, 127
      %v1287 = vpop.permute.xlu0 %1286
      %1288 = vrot.lane.b32.xlu0 %v565, 127
      %v1289 = vpop.permute.xlu0 %1288
      %1290 = vrot.lane.b32.xlu0 %v566, 127
      %v1291 = vpop.permute.xlu0 %1290
      %1292 = vrot.lane.b32.xlu0 %v567, 127
      %v1293 = vpop.permute.xlu0 %1292
      %1294 = vrot.lane.b32.xlu0 %v568, 127
      %v1295 = vpop.permute.xlu0 %1294
      %1296 = vrot.lane.b32.xlu0 %v569, 127
      %v1297 = vpop.permute.xlu0 %1296
      %1298 = vrot.lane.b32.xlu0 %v570, 127
      %v1299 = vpop.permute.xlu0 %1298
      %1300 = vrot.lane.b32.xlu0 %v571, 127
      %v1301 = vpop.permute.xlu0 %1300
      %1302 = vrot.lane.b32.xlu0 %v572, 127
      %v1303 = vpop.permute.xlu0 %1302
      %1304 = vrot.lane.b32.xlu0 %v573, 127
      %v1305 = vpop.permute.xlu0 %1304
      %1306 = vrot.lane.b32.xlu0 %v574, 127
      %v1307 = vpop.permute.xlu0 %1306
      %1308 = vrot.lane.b32.xlu0 %v575, 127
      %v1309 = vpop.permute.xlu0 %1308
      %1310 = vrot.lane.b32.xlu0 %v576, 127
      %v1311 = vpop.permute.xlu0 %1310
      %1312 = vrot.lane.b32.xlu0 %v577, 127
      %v1313 = vpop.permute.xlu0 %1312
      %1314 = vrot.lane.b32.xlu0 %v578, 127
      %v1315 = vpop.permute.xlu0 %1314
      %1316 = vrot.lane.b32.xlu0 %v579, 127
      %v1317 = vpop.permute.xlu0 %1316
      %1318 = vrot.lane.b32.xlu0 %v580, 127
      %v1319 = vpop.permute.xlu0 %1318
      %1320 = vrot.lane.b32.xlu0 %v581, 127
      %v1321 = vpop.permute.xlu0 %1320
      %1322 = vrot.lane.b32.xlu0 %v582, 127
      %v1323 = vpop.permute.xlu0 %1322
      %1324 = vrot.lane.b32.xlu0 %v583, 127
      %v1325 = vpop.permute.xlu0 %1324
      %1326 = vrot.lane.b32.xlu0 %v584, 127
      %v1327 = vpop.permute.xlu0 %1326
      %1328 = vrot.lane.b32.xlu0 %v585, 127
      %v1329 = vpop.permute.xlu0 %1328
      %1330 = vrot.lane.b32.xlu0 %v586, 127
      %v1331 = vpop.permute.xlu0 %1330
      %1332 = vrot.lane.b32.xlu0 %v587, 127
      %v1333 = vpop.permute.xlu0 %1332
      %1334 = vrot.lane.b32.xlu0 %v588, 127
      %v1335 = vpop.permute.xlu0 %1334
      %v1368 = vcombine.low %v1273, %v1281
      %v1369 = vcombine.high %v1273, %v1281
      %v1371 = vunpack.c.l.s4 1983009808
      %v1372 = vunpack.c.0.s8 %v1371
      %v1373 = vlaneseq
      %v1374 = vshrl.u32 %v1373, 7
      %v1375 = vsub.s32 %v1372, %v1374
      %v1376 = vrot.slane %v1368, %v1375
      %v1378 = vunpack.c.l.s4 1983009808
      %v1379 = vunpack.c.0.s8 %v1378
      %v1380 = vlaneseq
      %v1381 = vshrl.u32 %v1380, 7
      %v1382 = vsub.s32 %v1379, %v1381
      %v1383 = vrot.slane %v1369, %v1382
      %v1384 = vcombine.low %v1277, %v1285
      %v1385 = vcombine.high %v1277, %v1285
      %v1387 = vunpack.c.l.s4 1983009808
      %v1388 = vunpack.c.0.s8 %v1387
      %v1389 = vlaneseq
      %v1390 = vshrl.u32 %v1389, 7
      %v1391 = vsub.s32 %v1388, %v1390
      %v1392 = vrot.slane %v1384, %v1391
      %v1394 = vunpack.c.l.s4 1983009808
      %v1395 = vunpack.c.0.s8 %v1394
      %v1396 = vlaneseq
      %v1397 = vshrl.u32 %v1396, 7
      %v1398 = vsub.s32 %v1395, %v1397
      %v1399 = vrot.slane %v1385, %v1398
      %v1400 = vcombine.low %v1289, %v1297
      %v1401 = vcombine.high %v1289, %v1297
      %v1403 = vunpack.c.l.s4 1983009808
      %v1404 = vunpack.c.0.s8 %v1403
      %v1405 = vlaneseq
      %v1406 = vshrl.u32 %v1405, 7
      %v1407 = vsub.s32 %v1404, %v1406
      %v1408 = vrot.slane %v1400, %v1407
      %v1410 = vunpack.c.l.s4 1983009808
      %v1411 = vunpack.c.0.s8 %v1410
      %v1412 = vlaneseq
      %v1413 = vshrl.u32 %v1412, 7
      %v1414 = vsub.s32 %v1411, %v1413
      %v1415 = vrot.slane %v1401, %v1414
      %v1416 = vcombine.low %v1293, %v1301
      %v1417 = vcombine.high %v1293, %v1301
      %v1419 = vunpack.c.l.s4 1983009808
      %v1420 = vunpack.c.0.s8 %v1419
      %v1421 = vlaneseq
      %v1422 = vshrl.u32 %v1421, 7
      %v1423 = vsub.s32 %v1420, %v1422
      %v1424 = vrot.slane %v1416, %v1423
      %v1426 = vunpack.c.l.s4 1983009808
      %v1427 = vunpack.c.0.s8 %v1426
      %v1428 = vlaneseq
      %v1429 = vshrl.u32 %v1428, 7
      %v1430 = vsub.s32 %v1427, %v1429
      %v1431 = vrot.slane %v1417, %v1430
      %v1432 = vcombine.low %v1376, %v1392
      %v1433 = vcombine.high %v1376, %v1392
      %v1435 = vunpack.c.l.s4 1934713408
      %v1436 = vunpack.c.0.s8 %v1435
      %v1437 = vlaneseq
      %v1438 = vshrl.u32 %v1437, 7
      %v1439 = vsub.s32 %v1436, %v1438
      %v1440 = vrot.slane %v1432, %v1439
      %v1442 = vunpack.c.l.s4 1934713408
      %v1443 = vunpack.c.0.s8 %v1442
      %v1444 = vlaneseq
      %v1445 = vshrl.u32 %v1444, 7
      %v1446 = vsub.s32 %v1443, %v1445
      %v1447 = vrot.slane %v1433, %v1446
      %v1448 = vcombine.low %v1383, %v1399
      %v1449 = vcombine.high %v1383, %v1399
      %v1451 = vunpack.c.l.s4 1934713408
      %v1452 = vunpack.c.0.s8 %v1451
      %v1453 = vlaneseq
      %v1454 = vshrl.u32 %v1453, 7
      %v1455 = vsub.s32 %v1452, %v1454
      %v1456 = vrot.slane %v1448, %v1455
      %v1458 = vunpack.c.l.s4 1934713408
      %v1459 = vunpack.c.0.s8 %v1458
      %v1460 = vlaneseq
      %v1461 = vshrl.u32 %v1460, 7
      %v1462 = vsub.s32 %v1459, %v1461
      %v1463 = vrot.slane %v1449, %v1462
      %v1464 = vcombine.low %v1408, %v1424
      %v1465 = vcombine.high %v1408, %v1424
      %v1467 = vunpack.c.l.s4 1934713408
      %v1468 = vunpack.c.0.s8 %v1467
      %v1469 = vlaneseq
      %v1470 = vshrl.u32 %v1469, 7
      %v1471 = vsub.s32 %v1468, %v1470
      %v1472 = vrot.slane %v1464, %v1471
      %v1474 = vunpack.c.l.s4 1934713408
      %v1475 = vunpack.c.0.s8 %v1474
      %v1476 = vlaneseq
      %v1477 = vshrl.u32 %v1476, 7
      %v1478 = vsub.s32 %v1475, %v1477
      %v1479 = vrot.slane %v1465, %v1478
      %v1480 = vcombine.low %v1415, %v1431
      %v1481 = vcombine.high %v1415, %v1431
      %v1483 = vunpack.c.l.s4 1934713408
      %v1484 = vunpack.c.0.s8 %v1483
      %v1485 = vlaneseq
      %v1486 = vshrl.u32 %v1485, 7
      %v1487 = vsub.s32 %v1484, %v1486
      %v1488 = vrot.slane %v1480, %v1487
      %v1490 = vunpack.c.l.s4 1934713408
      %v1491 = vunpack.c.0.s8 %v1490
      %v1492 = vlaneseq
      %v1493 = vshrl.u32 %v1492, 7
      %v1494 = vsub.s32 %v1491, %v1493
      %v1495 = vrot.slane %v1481, %v1494
      %v1496 = vcombine.low %v1440, %v1472
      %v1497 = vcombine.high %v1440, %v1472
      %v1498 = vcombine.low %v1447, %v1479
      %v1499 = vcombine.high %v1447, %v1479
      %v1500 = vcombine.low %v1456, %v1488
      %v1501 = vcombine.high %v1456, %v1488
      %v1502 = vcombine.low %v1463, %v1495
      %v1503 = vcombine.high %v1463, %v1495
      %v1504 = vcombine.low %v1305, %v1313
      %v1505 = vcombine.high %v1305, %v1313
      %v1507 = vunpack.c.l.s4 1983009808
      %v1508 = vunpack.c.0.s8 %v1507
      %v1509 = vlaneseq
      %v1510 = vshrl.u32 %v1509, 7
      %v1511 = vsub.s32 %v1508, %v1510
      %v1512 = vrot.slane %v1504, %v1511
      %v1514 = vunpack.c.l.s4 1983009808
      %v1515 = vunpack.c.0.s8 %v1514
      %v1516 = vlaneseq
      %v1517 = vshrl.u32 %v1516, 7
      %v1518 = vsub.s32 %v1515, %v1517
      %v1519 = vrot.slane %v1505, %v1518
      %v1520 = vcombine.low %v1309, %v1317
      %v1521 = vcombine.high %v1309, %v1317
      %v1523 = vunpack.c.l.s4 1983009808
      %v1524 = vunpack.c.0.s8 %v1523
      %v1525 = vlaneseq
      %v1526 = vshrl.u32 %v1525, 7
      %v1527 = vsub.s32 %v1524, %v1526
      %v1528 = vrot.slane %v1520, %v1527
      %v1530 = vunpack.c.l.s4 1983009808
      %v1531 = vunpack.c.0.s8 %v1530
      %v1532 = vlaneseq
      %v1533 = vshrl.u32 %v1532, 7
      %v1534 = vsub.s32 %v1531, %v1533
      %v1535 = vrot.slane %v1521, %v1534
      %v1536 = vcombine.low %v1321, %v1329
      %v1537 = vcombine.high %v1321, %v1329
      %v1539 = vunpack.c.l.s4 1983009808
      %v1540 = vunpack.c.0.s8 %v1539
      %v1541 = vlaneseq
      %v1542 = vshrl.u32 %v1541, 7
      %v1543 = vsub.s32 %v1540, %v1542
      %v1544 = vrot.slane %v1536, %v1543
      %v1546 = vunpack.c.l.s4 1983009808
      %v1547 = vunpack.c.0.s8 %v1546
      %v1548 = vlaneseq
      %v1549 = vshrl.u32 %v1548, 7
      %v1550 = vsub.s32 %v1547, %v1549
      %v1551 = vrot.slane %v1537, %v1550
      %v1552 = vcombine.low %v1325, %v1333
      %v1553 = vcombine.high %v1325, %v1333
      %v1555 = vunpack.c.l.s4 1983009808
      %v1556 = vunpack.c.0.s8 %v1555
      %v1557 = vlaneseq
      %v1558 = vshrl.u32 %v1557, 7
      %v1559 = vsub.s32 %v1556, %v1558
      %v1560 = vrot.slane %v1552, %v1559
      %v1562 = vunpack.c.l.s4 1983009808
      %v1563 = vunpack.c.0.s8 %v1562
      %v1564 = vlaneseq
      %v1565 = vshrl.u32 %v1564, 7
      %v1566 = vsub.s32 %v1563, %v1565
      %v1567 = vrot.slane %v1553, %v1566
      %v1568 = vcombine.low %v1512, %v1528
      %v1569 = vcombine.high %v1512, %v1528
      %v1571 = vunpack.c.l.s4 1934713408
      %v1572 = vunpack.c.0.s8 %v1571
      %v1573 = vlaneseq
      %v1574 = vshrl.u32 %v1573, 7
      %v1575 = vsub.s32 %v1572, %v1574
      %v1576 = vrot.slane %v1568, %v1575
      %v1578 = vunpack.c.l.s4 1934713408
      %v1579 = vunpack.c.0.s8 %v1578
      %v1580 = vlaneseq
      %v1581 = vshrl.u32 %v1580, 7
      %v1582 = vsub.s32 %v1579, %v1581
      %v1583 = vrot.slane %v1569, %v1582
      %v1584 = vcombine.low %v1519, %v1535
      %v1585 = vcombine.high %v1519, %v1535
      %v1587 = vunpack.c.l.s4 1934713408
      %v1588 = vunpack.c.0.s8 %v1587
      %v1589 = vlaneseq
      %v1590 = vshrl.u32 %v1589, 7
      %v1591 = vsub.s32 %v1588, %v1590
      %v1592 = vrot.slane %v1584, %v1591
      %v1594 = vunpack.c.l.s4 1934713408
      %v1595 = vunpack.c.0.s8 %v1594
      %v1596 = vlaneseq
      %v1597 = vshrl.u32 %v1596, 7
      %v1598 = vsub.s32 %v1595, %v1597
      %v1599 = vrot.slane %v1585, %v1598
      %v1600 = vcombine.low %v1544, %v1560
      %v1601 = vcombine.high %v1544, %v1560
      %v1603 = vunpack.c.l.s4 1934713408
      %v1604 = vunpack.c.0.s8 %v1603
      %v1605 = vlaneseq
      %v1606 = vshrl.u32 %v1605, 7
      %v1607 = vsub.s32 %v1604, %v1606
      %v1608 = vrot.slane %v1600, %v1607
      %v1610 = vunpack.c.l.s4 1934713408
      %v1611 = vunpack.c.0.s8 %v1610
      %v1612 = vlaneseq
      %v1613 = vshrl.u32 %v1612, 7
      %v1614 = vsub.s32 %v1611, %v1613
      %v1615 = vrot.slane %v1601, %v1614
      %v1616 = vcombine.low %v1551, %v1567
      %v1617 = vcombine.high %v1551, %v1567
      %v1619 = vunpack.c.l.s4 1934713408
      %v1620 = vunpack.c.0.s8 %v1619
      %v1621 = vlaneseq
      %v1622 = vshrl.u32 %v1621, 7
      %v1623 = vsub.s32 %v1620, %v1622
      %v1624 = vrot.slane %v1616, %v1623
      %v1626 = vunpack.c.l.s4 1934713408
      %v1627 = vunpack.c.0.s8 %v1626
      %v1628 = vlaneseq
      %v1629 = vshrl.u32 %v1628, 7
      %v1630 = vsub.s32 %v1627, %v1629
      %v1631 = vrot.slane %v1617, %v1630
      %v1632 = vcombine.low %v1576, %v1608
      %v1633 = vcombine.high %v1576, %v1608
      %v1634 = vcombine.low %v1583, %v1615
      %v1635 = vcombine.high %v1583, %v1615
      %v1636 = vcombine.low %v1592, %v1624
      %v1637 = vcombine.high %v1592, %v1624
      %v1638 = vcombine.low %v1599, %v1631
      %v1639 = vcombine.high %v1599, %v1631
      %v1640 = vcombine.low %v1275, %v1283
      %v1641 = vcombine.high %v1275, %v1283
      %v1643 = vunpack.c.l.s4 1983009808
      %v1644 = vunpack.c.0.s8 %v1643
      %v1645 = vlaneseq
      %v1646 = vshrl.u32 %v1645, 7
      %v1647 = vsub.s32 %v1644, %v1646
      %v1648 = vrot.slane %v1640, %v1647
      %v1650 = vunpack.c.l.s4 1983009808
      %v1651 = vunpack.c.0.s8 %v1650
      %v1652 = vlaneseq
      %v1653 = vshrl.u32 %v1652, 7
      %v1654 = vsub.s32 %v1651, %v1653
      %v1655 = vrot.slane %v1641, %v1654
      %v1656 = vcombine.low %v1279, %v1287
      %v1657 = vcombine.high %v1279, %v1287
      %v1659 = vunpack.c.l.s4 1983009808
      %v1660 = vunpack.c.0.s8 %v1659
      %v1661 = vlaneseq
      %v1662 = vshrl.u32 %v1661, 7
      %v1663 = vsub.s32 %v1660, %v1662
      %v1664 = vrot.slane %v1656, %v1663
      %v1666 = vunpack.c.l.s4 1983009808
      %v1667 = vunpack.c.0.s8 %v1666
      %v1668 = vlaneseq
      %v1669 = vshrl.u32 %v1668, 7
      %v1670 = vsub.s32 %v1667, %v1669
      %v1671 = vrot.slane %v1657, %v1670
      %v1672 = vcombine.low %v1291, %v1299
      %v1673 = vcombine.high %v1291, %v1299
      %v1675 = vunpack.c.l.s4 1983009808
      %v1676 = vunpack.c.0.s8 %v1675
      %v1677 = vlaneseq
      %v1678 = vshrl.u32 %v1677, 7
      %v1679 = vsub.s32 %v1676, %v1678
      %v1680 = vrot.slane %v1672, %v1679
      %v1682 = vunpack.c.l.s4 1983009808
      %v1683 = vunpack.c.0.s8 %v1682
      %v1684 = vlaneseq
      %v1685 = vshrl.u32 %v1684, 7
      %v1686 = vsub.s32 %v1683, %v1685
      %v1687 = vrot.slane %v1673, %v1686
      %v1688 = vcombine.low %v1295, %v1303
      %v1689 = vcombine.high %v1295, %v1303
      %v1691 = vunpack.c.l.s4 1983009808
      %v1692 = vunpack.c.0.s8 %v1691
      %v1693 = vlaneseq
      %v1694 = vshrl.u32 %v1693, 7
      %v1695 = vsub.s32 %v1692, %v1694
      %v1696 = vrot.slane %v1688, %v1695
      %v1698 = vunpack.c.l.s4 1983009808
      %v1699 = vunpack.c.0.s8 %v1698
      %v1700 = vlaneseq
      %v1701 = vshrl.u32 %v1700, 7
      %v1702 = vsub.s32 %v1699, %v1701
      %v1703 = vrot.slane %v1689, %v1702
      %v1704 = vcombine.low %v1648, %v1664
      %v1705 = vcombine.high %v1648, %v1664
      %v1707 = vunpack.c.l.s4 1934713408
      %v1708 = vunpack.c.0.s8 %v1707
      %v1709 = vlaneseq
      %v1710 = vshrl.u32 %v1709, 7
      %v1711 = vsub.s32 %v1708, %v1710
      %v1712 = vrot.slane %v1704, %v1711
      %v1714 = vunpack.c.l.s4 1934713408
      %v1715 = vunpack.c.0.s8 %v1714
      %v1716 = vlaneseq
      %v1717 = vshrl.u32 %v1716, 7
      %v1718 = vsub.s32 %v1715, %v1717
      %v1719 = vrot.slane %v1705, %v1718
      %v1720 = vcombine.low %v1655, %v1671
      %v1722 = vunpack.c.l.s4 1934713408
      %v1723 = vunpack.c.0.s8 %v1722
      %v1724 = vlaneseq
      %v1725 = vshrl.u32 %v1724, 7
      %v1726 = vsub.s32 %v1723, %v1725
      %v1727 = vrot.slane %v1720, %v1726
      %v1728 = vcombine.low %v1680, %v1696
      %v1729 = vcombine.high %v1680, %v1696
      %v1731 = vunpack.c.l.s4 1934713408
      %v1732 = vunpack.c.0.s8 %v1731
      %v1733 = vlaneseq
      %v1734 = vshrl.u32 %v1733, 7
      %v1735 = vsub.s32 %v1732, %v1734
      %v1736 = vrot.slane %v1728, %v1735
      %v1738 = vunpack.c.l.s4 1934713408
      %v1739 = vunpack.c.0.s8 %v1738
      %v1740 = vlaneseq
      %v1741 = vshrl.u32 %v1740, 7
      %v1742 = vsub.s32 %v1739, %v1741
      %v1743 = vrot.slane %v1729, %v1742
      %v1744 = vcombine.low %v1687, %v1703
      %v1746 = vunpack.c.l.s4 1934713408
      %v1747 = vunpack.c.0.s8 %v1746
      %v1748 = vlaneseq
      %v1749 = vshrl.u32 %v1748, 7
      %v1750 = vsub.s32 %v1747, %v1749
      %v1751 = vrot.slane %v1744, %v1750
      %v1752 = vcombine.low %v1712, %v1736
      %v1753 = vcombine.high %v1712, %v1736
      %v1754 = vcombine.low %v1719, %v1743
      %v1755 = vcombine.high %v1719, %v1743
      %v1756 = vcombine.low %v1727, %v1751
      %v1757 = vcombine.high %v1727, %v1751
      %v1758 = vcombine.low %v1307, %v1315
      %v1759 = vcombine.high %v1307, %v1315
      %v1761 = vunpack.c.l.s4 1983009808
      %v1762 = vunpack.c.0.s8 %v1761
      %v1763 = vlaneseq
      %v1764 = vshrl.u32 %v1763, 7
      %v1765 = vsub.s32 %v1762, %v1764
      %v1766 = vrot.slane %v1758, %v1765
      %v1768 = vunpack.c.l.s4 1983009808
      %v1769 = vunpack.c.0.s8 %v1768
      %v1770 = vlaneseq
      %v1771 = vshrl.u32 %v1770, 7
      %v1772 = vsub.s32 %v1769, %v1771
      %v1773 = vrot.slane %v1759, %v1772
      %v1774 = vcombine.low %v1311, %v1319
      %v1775 = vcombine.high %v1311, %v1319
      %v1777 = vunpack.c.l.s4 1983009808
      %v1778 = vunpack.c.0.s8 %v1777
      %v1779 = vlaneseq
      %v1780 = vshrl.u32 %v1779, 7
      %v1781 = vsub.s32 %v1778, %v1780
      %v1782 = vrot.slane %v1774, %v1781
      %v1784 = vunpack.c.l.s4 1983009808
      %v1785 = vunpack.c.0.s8 %v1784
      %v1786 = vlaneseq
      %v1787 = vshrl.u32 %v1786, 7
      %v1788 = vsub.s32 %v1785, %v1787
      %v1789 = vrot.slane %v1775, %v1788
      %v1790 = vcombine.low %v1323, %v1331
      %v1791 = vcombine.high %v1323, %v1331
      %v1793 = vunpack.c.l.s4 1983009808
      %v1794 = vunpack.c.0.s8 %v1793
      %v1795 = vlaneseq
      %v1796 = vshrl.u32 %v1795, 7
      %v1797 = vsub.s32 %v1794, %v1796
      %v1798 = vrot.slane %v1790, %v1797
      %v1800 = vunpack.c.l.s4 1983009808
      %v1801 = vunpack.c.0.s8 %v1800
      %v1802 = vlaneseq
      %v1803 = vshrl.u32 %v1802, 7
      %v1804 = vsub.s32 %v1801, %v1803
      %v1805 = vrot.slane %v1791, %v1804
      %v1806 = vcombine.low %v1327, %v1335
      %v1807 = vcombine.high %v1327, %v1335
      %v1809 = vunpack.c.l.s4 1983009808
      %v1810 = vunpack.c.0.s8 %v1809
      %v1811 = vlaneseq
      %v1812 = vshrl.u32 %v1811, 7
      %v1813 = vsub.s32 %v1810, %v1812
      %v1814 = vrot.slane %v1806, %v1813
      %v1816 = vunpack.c.l.s4 1983009808
      %v1817 = vunpack.c.0.s8 %v1816
      %v1818 = vlaneseq
      %v1819 = vshrl.u32 %v1818, 7
      %v1820 = vsub.s32 %v1817, %v1819
      %v1821 = vrot.slane %v1807, %v1820
      %v1822 = vcombine.low %v1766, %v1782
      %v1823 = vcombine.high %v1766, %v1782
      %v1825 = vunpack.c.l.s4 1934713408
      %v1826 = vunpack.c.0.s8 %v1825
      %v1827 = vlaneseq
      %v1828 = vshrl.u32 %v1827, 7
      %v1829 = vsub.s32 %v1826, %v1828
      %v1830 = vrot.slane %v1822, %v1829
      %v1832 = vunpack.c.l.s4 1934713408
      %v1833 = vunpack.c.0.s8 %v1832
      %v1834 = vlaneseq
      %v1835 = vshrl.u32 %v1834, 7
      %v1836 = vsub.s32 %v1833, %v1835
      %v1837 = vrot.slane %v1823, %v1836
      %v1838 = vcombine.low %v1773, %v1789
      %v1840 = vunpack.c.l.s4 1934713408
      %v1841 = vunpack.c.0.s8 %v1840
      %v1842 = vlaneseq
      %v1843 = vshrl.u32 %v1842, 7
      %v1844 = vsub.s32 %v1841, %v1843
      %v1845 = vrot.slane %v1838, %v1844
      %v1846 = vcombine.low %v1798, %v1814
      %v1847 = vcombine.high %v1798, %v1814
      %v1849 = vunpack.c.l.s4 1934713408
      %v1850 = vunpack.c.0.s8 %v1849
      %v1851 = vlaneseq
      %v1852 = vshrl.u32 %v1851, 7
      %v1853 = vsub.s32 %v1850, %v1852
      %v1854 = vrot.slane %v1846, %v1853
      %v1856 = vunpack.c.l.s4 1934713408
      %v1857 = vunpack.c.0.s8 %v1856
      %v1858 = vlaneseq
      %v1859 = vshrl.u32 %v1858, 7
      %v1860 = vsub.s32 %v1857, %v1859
      %v1861 = vrot.slane %v1847, %v1860
      %v1862 = vcombine.low %v1805, %v1821
      %v1864 = vunpack.c.l.s4 1934713408
      %v1865 = vunpack.c.0.s8 %v1864
      %v1866 = vlaneseq
      %v1867 = vshrl.u32 %v1866, 7
      %v1868 = vsub.s32 %v1865, %v1867
      %v1869 = vrot.slane %v1862, %v1868
      %v1870 = vcombine.low %v1830, %v1854
      %v1871 = vcombine.high %v1830, %v1854
      %v1872 = vcombine.low %v1837, %v1861
      %v1873 = vcombine.high %v1837, %v1861
      %v1874 = vcombine.low %v1845, %v1869
      %v1875 = vcombine.high %v1845, %v1869
      %1878 = vrot.lane.b32.xlu0 %v1497, 14
      %v1879 = vpop.permute.xlu0 %1878
      %1880 = vrot.lane.b32.xlu0 %v1633, 14
      %v1881 = vpop.permute.xlu0 %1880
      %1886 = vrot.lane.b32.xlu0 %v1498, 28
      %v1887 = vpop.permute.xlu0 %1886
      %1888 = vrot.lane.b32.xlu0 %v1634, 28
      %v1889 = vpop.permute.xlu0 %1888
      %1894 = vrot.lane.b32.xlu0 %v1499, 42
      %v1895 = vpop.permute.xlu0 %1894
      %1896 = vrot.lane.b32.xlu0 %v1635, 42
      %v1897 = vpop.permute.xlu0 %1896
      %1902 = vrot.lane.b32.xlu0 %v1500, 56
      %v1903 = vpop.permute.xlu0 %1902
      %1904 = vrot.lane.b32.xlu0 %v1636, 56
      %v1905 = vpop.permute.xlu0 %1904
      %1910 = vrot.lane.b32.xlu0 %v1501, 70
      %v1911 = vpop.permute.xlu0 %1910
      %1912 = vrot.lane.b32.xlu0 %v1637, 70
      %v1913 = vpop.permute.xlu0 %1912
      %1918 = vrot.lane.b32.xlu0 %v1502, 84
      %v1919 = vpop.permute.xlu0 %1918
      %1920 = vrot.lane.b32.xlu0 %v1638, 84
      %v1921 = vpop.permute.xlu0 %1920
      %1926 = vrot.lane.b32.xlu0 %v1503, 98
      %v1927 = vpop.permute.xlu0 %1926
      %1928 = vrot.lane.b32.xlu0 %v1639, 98
      %v1929 = vpop.permute.xlu0 %1928
      %1934 = vrot.lane.b32.xlu0 %v1752, 112
      %v1935 = vpop.permute.xlu0 %1934
      %1936 = vrot.lane.b32.xlu0 %v1870, 112
      %v1937 = vpop.permute.xlu0 %1936
      %1942 = vrot.lane.b32.xlu0 %v1753, 126
      %v1943 = vpop.permute.xlu0 %1942
      %1944 = vrot.lane.b32.xlu0 %v1871, 126
      %v1945 = vpop.permute.xlu0 %1944
      %1950 = vrot.lane.b32.xlu0 %v1754, 12
      %v1951 = vpop.permute.xlu0 %1950
      %1952 = vrot.lane.b32.xlu0 %v1872, 12
      %v1953 = vpop.permute.xlu0 %1952
      %1958 = vrot.lane.b32.xlu0 %v1755, 26
      %v1959 = vpop.permute.xlu0 %1958
      %1960 = vrot.lane.b32.xlu0 %v1873, 26
      %v1961 = vpop.permute.xlu0 %1960
      %1966 = vrot.lane.b32.xlu0 %v1756, 40
      %v1967 = vpop.permute.xlu0 %1966
      %1968 = vrot.lane.b32.xlu0 %v1874, 40
      %v1969 = vpop.permute.xlu0 %1968
      %1974 = vrot.lane.b32.xlu0 %v1757, 54
      %v1975 = vpop.permute.xlu0 %1974
      %1976 = vrot.lane.b32.xlu0 %v1875, 54
      %v1977 = vpop.permute.xlu0 %1976
      %v1980 = vsel %vm1201, %v1496, %v1879
      %v1981 = vsel %vm1201, %v1632, %v1881
      %v1982 = vsel %vm1204, %v1980, %v1887
      %v1983 = vsel %vm1204, %v1981, %v1889
      %v1984 = vsel %vm1207, %v1982, %v1895
      %v1985 = vsel %vm1207, %v1983, %v1897
      %v1986 = vsel %vm1210, %v1984, %v1903
      %v1987 = vsel %vm1210, %v1985, %v1905
      %v1988 = vsel %vm1213, %v1986, %v1911
      %v1989 = vsel %vm1213, %v1987, %v1913
      %v1990 = vsel %vm1216, %v1988, %v1919
      %v1991 = vsel %vm1216, %v1989, %v1921
      %v1992 = vsel %vm1219, %v1990, %v1927
      %v1993 = vsel %vm1219, %v1991, %v1929
      %v1994 = vsel %vm1222, %v1992, %v1935
      %v1995 = vsel %vm1222, %v1993, %v1937
      %v1996 = vsel %vm1225, %v1994, %v1943
      %v1997 = vsel %vm1225, %v1995, %v1945
      %v1998 = vsel %vm1228, %v1943, %v1951
      %v1999 = vsel %vm1228, %v1945, %v1953
      %v2000 = vsel %vm1231, %v1998, %v1959
      %v2001 = vsel %vm1231, %v1999, %v1961
      %v2002 = vsel %vm1234, %v2000, %v1967
      %v2003 = vsel %vm1234, %v2001, %v1969
      %v2004 = vsel %vm1237, %v2002, %v1975
      %v2005 = vsel %vm1237, %v2003, %v1977
      %2008 = vrot.lane.b32.xlu0 %v553, 112
      %v2009 = vpop.permute.xlu0 %2008
      %2010 = vrot.lane.b32.xlu0 %v555, 112
      %v2011 = vpop.permute.xlu0 %2010
      %vm2012 = vcmask 130048
      %v2013 = vsel %vm2012, %v2009, 0
      %v2015 = vsel %vm2012, %v2011, 0
      %2017 = vmatprep.subr.mxu0 %v2004
      %2018 = vmatpush1.msra.mxu0 %v1996
      %2019 = vmatprep.subr.mxu0 %v2005
      %2020 = vmatpush1.msra.mxu0 %v1997
      %2021 = vmatprep.subr.mxu0 0.0
      %2022 = vmatpush1.msra.mxu0 0.0
      %2023 = vmatprep.subr.mxu0 0.0
      %2024 = vmatpush1.msra.mxu0 0.0
      %2025 = vmatprep.subr.mxu0 0.0
      %2026 = vmatpush1.msra.mxu0 0.0
      %2027 = vmatprep.subr.mxu0 0.0
      %2028 = vmatpush1.msra.mxu0 0.0
      %2029 = vmatprep.subr.mxu0 0.0
      %2030 = vmatpush1.msra.mxu0 0.0
      %2031 = vmatprep.subr.mxu0 0.0
      %2032 = vmatpush1.msra.mxu0 0.0
      %2033 = vmatprep.subr.mxu0 0.0
      %2034 = vmatpush1.msra.mxu0 0.0
      %2035 = vmatprep.subr.mxu0 0.0
      %2036 = vmatpush1.msra.mxu0 0.0
      %2037 = vmatprep.subr.mxu0 0.0
      %2038 = vmatpush1.msra.mxu0 0.0
      %2039 = vmatprep.subr.mxu0 0.0
      %2040 = vmatpush1.msra.mxu0 0.0
      %2041 = vmatprep.subr.mxu0 0.0
      %2042 = vmatpush1.msra.mxu0 0.0
      %2043 = vmatprep.subr.mxu0 0.0
      %2044 = vmatpush1.msra.mxu0 0.0
      %2045 = vmatprep.subr.mxu0 0.0
      %2046 = vmatpush1.msra.mxu0 0.0
      %2047 = vmatprep.subr.mxu0 0.0
      %2048 = vmatpush1.msra.mxu0 0.0
      %2049 = vmatprep.subr.mxu0 0.0
      %2050 = vmatpush1.msra.mxu0 0.0
      %2051 = vmatprep.subr.mxu0 0.0
      %2052 = vmatpush1.msra.mxu0 0.0
      %2053 = vmatprep.subr.mxu0 0.0
      %2054 = vmatpush1.msra.mxu0 0.0
      %2055 = vmatprep.subr.mxu0 0.0
      %2056 = vmatpush1.msra.mxu0 0.0
      %2057 = vmatprep.subr.mxu0 0.0
      %2058 = vmatpush1.msra.mxu0 0.0
      %2059 = vmatprep.subr.mxu0 0.0
      %2060 = vmatpush1.msra.mxu0 0.0
      %2061 = vmatprep.subr.mxu0 0.0
      %2062 = vmatpush1.msra.mxu0 0.0
      %2063 = vmatprep.subr.mxu0 0.0
      %2064 = vmatpush1.msra.mxu0 0.0
      %2065 = vmatprep.subr.mxu0 0.0
      %2066 = vmatpush1.msra.mxu0 0.0
      %2067 = vmatprep.subr.mxu0 0.0
      %2068 = vmatpush1.msra.mxu0 0.0
      %2069 = vmatprep.subr.mxu0 0.0
      %2070 = vmatpush1.msra.mxu0 0.0
      %2071 = vmatprep.subr.mxu0 0.0
      %2072 = vmatpush1.msra.mxu0 0.0
      %2073 = vmatprep.subr.mxu0 0.0
      %2074 = vmatpush1.msra.mxu0 0.0
      %2075 = vmatprep.subr.mxu0 0.0
      %2076 = vmatpush1.msra.mxu0 0.0
      %2077 = vmatprep.subr.mxu0 0.0
      %2078 = vmatpush1.msra.mxu0 0.0
      %2079 = vmatprep.subr.mxu0 0.0
      %2080 = vmatpush1.msra.mxu0 0.0
      %2081 = vmatprep.mubr.f32.mxu0 0.0
      %2082 = vmatmul.mubr.f32.gmra.mrb[0].mxu0 %v2013
      %v2083 = vpop.f32.mrb[0].mxu0
      %v2084 = vadd.f32 0.0, %v2083
      %v2085 = vpop.f32.mrb[0].mxu0
      %v2086 = vadd.f32 0.0, %v2085
      %2087 = vmatprep.mubr.f32.mxu0 0.0
      %2088 = vmatmul.mubr.f32.gmra.mrb[0].mxu0 %v2015
      %v2089 = vpop.f32.mrb[0].mxu0
      %v2090 = vadd.f32 0.0, %v2089
      %v2091 = vpop.f32.mrb[0].mxu0
      %v2092 = vadd.f32 0.0, %v2091
      %2093 = vdwg.mxu0
      %v2094 = vsel %vm2012, %v553, 0
      %v2096 = vsel %vm2012, %v555, 0
      %2098 = vmatprep.subr.mxu0 %v1238
      %2099 = vmatpush1.msra.mxu0 %v1226
      %2100 = vmatprep.subr.mxu0 %v1239
      %2101 = vmatpush1.msra.mxu0 %v1227
      %2102 = vmatprep.subr.mxu0 0.0
      %2103 = vmatpush1.msra.mxu0 0.0
      %2104 = vmatprep.subr.mxu0 0.0
      %2105 = vmatpush1.msra.mxu0 0.0
      %2106 = vmatprep.subr.mxu0 0.0
      %2107 = vmatpush1.msra.mxu0 0.0
      %2108 = vmatprep.subr.mxu0 0.0
      %2109 = vmatpush1.msra.mxu0 0.0
      %2110 = vmatprep.subr.mxu0 0.0
      %2111 = vmatpush1.msra.mxu0 0.0
      %2112 = vmatprep.subr.mxu0 0.0
      %2113 = vmatpush1.msra.mxu0 0.0
      %2114 = vmatprep.subr.mxu0 0.0
      %2115 = vmatpush1.msra.mxu0 0.0
      %2116 = vmatprep.subr.mxu0 0.0
      %2117 = vmatpush1.msra.mxu0 0.0
      %2118 = vmatprep.subr.mxu0 0.0
      %2119 = vmatpush1.msra.mxu0 0.0
      %2120 = vmatprep.subr.mxu0 0.0
      %2121 = vmatpush1.msra.mxu0 0.0
      %2122 = vmatprep.subr.mxu0 0.0
      %2123 = vmatpush1.msra.mxu0 0.0
      %2124 = vmatprep.subr.mxu0 0.0
      %2125 = vmatpush1.msra.mxu0 0.0
      %2126 = vmatprep.subr.mxu0 0.0
      %2127 = vmatpush1.msra.mxu0 0.0
      %2128 = vmatprep.subr.mxu0 0.0
      %2129 = vmatpush1.msra.mxu0 0.0
      %2130 = vmatprep.subr.mxu0 0.0
      %2131 = vmatpush1.msra.mxu0 0.0
      %2132 = vmatprep.subr.mxu0 0.0
      %2133 = vmatpush1.msra.mxu0 0.0
      %2134 = vmatprep.subr.mxu0 0.0
      %2135 = vmatpush1.msra.mxu0 0.0
      %2136 = vmatprep.subr.mxu0 0.0
      %2137 = vmatpush1.msra.mxu0 0.0
      %2138 = vmatprep.subr.mxu0 0.0
      %2139 = vmatpush1.msra.mxu0 0.0
      %2140 = vmatprep.subr.mxu0 0.0
      %2141 = vmatpush1.msra.mxu0 0.0
      %2142 = vmatprep.subr.mxu0 0.0
      %2143 = vmatpush1.msra.mxu0 0.0
      %2144 = vmatprep.subr.mxu0 0.0
      %2145 = vmatpush1.msra.mxu0 0.0
      %2146 = vmatprep.subr.mxu0 0.0
      %2147 = vmatpush1.msra.mxu0 0.0
      %2148 = vmatprep.subr.mxu0 0.0
      %2149 = vmatpush1.msra.mxu0 0.0
      %2150 = vmatprep.subr.mxu0 0.0
      %2151 = vmatpush1.msra.mxu0 0.0
      %2152 = vmatprep.subr.mxu0 0.0
      %2153 = vmatpush1.msra.mxu0 0.0
      %2154 = vmatprep.subr.mxu0 0.0
      %2155 = vmatpush1.msra.mxu0 0.0
      %2156 = vmatprep.subr.mxu0 0.0
      %2157 = vmatpush1.msra.mxu0 0.0
      %2158 = vmatprep.subr.mxu0 0.0
      %2159 = vmatpush1.msra.mxu0 0.0
      %2160 = vmatprep.subr.mxu0 0.0
      %2161 = vmatpush1.msra.mxu0 0.0
      %2162 = vmatprep.mubr.f32.mxu0 0.0
      %2163 = vmatmul.mubr.f32.gmra.mrb[0].mxu0 %v2094
      %v2164 = vpop.f32.mrb[0].mxu0
      %v2165 = vadd.f32 %v2084, %v2164
      %v2166 = vpop.f32.mrb[0].mxu0
      %v2167 = vadd.f32 %v2086, %v2166
      %2168 = vmatprep.mubr.f32.mxu0 0.0
      %2169 = vmatmul.mubr.f32.gmra.mrb[0].mxu0 %v2096
      %v2170 = vpop.f32.mrb[0].mxu0
      %v2171 = vadd.f32 %v2090, %v2170
      %v2172 = vpop.f32.mrb[0].mxu0
      %v2173 = vadd.f32 %v2092, %v2172
      %2174 = vdwg.mxu0
      %v2175 = vld [vmem:[#allocation2] sm:$0xff]
      %v2176 = vld [vmem:[#allocation2 + $0x8] sm:$0x3f]
      %v2177 = vld [vmem:[#allocation2 + $0x10] sm:$0xff]
      %v2178 = vld [vmem:[#allocation2 + $0x18] sm:$0x3f]
      %v2179 = vld [vmem:[#allocation2 + $0x20] sm:$0xff]
      %v2180 = vld [vmem:[#allocation2 + $0x28] sm:$0x3f]
      %v2181 = vld [vmem:[#allocation2 + $0x30] sm:$0xff]
      %v2182 = vld [vmem:[#allocation2 + $0x38] sm:$0x3f]
      %v2183 = vld [vmem:[#allocation2 + $0x40] sm:$0xff]
      %v2184 = vld [vmem:[#allocation2 + $0x48] sm:$0x3f]
      %v2185 = vld [vmem:[#allocation2 + $0x50] sm:$0xff]
      %v2186 = vld [vmem:[#allocation2 + $0x58] sm:$0x3f]
      %v2187 = vld [vmem:[#allocation2 + $0x60] sm:$0xff]
      %v2188 = vld [vmem:[#allocation2 + $0x68] sm:$0x3f]
      %v2189 = vld [vmem:[#allocation2 + $0x70] sm:$0xff]
      %v2190 = vld [vmem:[#allocation2 + $0x78] sm:$0x3f]
      %v2191 = vld [vmem:[#allocation2 + $0x80] sm:$0xff]
      %v2192 = vld [vmem:[#allocation2 + $0x88] sm:$0x3f]
      %v2193 = vld [vmem:[#allocation2 + $0x90] sm:$0xff]
      %v2194 = vld [vmem:[#allocation2 + $0x98] sm:$0x3f]
      %v2195 = vld [vmem:[#allocation2 + $0xa0] sm:$0xff]
      %v2196 = vld [vmem:[#allocation2 + $0xa8] sm:$0x3f]
      %v2197 = vld [vmem:[#allocation2 + $0xb0] sm:$0xff]
      %v2198 = vld [vmem:[#allocation2 + $0xb8] sm:$0x3f]
      %v2199 = vld [vmem:[#allocation2 + $0xc0] sm:$0xff]
      %v2200 = vld [vmem:[#allocation2 + $0xc8] sm:$0x3f]
      %v2201 = vld [vmem:[#allocation2 + $0xd0] sm:$0xff]
      %v2202 = vld [vmem:[#allocation2 + $0xd8] sm:$0x3f]
      %v2203 = vld [vmem:[#allocation2 + $0xe0] sm:$0xff]
      %v2204 = vld [vmem:[#allocation2 + $0xe8] sm:$0x3f]
      %v2205 = vld [vmem:[#allocation2 + $0xf0] sm:$0xff]
      %v2206 = vld [vmem:[#allocation2 + $0xf8] sm:$0x3f]
      %2239 = vrot.lane.b32.xlu0 %v2175, 126
      %v2240 = vpop.permute.xlu0 %2239
      %2241 = vrot.lane.b32.xlu0 %v2176, 126
      %v2242 = vpop.permute.xlu0 %2241
      %2243 = vrot.lane.b32.xlu0 %v2177, 126
      %v2244 = vpop.permute.xlu0 %2243
      %2245 = vrot.lane.b32.xlu0 %v2178, 126
      %v2246 = vpop.permute.xlu0 %2245
      %2247 = vrot.lane.b32.xlu0 %v2179, 126
      %v2248 = vpop.permute.xlu0 %2247
      %2249 = vrot.lane.b32.xlu0 %v2180, 126
      %v2250 = vpop.permute.xlu0 %2249
      %2251 = vrot.lane.b32.xlu0 %v2181, 126
      %v2252 = vpop.permute.xlu0 %2251
      %2253 = vrot.lane.b32.xlu0 %v2182, 126
      %v2254 = vpop.permute.xlu0 %2253
      %2255 = vrot.lane.b32.xlu0 %v2183, 126
      %v2256 = vpop.permute.xlu0 %2255
      %2257 = vrot.lane.b32.xlu0 %v2184, 126
      %v2258 = vpop.permute.xlu0 %2257
      %2259 = vrot.lane.b32.xlu0 %v2185, 126
      %v2260 = vpop.permute.xlu0 %2259
      %2261 = vrot.lane.b32.xlu0 %v2186, 126
      %v2262 = vpop.permute.xlu0 %2261
      %2263 = vrot.lane.b32.xlu0 %v2187, 126
      %v2264 = vpop.permute.xlu0 %2263
      %2265 = vrot.lane.b32.xlu0 %v2188, 126
      %v2266 = vpop.permute.xlu0 %2265
      %2267 = vrot.lane.b32.xlu0 %v2189, 126
      %v2268 = vpop.permute.xlu0 %2267
      %2269 = vrot.lane.b32.xlu0 %v2190, 126
      %v2270 = vpop.permute.xlu0 %2269
      %2271 = vrot.lane.b32.xlu0 %v2191, 126
      %v2272 = vpop.permute.xlu0 %2271
      %2273 = vrot.lane.b32.xlu0 %v2192, 126
      %v2274 = vpop.permute.xlu0 %2273
      %2275 = vrot.lane.b32.xlu0 %v2193, 126
      %v2276 = vpop.permute.xlu0 %2275
      %2277 = vrot.lane.b32.xlu0 %v2194, 126
      %v2278 = vpop.permute.xlu0 %2277
      %2279 = vrot.lane.b32.xlu0 %v2195, 126
      %v2280 = vpop.permute.xlu0 %2279
      %2281 = vrot.lane.b32.xlu0 %v2196, 126
      %v2282 = vpop.permute.xlu0 %2281
      %2283 = vrot.lane.b32.xlu0 %v2197, 126
      %v2284 = vpop.permute.xlu0 %2283
      %2285 = vrot.lane.b32.xlu0 %v2198, 126
      %v2286 = vpop.permute.xlu0 %2285
      %2287 = vrot.lane.b32.xlu0 %v2199, 126
      %v2288 = vpop.permute.xlu0 %2287
      %2289 = vrot.lane.b32.xlu0 %v2200, 126
      %v2290 = vpop.permute.xlu0 %2289
      %2291 = vrot.lane.b32.xlu0 %v2201, 126
      %v2292 = vpop.permute.xlu0 %2291
      %2293 = vrot.lane.b32.xlu0 %v2202, 126
      %v2294 = vpop.permute.xlu0 %2293
      %2295 = vrot.lane.b32.xlu0 %v2203, 126
      %v2296 = vpop.permute.xlu0 %2295
      %2297 = vrot.lane.b32.xlu0 %v2204, 126
      %v2298 = vpop.permute.xlu0 %2297
      %2299 = vrot.lane.b32.xlu0 %v2205, 126
      %v2300 = vpop.permute.xlu0 %2299
      %2301 = vrot.lane.b32.xlu0 %v2206, 126
      %v2302 = vpop.permute.xlu0 %2301
      %v2335 = vcombine.low %v2240, %v2248
      %v2336 = vcombine.high %v2240, %v2248
      %v2338 = vunpack.c.l.s4 1983009808
      %v2339 = vunpack.c.0.s8 %v2338
      %v2340 = vlaneseq
      %v2341 = vshrl.u32 %v2340, 7
      %v2342 = vsub.s32 %v2339, %v2341
      %v2343 = vrot.slane %v2335, %v2342
      %v2345 = vunpack.c.l.s4 1983009808
      %v2346 = vunpack.c.0.s8 %v2345
      %v2347 = vlaneseq
      %v2348 = vshrl.u32 %v2347, 7
      %v2349 = vsub.s32 %v2346, %v2348
      %v2350 = vrot.slane %v2336, %v2349
      %v2351 = vcombine.low %v2244, %v2252
      %v2352 = vcombine.high %v2244, %v2252
      %v2354 = vunpack.c.l.s4 1983009808
      %v2355 = vunpack.c.0.s8 %v2354
      %v2356 = vlaneseq
      %v2357 = vshrl.u32 %v2356, 7
      %v2358 = vsub.s32 %v2355, %v2357
      %v2359 = vrot.slane %v2351, %v2358
      %v2361 = vunpack.c.l.s4 1983009808
      %v2362 = vunpack.c.0.s8 %v2361
      %v2363 = vlaneseq
      %v2364 = vshrl.u32 %v2363, 7
      %v2365 = vsub.s32 %v2362, %v2364
      %v2366 = vrot.slane %v2352, %v2365
      %v2367 = vcombine.low %v2256, %v2264
      %v2368 = vcombine.high %v2256, %v2264
      %v2370 = vunpack.c.l.s4 1983009808
      %v2371 = vunpack.c.0.s8 %v2370
      %v2372 = vlaneseq
      %v2373 = vshrl.u32 %v2372, 7
      %v2374 = vsub.s32 %v2371, %v2373
      %v2375 = vrot.slane %v2367, %v2374
      %v2377 = vunpack.c.l.s4 1983009808
      %v2378 = vunpack.c.0.s8 %v2377
      %v2379 = vlaneseq
      %v2380 = vshrl.u32 %v2379, 7
      %v2381 = vsub.s32 %v2378, %v2380
      %v2382 = vrot.slane %v2368, %v2381
      %v2383 = vcombine.low %v2260, %v2268
      %v2384 = vcombine.high %v2260, %v2268
      %v2386 = vunpack.c.l.s4 1983009808
      %v2387 = vunpack.c.0.s8 %v2386
      %v2388 = vlaneseq
      %v2389 = vshrl.u32 %v2388, 7
      %v2390 = vsub.s32 %v2387, %v2389
      %v2391 = vrot.slane %v2383, %v2390
      %v2393 = vunpack.c.l.s4 1983009808
      %v2394 = vunpack.c.0.s8 %v2393
      %v2395 = vlaneseq
      %v2396 = vshrl.u32 %v2395, 7
      %v2397 = vsub.s32 %v2394, %v2396
      %v2398 = vrot.slane %v2384, %v2397
      %v2399 = vcombine.low %v2343, %v2359
      %v2400 = vcombine.high %v2343, %v2359
      %v2402 = vunpack.c.l.s4 1934713408
      %v2403 = vunpack.c.0.s8 %v2402
      %v2404 = vlaneseq
      %v2405 = vshrl.u32 %v2404, 7
      %v2406 = vsub.s32 %v2403, %v2405
      %v2407 = vrot.slane %v2399, %v2406
      %v2409 = vunpack.c.l.s4 1934713408
      %v2410 = vunpack.c.0.s8 %v2409
      %v2411 = vlaneseq
      %v2412 = vshrl.u32 %v2411, 7
      %v2413 = vsub.s32 %v2410, %v2412
      %v2414 = vrot.slane %v2400, %v2413
      %v2415 = vcombine.low %v2350, %v2366
      %v2416 = vcombine.high %v2350, %v2366
      %v2418 = vunpack.c.l.s4 1934713408
      %v2419 = vunpack.c.0.s8 %v2418
      %v2420 = vlaneseq
      %v2421 = vshrl.u32 %v2420, 7
      %v2422 = vsub.s32 %v2419, %v2421
      %v2423 = vrot.slane %v2415, %v2422
      %v2425 = vunpack.c.l.s4 1934713408
      %v2426 = vunpack.c.0.s8 %v2425
      %v2427 = vlaneseq
      %v2428 = vshrl.u32 %v2427, 7
      %v2429 = vsub.s32 %v2426, %v2428
      %v2430 = vrot.slane %v2416, %v2429
      %v2431 = vcombine.low %v2375, %v2391
      %v2432 = vcombine.high %v2375, %v2391
      %v2434 = vunpack.c.l.s4 1934713408
      %v2435 = vunpack.c.0.s8 %v2434
      %v2436 = vlaneseq
      %v2437 = vshrl.u32 %v2436, 7
      %v2438 = vsub.s32 %v2435, %v2437
      %v2439 = vrot.slane %v2431, %v2438
      %v2441 = vunpack.c.l.s4 1934713408
      %v2442 = vunpack.c.0.s8 %v2441
      %v2443 = vlaneseq
      %v2444 = vshrl.u32 %v2443, 7
      %v2445 = vsub.s32 %v2442, %v2444
      %v2446 = vrot.slane %v2432, %v2445
      %v2447 = vcombine.low %v2382, %v2398
      %v2448 = vcombine.high %v2382, %v2398
      %v2450 = vunpack.c.l.s4 1934713408
      %v2451 = vunpack.c.0.s8 %v2450
      %v2452 = vlaneseq
      %v2453 = vshrl.u32 %v2452, 7
      %v2454 = vsub.s32 %v2451, %v2453
      %v2455 = vrot.slane %v2447, %v2454
      %v2457 = vunpack.c.l.s4 1934713408
      %v2458 = vunpack.c.0.s8 %v2457
      %v2459 = vlaneseq
      %v2460 = vshrl.u32 %v2459, 7
      %v2461 = vsub.s32 %v2458, %v2460
      %v2462 = vrot.slane %v2448, %v2461
      %v2463 = vcombine.low %v2407, %v2439
      %v2464 = vcombine.high %v2407, %v2439
      %v2465 = vcombine.low %v2414, %v2446
      %v2466 = vcombine.high %v2414, %v2446
      %v2467 = vcombine.low %v2423, %v2455
      %v2468 = vcombine.high %v2423, %v2455
      %v2469 = vcombine.low %v2430, %v2462
      %v2470 = vcombine.high %v2430, %v2462
      %v2471 = vcombine.low %v2272, %v2280
      %v2472 = vcombine.high %v2272, %v2280
      %v2474 = vunpack.c.l.s4 1983009808
      %v2475 = vunpack.c.0.s8 %v2474
      %v2476 = vlaneseq
      %v2477 = vshrl.u32 %v2476, 7
      %v2478 = vsub.s32 %v2475, %v2477
      %v2479 = vrot.slane %v2471, %v2478
      %v2481 = vunpack.c.l.s4 1983009808
      %v2482 = vunpack.c.0.s8 %v2481
      %v2483 = vlaneseq
      %v2484 = vshrl.u32 %v2483, 7
      %v2485 = vsub.s32 %v2482, %v2484
      %v2486 = vrot.slane %v2472, %v2485
      %v2487 = vcombine.low %v2276, %v2284
      %v2488 = vcombine.high %v2276, %v2284
      %v2490 = vunpack.c.l.s4 1983009808
      %v2491 = vunpack.c.0.s8 %v2490
      %v2492 = vlaneseq
      %v2493 = vshrl.u32 %v2492, 7
      %v2494 = vsub.s32 %v2491, %v2493
      %v2495 = vrot.slane %v2487, %v2494
      %v2497 = vunpack.c.l.s4 1983009808
      %v2498 = vunpack.c.0.s8 %v2497
      %v2499 = vlaneseq
      %v2500 = vshrl.u32 %v2499, 7
      %v2501 = vsub.s32 %v2498, %v2500
      %v2502 = vrot.slane %v2488, %v2501
      %v2503 = vcombine.low %v2288, %v2296
      %v2504 = vcombine.high %v2288, %v2296
      %v2506 = vunpack.c.l.s4 1983009808
      %v2507 = vunpack.c.0.s8 %v2506
      %v2508 = vlaneseq
      %v2509 = vshrl.u32 %v2508, 7
      %v2510 = vsub.s32 %v2507, %v2509
      %v2511 = vrot.slane %v2503, %v2510
      %v2513 = vunpack.c.l.s4 1983009808
      %v2514 = vunpack.c.0.s8 %v2513
      %v2515 = vlaneseq
      %v2516 = vshrl.u32 %v2515, 7
      %v2517 = vsub.s32 %v2514, %v2516
      %v2518 = vrot.slane %v2504, %v2517
      %v2519 = vcombine.low %v2292, %v2300
      %v2520 = vcombine.high %v2292, %v2300
      %v2522 = vunpack.c.l.s4 1983009808
      %v2523 = vunpack.c.0.s8 %v2522
      %v2524 = vlaneseq
      %v2525 = vshrl.u32 %v2524, 7
      %v2526 = vsub.s32 %v2523, %v2525
      %v2527 = vrot.slane %v2519, %v2526
      %v2529 = vunpack.c.l.s4 1983009808
      %v2530 = vunpack.c.0.s8 %v2529
      %v2531 = vlaneseq
      %v2532 = vshrl.u32 %v2531, 7
      %v2533 = vsub.s32 %v2530, %v2532
      %v2534 = vrot.slane %v2520, %v2533
      %v2535 = vcombine.low %v2479, %v2495
      %v2536 = vcombine.high %v2479, %v2495
      %v2538 = vunpack.c.l.s4 1934713408
      %v2539 = vunpack.c.0.s8 %v2538
      %v2540 = vlaneseq
      %v2541 = vshrl.u32 %v2540, 7
      %v2542 = vsub.s32 %v2539, %v2541
      %v2543 = vrot.slane %v2535, %v2542
      %v2545 = vunpack.c.l.s4 1934713408
      %v2546 = vunpack.c.0.s8 %v2545
      %v2547 = vlaneseq
      %v2548 = vshrl.u32 %v2547, 7
      %v2549 = vsub.s32 %v2546, %v2548
      %v2550 = vrot.slane %v2536, %v2549
      %v2551 = vcombine.low %v2486, %v2502
      %v2552 = vcombine.high %v2486, %v2502
      %v2554 = vunpack.c.l.s4 1934713408
      %v2555 = vunpack.c.0.s8 %v2554
      %v2556 = vlaneseq
      %v2557 = vshrl.u32 %v2556, 7
      %v2558 = vsub.s32 %v2555, %v2557
      %v2559 = vrot.slane %v2551, %v2558
      %v2561 = vunpack.c.l.s4 1934713408
      %v2562 = vunpack.c.0.s8 %v2561
      %v2563 = vlaneseq
      %v2564 = vshrl.u32 %v2563, 7
      %v2565 = vsub.s32 %v2562, %v2564
      %v2566 = vrot.slane %v2552, %v2565
      %v2567 = vcombine.low %v2511, %v2527
      %v2568 = vcombine.high %v2511, %v2527
      %v2570 = vunpack.c.l.s4 1934713408
      %v2571 = vunpack.c.0.s8 %v2570
      %v2572 = vlaneseq
      %v2573 = vshrl.u32 %v2572, 7
      %v2574 = vsub.s32 %v2571, %v2573
      %v2575 = vrot.slane %v2567, %v2574
      %v2577 = vunpack.c.l.s4 1934713408
      %v2578 = vunpack.c.0.s8 %v2577
      %v2579 = vlaneseq
      %v2580 = vshrl.u32 %v2579, 7
      %v2581 = vsub.s32 %v2578, %v2580
      %v2582 = vrot.slane %v2568, %v2581
      %v2583 = vcombine.low %v2518, %v2534
      %v2584 = vcombine.high %v2518, %v2534
      %v2586 = vunpack.c.l.s4 1934713408
      %v2587 = vunpack.c.0.s8 %v2586
      %v2588 = vlaneseq
      %v2589 = vshrl.u32 %v2588, 7
      %v2590 = vsub.s32 %v2587, %v2589
      %v2591 = vrot.slane %v2583, %v2590
      %v2593 = vunpack.c.l.s4 1934713408
      %v2594 = vunpack.c.0.s8 %v2593
      %v2595 = vlaneseq
      %v2596 = vshrl.u32 %v2595, 7
      %v2597 = vsub.s32 %v2594, %v2596
      %v2598 = vrot.slane %v2584, %v2597
      %v2599 = vcombine.low %v2543, %v2575
      %v2600 = vcombine.high %v2543, %v2575
      %v2601 = vcombine.low %v2550, %v2582
      %v2602 = vcombine.high %v2550, %v2582
      %v2603 = vcombine.low %v2559, %v2591
      %v2604 = vcombine.high %v2559, %v2591
      %v2605 = vcombine.low %v2566, %v2598
      %v2606 = vcombine.high %v2566, %v2598
      %v2607 = vcombine.low %v2242, %v2250
      %v2608 = vcombine.high %v2242, %v2250
      %v2610 = vunpack.c.l.s4 1983009808
      %v2611 = vunpack.c.0.s8 %v2610
      %v2612 = vlaneseq
      %v2613 = vshrl.u32 %v2612, 7
      %v2614 = vsub.s32 %v2611, %v2613
      %v2615 = vrot.slane %v2607, %v2614
      %v2617 = vunpack.c.l.s4 1983009808
      %v2618 = vunpack.c.0.s8 %v2617
      %v2619 = vlaneseq
      %v2620 = vshrl.u32 %v2619, 7
      %v2621 = vsub.s32 %v2618, %v2620
      %v2622 = vrot.slane %v2608, %v2621
      %v2623 = vcombine.low %v2246, %v2254
      %v2624 = vcombine.high %v2246, %v2254
      %v2626 = vunpack.c.l.s4 1983009808
      %v2627 = vunpack.c.0.s8 %v2626
      %v2628 = vlaneseq
      %v2629 = vshrl.u32 %v2628, 7
      %v2630 = vsub.s32 %v2627, %v2629
      %v2631 = vrot.slane %v2623, %v2630
      %v2633 = vunpack.c.l.s4 1983009808
      %v2634 = vunpack.c.0.s8 %v2633
      %v2635 = vlaneseq
      %v2636 = vshrl.u32 %v2635, 7
      %v2637 = vsub.s32 %v2634, %v2636
      %v2638 = vrot.slane %v2624, %v2637
      %v2639 = vcombine.low %v2258, %v2266
      %v2640 = vcombine.high %v2258, %v2266
      %v2642 = vunpack.c.l.s4 1983009808
      %v2643 = vunpack.c.0.s8 %v2642
      %v2644 = vlaneseq
      %v2645 = vshrl.u32 %v2644, 7
      %v2646 = vsub.s32 %v2643, %v2645
      %v2647 = vrot.slane %v2639, %v2646
      %v2649 = vunpack.c.l.s4 1983009808
      %v2650 = vunpack.c.0.s8 %v2649
      %v2651 = vlaneseq
      %v2652 = vshrl.u32 %v2651, 7
      %v2653 = vsub.s32 %v2650, %v2652
      %v2654 = vrot.slane %v2640, %v2653
      %v2655 = vcombine.low %v2262, %v2270
      %v2656 = vcombine.high %v2262, %v2270
      %v2658 = vunpack.c.l.s4 1983009808
      %v2659 = vunpack.c.0.s8 %v2658
      %v2660 = vlaneseq
      %v2661 = vshrl.u32 %v2660, 7
      %v2662 = vsub.s32 %v2659, %v2661
      %v2663 = vrot.slane %v2655, %v2662
      %v2665 = vunpack.c.l.s4 1983009808
      %v2666 = vunpack.c.0.s8 %v2665
      %v2667 = vlaneseq
      %v2668 = vshrl.u32 %v2667, 7
      %v2669 = vsub.s32 %v2666, %v2668
      %v2670 = vrot.slane %v2656, %v2669
      %v2671 = vcombine.low %v2615, %v2631
      %v2672 = vcombine.high %v2615, %v2631
      %v2674 = vunpack.c.l.s4 1934713408
      %v2675 = vunpack.c.0.s8 %v2674
      %v2676 = vlaneseq
      %v2677 = vshrl.u32 %v2676, 7
      %v2678 = vsub.s32 %v2675, %v2677
      %v2679 = vrot.slane %v2671, %v2678
      %v2681 = vunpack.c.l.s4 1934713408
      %v2682 = vunpack.c.0.s8 %v2681
      %v2683 = vlaneseq
      %v2684 = vshrl.u32 %v2683, 7
      %v2685 = vsub.s32 %v2682, %v2684
      %v2686 = vrot.slane %v2672, %v2685
      %v2687 = vcombine.low %v2622, %v2638
      %v2689 = vunpack.c.l.s4 1934713408
      %v2690 = vunpack.c.0.s8 %v2689
      %v2691 = vlaneseq
      %v2692 = vshrl.u32 %v2691, 7
      %v2693 = vsub.s32 %v2690, %v2692
      %v2694 = vrot.slane %v2687, %v2693
      %v2695 = vcombine.low %v2647, %v2663
      %v2696 = vcombine.high %v2647, %v2663
      %v2698 = vunpack.c.l.s4 1934713408
      %v2699 = vunpack.c.0.s8 %v2698
      %v2700 = vlaneseq
      %v2701 = vshrl.u32 %v2700, 7
      %v2702 = vsub.s32 %v2699, %v2701
      %v2703 = vrot.slane %v2695, %v2702
      %v2705 = vunpack.c.l.s4 1934713408
      %v2706 = vunpack.c.0.s8 %v2705
      %v2707 = vlaneseq
      %v2708 = vshrl.u32 %v2707, 7
      %v2709 = vsub.s32 %v2706, %v2708
      %v2710 = vrot.slane %v2696, %v2709
      %v2711 = vcombine.low %v2654, %v2670
      %v2713 = vunpack.c.l.s4 1934713408
      %v2714 = vunpack.c.0.s8 %v2713
      %v2715 = vlaneseq
      %v2716 = vshrl.u32 %v2715, 7
      %v2717 = vsub.s32 %v2714, %v2716
      %v2718 = vrot.slane %v2711, %v2717
      %v2719 = vcombine.low %v2679, %v2703
      %v2720 = vcombine.high %v2679, %v2703
      %v2721 = vcombine.low %v2686, %v2710
      %v2722 = vcombine.high %v2686, %v2710
      %v2723 = vcombine.low %v2694, %v2718
      %v2724 = vcombine.high %v2694, %v2718
      %v2725 = vcombine.low %v2274, %v2282
      %v2726 = vcombine.high %v2274, %v2282
      %v2728 = vunpack.c.l.s4 1983009808
      %v2729 = vunpack.c.0.s8 %v2728
      %v2730 = vlaneseq
      %v2731 = vshrl.u32 %v2730, 7
      %v2732 = vsub.s32 %v2729, %v2731
      %v2733 = vrot.slane %v2725, %v2732
      %v2735 = vunpack.c.l.s4 1983009808
      %v2736 = vunpack.c.0.s8 %v2735
      %v2737 = vlaneseq
      %v2738 = vshrl.u32 %v2737, 7
      %v2739 = vsub.s32 %v2736, %v2738
      %v2740 = vrot.slane %v2726, %v2739
      %v2741 = vcombine.low %v2278, %v2286
      %v2742 = vcombine.high %v2278, %v2286
      %v2744 = vunpack.c.l.s4 1983009808
      %v2745 = vunpack.c.0.s8 %v2744
      %v2746 = vlaneseq
      %v2747 = vshrl.u32 %v2746, 7
      %v2748 = vsub.s32 %v2745, %v2747
      %v2749 = vrot.slane %v2741, %v2748
      %v2751 = vunpack.c.l.s4 1983009808
      %v2752 = vunpack.c.0.s8 %v2751
      %v2753 = vlaneseq
      %v2754 = vshrl.u32 %v2753, 7
      %v2755 = vsub.s32 %v2752, %v2754
      %v2756 = vrot.slane %v2742, %v2755
      %v2757 = vcombine.low %v2290, %v2298
      %v2758 = vcombine.high %v2290, %v2298
      %v2760 = vunpack.c.l.s4 1983009808
      %v2761 = vunpack.c.0.s8 %v2760
      %v2762 = vlaneseq
      %v2763 = vshrl.u32 %v2762, 7
      %v2764 = vsub.s32 %v2761, %v2763
      %v2765 = vrot.slane %v2757, %v2764
      %v2767 = vunpack.c.l.s4 1983009808
      %v2768 = vunpack.c.0.s8 %v2767
      %v2769 = vlaneseq
      %v2770 = vshrl.u32 %v2769, 7
      %v2771 = vsub.s32 %v2768, %v2770
      %v2772 = vrot.slane %v2758, %v2771
      %v2773 = vcombine.low %v2294, %v2302
      %v2774 = vcombine.high %v2294, %v2302
      %v2776 = vunpack.c.l.s4 1983009808
      %v2777 = vunpack.c.0.s8 %v2776
      %v2778 = vlaneseq
      %v2779 = vshrl.u32 %v2778, 7
      %v2780 = vsub.s32 %v2777, %v2779
      %v2781 = vrot.slane %v2773, %v2780
      %v2783 = vunpack.c.l.s4 1983009808
      %v2784 = vunpack.c.0.s8 %v2783
      %v2785 = vlaneseq
      %v2786 = vshrl.u32 %v2785, 7
      %v2787 = vsub.s32 %v2784, %v2786
      %v2788 = vrot.slane %v2774, %v2787
      %v2789 = vcombine.low %v2733, %v2749
      %v2790 = vcombine.high %v2733, %v2749
      %v2792 = vunpack.c.l.s4 1934713408
      %v2793 = vunpack.c.0.s8 %v2792
      %v2794 = vlaneseq
      %v2795 = vshrl.u32 %v2794, 7
      %v2796 = vsub.s32 %v2793, %v2795
      %v2797 = vrot.slane %v2789, %v2796
      %v2799 = vunpack.c.l.s4 1934713408
      %v2800 = vunpack.c.0.s8 %v2799
      %v2801 = vlaneseq
      %v2802 = vshrl.u32 %v2801, 7
      %v2803 = vsub.s32 %v2800, %v2802
      %v2804 = vrot.slane %v2790, %v2803
      %v2805 = vcombine.low %v2740, %v2756
      %v2807 = vunpack.c.l.s4 1934713408
      %v2808 = vunpack.c.0.s8 %v2807
      %v2809 = vlaneseq
      %v2810 = vshrl.u32 %v2809, 7
      %v2811 = vsub.s32 %v2808, %v2810
      %v2812 = vrot.slane %v2805, %v2811
      %v2813 = vcombine.low %v2765, %v2781
      %v2814 = vcombine.high %v2765, %v2781
      %v2816 = vunpack.c.l.s4 1934713408
      %v2817 = vunpack.c.0.s8 %v2816
      %v2818 = vlaneseq
      %v2819 = vshrl.u32 %v2818, 7
      %v2820 = vsub.s32 %v2817, %v2819
      %v2821 = vrot.slane %v2813, %v2820
      %v2823 = vunpack.c.l.s4 1934713408
      %v2824 = vunpack.c.0.s8 %v2823
      %v2825 = vlaneseq
      %v2826 = vshrl.u32 %v2825, 7
      %v2827 = vsub.s32 %v2824, %v2826
      %v2828 = vrot.slane %v2814, %v2827
      %v2829 = vcombine.low %v2772, %v2788
      %v2831 = vunpack.c.l.s4 1934713408
      %v2832 = vunpack.c.0.s8 %v2831
      %v2833 = vlaneseq
      %v2834 = vshrl.u32 %v2833, 7
      %v2835 = vsub.s32 %v2832, %v2834
      %v2836 = vrot.slane %v2829, %v2835
      %v2837 = vcombine.low %v2797, %v2821
      %v2838 = vcombine.high %v2797, %v2821
      %v2839 = vcombine.low %v2804, %v2828
      %v2840 = vcombine.high %v2804, %v2828
      %v2841 = vcombine.low %v2812, %v2836
      %v2842 = vcombine.high %v2812, %v2836
      %2845 = vrot.lane.b32.xlu0 %v2464, 14
      %v2846 = vpop.permute.xlu0 %2845
      %2847 = vrot.lane.b32.xlu0 %v2600, 14
      %v2848 = vpop.permute.xlu0 %2847
      %2853 = vrot.lane.b32.xlu0 %v2465, 28
      %v2854 = vpop.permute.xlu0 %2853
      %2855 = vrot.lane.b32.xlu0 %v2601, 28
      %v2856 = vpop.permute.xlu0 %2855
      %2861 = vrot.lane.b32.xlu0 %v2466, 42
      %v2862 = vpop.permute.xlu0 %2861
      %2863 = vrot.lane.b32.xlu0 %v2602, 42
      %v2864 = vpop.permute.xlu0 %2863
      %2869 = vrot.lane.b32.xlu0 %v2467, 56
      %v2870 = vpop.permute.xlu0 %2869
      %2871 = vrot.lane.b32.xlu0 %v2603, 56
      %v2872 = vpop.permute.xlu0 %2871
      %2877 = vrot.lane.b32.xlu0 %v2468, 70
      %v2878 = vpop.permute.xlu0 %2877
      %2879 = vrot.lane.b32.xlu0 %v2604, 70
      %v2880 = vpop.permute.xlu0 %2879
      %2885 = vrot.lane.b32.xlu0 %v2469, 84
      %v2886 = vpop.permute.xlu0 %2885
      %2887 = vrot.lane.b32.xlu0 %v2605, 84
      %v2888 = vpop.permute.xlu0 %2887
      %2893 = vrot.lane.b32.xlu0 %v2470, 98
      %v2894 = vpop.permute.xlu0 %2893
      %2895 = vrot.lane.b32.xlu0 %v2606, 98
      %v2896 = vpop.permute.xlu0 %2895
      %2901 = vrot.lane.b32.xlu0 %v2719, 112
      %v2902 = vpop.permute.xlu0 %2901
      %2903 = vrot.lane.b32.xlu0 %v2837, 112
      %v2904 = vpop.permute.xlu0 %2903
      %2909 = vrot.lane.b32.xlu0 %v2720, 126
      %v2910 = vpop.permute.xlu0 %2909
      %2911 = vrot.lane.b32.xlu0 %v2838, 126
      %v2912 = vpop.permute.xlu0 %2911
      %2917 = vrot.lane.b32.xlu0 %v2721, 12
      %v2918 = vpop.permute.xlu0 %2917
      %2919 = vrot.lane.b32.xlu0 %v2839, 12
      %v2920 = vpop.permute.xlu0 %2919
      %2925 = vrot.lane.b32.xlu0 %v2722, 26
      %v2926 = vpop.permute.xlu0 %2925
      %2927 = vrot.lane.b32.xlu0 %v2840, 26
      %v2928 = vpop.permute.xlu0 %2927
      %2933 = vrot.lane.b32.xlu0 %v2723, 40
      %v2934 = vpop.permute.xlu0 %2933
      %2935 = vrot.lane.b32.xlu0 %v2841, 40
      %v2936 = vpop.permute.xlu0 %2935
      %2941 = vrot.lane.b32.xlu0 %v2724, 54
      %v2942 = vpop.permute.xlu0 %2941
      %2943 = vrot.lane.b32.xlu0 %v2842, 54
      %v2944 = vpop.permute.xlu0 %2943
      %v2947 = vsel %vm1201, %v2463, %v2846
      %v2948 = vsel %vm1201, %v2599, %v2848
      %v2949 = vsel %vm1204, %v2947, %v2854
      %v2950 = vsel %vm1204, %v2948, %v2856
      %v2951 = vsel %vm1207, %v2949, %v2862
      %v2952 = vsel %vm1207, %v2950, %v2864
      %v2953 = vsel %vm1210, %v2951, %v2870
      %v2954 = vsel %vm1210, %v2952, %v2872
      %v2955 = vsel %vm1213, %v2953, %v2878
      %v2956 = vsel %vm1213, %v2954, %v2880
      %v2957 = vsel %vm1216, %v2955, %v2886
      %v2958 = vsel %vm1216, %v2956, %v2888
      %v2959 = vsel %vm1219, %v2957, %v2894
      %v2960 = vsel %vm1219, %v2958, %v2896
      %v2961 = vsel %vm1222, %v2959, %v2902
      %v2962 = vsel %vm1222, %v2960, %v2904
      %v2963 = vsel %vm1225, %v2961, %v2910
      %v2964 = vsel %vm1225, %v2962, %v2912
      %v2965 = vsel %vm1228, %v2910, %v2918
      %v2966 = vsel %vm1228, %v2912, %v2920
      %v2967 = vsel %vm1231, %v2965, %v2926
      %v2968 = vsel %vm1231, %v2966, %v2928
      %v2969 = vsel %vm1234, %v2967, %v2934
      %v2970 = vsel %vm1234, %v2968, %v2936
      %v2971 = vsel %vm1237, %v2969, %v2942
      %v2972 = vsel %vm1237, %v2970, %v2944
      %2973 = vrot.lane.b32.xlu0 %v553, 96
      %v2974 = vpop.permute.xlu0 %2973
      %2975 = vrot.lane.b32.xlu0 %v555, 96
      %v2976 = vpop.permute.xlu0 %2975
      %v2977 = vsel %vm2012, %v2974, 0
      %v2979 = vsel %vm2012, %v2976, 0
      %2981 = vmatprep.subr.mxu0 %v2971
      %2982 = vmatpush1.msra.mxu0 %v2963
      %2983 = vmatprep.subr.mxu0 %v2972
      %2984 = vmatpush1.msra.mxu0 %v2964
      %2985 = vmatprep.subr.mxu0 0.0
      %2986 = vmatpush1.msra.mxu0 0.0
      %2987 = vmatprep.subr.mxu0 0.0
      %2988 = vmatpush1.msra.mxu0 0.0
      %2989 = vmatprep.subr.mxu0 0.0
      %2990 = vmatpush1.msra.mxu0 0.0
      %2991 = vmatprep.subr.mxu0 0.0
      %2992 = vmatpush1.msra.mxu0 0.0
      %2993 = vmatprep.subr.mxu0 0.0
      %2994 = vmatpush1.msra.mxu0 0.0
      %2995 = vmatprep.subr.mxu0 0.0
      %2996 = vmatpush1.msra.mxu0 0.0
      %2997 = vmatprep.subr.mxu0 0.0
      %2998 = vmatpush1.msra.mxu0 0.0
      %2999 = vmatprep.subr.mxu0 0.0
      %3000 = vmatpush1.msra.mxu0 0.0
      %3001 = vmatprep.subr.mxu0 0.0
      %3002 = vmatpush1.msra.mxu0 0.0
      %3003 = vmatprep.subr.mxu0 0.0
      %3004 = vmatpush1.msra.mxu0 0.0
      %3005 = vmatprep.subr.mxu0 0.0
      %3006 = vmatpush1.msra.mxu0 0.0
      %3007 = vmatprep.subr.mxu0 0.0
      %3008 = vmatpush1.msra.mxu0 0.0
      %3009 = vmatprep.subr.mxu0 0.0
      %3010 = vmatpush1.msra.mxu0 0.0
      %3011 = vmatprep.subr.mxu0 0.0
      %3012 = vmatpush1.msra.mxu0 0.0
      %3013 = vmatprep.subr.mxu0 0.0
      %3014 = vmatpush1.msra.mxu0 0.0
      %3015 = vmatprep.subr.mxu0 0.0
      %3016 = vmatpush1.msra.mxu0 0.0
      %3017 = vmatprep.subr.mxu0 0.0
      %3018 = vmatpush1.msra.mxu0 0.0
      %3019 = vmatprep.subr.mxu0 0.0
      %3020 = vmatpush1.msra.mxu0 0.0
      %3021 = vmatprep.subr.mxu0 0.0
      %3022 = vmatpush1.msra.mxu0 0.0
      %3023 = vmatprep.subr.mxu0 0.0
      %3024 = vmatpush1.msra.mxu0 0.0
      %3025 = vmatprep.subr.mxu0 0.0
      %3026 = vmatpush1.msra.mxu0 0.0
      %3027 = vmatprep.subr.mxu0 0.0
      %3028 = vmatpush1.msra.mxu0 0.0
      %3029 = vmatprep.subr.mxu0 0.0
      %3030 = vmatpush1.msra.mxu0 0.0
      %3031 = vmatprep.subr.mxu0 0.0
      %3032 = vmatpush1.msra.mxu0 0.0
      %3033 = vmatprep.subr.mxu0 0.0
      %3034 = vmatpush1.msra.mxu0 0.0
      %3035 = vmatprep.subr.mxu0 0.0
      %3036 = vmatpush1.msra.mxu0 0.0
      %3037 = vmatprep.subr.mxu0 0.0
      %3038 = vmatpush1.msra.mxu0 0.0
      %3039 = vmatprep.subr.mxu0 0.0
      %3040 = vmatpush1.msra.mxu0 0.0
      %3041 = vmatprep.subr.mxu0 0.0
      %3042 = vmatpush1.msra.mxu0 0.0
      %3043 = vmatprep.subr.mxu0 0.0
      %3044 = vmatpush1.msra.mxu0 0.0
      %3045 = vmatprep.mubr.f32.mxu0 0.0
      %3046 = vmatmul.mubr.f32.gmra.mrb[0].mxu0 %v2977
      %v3047 = vpop.f32.mrb[0].mxu0
      %v3048 = vadd.f32 0.0, %v3047
      %v3049 = vpop.f32.mrb[0].mxu0
      %v3050 = vadd.f32 0.0, %v3049
      %3051 = vmatprep.mubr.f32.mxu0 0.0
      %3052 = vmatmul.mubr.f32.gmra.mrb[0].mxu0 %v2979
      %v3053 = vpop.f32.mrb[0].mxu0
      %v3054 = vadd.f32 0.0, %v3053
      %v3055 = vpop.f32.mrb[0].mxu0
      %v3056 = vadd.f32 0.0, %v3055
      %3057 = vdwg.mxu0
      %v3058 = vadd.f32 %v2165, %v3048
      %v3059 = vadd.f32 %v2167, %v3050
      %v3060 = vadd.f32 %v2171, %v3054
      %v3061 = vadd.f32 %v2173, %v3056
      %v3062 = vld [vmem:[#allocation2 + $0x1] sm:$0xff]
      %v3063 = vld [vmem:[#allocation2 + $0x9] sm:$0x3f]
      %v3064 = vld [vmem:[#allocation2 + $0x11] sm:$0xff]
      %v3065 = vld [vmem:[#allocation2 + $0x19] sm:$0x3f]
      %v3066 = vld [vmem:[#allocation2 + $0x21] sm:$0xff]
      %v3067 = vld [vmem:[#allocation2 + $0x29] sm:$0x3f]
      %v3068 = vld [vmem:[#allocation2 + $0x31] sm:$0xff]
      %v3069 = vld [vmem:[#allocation2 + $0x39] sm:$0x3f]
      %v3070 = vld [vmem:[#allocation2 + $0x41] sm:$0xff]
      %v3071 = vld [vmem:[#allocation2 + $0x49] sm:$0x3f]
      %v3072 = vld [vmem:[#allocation2 + $0x51] sm:$0xff]
      %v3073 = vld [vmem:[#allocation2 + $0x59] sm:$0x3f]
      %v3074 = vld [vmem:[#allocation2 + $0x61] sm:$0xff]
      %v3075 = vld [vmem:[#allocation2 + $0x69] sm:$0x3f]
      %v3076 = vld [vmem:[#allocation2 + $0x71] sm:$0xff]
      %v3077 = vld [vmem:[#allocation2 + $0x79] sm:$0x3f]
      %v3078 = vld [vmem:[#allocation2 + $0x81] sm:$0xff]
      %v3079 = vld [vmem:[#allocation2 + $0x89] sm:$0x3f]
      %v3080 = vld [vmem:[#allocation2 + $0x91] sm:$0xff]
      %v3081 = vld [vmem:[#allocation2 + $0x99] sm:$0x3f]
      %v3082 = vld [vmem:[#allocation2 + $0xa1] sm:$0xff]
      %v3083 = vld [vmem:[#allocation2 + $0xa9] sm:$0x3f]
      %v3084 = vld [vmem:[#allocation2 + $0xb1] sm:$0xff]
      %v3085 = vld [vmem:[#allocation2 + $0xb9] sm:$0x3f]
      %v3086 = vld [vmem:[#allocation2 + $0xc1] sm:$0xff]
      %v3087 = vld [vmem:[#allocation2 + $0xc9] sm:$0x3f]
      %v3088 = vld [vmem:[#allocation2 + $0xd1] sm:$0xff]
      %v3089 = vld [vmem:[#allocation2 + $0xd9] sm:$0x3f]
      %v3090 = vld [vmem:[#allocation2 + $0xe1] sm:$0xff]
      %v3091 = vld [vmem:[#allocation2 + $0xe9] sm:$0x3f]
      %v3092 = vld [vmem:[#allocation2 + $0xf1] sm:$0xff]
      %v3093 = vld [vmem:[#allocation2 + $0xf9] sm:$0x3f]
      %v3094 = vcombine.low %v3062, %v3066
      %v3095 = vcombine.high %v3062, %v3066
      %v3097 = vunpack.c.l.s4 1983009808
      %v3098 = vunpack.c.0.s8 %v3097
      %v3099 = vlaneseq
      %v3100 = vshrl.u32 %v3099, 7
      %v3101 = vsub.s32 %v3098, %v3100
      %v3102 = vrot.slane %v3094, %v3101
      %v3104 = vunpack.c.l.s4 1983009808
      %v3105 = vunpack.c.0.s8 %v3104
      %v3106 = vlaneseq
      %v3107 = vshrl.u32 %v3106, 7
      %v3108 = vsub.s32 %v3105, %v3107
      %v3109 = vrot.slane %v3095, %v3108
      %v3110 = vcombine.low %v3064, %v3068
      %v3111 = vcombine.high %v3064, %v3068
      %v3113 = vunpack.c.l.s4 1983009808
      %v3114 = vunpack.c.0.s8 %v3113
      %v3115 = vlaneseq
      %v3116 = vshrl.u32 %v3115, 7
      %v3117 = vsub.s32 %v3114, %v3116
      %v3118 = vrot.slane %v3110, %v3117
      %v3120 = vunpack.c.l.s4 1983009808
      %v3121 = vunpack.c.0.s8 %v3120
      %v3122 = vlaneseq
      %v3123 = vshrl.u32 %v3122, 7
      %v3124 = vsub.s32 %v3121, %v3123
      %v3125 = vrot.slane %v3111, %v3124
      %v3126 = vcombine.low %v3070, %v3074
      %v3127 = vcombine.high %v3070, %v3074
      %v3129 = vunpack.c.l.s4 1983009808
      %v3130 = vunpack.c.0.s8 %v3129
      %v3131 = vlaneseq
      %v3132 = vshrl.u32 %v3131, 7
      %v3133 = vsub.s32 %v3130, %v3132
      %v3134 = vrot.slane %v3126, %v3133
      %v3136 = vunpack.c.l.s4 1983009808
      %v3137 = vunpack.c.0.s8 %v3136
      %v3138 = vlaneseq
      %v3139 = vshrl.u32 %v3138, 7
      %v3140 = vsub.s32 %v3137, %v3139
      %v3141 = vrot.slane %v3127, %v3140
      %v3142 = vcombine.low %v3072, %v3076
      %v3143 = vcombine.high %v3072, %v3076
      %v3145 = vunpack.c.l.s4 1983009808
      %v3146 = vunpack.c.0.s8 %v3145
      %v3147 = vlaneseq
      %v3148 = vshrl.u32 %v3147, 7
      %v3149 = vsub.s32 %v3146, %v3148
      %v3150 = vrot.slane %v3142, %v3149
      %v3152 = vunpack.c.l.s4 1983009808
      %v3153 = vunpack.c.0.s8 %v3152
      %v3154 = vlaneseq
      %v3155 = vshrl.u32 %v3154, 7
      %v3156 = vsub.s32 %v3153, %v3155
      %v3157 = vrot.slane %v3143, %v3156
      %v3158 = vcombine.low %v3102, %v3118
      %v3159 = vcombine.high %v3102, %v3118
      %v3161 = vunpack.c.l.s4 1934713408
      %v3162 = vunpack.c.0.s8 %v3161
      %v3163 = vlaneseq
      %v3164 = vshrl.u32 %v3163, 7
      %v3165 = vsub.s32 %v3162, %v3164
      %v3166 = vrot.slane %v3158, %v3165
      %v3168 = vunpack.c.l.s4 1934713408
      %v3169 = vunpack.c.0.s8 %v3168
      %v3170 = vlaneseq
      %v3171 = vshrl.u32 %v3170, 7
      %v3172 = vsub.s32 %v3169, %v3171
      %v3173 = vrot.slane %v3159, %v3172
      %v3174 = vcombine.low %v3109, %v3125
      %v3175 = vcombine.high %v3109, %v3125
      %v3177 = vunpack.c.l.s4 1934713408
      %v3178 = vunpack.c.0.s8 %v3177
      %v3179 = vlaneseq
      %v3180 = vshrl.u32 %v3179, 7
      %v3181 = vsub.s32 %v3178, %v3180
      %v3182 = vrot.slane %v3174, %v3181
      %v3184 = vunpack.c.l.s4 1934713408
      %v3185 = vunpack.c.0.s8 %v3184
      %v3186 = vlaneseq
      %v3187 = vshrl.u32 %v3186, 7
      %v3188 = vsub.s32 %v3185, %v3187
      %v3189 = vrot.slane %v3175, %v3188
      %v3190 = vcombine.low %v3134, %v3150
      %v3191 = vcombine.high %v3134, %v3150
      %v3193 = vunpack.c.l.s4 1934713408
      %v3194 = vunpack.c.0.s8 %v3193
      %v3195 = vlaneseq
      %v3196 = vshrl.u32 %v3195, 7
      %v3197 = vsub.s32 %v3194, %v3196
      %v3198 = vrot.slane %v3190, %v3197
      %v3200 = vunpack.c.l.s4 1934713408
      %v3201 = vunpack.c.0.s8 %v3200
      %v3202 = vlaneseq
      %v3203 = vshrl.u32 %v3202, 7
      %v3204 = vsub.s32 %v3201, %v3203
      %v3205 = vrot.slane %v3191, %v3204
      %v3206 = vcombine.low %v3141, %v3157
      %v3207 = vcombine.high %v3141, %v3157
      %v3209 = vunpack.c.l.s4 1934713408
      %v3210 = vunpack.c.0.s8 %v3209
      %v3211 = vlaneseq
      %v3212 = vshrl.u32 %v3211, 7
      %v3213 = vsub.s32 %v3210, %v3212
      %v3214 = vrot.slane %v3206, %v3213
      %v3216 = vunpack.c.l.s4 1934713408
      %v3217 = vunpack.c.0.s8 %v3216
      %v3218 = vlaneseq
      %v3219 = vshrl.u32 %v3218, 7
      %v3220 = vsub.s32 %v3217, %v3219
      %v3221 = vrot.slane %v3207, %v3220
      %v3222 = vcombine.low %v3166, %v3198
      %v3223 = vcombine.high %v3166, %v3198
      %v3224 = vcombine.low %v3173, %v3205
      %v3225 = vcombine.high %v3173, %v3205
      %v3226 = vcombine.low %v3182, %v3214
      %v3227 = vcombine.high %v3182, %v3214
      %v3228 = vcombine.low %v3189, %v3221
      %v3229 = vcombine.high %v3189, %v3221
      %v3230 = vcombine.low %v3078, %v3082
      %v3231 = vcombine.high %v3078, %v3082
      %v3233 = vunpack.c.l.s4 1983009808
      %v3234 = vunpack.c.0.s8 %v3233
      %v3235 = vlaneseq
      %v3236 = vshrl.u32 %v3235, 7
      %v3237 = vsub.s32 %v3234, %v3236
      %v3238 = vrot.slane %v3230, %v3237
      %v3240 = vunpack.c.l.s4 1983009808
      %v3241 = vunpack.c.0.s8 %v3240
      %v3242 = vlaneseq
      %v3243 = vshrl.u32 %v3242, 7
      %v3244 = vsub.s32 %v3241, %v3243
      %v3245 = vrot.slane %v3231, %v3244
      %v3246 = vcombine.low %v3080, %v3084
      %v3247 = vcombine.high %v3080, %v3084
      %v3249 = vunpack.c.l.s4 1983009808
      %v3250 = vunpack.c.0.s8 %v3249
      %v3251 = vlaneseq
      %v3252 = vshrl.u32 %v3251, 7
      %v3253 = vsub.s32 %v3250, %v3252
      %v3254 = vrot.slane %v3246, %v3253
      %v3256 = vunpack.c.l.s4 1983009808
      %v3257 = vunpack.c.0.s8 %v3256
      %v3258 = vlaneseq
      %v3259 = vshrl.u32 %v3258, 7
      %v3260 = vsub.s32 %v3257, %v3259
      %v3261 = vrot.slane %v3247, %v3260
      %v3262 = vcombine.low %v3086, %v3090
      %v3263 = vcombine.high %v3086, %v3090
      %v3265 = vunpack.c.l.s4 1983009808
      %v3266 = vunpack.c.0.s8 %v3265
      %v3267 = vlaneseq
      %v3268 = vshrl.u32 %v3267, 7
      %v3269 = vsub.s32 %v3266, %v3268
      %v3270 = vrot.slane %v3262, %v3269
      %v3272 = vunpack.c.l.s4 1983009808
      %v3273 = vunpack.c.0.s8 %v3272
      %v3274 = vlaneseq
      %v3275 = vshrl.u32 %v3274, 7
      %v3276 = vsub.s32 %v3273, %v3275
      %v3277 = vrot.slane %v3263, %v3276
      %v3278 = vcombine.low %v3088, %v3092
      %v3279 = vcombine.high %v3088, %v3092
      %v3281 = vunpack.c.l.s4 1983009808
      %v3282 = vunpack.c.0.s8 %v3281
      %v3283 = vlaneseq
      %v3284 = vshrl.u32 %v3283, 7
      %v3285 = vsub.s32 %v3282, %v3284
      %v3286 = vrot.slane %v3278, %v3285
      %v3288 = vunpack.c.l.s4 1983009808
      %v3289 = vunpack.c.0.s8 %v3288
      %v3290 = vlaneseq
      %v3291 = vshrl.u32 %v3290, 7
      %v3292 = vsub.s32 %v3289, %v3291
      %v3293 = vrot.slane %v3279, %v3292
      %v3294 = vcombine.low %v3238, %v3254
      %v3295 = vcombine.high %v3238, %v3254
      %v3297 = vunpack.c.l.s4 1934713408
      %v3298 = vunpack.c.0.s8 %v3297
      %v3299 = vlaneseq
      %v3300 = vshrl.u32 %v3299, 7
      %v3301 = vsub.s32 %v3298, %v3300
      %v3302 = vrot.slane %v3294, %v3301
      %v3304 = vunpack.c.l.s4 1934713408
      %v3305 = vunpack.c.0.s8 %v3304
      %v3306 = vlaneseq
      %v3307 = vshrl.u32 %v3306, 7
      %v3308 = vsub.s32 %v3305, %v3307
      %v3309 = vrot.slane %v3295, %v3308
      %v3310 = vcombine.low %v3245, %v3261
      %v3311 = vcombine.high %v3245, %v3261
      %v3313 = vunpack.c.l.s4 1934713408
      %v3314 = vunpack.c.0.s8 %v3313
      %v3315 = vlaneseq
      %v3316 = vshrl.u32 %v3315, 7
      %v3317 = vsub.s32 %v3314, %v3316
      %v3318 = vrot.slane %v3310, %v3317
      %v3320 = vunpack.c.l.s4 1934713408
      %v3321 = vunpack.c.0.s8 %v3320
      %v3322 = vlaneseq
      %v3323 = vshrl.u32 %v3322, 7
      %v3324 = vsub.s32 %v3321, %v3323
      %v3325 = vrot.slane %v3311, %v3324
      %v3326 = vcombine.low %v3270, %v3286
      %v3327 = vcombine.high %v3270, %v3286
      %v3329 = vunpack.c.l.s4 1934713408
      %v3330 = vunpack.c.0.s8 %v3329
      %v3331 = vlaneseq
      %v3332 = vshrl.u32 %v3331, 7
      %v3333 = vsub.s32 %v3330, %v3332
      %v3334 = vrot.slane %v3326, %v3333
      %v3336 = vunpack.c.l.s4 1934713408
      %v3337 = vunpack.c.0.s8 %v3336
      %v3338 = vlaneseq
      %v3339 = vshrl.u32 %v3338, 7
      %v3340 = vsub.s32 %v3337, %v3339
      %v3341 = vrot.slane %v3327, %v3340
      %v3342 = vcombine.low %v3277, %v3293
      %v3343 = vcombine.high %v3277, %v3293
      %v3345 = vunpack.c.l.s4 1934713408
      %v3346 = vunpack.c.0.s8 %v3345
      %v3347 = vlaneseq
      %v3348 = vshrl.u32 %v3347, 7
      %v3349 = vsub.s32 %v3346, %v3348
      %v3350 = vrot.slane %v3342, %v3349
      %v3352 = vunpack.c.l.s4 1934713408
      %v3353 = vunpack.c.0.s8 %v3352
      %v3354 = vlaneseq
      %v3355 = vshrl.u32 %v3354, 7
      %v3356 = vsub.s32 %v3353, %v3355
      %v3357 = vrot.slane %v3343, %v3356
      %v3358 = vcombine.low %v3302, %v3334
      %v3359 = vcombine.high %v3302, %v3334
      %v3360 = vcombine.low %v3309, %v3341
      %v3361 = vcombine.high %v3309, %v3341
      %v3362 = vcombine.low %v3318, %v3350
      %v3363 = vcombine.high %v3318, %v3350
      %v3364 = vcombine.low %v3325, %v3357
      %v3365 = vcombine.high %v3325, %v3357
      %v3366 = vcombine.low %v3063, %v3067
      %v3367 = vcombine.high %v3063, %v3067
      %v3369 = vunpack.c.l.s4 1983009808
      %v3370 = vunpack.c.0.s8 %v3369
      %v3371 = vlaneseq
      %v3372 = vshrl.u32 %v3371, 7
      %v3373 = vsub.s32 %v3370, %v3372
      %v3374 = vrot.slane %v3366, %v3373
      %v3376 = vunpack.c.l.s4 1983009808
      %v3377 = vunpack.c.0.s8 %v3376
      %v3378 = vlaneseq
      %v3379 = vshrl.u32 %v3378, 7
      %v3380 = vsub.s32 %v3377, %v3379
      %v3381 = vrot.slane %v3367, %v3380
      %v3382 = vcombine.low %v3065, %v3069
      %v3383 = vcombine.high %v3065, %v3069
      %v3385 = vunpack.c.l.s4 1983009808
      %v3386 = vunpack.c.0.s8 %v3385
      %v3387 = vlaneseq
      %v3388 = vshrl.u32 %v3387, 7
      %v3389 = vsub.s32 %v3386, %v3388
      %v3390 = vrot.slane %v3382, %v3389
      %v3392 = vunpack.c.l.s4 1983009808
      %v3393 = vunpack.c.0.s8 %v3392
      %v3394 = vlaneseq
      %v3395 = vshrl.u32 %v3394, 7
      %v3396 = vsub.s32 %v3393, %v3395
      %v3397 = vrot.slane %v3383, %v3396
      %v3398 = vcombine.low %v3071, %v3075
      %v3399 = vcombine.high %v3071, %v3075
      %v3401 = vunpack.c.l.s4 1983009808
      %v3402 = vunpack.c.0.s8 %v3401
      %v3403 = vlaneseq
      %v3404 = vshrl.u32 %v3403, 7
      %v3405 = vsub.s32 %v3402, %v3404
      %v3406 = vrot.slane %v3398, %v3405
      %v3408 = vunpack.c.l.s4 1983009808
      %v3409 = vunpack.c.0.s8 %v3408
      %v3410 = vlaneseq
      %v3411 = vshrl.u32 %v3410, 7
      %v3412 = vsub.s32 %v3409, %v3411
      %v3413 = vrot.slane %v3399, %v3412
      %v3414 = vcombine.low %v3073, %v3077
      %v3415 = vcombine.high %v3073, %v3077
      %v3417 = vunpack.c.l.s4 1983009808
      %v3418 = vunpack.c.0.s8 %v3417
      %v3419 = vlaneseq
      %v3420 = vshrl.u32 %v3419, 7
      %v3421 = vsub.s32 %v3418, %v3420
      %v3422 = vrot.slane %v3414, %v3421
      %v3424 = vunpack.c.l.s4 1983009808
      %v3425 = vunpack.c.0.s8 %v3424
      %v3426 = vlaneseq
      %v3427 = vshrl.u32 %v3426, 7
      %v3428 = vsub.s32 %v3425, %v3427
      %v3429 = vrot.slane %v3415, %v3428
      %v3430 = vcombine.low %v3374, %v3390
      %v3431 = vcombine.high %v3374, %v3390
      %v3433 = vunpack.c.l.s4 1934713408
      %v3434 = vunpack.c.0.s8 %v3433
      %v3435 = vlaneseq
      %v3436 = vshrl.u32 %v3435, 7
      %v3437 = vsub.s32 %v3434, %v3436
      %v3438 = vrot.slane %v3430, %v3437
      %v3440 = vunpack.c.l.s4 1934713408
      %v3441 = vunpack.c.0.s8 %v3440
      %v3442 = vlaneseq
      %v3443 = vshrl.u32 %v3442, 7
      %v3444 = vsub.s32 %v3441, %v3443
      %v3445 = vrot.slane %v3431, %v3444
      %v3446 = vcombine.low %v3381, %v3397
      %v3448 = vunpack.c.l.s4 1934713408
      %v3449 = vunpack.c.0.s8 %v3448
      %v3450 = vlaneseq
      %v3451 = vshrl.u32 %v3450, 7
      %v3452 = vsub.s32 %v3449, %v3451
      %v3453 = vrot.slane %v3446, %v3452
      %v3454 = vcombine.low %v3406, %v3422
      %v3455 = vcombine.high %v3406, %v3422
      %v3457 = vunpack.c.l.s4 1934713408
      %v3458 = vunpack.c.0.s8 %v3457
      %v3459 = vlaneseq
      %v3460 = vshrl.u32 %v3459, 7
      %v3461 = vsub.s32 %v3458, %v3460
      %v3462 = vrot.slane %v3454, %v3461
      %v3464 = vunpack.c.l.s4 1934713408
      %v3465 = vunpack.c.0.s8 %v3464
      %v3466 = vlaneseq
      %v3467 = vshrl.u32 %v3466, 7
      %v3468 = vsub.s32 %v3465, %v3467
      %v3469 = vrot.slane %v3455, %v3468
      %v3470 = vcombine.low %v3413, %v3429
      %v3472 = vunpack.c.l.s4 1934713408
      %v3473 = vunpack.c.0.s8 %v3472
      %v3474 = vlaneseq
      %v3475 = vshrl.u32 %v3474, 7
      %v3476 = vsub.s32 %v3473, %v3475
      %v3477 = vrot.slane %v3470, %v3476
      %v3478 = vcombine.low %v3438, %v3462
      %v3479 = vcombine.high %v3438, %v3462
      %v3480 = vcombine.low %v3445, %v3469
      %v3481 = vcombine.high %v3445, %v3469
      %v3482 = vcombine.low %v3453, %v3477
      %v3483 = vcombine.high %v3453, %v3477
      %v3484 = vcombine.low %v3079, %v3083
      %v3485 = vcombine.high %v3079, %v3083
      %v3487 = vunpack.c.l.s4 1983009808
      %v3488 = vunpack.c.0.s8 %v3487
      %v3489 = vlaneseq
      %v3490 = vshrl.u32 %v3489, 7
      %v3491 = vsub.s32 %v3488, %v3490
      %v3492 = vrot.slane %v3484, %v3491
      %v3494 = vunpack.c.l.s4 1983009808
      %v3495 = vunpack.c.0.s8 %v3494
      %v3496 = vlaneseq
      %v3497 = vshrl.u32 %v3496, 7
      %v3498 = vsub.s32 %v3495, %v3497
      %v3499 = vrot.slane %v3485, %v3498
      %v3500 = vcombine.low %v3081, %v3085
      %v3501 = vcombine.high %v3081, %v3085
      %v3503 = vunpack.c.l.s4 1983009808
      %v3504 = vunpack.c.0.s8 %v3503
      %v3505 = vlaneseq
      %v3506 = vshrl.u32 %v3505, 7
      %v3507 = vsub.s32 %v3504, %v3506
      %v3508 = vrot.slane %v3500, %v3507
      %v3510 = vunpack.c.l.s4 1983009808
      %v3511 = vunpack.c.0.s8 %v3510
      %v3512 = vlaneseq
      %v3513 = vshrl.u32 %v3512, 7
      %v3514 = vsub.s32 %v3511, %v3513
      %v3515 = vrot.slane %v3501, %v3514
      %v3516 = vcombine.low %v3087, %v3091
      %v3517 = vcombine.high %v3087, %v3091
      %v3519 = vunpack.c.l.s4 1983009808
      %v3520 = vunpack.c.0.s8 %v3519
      %v3521 = vlaneseq
      %v3522 = vshrl.u32 %v3521, 7
      %v3523 = vsub.s32 %v3520, %v3522
      %v3524 = vrot.slane %v3516, %v3523
      %v3526 = vunpack.c.l.s4 1983009808
      %v3527 = vunpack.c.0.s8 %v3526
      %v3528 = vlaneseq
      %v3529 = vshrl.u32 %v3528, 7
      %v3530 = vsub.s32 %v3527, %v3529
      %v3531 = vrot.slane %v3517, %v3530
      %v3532 = vcombine.low %v3089, %v3093
      %v3533 = vcombine.high %v3089, %v3093
      %v3535 = vunpack.c.l.s4 1983009808
      %v3536 = vunpack.c.0.s8 %v3535
      %v3537 = vlaneseq
      %v3538 = vshrl.u32 %v3537, 7
      %v3539 = vsub.s32 %v3536, %v3538
      %v3540 = vrot.slane %v3532, %v3539
      %v3542 = vunpack.c.l.s4 1983009808
      %v3543 = vunpack.c.0.s8 %v3542
      %v3544 = vlaneseq
      %v3545 = vshrl.u32 %v3544, 7
      %v3546 = vsub.s32 %v3543, %v3545
      %v3547 = vrot.slane %v3533, %v3546
      %v3548 = vcombine.low %v3492, %v3508
      %v3549 = vcombine.high %v3492, %v3508
      %v3551 = vunpack.c.l.s4 1934713408
      %v3552 = vunpack.c.0.s8 %v3551
      %v3553 = vlaneseq
      %v3554 = vshrl.u32 %v3553, 7
      %v3555 = vsub.s32 %v3552, %v3554
      %v3556 = vrot.slane %v3548, %v3555
      %v3558 = vunpack.c.l.s4 1934713408
      %v3559 = vunpack.c.0.s8 %v3558
      %v3560 = vlaneseq
      %v3561 = vshrl.u32 %v3560, 7
      %v3562 = vsub.s32 %v3559, %v3561
      %v3563 = vrot.slane %v3549, %v3562
      %v3564 = vcombine.low %v3499, %v3515
      %v3566 = vunpack.c.l.s4 1934713408
      %v3567 = vunpack.c.0.s8 %v3566
      %v3568 = vlaneseq
      %v3569 = vshrl.u32 %v3568, 7
      %v3570 = vsub.s32 %v3567, %v3569
      %v3571 = vrot.slane %v3564, %v3570
      %v3572 = vcombine.low %v3524, %v3540
      %v3573 = vcombine.high %v3524, %v3540
      %v3575 = vunpack.c.l.s4 1934713408
      %v3576 = vunpack.c.0.s8 %v3575
      %v3577 = vlaneseq
      %v3578 = vshrl.u32 %v3577, 7
      %v3579 = vsub.s32 %v3576, %v3578
      %v3580 = vrot.slane %v3572, %v3579
      %v3582 = vunpack.c.l.s4 1934713408
      %v3583 = vunpack.c.0.s8 %v3582
      %v3584 = vlaneseq
      %v3585 = vshrl.u32 %v3584, 7
      %v3586 = vsub.s32 %v3583, %v3585
      %v3587 = vrot.slane %v3573, %v3586
      %v3588 = vcombine.low %v3531, %v3547
      %v3590 = vunpack.c.l.s4 1934713408
      %v3591 = vunpack.c.0.s8 %v3590
      %v3592 = vlaneseq
      %v3593 = vshrl.u32 %v3592, 7
      %v3594 = vsub.s32 %v3591, %v3593
      %v3595 = vrot.slane %v3588, %v3594
      %v3596 = vcombine.low %v3556, %v3580
      %v3597 = vcombine.high %v3556, %v3580
      %v3598 = vcombine.low %v3563, %v3587
      %v3599 = vcombine.high %v3563, %v3587
      %v3600 = vcombine.low %v3571, %v3595
      %v3601 = vcombine.high %v3571, %v3595
      %3604 = vrot.lane.b32.xlu0 %v3223, 14
      %v3605 = vpop.permute.xlu0 %3604
      %3606 = vrot.lane.b32.xlu0 %v3359, 14
      %v3607 = vpop.permute.xlu0 %3606
      %3612 = vrot.lane.b32.xlu0 %v3224, 28
      %v3613 = vpop.permute.xlu0 %3612
      %3614 = vrot.lane.b32.xlu0 %v3360, 28
      %v3615 = vpop.permute.xlu0 %3614
      %3620 = vrot.lane.b32.xlu0 %v3225, 42
      %v3621 = vpop.permute.xlu0 %3620
      %3622 = vrot.lane.b32.xlu0 %v3361, 42
      %v3623 = vpop.permute.xlu0 %3622
      %3628 = vrot.lane.b32.xlu0 %v3226, 56
      %v3629 = vpop.permute.xlu0 %3628
      %3630 = vrot.lane.b32.xlu0 %v3362, 56
      %v3631 = vpop.permute.xlu0 %3630
      %3636 = vrot.lane.b32.xlu0 %v3227, 70
      %v3637 = vpop.permute.xlu0 %3636
      %3638 = vrot.lane.b32.xlu0 %v3363, 70
      %v3639 = vpop.permute.xlu0 %3638
      %3644 = vrot.lane.b32.xlu0 %v3228, 84
      %v3645 = vpop.permute.xlu0 %3644
      %3646 = vrot.lane.b32.xlu0 %v3364, 84
      %v3647 = vpop.permute.xlu0 %3646
      %3652 = vrot.lane.b32.xlu0 %v3229, 98
      %v3653 = vpop.permute.xlu0 %3652
      %3654 = vrot.lane.b32.xlu0 %v3365, 98
      %v3655 = vpop.permute.xlu0 %3654
      %3660 = vrot.lane.b32.xlu0 %v3478, 112
      %v3661 = vpop.permute.xlu0 %3660
      %3662 = vrot.lane.b32.xlu0 %v3596, 112
      %v3663 = vpop.permute.xlu0 %3662
      %3668 = vrot.lane.b32.xlu0 %v3479, 126
      %v3669 = vpop.permute.xlu0 %3668
      %3670 = vrot.lane.b32.xlu0 %v3597, 126
      %v3671 = vpop.permute.xlu0 %3670
      %3676 = vrot.lane.b32.xlu0 %v3480, 12
      %v3677 = vpop.permute.xlu0 %3676
      %3678 = vrot.lane.b32.xlu0 %v3598, 12
      %v3679 = vpop.permute.xlu0 %3678
      %3684 = vrot.lane.b32.xlu0 %v3481, 26
      %v3685 = vpop.permute.xlu0 %3684
      %3686 = vrot.lane.b32.xlu0 %v3599, 26
      %v3687 = vpop.permute.xlu0 %3686
      %3692 = vrot.lane.b32.xlu0 %v3482, 40
      %v3693 = vpop.permute.xlu0 %3692
      %3694 = vrot.lane.b32.xlu0 %v3600, 40
      %v3695 = vpop.permute.xlu0 %3694
      %3700 = vrot.lane.b32.xlu0 %v3483, 54
      %v3701 = vpop.permute.xlu0 %3700
      %3702 = vrot.lane.b32.xlu0 %v3601, 54
      %v3703 = vpop.permute.xlu0 %3702
      %v3706 = vsel %vm1201, %v3222, %v3605
      %v3707 = vsel %vm1201, %v3358, %v3607
      %v3708 = vsel %vm1204, %v3706, %v3613
      %v3709 = vsel %vm1204, %v3707, %v3615
      %v3710 = vsel %vm1207, %v3708, %v3621
      %v3711 = vsel %vm1207, %v3709, %v3623
      %v3712 = vsel %vm1210, %v3710, %v3629
      %v3713 = vsel %vm1210, %v3711, %v3631
      %v3714 = vsel %vm1213, %v3712, %v3637
      %v3715 = vsel %vm1213, %v3713, %v3639
      %v3716 = vsel %vm1216, %v3714, %v3645
      %v3717 = vsel %vm1216, %v3715, %v3647
      %v3718 = vsel %vm1219, %v3716, %v3653
      %v3719 = vsel %vm1219, %v3717, %v3655
      %v3720 = vsel %vm1222, %v3718, %v3661
      %v3721 = vsel %vm1222, %v3719, %v3663
      %v3722 = vsel %vm1225, %v3720, %v3669
      %v3723 = vsel %vm1225, %v3721, %v3671
      %v3724 = vsel %vm1228, %v3669, %v3677
      %v3725 = vsel %vm1228, %v3671, %v3679
      %v3726 = vsel %vm1231, %v3724, %v3685
      %v3727 = vsel %vm1231, %v3725, %v3687
      %v3728 = vsel %vm1234, %v3726, %v3693
      %v3729 = vsel %vm1234, %v3727, %v3695
      %v3730 = vsel %vm1237, %v3728, %v3701
      %v3731 = vsel %vm1237, %v3729, %v3703
      %3732 = vrot.lane.b32.xlu0 %v553, 80
      %v3733 = vpop.permute.xlu0 %3732
      %3734 = vrot.lane.b32.xlu0 %v555, 80
      %v3735 = vpop.permute.xlu0 %3734
      %v3736 = vsel %vm2012, %v3733, 0
      %v3738 = vsel %vm2012, %v3735, 0
      %3740 = vmatprep.subr.mxu0 %v3730
      %3741 = vmatpush1.msra.mxu0 %v3722
      %3742 = vmatprep.subr.mxu0 %v3731
      %3743 = vmatpush1.msra.mxu0 %v3723
      %3744 = vmatprep.subr.mxu0 0.0
      %3745 = vmatpush1.msra.mxu0 0.0
      %3746 = vmatprep.subr.mxu0 0.0
      %3747 = vmatpush1.msra.mxu0 0.0
      %3748 = vmatprep.subr.mxu0 0.0
      %3749 = vmatpush1.msra.mxu0 0.0
      %3750 = vmatprep.subr.mxu0 0.0
      %3751 = vmatpush1.msra.mxu0 0.0
      %3752 = vmatprep.subr.mxu0 0.0
      %3753 = vmatpush1.msra.mxu0 0.0
      %3754 = vmatprep.subr.mxu0 0.0
      %3755 = vmatpush1.msra.mxu0 0.0
      %3756 = vmatprep.subr.mxu0 0.0
      %3757 = vmatpush1.msra.mxu0 0.0
      %3758 = vmatprep.subr.mxu0 0.0
      %3759 = vmatpush1.msra.mxu0 0.0
      %3760 = vmatprep.subr.mxu0 0.0
      %3761 = vmatpush1.msra.mxu0 0.0
      %3762 = vmatprep.subr.mxu0 0.0
      %3763 = vmatpush1.msra.mxu0 0.0
      %3764 = vmatprep.subr.mxu0 0.0
      %3765 = vmatpush1.msra.mxu0 0.0
      %3766 = vmatprep.subr.mxu0 0.0
      %3767 = vmatpush1.msra.mxu0 0.0
      %3768 = vmatprep.subr.mxu0 0.0
      %3769 = vmatpush1.msra.mxu0 0.0
      %3770 = vmatprep.subr.mxu0 0.0
      %3771 = vmatpush1.msra.mxu0 0.0
      %3772 = vmatprep.subr.mxu0 0.0
      %3773 = vmatpush1.msra.mxu0 0.0
      %3774 = vmatprep.subr.mxu0 0.0
      %3775 = vmatpush1.msra.mxu0 0.0
      %3776 = vmatprep.subr.mxu0 0.0
      %3777 = vmatpush1.msra.mxu0 0.0
      %3778 = vmatprep.subr.mxu0 0.0
      %3779 = vmatpush1.msra.mxu0 0.0
      %3780 = vmatprep.subr.mxu0 0.0
      %3781 = vmatpush1.msra.mxu0 0.0
      %3782 = vmatprep.subr.mxu0 0.0
      %3783 = vmatpush1.msra.mxu0 0.0
      %3784 = vmatprep.subr.mxu0 0.0
      %3785 = vmatpush1.msra.mxu0 0.0
      %3786 = vmatprep.subr.mxu0 0.0
      %3787 = vmatpush1.msra.mxu0 0.0
      %3788 = vmatprep.subr.mxu0 0.0
      %3789 = vmatpush1.msra.mxu0 0.0
      %3790 = vmatprep.subr.mxu0 0.0
      %3791 = vmatpush1.msra.mxu0 0.0
      %3792 = vmatprep.subr.mxu0 0.0
      %3793 = vmatpush1.msra.mxu0 0.0
      %3794 = vmatprep.subr.mxu0 0.0
      %3795 = vmatpush1.msra.mxu0 0.0
      %3796 = vmatprep.subr.mxu0 0.0
      %3797 = vmatpush1.msra.mxu0 0.0
      %3798 = vmatprep.subr.mxu0 0.0
      %3799 = vmatpush1.msra.mxu0 0.0
      %3800 = vmatprep.subr.mxu0 0.0
      %3801 = vmatpush1.msra.mxu0 0.0
      %3802 = vmatprep.subr.mxu0 0.0
      %3803 = vmatpush1.msra.mxu0 0.0
      %3804 = vmatprep.mubr.f32.mxu0 0.0
      %3805 = vmatmul.mubr.f32.gmra.mrb[0].mxu0 %v3736
      %v3806 = vpop.f32.mrb[0].mxu0
      %v3807 = vadd.f32 0.0, %v3806
      %v3808 = vpop.f32.mrb[0].mxu0
      %v3809 = vadd.f32 0.0, %v3808
      %3810 = vmatprep.mubr.f32.mxu0 0.0
      %3811 = vmatmul.mubr.f32.gmra.mrb[0].mxu0 %v3738
      %v3812 = vpop.f32.mrb[0].mxu0
      %v3813 = vadd.f32 0.0, %v3812
      %v3814 = vpop.f32.mrb[0].mxu0
      %v3815 = vadd.f32 0.0, %v3814
      %3816 = vdwg.mxu0
      %v3817 = vadd.f32 %v3058, %v3807
      %v3818 = vadd.f32 %v3059, %v3809
      %v3819 = vadd.f32 %v3060, %v3813
      %v3820 = vadd.f32 %v3061, %v3815
      %v3821 = vld [vmem:[#allocation2 + $0x1] sm:$0xff]
      %v3822 = vld [vmem:[#allocation2 + $0x9] sm:$0x3f]
      %v3823 = vld [vmem:[#allocation2 + $0x11] sm:$0xff]
      %v3824 = vld [vmem:[#allocation2 + $0x19] sm:$0x3f]
      %v3825 = vld [vmem:[#allocation2 + $0x21] sm:$0xff]
      %v3826 = vld [vmem:[#allocation2 + $0x29] sm:$0x3f]
      %v3827 = vld [vmem:[#allocation2 + $0x31] sm:$0xff]
      %v3828 = vld [vmem:[#allocation2 + $0x39] sm:$0x3f]
      %v3829 = vld [vmem:[#allocation2 + $0x41] sm:$0xff]
      %v3830 = vld [vmem:[#allocation2 + $0x49] sm:$0x3f]
      %v3831 = vld [vmem:[#allocation2 + $0x51] sm:$0xff]
      %v3832 = vld [vmem:[#allocation2 + $0x59] sm:$0x3f]
      %v3833 = vld [vmem:[#allocation2 + $0x61] sm:$0xff]
      %v3834 = vld [vmem:[#allocation2 + $0x69] sm:$0x3f]
      %v3835 = vld [vmem:[#allocation2 + $0x71] sm:$0xff]
      %v3836 = vld [vmem:[#allocation2 + $0x79] sm:$0x3f]
      %v3837 = vld [vmem:[#allocation2 + $0x81] sm:$0xff]
      %v3838 = vld [vmem:[#allocation2 + $0x89] sm:$0x3f]
      %v3839 = vld [vmem:[#allocation2 + $0x91] sm:$0xff]
      %v3840 = vld [vmem:[#allocation2 + $0x99] sm:$0x3f]
      %v3841 = vld [vmem:[#allocation2 + $0xa1] sm:$0xff]
      %v3842 = vld [vmem:[#allocation2 + $0xa9] sm:$0x3f]
      %v3843 = vld [vmem:[#allocation2 + $0xb1] sm:$0xff]
      %v3844 = vld [vmem:[#allocation2 + $0xb9] sm:$0x3f]
      %v3845 = vld [vmem:[#allocation2 + $0xc1] sm:$0xff]
      %v3846 = vld [vmem:[#allocation2 + $0xc9] sm:$0x3f]
      %v3847 = vld [vmem:[#allocation2 + $0xd1] sm:$0xff]
      %v3848 = vld [vmem:[#allocation2 + $0xd9] sm:$0x3f]
      %v3849 = vld [vmem:[#allocation2 + $0xe1] sm:$0xff]
      %v3850 = vld [vmem:[#allocation2 + $0xe9] sm:$0x3f]
      %v3851 = vld [vmem:[#allocation2 + $0xf1] sm:$0xff]
      %v3852 = vld [vmem:[#allocation2 + $0xf9] sm:$0x3f]
      %3885 = vrot.lane.b32.xlu0 %v3821, 127
      %v3886 = vpop.permute.xlu0 %3885
      %3887 = vrot.lane.b32.xlu0 %v3822, 127
      %v3888 = vpop.permute.xlu0 %3887
      %3889 = vrot.lane.b32.xlu0 %v3823, 127
      %v3890 = vpop.permute.xlu0 %3889
      %3891 = vrot.lane.b32.xlu0 %v3824, 127
      %v3892 = vpop.permute.xlu0 %3891
      %3893 = vrot.lane.b32.xlu0 %v3825, 127
      %v3894 = vpop.permute.xlu0 %3893
      %3895 = vrot.lane.b32.xlu0 %v3826, 127
      %v3896 = vpop.permute.xlu0 %3895
      %3897 = vrot.lane.b32.xlu0 %v3827, 127
      %v3898 = vpop.permute.xlu0 %3897
      %3899 = vrot.lane.b32.xlu0 %v3828, 127
      %v3900 = vpop.permute.xlu0 %3899
      %3901 = vrot.lane.b32.xlu0 %v3829, 127
      %v3902 = vpop.permute.xlu0 %3901
      %3903 = vrot.lane.b32.xlu0 %v3830, 127
      %v3904 = vpop.permute.xlu0 %3903
      %3905 = vrot.lane.b32.xlu0 %v3831, 127
      %v3906 = vpop.permute.xlu0 %3905
      %3907 = vrot.lane.b32.xlu0 %v3832, 127
      %v3908 = vpop.permute.xlu0 %3907
      %3909 = vrot.lane.b32.xlu0 %v3833, 127
      %v3910 = vpop.permute.xlu0 %3909
      %3911 = vrot.lane.b32.xlu0 %v3834, 127
      %v3912 = vpop.permute.xlu0 %3911
      %3913 = vrot.lane.b32.xlu0 %v3835, 127
      %v3914 = vpop.permute.xlu0 %3913
      %3915 = vrot.lane.b32.xlu0 %v3836, 127
      %v3916 = vpop.permute.xlu0 %3915
      %3917 = vrot.lane.b32.xlu0 %v3837, 127
      %v3918 = vpop.permute.xlu0 %3917
      %3919 = vrot.lane.b32.xlu0 %v3838, 127
      %v3920 = vpop.permute.xlu0 %3919
      %3921 = vrot.lane.b32.xlu0 %v3839, 127
      %v3922 = vpop.permute.xlu0 %3921
      %3923 = vrot.lane.b32.xlu0 %v3840, 127
      %v3924 = vpop.permute.xlu0 %3923
      %3925 = vrot.lane.b32.xlu0 %v3841, 127
      %v3926 = vpop.permute.xlu0 %3925
      %3927 = vrot.lane.b32.xlu0 %v3842, 127
      %v3928 = vpop.permute.xlu0 %3927
      %3929 = vrot.lane.b32.xlu0 %v3843, 127
      %v3930 = vpop.permute.xlu0 %3929
      %3931 = vrot.lane.b32.xlu0 %v3844, 127
      %v3932 = vpop.permute.xlu0 %3931
      %3933 = vrot.lane.b32.xlu0 %v3845, 127
      %v3934 = vpop.permute.xlu0 %3933
      %3935 = vrot.lane.b32.xlu0 %v3846, 127
      %v3936 = vpop.permute.xlu0 %3935
      %3937 = vrot.lane.b32.xlu0 %v3847, 127
      %v3938 = vpop.permute.xlu0 %3937
      %3939 = vrot.lane.b32.xlu0 %v3848, 127
      %v3940 = vpop.permute.xlu0 %3939
      %3941 = vrot.lane.b32.xlu0 %v3849, 127
      %v3942 = vpop.permute.xlu0 %3941
      %3943 = vrot.lane.b32.xlu0 %v3850, 127
      %v3944 = vpop.permute.xlu0 %3943
      %3945 = vrot.lane.b32.xlu0 %v3851, 127
      %v3946 = vpop.permute.xlu0 %3945
      %3947 = vrot.lane.b32.xlu0 %v3852, 127
      %v3948 = vpop.permute.xlu0 %3947
      %v3981 = vcombine.low %v3886, %v3894
      %v3982 = vcombine.high %v3886, %v3894
      %v3984 = vunpack.c.l.s4 1983009808
      %v3985 = vunpack.c.0.s8 %v3984
      %v3986 = vlaneseq
      %v3987 = vshrl.u32 %v3986, 7
      %v3988 = vsub.s32 %v3985, %v3987
      %v3989 = vrot.slane %v3981, %v3988
      %v3991 = vunpack.c.l.s4 1983009808
      %v3992 = vunpack.c.0.s8 %v3991
      %v3993 = vlaneseq
      %v3994 = vshrl.u32 %v3993, 7
      %v3995 = vsub.s32 %v3992, %v3994
      %v3996 = vrot.slane %v3982, %v3995
      %v3997 = vcombine.low %v3890, %v3898
      %v3998 = vcombine.high %v3890, %v3898
      %v4000 = vunpack.c.l.s4 1983009808
      %v4001 = vunpack.c.0.s8 %v4000
      %v4002 = vlaneseq
      %v4003 = vshrl.u32 %v4002, 7
      %v4004 = vsub.s32 %v4001, %v4003
      %v4005 = vrot.slane %v3997, %v4004
      %v4007 = vunpack.c.l.s4 1983009808
      %v4008 = vunpack.c.0.s8 %v4007
      %v4009 = vlaneseq
      %v4010 = vshrl.u32 %v4009, 7
      %v4011 = vsub.s32 %v4008, %v4010
      %v4012 = vrot.slane %v3998, %v4011
      %v4013 = vcombine.low %v3902, %v3910
      %v4014 = vcombine.high %v3902, %v3910
      %v4016 = vunpack.c.l.s4 1983009808
      %v4017 = vunpack.c.0.s8 %v4016
      %v4018 = vlaneseq
      %v4019 = vshrl.u32 %v4018, 7
      %v4020 = vsub.s32 %v4017, %v4019
      %v4021 = vrot.slane %v4013, %v4020
      %v4023 = vunpack.c.l.s4 1983009808
      %v4024 = vunpack.c.0.s8 %v4023
      %v4025 = vlaneseq
      %v4026 = vshrl.u32 %v4025, 7
      %v4027 = vsub.s32 %v4024, %v4026
      %v4028 = vrot.slane %v4014, %v4027
      %v4029 = vcombine.low %v3906, %v3914
      %v4030 = vcombine.high %v3906, %v3914
      %v4032 = vunpack.c.l.s4 1983009808
      %v4033 = vunpack.c.0.s8 %v4032
      %v4034 = vlaneseq
      %v4035 = vshrl.u32 %v4034, 7
      %v4036 = vsub.s32 %v4033, %v4035
      %v4037 = vrot.slane %v4029, %v4036
      %v4039 = vunpack.c.l.s4 1983009808
      %v4040 = vunpack.c.0.s8 %v4039
      %v4041 = vlaneseq
      %v4042 = vshrl.u32 %v4041, 7
      %v4043 = vsub.s32 %v4040, %v4042
      %v4044 = vrot.slane %v4030, %v4043
      %v4045 = vcombine.low %v3989, %v4005
      %v4046 = vcombine.high %v3989, %v4005
      %v4048 = vunpack.c.l.s4 1934713408
      %v4049 = vunpack.c.0.s8 %v4048
      %v4050 = vlaneseq
      %v4051 = vshrl.u32 %v4050, 7
      %v4052 = vsub.s32 %v4049, %v4051
      %v4053 = vrot.slane %v4045, %v4052
      %v4055 = vunpack.c.l.s4 1934713408
      %v4056 = vunpack.c.0.s8 %v4055
      %v4057 = vlaneseq
      %v4058 = vshrl.u32 %v4057, 7
      %v4059 = vsub.s32 %v4056, %v4058
      %v4060 = vrot.slane %v4046, %v4059
      %v4061 = vcombine.low %v3996, %v4012
      %v4062 = vcombine.high %v3996, %v4012
      %v4064 = vunpack.c.l.s4 1934713408
      %v4065 = vunpack.c.0.s8 %v4064
      %v4066 = vlaneseq
      %v4067 = vshrl.u32 %v4066, 7
      %v4068 = vsub.s32 %v4065, %v4067
      %v4069 = vrot.slane %v4061, %v4068
      %v4071 = vunpack.c.l.s4 1934713408
      %v4072 = vunpack.c.0.s8 %v4071
      %v4073 = vlaneseq
      %v4074 = vshrl.u32 %v4073, 7
      %v4075 = vsub.s32 %v4072, %v4074
      %v4076 = vrot.slane %v4062, %v4075
      %v4077 = vcombine.low %v4021, %v4037
      %v4078 = vcombine.high %v4021, %v4037
      %v4080 = vunpack.c.l.s4 1934713408
      %v4081 = vunpack.c.0.s8 %v4080
      %v4082 = vlaneseq
      %v4083 = vshrl.u32 %v4082, 7
      %v4084 = vsub.s32 %v4081, %v4083
      %v4085 = vrot.slane %v4077, %v4084
      %v4087 = vunpack.c.l.s4 1934713408
      %v4088 = vunpack.c.0.s8 %v4087
      %v4089 = vlaneseq
      %v4090 = vshrl.u32 %v4089, 7
      %v4091 = vsub.s32 %v4088, %v4090
      %v4092 = vrot.slane %v4078, %v4091
      %v4093 = vcombine.low %v4028, %v4044
      %v4094 = vcombine.high %v4028, %v4044
      %v4096 = vunpack.c.l.s4 1934713408
      %v4097 = vunpack.c.0.s8 %v4096
      %v4098 = vlaneseq
      %v4099 = vshrl.u32 %v4098, 7
      %v4100 = vsub.s32 %v4097, %v4099
      %v4101 = vrot.slane %v4093, %v4100
      %v4103 = vunpack.c.l.s4 1934713408
      %v4104 = vunpack.c.0.s8 %v4103
      %v4105 = vlaneseq
      %v4106 = vshrl.u32 %v4105, 7
      %v4107 = vsub.s32 %v4104, %v4106
      %v4108 = vrot.slane %v4094, %v4107
      %v4109 = vcombine.low %v4053, %v4085
      %v4110 = vcombine.high %v4053, %v4085
      %v4111 = vcombine.low %v4060, %v4092
      %v4112 = vcombine.high %v4060, %v4092
      %v4113 = vcombine.low %v4069, %v4101
      %v4114 = vcombine.high %v4069, %v4101
      %v4115 = vcombine.low %v4076, %v4108
      %v4116 = vcombine.high %v4076, %v4108
      %v4117 = vcombine.low %v3918, %v3926
      %v4118 = vcombine.high %v3918, %v3926
      %v4120 = vunpack.c.l.s4 1983009808
      %v4121 = vunpack.c.0.s8 %v4120
      %v4122 = vlaneseq
      %v4123 = vshrl.u32 %v4122, 7
      %v4124 = vsub.s32 %v4121, %v4123
      %v4125 = vrot.slane %v4117, %v4124
      %v4127 = vunpack.c.l.s4 1983009808
      %v4128 = vunpack.c.0.s8 %v4127
      %v4129 = vlaneseq
      %v4130 = vshrl.u32 %v4129, 7
      %v4131 = vsub.s32 %v4128, %v4130
      %v4132 = vrot.slane %v4118, %v4131
      %v4133 = vcombine.low %v3922, %v3930
      %v4134 = vcombine.high %v3922, %v3930
      %v4136 = vunpack.c.l.s4 1983009808
      %v4137 = vunpack.c.0.s8 %v4136
      %v4138 = vlaneseq
      %v4139 = vshrl.u32 %v4138, 7
      %v4140 = vsub.s32 %v4137, %v4139
      %v4141 = vrot.slane %v4133, %v4140
      %v4143 = vunpack.c.l.s4 1983009808
      %v4144 = vunpack.c.0.s8 %v4143
      %v4145 = vlaneseq
      %v4146 = vshrl.u32 %v4145, 7
      %v4147 = vsub.s32 %v4144, %v4146
      %v4148 = vrot.slane %v4134, %v4147
      %v4149 = vcombine.low %v3934, %v3942
      %v4150 = vcombine.high %v3934, %v3942
      %v4152 = vunpack.c.l.s4 1983009808
      %v4153 = vunpack.c.0.s8 %v4152
      %v4154 = vlaneseq
      %v4155 = vshrl.u32 %v4154, 7
      %v4156 = vsub.s32 %v4153, %v4155
      %v4157 = vrot.slane %v4149, %v4156
      %v4159 = vunpack.c.l.s4 1983009808
      %v4160 = vunpack.c.0.s8 %v4159
      %v4161 = vlaneseq
      %v4162 = vshrl.u32 %v4161, 7
      %v4163 = vsub.s32 %v4160, %v4162
      %v4164 = vrot.slane %v4150, %v4163
      %v4165 = vcombine.low %v3938, %v3946
      %v4166 = vcombine.high %v3938, %v3946
      %v4168 = vunpack.c.l.s4 1983009808
      %v4169 = vunpack.c.0.s8 %v4168
      %v4170 = vlaneseq
      %v4171 = vshrl.u32 %v4170, 7
      %v4172 = vsub.s32 %v4169, %v4171
      %v4173 = vrot.slane %v4165, %v4172
      %v4175 = vunpack.c.l.s4 1983009808
      %v4176 = vunpack.c.0.s8 %v4175
      %v4177 = vlaneseq
      %v4178 = vshrl.u32 %v4177, 7
      %v4179 = vsub.s32 %v4176, %v4178
      %v4180 = vrot.slane %v4166, %v4179
      %v4181 = vcombine.low %v4125, %v4141
      %v4182 = vcombine.high %v4125, %v4141
      %v4184 = vunpack.c.l.s4 1934713408
      %v4185 = vunpack.c.0.s8 %v4184
      %v4186 = vlaneseq
      %v4187 = vshrl.u32 %v4186, 7
      %v4188 = vsub.s32 %v4185, %v4187
      %v4189 = vrot.slane %v4181, %v4188
      %v4191 = vunpack.c.l.s4 1934713408
      %v4192 = vunpack.c.0.s8 %v4191
      %v4193 = vlaneseq
      %v4194 = vshrl.u32 %v4193, 7
      %v4195 = vsub.s32 %v4192, %v4194
      %v4196 = vrot.slane %v4182, %v4195
      %v4197 = vcombine.low %v4132, %v4148
      %v4198 = vcombine.high %v4132, %v4148
      %v4200 = vunpack.c.l.s4 1934713408
      %v4201 = vunpack.c.0.s8 %v4200
      %v4202 = vlaneseq
      %v4203 = vshrl.u32 %v4202, 7
      %v4204 = vsub.s32 %v4201, %v4203
      %v4205 = vrot.slane %v4197, %v4204
      %v4207 = vunpack.c.l.s4 1934713408
      %v4208 = vunpack.c.0.s8 %v4207
      %v4209 = vlaneseq
      %v4210 = vshrl.u32 %v4209, 7
      %v4211 = vsub.s32 %v4208, %v4210
      %v4212 = vrot.slane %v4198, %v4211
      %v4213 = vcombine.low %v4157, %v4173
      %v4214 = vcombine.high %v4157, %v4173
      %v4216 = vunpack.c.l.s4 1934713408
      %v4217 = vunpack.c.0.s8 %v4216
      %v4218 = vlaneseq
      %v4219 = vshrl.u32 %v4218, 7
      %v4220 = vsub.s32 %v4217, %v4219
      %v4221 = vrot.slane %v4213, %v4220
      %v4223 = vunpack.c.l.s4 1934713408
      %v4224 = vunpack.c.0.s8 %v4223
      %v4225 = vlaneseq
      %v4226 = vshrl.u32 %v4225, 7
      %v4227 = vsub.s32 %v4224, %v4226
      %v4228 = vrot.slane %v4214, %v4227
      %v4229 = vcombine.low %v4164, %v4180
      %v4230 = vcombine.high %v4164, %v4180
      %v4232 = vunpack.c.l.s4 1934713408
      %v4233 = vunpack.c.0.s8 %v4232
      %v4234 = vlaneseq
      %v4235 = vshrl.u32 %v4234, 7
      %v4236 = vsub.s32 %v4233, %v4235
      %v4237 = vrot.slane %v4229, %v4236
      %v4239 = vunpack.c.l.s4 1934713408
      %v4240 = vunpack.c.0.s8 %v4239
      %v4241 = vlaneseq
      %v4242 = vshrl.u32 %v4241, 7
      %v4243 = vsub.s32 %v4240, %v4242
      %v4244 = vrot.slane %v4230, %v4243
      %v4245 = vcombine.low %v4189, %v4221
      %v4246 = vcombine.high %v4189, %v4221
      %v4247 = vcombine.low %v4196, %v4228
      %v4248 = vcombine.high %v4196, %v4228
      %v4249 = vcombine.low %v4205, %v4237
      %v4250 = vcombine.high %v4205, %v4237
      %v4251 = vcombine.low %v4212, %v4244
      %v4252 = vcombine.high %v4212, %v4244
      %v4253 = vcombine.low %v3888, %v3896
      %v4254 = vcombine.high %v3888, %v3896
      %v4256 = vunpack.c.l.s4 1983009808
      %v4257 = vunpack.c.0.s8 %v4256
      %v4258 = vlaneseq
      %v4259 = vshrl.u32 %v4258, 7
      %v4260 = vsub.s32 %v4257, %v4259
      %v4261 = vrot.slane %v4253, %v4260
      %v4263 = vunpack.c.l.s4 1983009808
      %v4264 = vunpack.c.0.s8 %v4263
      %v4265 = vlaneseq
      %v4266 = vshrl.u32 %v4265, 7
      %v4267 = vsub.s32 %v4264, %v4266
      %v4268 = vrot.slane %v4254, %v4267
      %v4269 = vcombine.low %v3892, %v3900
      %v4270 = vcombine.high %v3892, %v3900
      %v4272 = vunpack.c.l.s4 1983009808
      %v4273 = vunpack.c.0.s8 %v4272
      %v4274 = vlaneseq
      %v4275 = vshrl.u32 %v4274, 7
      %v4276 = vsub.s32 %v4273, %v4275
      %v4277 = vrot.slane %v4269, %v4276
      %v4279 = vunpack.c.l.s4 1983009808
      %v4280 = vunpack.c.0.s8 %v4279
      %v4281 = vlaneseq
      %v4282 = vshrl.u32 %v4281, 7
      %v4283 = vsub.s32 %v4280, %v4282
      %v4284 = vrot.slane %v4270, %v4283
      %v4285 = vcombine.low %v3904, %v3912
      %v4286 = vcombine.high %v3904, %v3912
      %v4288 = vunpack.c.l.s4 1983009808
      %v4289 = vunpack.c.0.s8 %v4288
      %v4290 = vlaneseq
      %v4291 = vshrl.u32 %v4290, 7
      %v4292 = vsub.s32 %v4289, %v4291
      %v4293 = vrot.slane %v4285, %v4292
      %v4295 = vunpack.c.l.s4 1983009808
      %v4296 = vunpack.c.0.s8 %v4295
      %v4297 = vlaneseq
      %v4298 = vshrl.u32 %v4297, 7
      %v4299 = vsub.s32 %v4296, %v4298
      %v4300 = vrot.slane %v4286, %v4299
      %v4301 = vcombine.low %v3908, %v3916
      %v4302 = vcombine.high %v3908, %v3916
      %v4304 = vunpack.c.l.s4 1983009808
      %v4305 = vunpack.c.0.s8 %v4304
      %v4306 = vlaneseq
      %v4307 = vshrl.u32 %v4306, 7
      %v4308 = vsub.s32 %v4305, %v4307
      %v4309 = vrot.slane %v4301, %v4308
      %v4311 = vunpack.c.l.s4 1983009808
      %v4312 = vunpack.c.0.s8 %v4311
      %v4313 = vlaneseq
      %v4314 = vshrl.u32 %v4313, 7
      %v4315 = vsub.s32 %v4312, %v4314
      %v4316 = vrot.slane %v4302, %v4315
      %v4317 = vcombine.low %v4261, %v4277
      %v4318 = vcombine.high %v4261, %v4277
      %v4320 = vunpack.c.l.s4 1934713408
      %v4321 = vunpack.c.0.s8 %v4320
      %v4322 = vlaneseq
      %v4323 = vshrl.u32 %v4322, 7
      %v4324 = vsub.s32 %v4321, %v4323
      %v4325 = vrot.slane %v4317, %v4324
      %v4327 = vunpack.c.l.s4 1934713408
      %v4328 = vunpack.c.0.s8 %v4327
      %v4329 = vlaneseq
      %v4330 = vshrl.u32 %v4329, 7
      %v4331 = vsub.s32 %v4328, %v4330
      %v4332 = vrot.slane %v4318, %v4331
      %v4333 = vcombine.low %v4268, %v4284
      %v4335 = vunpack.c.l.s4 1934713408
      %v4336 = vunpack.c.0.s8 %v4335
      %v4337 = vlaneseq
      %v4338 = vshrl.u32 %v4337, 7
      %v4339 = vsub.s32 %v4336, %v4338
      %v4340 = vrot.slane %v4333, %v4339
      %v4341 = vcombine.low %v4293, %v4309
      %v4342 = vcombine.high %v4293, %v4309
      %v4344 = vunpack.c.l.s4 1934713408
      %v4345 = vunpack.c.0.s8 %v4344
      %v4346 = vlaneseq
      %v4347 = vshrl.u32 %v4346, 7
      %v4348 = vsub.s32 %v4345, %v4347
      %v4349 = vrot.slane %v4341, %v4348
      %v4351 = vunpack.c.l.s4 1934713408
      %v4352 = vunpack.c.0.s8 %v4351
      %v4353 = vlaneseq
      %v4354 = vshrl.u32 %v4353, 7
      %v4355 = vsub.s32 %v4352, %v4354
      %v4356 = vrot.slane %v4342, %v4355
      %v4357 = vcombine.low %v4300, %v4316
      %v4359 = vunpack.c.l.s4 1934713408
      %v4360 = vunpack.c.0.s8 %v4359
      %v4361 = vlaneseq
      %v4362 = vshrl.u32 %v4361, 7
      %v4363 = vsub.s32 %v4360, %v4362
      %v4364 = vrot.slane %v4357, %v4363
      %v4365 = vcombine.low %v4325, %v4349
      %v4366 = vcombine.high %v4325, %v4349
      %v4367 = vcombine.low %v4332, %v4356
      %v4368 = vcombine.high %v4332, %v4356
      %v4369 = vcombine.low %v4340, %v4364
      %v4370 = vcombine.high %v4340, %v4364
      %v4371 = vcombine.low %v3920, %v3928
      %v4372 = vcombine.high %v3920, %v3928
      %v4374 = vunpack.c.l.s4 1983009808
      %v4375 = vunpack.c.0.s8 %v4374
      %v4376 = vlaneseq
      %v4377 = vshrl.u32 %v4376, 7
      %v4378 = vsub.s32 %v4375, %v4377
      %v4379 = vrot.slane %v4371, %v4378
      %v4381 = vunpack.c.l.s4 1983009808
      %v4382 = vunpack.c.0.s8 %v4381
      %v4383 = vlaneseq
      %v4384 = vshrl.u32 %v4383, 7
      %v4385 = vsub.s32 %v4382, %v4384
      %v4386 = vrot.slane %v4372, %v4385
      %v4387 = vcombine.low %v3924, %v3932
      %v4388 = vcombine.high %v3924, %v3932
      %v4390 = vunpack.c.l.s4 1983009808
      %v4391 = vunpack.c.0.s8 %v4390
      %v4392 = vlaneseq
      %v4393 = vshrl.u32 %v4392, 7
      %v4394 = vsub.s32 %v4391, %v4393
      %v4395 = vrot.slane %v4387, %v4394
      %v4397 = vunpack.c.l.s4 1983009808
      %v4398 = vunpack.c.0.s8 %v4397
      %v4399 = vlaneseq
      %v4400 = vshrl.u32 %v4399, 7
      %v4401 = vsub.s32 %v4398, %v4400
      %v4402 = vrot.slane %v4388, %v4401
      %v4403 = vcombine.low %v3936, %v3944
      %v4404 = vcombine.high %v3936, %v3944
      %v4406 = vunpack.c.l.s4 1983009808
      %v4407 = vunpack.c.0.s8 %v4406
      %v4408 = vlaneseq
      %v4409 = vshrl.u32 %v4408, 7
      %v4410 = vsub.s32 %v4407, %v4409
      %v4411 = vrot.slane %v4403, %v4410
      %v4413 = vunpack.c.l.s4 1983009808
      %v4414 = vunpack.c.0.s8 %v4413
      %v4415 = vlaneseq
      %v4416 = vshrl.u32 %v4415, 7
      %v4417 = vsub.s32 %v4414, %v4416
      %v4418 = vrot.slane %v4404, %v4417
      %v4419 = vcombine.low %v3940, %v3948
      %v4420 = vcombine.high %v3940, %v3948
      %v4422 = vunpack.c.l.s4 1983009808
      %v4423 = vunpack.c.0.s8 %v4422
      %v4424 = vlaneseq
      %v4425 = vshrl.u32 %v4424, 7
      %v4426 = vsub.s32 %v4423, %v4425
      %v4427 = vrot.slane %v4419, %v4426
      %v4429 = vunpack.c.l.s4 1983009808
      %v4430 = vunpack.c.0.s8 %v4429
      %v4431 = vlaneseq
      %v4432 = vshrl.u32 %v4431, 7
      %v4433 = vsub.s32 %v4430, %v4432
      %v4434 = vrot.slane %v4420, %v4433
      %v4435 = vcombine.low %v4379, %v4395
      %v4436 = vcombine.high %v4379, %v4395
      %v4438 = vunpack.c.l.s4 1934713408
      %v4439 = vunpack.c.0.s8 %v4438
      %v4440 = vlaneseq
      %v4441 = vshrl.u32 %v4440, 7
      %v4442 = vsub.s32 %v4439, %v4441
      %v4443 = vrot.slane %v4435, %v4442
      %v4445 = vunpack.c.l.s4 1934713408
      %v4446 = vunpack.c.0.s8 %v4445
      %v4447 = vlaneseq
      %v4448 = vshrl.u32 %v4447, 7
      %v4449 = vsub.s32 %v4446, %v4448
      %v4450 = vrot.slane %v4436, %v4449
      %v4451 = vcombine.low %v4386, %v4402
      %v4453 = vunpack.c.l.s4 1934713408
      %v4454 = vunpack.c.0.s8 %v4453
      %v4455 = vlaneseq
      %v4456 = vshrl.u32 %v4455, 7
      %v4457 = vsub.s32 %v4454, %v4456
      %v4458 = vrot.slane %v4451, %v4457
      %v4459 = vcombine.low %v4411, %v4427
      %v4460 = vcombine.high %v4411, %v4427
      %v4462 = vunpack.c.l.s4 1934713408
      %v4463 = vunpack.c.0.s8 %v4462
      %v4464 = vlaneseq
      %v4465 = vshrl.u32 %v4464, 7
      %v4466 = vsub.s32 %v4463, %v4465
      %v4467 = vrot.slane %v4459, %v4466
      %v4469 = vunpack.c.l.s4 1934713408
      %v4470 = vunpack.c.0.s8 %v4469
      %v4471 = vlaneseq
      %v4472 = vshrl.u32 %v4471, 7
      %v4473 = vsub.s32 %v4470, %v4472
      %v4474 = vrot.slane %v4460, %v4473
      %v4475 = vcombine.low %v4418, %v4434
      %v4477 = vunpack.c.l.s4 1934713408
      %v4478 = vunpack.c.0.s8 %v4477
      %v4479 = vlaneseq
      %v4480 = vshrl.u32 %v4479, 7
      %v4481 = vsub.s32 %v4478, %v4480
      %v4482 = vrot.slane %v4475, %v4481
      %v4483 = vcombine.low %v4443, %v4467
      %v4484 = vcombine.high %v4443, %v4467
      %v4485 = vcombine.low %v4450, %v4474
      %v4486 = vcombine.high %v4450, %v4474
      %v4487 = vcombine.low %v4458, %v4482
      %v4488 = vcombine.high %v4458, %v4482
      %4491 = vrot.lane.b32.xlu0 %v4110, 14
      %v4492 = vpop.permute.xlu0 %4491
      %4493 = vrot.lane.b32.xlu0 %v4246, 14
      %v4494 = vpop.permute.xlu0 %4493
      %4499 = vrot.lane.b32.xlu0 %v4111, 28
      %v4500 = vpop.permute.xlu0 %4499
      %4501 = vrot.lane.b32.xlu0 %v4247, 28
      %v4502 = vpop.permute.xlu0 %4501
      %4507 = vrot.lane.b32.xlu0 %v4112, 42
      %v4508 = vpop.permute.xlu0 %4507
      %4509 = vrot.lane.b32.xlu0 %v4248, 42
      %v4510 = vpop.permute.xlu0 %4509
      %4515 = vrot.lane.b32.xlu0 %v4113, 56
      %v4516 = vpop.permute.xlu0 %4515
      %4517 = vrot.lane.b32.xlu0 %v4249, 56
      %v4518 = vpop.permute.xlu0 %4517
      %4523 = vrot.lane.b32.xlu0 %v4114, 70
      %v4524 = vpop.permute.xlu0 %4523
      %4525 = vrot.lane.b32.xlu0 %v4250, 70
      %v4526 = vpop.permute.xlu0 %4525
      %4531 = vrot.lane.b32.xlu0 %v4115, 84
      %v4532 = vpop.permute.xlu0 %4531
      %4533 = vrot.lane.b32.xlu0 %v4251, 84
      %v4534 = vpop.permute.xlu0 %4533
      %4539 = vrot.lane.b32.xlu0 %v4116, 98
      %v4540 = vpop.permute.xlu0 %4539
      %4541 = vrot.lane.b32.xlu0 %v4252, 98
      %v4542 = vpop.permute.xlu0 %4541
      %4547 = vrot.lane.b32.xlu0 %v4365, 112
      %v4548 = vpop.permute.xlu0 %4547
      %4549 = vrot.lane.b32.xlu0 %v4483, 112
      %v4550 = vpop.permute.xlu0 %4549
      %4555 = vrot.lane.b32.xlu0 %v4366, 126
      %v4556 = vpop.permute.xlu0 %4555
      %4557 = vrot.lane.b32.xlu0 %v4484, 126
      %v4558 = vpop.permute.xlu0 %4557
      %4563 = vrot.lane.b32.xlu0 %v4367, 12
      %v4564 = vpop.permute.xlu0 %4563
      %4565 = vrot.lane.b32.xlu0 %v4485, 12
      %v4566 = vpop.permute.xlu0 %4565
      %4571 = vrot.lane.b32.xlu0 %v4368, 26
      %v4572 = vpop.permute.xlu0 %4571
      %4573 = vrot.lane.b32.xlu0 %v4486, 26
      %v4574 = vpop.permute.xlu0 %4573
      %4579 = vrot.lane.b32.xlu0 %v4369, 40
      %v4580 = vpop.permute.xlu0 %4579
      %4581 = vrot.lane.b32.xlu0 %v4487, 40
      %v4582 = vpop.permute.xlu0 %4581
      %4587 = vrot.lane.b32.xlu0 %v4370, 54
      %v4588 = vpop.permute.xlu0 %4587
      %4589 = vrot.lane.b32.xlu0 %v4488, 54
      %v4590 = vpop.permute.xlu0 %4589
      %v4593 = vsel %vm1201, %v4109, %v4492
      %v4594 = vsel %vm1201, %v4245, %v4494
      %v4595 = vsel %vm1204, %v4593, %v4500
      %v4596 = vsel %vm1204, %v4594, %v4502
      %v4597 = vsel %vm1207, %v4595, %v4508
      %v4598 = vsel %vm1207, %v4596, %v4510
      %v4599 = vsel %vm1210, %v4597, %v4516
      %v4600 = vsel %vm1210, %v4598, %v4518
      %v4601 = vsel %vm1213, %v4599, %v4524
      %v4602 = vsel %vm1213, %v4600, %v4526
      %v4603 = vsel %vm1216, %v4601, %v4532
      %v4604 = vsel %vm1216, %v4602, %v4534
      %v4605 = vsel %vm1219, %v4603, %v4540
      %v4606 = vsel %vm1219, %v4604, %v4542
      %v4607 = vsel %vm1222, %v4605, %v4548
      %v4608 = vsel %vm1222, %v4606, %v4550
      %v4609 = vsel %vm1225, %v4607, %v4556
      %v4610 = vsel %vm1225, %v4608, %v4558
      %v4611 = vsel %vm1228, %v4556, %v4564
      %v4612 = vsel %vm1228, %v4558, %v4566
      %v4613 = vsel %vm1231, %v4611, %v4572
      %v4614 = vsel %vm1231, %v4612, %v4574
      %v4615 = vsel %vm1234, %v4613, %v4580
      %v4616 = vsel %vm1234, %v4614, %v4582
      %v4617 = vsel %vm1237, %v4615, %v4588
      %v4618 = vsel %vm1237, %v4616, %v4590
      %4619 = vrot.lane.b32.xlu0 %v553, 64
      %v4620 = vpop.permute.xlu0 %4619
      %4621 = vrot.lane.b32.xlu0 %v555, 64
      %v4622 = vpop.permute.xlu0 %4621
      %v4623 = vsel %vm2012, %v4620, 0
      %v4625 = vsel %vm2012, %v4622, 0
      %4627 = vmatprep.subr.mxu0 %v4617
      %4628 = vmatpush1.msra.mxu0 %v4609
      %4629 = vmatprep.subr.mxu0 %v4618
      %4630 = vmatpush1.msra.mxu0 %v4610
      %4631 = vmatprep.subr.mxu0 0.0
      %4632 = vmatpush1.msra.mxu0 0.0
      %4633 = vmatprep.subr.mxu0 0.0
      %4634 = vmatpush1.msra.mxu0 0.0
      %4635 = vmatprep.subr.mxu0 0.0
      %4636 = vmatpush1.msra.mxu0 0.0
      %4637 = vmatprep.subr.mxu0 0.0
      %4638 = vmatpush1.msra.mxu0 0.0
      %4639 = vmatprep.subr.mxu0 0.0
      %4640 = vmatpush1.msra.mxu0 0.0
      %4641 = vmatprep.subr.mxu0 0.0
      %4642 = vmatpush1.msra.mxu0 0.0
      %4643 = vmatprep.subr.mxu0 0.0
      %4644 = vmatpush1.msra.mxu0 0.0
      %4645 = vmatprep.subr.mxu0 0.0
      %4646 = vmatpush1.msra.mxu0 0.0
      %4647 = vmatprep.subr.mxu0 0.0
      %4648 = vmatpush1.msra.mxu0 0.0
      %4649 = vmatprep.subr.mxu0 0.0
      %4650 = vmatpush1.msra.mxu0 0.0
      %4651 = vmatprep.subr.mxu0 0.0
      %4652 = vmatpush1.msra.mxu0 0.0
      %4653 = vmatprep.subr.mxu0 0.0
      %4654 = vmatpush1.msra.mxu0 0.0
      %4655 = vmatprep.subr.mxu0 0.0
      %4656 = vmatpush1.msra.mxu0 0.0
      %4657 = vmatprep.subr.mxu0 0.0
      %4658 = vmatpush1.msra.mxu0 0.0
      %4659 = vmatprep.subr.mxu0 0.0
      %4660 = vmatpush1.msra.mxu0 0.0
      %4661 = vmatprep.subr.mxu0 0.0
      %4662 = vmatpush1.msra.mxu0 0.0
      %4663 = vmatprep.subr.mxu0 0.0
      %4664 = vmatpush1.msra.mxu0 0.0
      %4665 = vmatprep.subr.mxu0 0.0
      %4666 = vmatpush1.msra.mxu0 0.0
      %4667 = vmatprep.subr.mxu0 0.0
      %4668 = vmatpush1.msra.mxu0 0.0
      %4669 = vmatprep.subr.mxu0 0.0
      %4670 = vmatpush1.msra.mxu0 0.0
      %4671 = vmatprep.subr.mxu0 0.0
      %4672 = vmatpush1.msra.mxu0 0.0
      %4673 = vmatprep.subr.mxu0 0.0
      %4674 = vmatpush1.msra.mxu0 0.0
      %4675 = vmatprep.subr.mxu0 0.0
      %4676 = vmatpush1.msra.mxu0 0.0
      %4677 = vmatprep.subr.mxu0 0.0
      %4678 = vmatpush1.msra.mxu0 0.0
      %4679 = vmatprep.subr.mxu0 0.0
      %4680 = vmatpush1.msra.mxu0 0.0
      %4681 = vmatprep.subr.mxu0 0.0
      %4682 = vmatpush1.msra.mxu0 0.0
      %4683 = vmatprep.subr.mxu0 0.0
      %4684 = vmatpush1.msra.mxu0 0.0
      %4685 = vmatprep.subr.mxu0 0.0
      %4686 = vmatpush1.msra.mxu0 0.0
      %4687 = vmatprep.subr.mxu0 0.0
      %4688 = vmatpush1.msra.mxu0 0.0
      %4689 = vmatprep.subr.mxu0 0.0
      %4690 = vmatpush1.msra.mxu0 0.0
      %4691 = vmatprep.mubr.f32.mxu0 0.0
      %4692 = vmatmul.mubr.f32.gmra.mrb[0].mxu0 %v4623
      %v4693 = vpop.f32.mrb[0].mxu0
      %v4694 = vadd.f32 0.0, %v4693
      %v4695 = vpop.f32.mrb[0].mxu0
      %v4696 = vadd.f32 0.0, %v4695
      %4697 = vmatprep.mubr.f32.mxu0 0.0
      %4698 = vmatmul.mubr.f32.gmra.mrb[0].mxu0 %v4625
      %v4699 = vpop.f32.mrb[0].mxu0
      %v4700 = vadd.f32 0.0, %v4699
      %v4701 = vpop.f32.mrb[0].mxu0
      %v4702 = vadd.f32 0.0, %v4701
      %4703 = vdwg.mxu0
      %v4704 = vadd.f32 %v3817, %v4694
      %v4705 = vadd.f32 %v3818, %v4696
      %v4706 = vadd.f32 %v3819, %v4700
      %v4707 = vadd.f32 %v3820, %v4702
      %v4708 = vld [vmem:[#allocation2 + $0x1] sm:$0xff]
      %v4709 = vld [vmem:[#allocation2 + $0x9] sm:$0x3f]
      %v4710 = vld [vmem:[#allocation2 + $0x11] sm:$0xff]
      %v4711 = vld [vmem:[#allocation2 + $0x19] sm:$0x3f]
      %v4712 = vld [vmem:[#allocation2 + $0x21] sm:$0xff]
      %v4713 = vld [vmem:[#allocation2 + $0x29] sm:$0x3f]
      %v4714 = vld [vmem:[#allocation2 + $0x31] sm:$0xff]
      %v4715 = vld [vmem:[#allocation2 + $0x39] sm:$0x3f]
      %v4716 = vld [vmem:[#allocation2 + $0x41] sm:$0xff]
      %v4717 = vld [vmem:[#allocation2 + $0x49] sm:$0x3f]
      %v4718 = vld [vmem:[#allocation2 + $0x51] sm:$0xff]
      %v4719 = vld [vmem:[#allocation2 + $0x59] sm:$0x3f]
      %v4720 = vld [vmem:[#allocation2 + $0x61] sm:$0xff]
      %v4721 = vld [vmem:[#allocation2 + $0x69] sm:$0x3f]
      %v4722 = vld [vmem:[#allocation2 + $0x71] sm:$0xff]
      %v4723 = vld [vmem:[#allocation2 + $0x79] sm:$0x3f]
      %v4724 = vld [vmem:[#allocation2 + $0x81] sm:$0xff]
      %v4725 = vld [vmem:[#allocation2 + $0x89] sm:$0x3f]
      %v4726 = vld [vmem:[#allocation2 + $0x91] sm:$0xff]
      %v4727 = vld [vmem:[#allocation2 + $0x99] sm:$0x3f]
      %v4728 = vld [vmem:[#allocation2 + $0xa1] sm:$0xff]
      %v4729 = vld [vmem:[#allocation2 + $0xa9] sm:$0x3f]
      %v4730 = vld [vmem:[#allocation2 + $0xb1] sm:$0xff]
      %v4731 = vld [vmem:[#allocation2 + $0xb9] sm:$0x3f]
      %v4732 = vld [vmem:[#allocation2 + $0xc1] sm:$0xff]
      %v4733 = vld [vmem:[#allocation2 + $0xc9] sm:$0x3f]
      %v4734 = vld [vmem:[#allocation2 + $0xd1] sm:$0xff]
      %v4735 = vld [vmem:[#allocation2 + $0xd9] sm:$0x3f]
      %v4736 = vld [vmem:[#allocation2 + $0xe1] sm:$0xff]
      %v4737 = vld [vmem:[#allocation2 + $0xe9] sm:$0x3f]
      %v4738 = vld [vmem:[#allocation2 + $0xf1] sm:$0xff]
      %v4739 = vld [vmem:[#allocation2 + $0xf9] sm:$0x3f]
      %4772 = vrot.lane.b32.xlu0 %v4708, 126
      %v4773 = vpop.permute.xlu0 %4772
      %4774 = vrot.lane.b32.xlu0 %v4709, 126
      %v4775 = vpop.permute.xlu0 %4774
      %4776 = vrot.lane.b32.xlu0 %v4710, 126
      %v4777 = vpop.permute.xlu0 %4776
      %4778 = vrot.lane.b32.xlu0 %v4711, 126
      %v4779 = vpop.permute.xlu0 %4778
      %4780 = vrot.lane.b32.xlu0 %v4712, 126
      %v4781 = vpop.permute.xlu0 %4780
      %4782 = vrot.lane.b32.xlu0 %v4713, 126
      %v4783 = vpop.permute.xlu0 %4782
      %4784 = vrot.lane.b32.xlu0 %v4714, 126
      %v4785 = vpop.permute.xlu0 %4784
      %4786 = vrot.lane.b32.xlu0 %v4715, 126
      %v4787 = vpop.permute.xlu0 %4786
      %4788 = vrot.lane.b32.xlu0 %v4716, 126
      %v4789 = vpop.permute.xlu0 %4788
      %4790 = vrot.lane.b32.xlu0 %v4717, 126
      %v4791 = vpop.permute.xlu0 %4790
      %4792 = vrot.lane.b32.xlu0 %v4718, 126
      %v4793 = vpop.permute.xlu0 %4792
      %4794 = vrot.lane.b32.xlu0 %v4719, 126
      %v4795 = vpop.permute.xlu0 %4794
      %4796 = vrot.lane.b32.xlu0 %v4720, 126
      %v4797 = vpop.permute.xlu0 %4796
      %4798 = vrot.lane.b32.xlu0 %v4721, 126
      %v4799 = vpop.permute.xlu0 %4798
      %4800 = vrot.lane.b32.xlu0 %v4722, 126
      %v4801 = vpop.permute.xlu0 %4800
      %4802 = vrot.lane.b32.xlu0 %v4723, 126
      %v4803 = vpop.permute.xlu0 %4802
      %4804 = vrot.lane.b32.xlu0 %v4724, 126
      %v4805 = vpop.permute.xlu0 %4804
      %4806 = vrot.lane.b32.xlu0 %v4725, 126
      %v4807 = vpop.permute.xlu0 %4806
      %4808 = vrot.lane.b32.xlu0 %v4726, 126
      %v4809 = vpop.permute.xlu0 %4808
      %4810 = vrot.lane.b32.xlu0 %v4727, 126
      %v4811 = vpop.permute.xlu0 %4810
      %4812 = vrot.lane.b32.xlu0 %v4728, 126
      %v4813 = vpop.permute.xlu0 %4812
      %4814 = vrot.lane.b32.xlu0 %v4729, 126
      %v4815 = vpop.permute.xlu0 %4814
      %4816 = vrot.lane.b32.xlu0 %v4730, 126
      %v4817 = vpop.permute.xlu0 %4816
      %4818 = vrot.lane.b32.xlu0 %v4731, 126
      %v4819 = vpop.permute.xlu0 %4818
      %4820 = vrot.lane.b32.xlu0 %v4732, 126
      %v4821 = vpop.permute.xlu0 %4820
      %4822 = vrot.lane.b32.xlu0 %v4733, 126
      %v4823 = vpop.permute.xlu0 %4822
      %4824 = vrot.lane.b32.xlu0 %v4734, 126
      %v4825 = vpop.permute.xlu0 %4824
      %4826 = vrot.lane.b32.xlu0 %v4735, 126
      %v4827 = vpop.permute.xlu0 %4826
      %4828 = vrot.lane.b32.xlu0 %v4736, 126
      %v4829 = vpop.permute.xlu0 %4828
      %4830 = vrot.lane.b32.xlu0 %v4737, 126
      %v4831 = vpop.permute.xlu0 %4830
      %4832 = vrot.lane.b32.xlu0 %v4738, 126
      %v4833 = vpop.permute.xlu0 %4832
      %4834 = vrot.lane.b32.xlu0 %v4739, 126
      %v4835 = vpop.permute.xlu0 %4834
      %v4868 = vcombine.low %v4773, %v4781
      %v4869 = vcombine.high %v4773, %v4781
      %v4871 = vunpack.c.l.s4 1983009808
      %v4872 = vunpack.c.0.s8 %v4871
      %v4873 = vlaneseq
      %v4874 = vshrl.u32 %v4873, 7
      %v4875 = vsub.s32 %v4872, %v4874
      %v4876 = vrot.slane %v4868, %v4875
      %v4878 = vunpack.c.l.s4 1983009808
      %v4879 = vunpack.c.0.s8 %v4878
      %v4880 = vlaneseq
      %v4881 = vshrl.u32 %v4880, 7
      %v4882 = vsub.s32 %v4879, %v4881
      %v4883 = vrot.slane %v4869, %v4882
      %v4884 = vcombine.low %v4777, %v4785
      %v4885 = vcombine.high %v4777, %v4785
      %v4887 = vunpack.c.l.s4 1983009808
      %v4888 = vunpack.c.0.s8 %v4887
      %v4889 = vlaneseq
      %v4890 = vshrl.u32 %v4889, 7
      %v4891 = vsub.s32 %v4888, %v4890
      %v4892 = vrot.slane %v4884, %v4891
      %v4894 = vunpack.c.l.s4 1983009808
      %v4895 = vunpack.c.0.s8 %v4894
      %v4896 = vlaneseq
      %v4897 = vshrl.u32 %v4896, 7
      %v4898 = vsub.s32 %v4895, %v4897
      %v4899 = vrot.slane %v4885, %v4898
      %v4900 = vcombine.low %v4789, %v4797
      %v4901 = vcombine.high %v4789, %v4797
      %v4903 = vunpack.c.l.s4 1983009808
      %v4904 = vunpack.c.0.s8 %v4903
      %v4905 = vlaneseq
      %v4906 = vshrl.u32 %v4905, 7
      %v4907 = vsub.s32 %v4904, %v4906
      %v4908 = vrot.slane %v4900, %v4907
      %v4910 = vunpack.c.l.s4 1983009808
      %v4911 = vunpack.c.0.s8 %v4910
      %v4912 = vlaneseq
      %v4913 = vshrl.u32 %v4912, 7
      %v4914 = vsub.s32 %v4911, %v4913
      %v4915 = vrot.slane %v4901, %v4914
      %v4916 = vcombine.low %v4793, %v4801
      %v4917 = vcombine.high %v4793, %v4801
      %v4919 = vunpack.c.l.s4 1983009808
      %v4920 = vunpack.c.0.s8 %v4919
      %v4921 = vlaneseq
      %v4922 = vshrl.u32 %v4921, 7
      %v4923 = vsub.s32 %v4920, %v4922
      %v4924 = vrot.slane %v4916, %v4923
      %v4926 = vunpack.c.l.s4 1983009808
      %v4927 = vunpack.c.0.s8 %v4926
      %v4928 = vlaneseq
      %v4929 = vshrl.u32 %v4928, 7
      %v4930 = vsub.s32 %v4927, %v4929
      %v4931 = vrot.slane %v4917, %v4930
      %v4932 = vcombine.low %v4876, %v4892
      %v4933 = vcombine.high %v4876, %v4892
      %v4935 = vunpack.c.l.s4 1934713408
      %v4936 = vunpack.c.0.s8 %v4935
      %v4937 = vlaneseq
      %v4938 = vshrl.u32 %v4937, 7
      %v4939 = vsub.s32 %v4936, %v4938
      %v4940 = vrot.slane %v4932, %v4939
      %v4942 = vunpack.c.l.s4 1934713408
      %v4943 = vunpack.c.0.s8 %v4942
      %v4944 = vlaneseq
      %v4945 = vshrl.u32 %v4944, 7
      %v4946 = vsub.s32 %v4943, %v4945
      %v4947 = vrot.slane %v4933, %v4946
      %v4948 = vcombine.low %v4883, %v4899
      %v4949 = vcombine.high %v4883, %v4899
      %v4951 = vunpack.c.l.s4 1934713408
      %v4952 = vunpack.c.0.s8 %v4951
      %v4953 = vlaneseq
      %v4954 = vshrl.u32 %v4953, 7
      %v4955 = vsub.s32 %v4952, %v4954
      %v4956 = vrot.slane %v4948, %v4955
      %v4958 = vunpack.c.l.s4 1934713408
      %v4959 = vunpack.c.0.s8 %v4958
      %v4960 = vlaneseq
      %v4961 = vshrl.u32 %v4960, 7
      %v4962 = vsub.s32 %v4959, %v4961
      %v4963 = vrot.slane %v4949, %v4962
      %v4964 = vcombine.low %v4908, %v4924
      %v4965 = vcombine.high %v4908, %v4924
      %v4967 = vunpack.c.l.s4 1934713408
      %v4968 = vunpack.c.0.s8 %v4967
      %v4969 = vlaneseq
      %v4970 = vshrl.u32 %v4969, 7
      %v4971 = vsub.s32 %v4968, %v4970
      %v4972 = vrot.slane %v4964, %v4971
      %v4974 = vunpack.c.l.s4 1934713408
      %v4975 = vunpack.c.0.s8 %v4974
      %v4976 = vlaneseq
      %v4977 = vshrl.u32 %v4976, 7
      %v4978 = vsub.s32 %v4975, %v4977
      %v4979 = vrot.slane %v4965, %v4978
      %v4980 = vcombine.low %v4915, %v4931
      %v4981 = vcombine.high %v4915, %v4931
      %v4983 = vunpack.c.l.s4 1934713408
      %v4984 = vunpack.c.0.s8 %v4983
      %v4985 = vlaneseq
      %v4986 = vshrl.u32 %v4985, 7
      %v4987 = vsub.s32 %v4984, %v4986
      %v4988 = vrot.slane %v4980, %v4987
      %v4990 = vunpack.c.l.s4 1934713408
      %v4991 = vunpack.c.0.s8 %v4990
      %v4992 = vlaneseq
      %v4993 = vshrl.u32 %v4992, 7
      %v4994 = vsub.s32 %v4991, %v4993
      %v4995 = vrot.slane %v4981, %v4994
      %v4996 = vcombine.low %v4940, %v4972
      %v4997 = vcombine.high %v4940, %v4972
      %v4998 = vcombine.low %v4947, %v4979
      %v4999 = vcombine.high %v4947, %v4979
      %v5000 = vcombine.low %v4956, %v4988
      %v5001 = vcombine.high %v4956, %v4988
      %v5002 = vcombine.low %v4963, %v4995
      %v5003 = vcombine.high %v4963, %v4995
      %v5004 = vcombine.low %v4805, %v4813
      %v5005 = vcombine.high %v4805, %v4813
      %v5007 = vunpack.c.l.s4 1983009808
      %v5008 = vunpack.c.0.s8 %v5007
      %v5009 = vlaneseq
      %v5010 = vshrl.u32 %v5009, 7
      %v5011 = vsub.s32 %v5008, %v5010
      %v5012 = vrot.slane %v5004, %v5011
      %v5014 = vunpack.c.l.s4 1983009808
      %v5015 = vunpack.c.0.s8 %v5014
      %v5016 = vlaneseq
      %v5017 = vshrl.u32 %v5016, 7
      %v5018 = vsub.s32 %v5015, %v5017
      %v5019 = vrot.slane %v5005, %v5018
      %v5020 = vcombine.low %v4809, %v4817
      %v5021 = vcombine.high %v4809, %v4817
      %v5023 = vunpack.c.l.s4 1983009808
      %v5024 = vunpack.c.0.s8 %v5023
      %v5025 = vlaneseq
      %v5026 = vshrl.u32 %v5025, 7
      %v5027 = vsub.s32 %v5024, %v5026
      %v5028 = vrot.slane %v5020, %v5027
      %v5030 = vunpack.c.l.s4 1983009808
      %v5031 = vunpack.c.0.s8 %v5030
      %v5032 = vlaneseq
      %v5033 = vshrl.u32 %v5032, 7
      %v5034 = vsub.s32 %v5031, %v5033
      %v5035 = vrot.slane %v5021, %v5034
      %v5036 = vcombine.low %v4821, %v4829
      %v5037 = vcombine.high %v4821, %v4829
      %v5039 = vunpack.c.l.s4 1983009808
      %v5040 = vunpack.c.0.s8 %v5039
      %v5041 = vlaneseq
      %v5042 = vshrl.u32 %v5041, 7
      %v5043 = vsub.s32 %v5040, %v5042
      %v5044 = vrot.slane %v5036, %v5043
      %v5046 = vunpack.c.l.s4 1983009808
      %v5047 = vunpack.c.0.s8 %v5046
      %v5048 = vlaneseq
      %v5049 = vshrl.u32 %v5048, 7
      %v5050 = vsub.s32 %v5047, %v5049
      %v5051 = vrot.slane %v5037, %v5050
      %v5052 = vcombine.low %v4825, %v4833
      %v5053 = vcombine.high %v4825, %v4833
      %v5055 = vunpack.c.l.s4 1983009808
      %v5056 = vunpack.c.0.s8 %v5055
      %v5057 = vlaneseq
      %v5058 = vshrl.u32 %v5057, 7
      %v5059 = vsub.s32 %v5056, %v5058
      %v5060 = vrot.slane %v5052, %v5059
      %v5062 = vunpack.c.l.s4 1983009808
      %v5063 = vunpack.c.0.s8 %v5062
      %v5064 = vlaneseq
      %v5065 = vshrl.u32 %v5064, 7
      %v5066 = vsub.s32 %v5063, %v5065
      %v5067 = vrot.slane %v5053, %v5066
      %v5068 = vcombine.low %v5012, %v5028
      %v5069 = vcombine.high %v5012, %v5028
      %v5071 = vunpack.c.l.s4 1934713408
      %v5072 = vunpack.c.0.s8 %v5071
      %v5073 = vlaneseq
      %v5074 = vshrl.u32 %v5073, 7
      %v5075 = vsub.s32 %v5072, %v5074
      %v5076 = vrot.slane %v5068, %v5075
      %v5078 = vunpack.c.l.s4 1934713408
      %v5079 = vunpack.c.0.s8 %v5078
      %v5080 = vlaneseq
      %v5081 = vshrl.u32 %v5080, 7
      %v5082 = vsub.s32 %v5079, %v5081
      %v5083 = vrot.slane %v5069, %v5082
      %v5084 = vcombine.low %v5019, %v5035
      %v5085 = vcombine.high %v5019, %v5035
      %v5087 = vunpack.c.l.s4 1934713408
      %v5088 = vunpack.c.0.s8 %v5087
      %v5089 = vlaneseq
      %v5090 = vshrl.u32 %v5089, 7
      %v5091 = vsub.s32 %v5088, %v5090
      %v5092 = vrot.slane %v5084, %v5091
      %v5094 = vunpack.c.l.s4 1934713408
      %v5095 = vunpack.c.0.s8 %v5094
      %v5096 = vlaneseq
      %v5097 = vshrl.u32 %v5096, 7
      %v5098 = vsub.s32 %v5095, %v5097
      %v5099 = vrot.slane %v5085, %v5098
      %v5100 = vcombine.low %v5044, %v5060
      %v5101 = vcombine.high %v5044, %v5060
      %v5103 = vunpack.c.l.s4 1934713408
      %v5104 = vunpack.c.0.s8 %v5103
      %v5105 = vlaneseq
      %v5106 = vshrl.u32 %v5105, 7
      %v5107 = vsub.s32 %v5104, %v5106
      %v5108 = vrot.slane %v5100, %v5107
      %v5110 = vunpack.c.l.s4 1934713408
      %v5111 = vunpack.c.0.s8 %v5110
      %v5112 = vlaneseq
      %v5113 = vshrl.u32 %v5112, 7
      %v5114 = vsub.s32 %v5111, %v5113
      %v5115 = vrot.slane %v5101, %v5114
      %v5116 = vcombine.low %v5051, %v5067
      %v5117 = vcombine.high %v5051, %v5067
      %v5119 = vunpack.c.l.s4 1934713408
      %v5120 = vunpack.c.0.s8 %v5119
      %v5121 = vlaneseq
      %v5122 = vshrl.u32 %v5121, 7
      %v5123 = vsub.s32 %v5120, %v5122
      %v5124 = vrot.slane %v5116, %v5123
      %v5126 = vunpack.c.l.s4 1934713408
      %v5127 = vunpack.c.0.s8 %v5126
      %v5128 = vlaneseq
      %v5129 = vshrl.u32 %v5128, 7
      %v5130 = vsub.s32 %v5127, %v5129
      %v5131 = vrot.slane %v5117, %v5130
      %v5132 = vcombine.low %v5076, %v5108
      %v5133 = vcombine.high %v5076, %v5108
      %v5134 = vcombine.low %v5083, %v5115
      %v5135 = vcombine.high %v5083, %v5115
      %v5136 = vcombine.low %v5092, %v5124
      %v5137 = vcombine.high %v5092, %v5124
      %v5138 = vcombine.low %v5099, %v5131
      %v5139 = vcombine.high %v5099, %v5131
      %v5140 = vcombine.low %v4775, %v4783
      %v5141 = vcombine.high %v4775, %v4783
      %v5143 = vunpack.c.l.s4 1983009808
      %v5144 = vunpack.c.0.s8 %v5143
      %v5145 = vlaneseq
      %v5146 = vshrl.u32 %v5145, 7
      %v5147 = vsub.s32 %v5144, %v5146
      %v5148 = vrot.slane %v5140, %v5147
      %v5150 = vunpack.c.l.s4 1983009808
      %v5151 = vunpack.c.0.s8 %v5150
      %v5152 = vlaneseq
      %v5153 = vshrl.u32 %v5152, 7
      %v5154 = vsub.s32 %v5151, %v5153
      %v5155 = vrot.slane %v5141, %v5154
      %v5156 = vcombine.low %v4779, %v4787
      %v5157 = vcombine.high %v4779, %v4787
      %v5159 = vunpack.c.l.s4 1983009808
      %v5160 = vunpack.c.0.s8 %v5159
      %v5161 = vlaneseq
      %v5162 = vshrl.u32 %v5161, 7
      %v5163 = vsub.s32 %v5160, %v5162
      %v5164 = vrot.slane %v5156, %v5163
      %v5166 = vunpack.c.l.s4 1983009808
      %v5167 = vunpack.c.0.s8 %v5166
      %v5168 = vlaneseq
      %v5169 = vshrl.u32 %v5168, 7
      %v5170 = vsub.s32 %v5167, %v5169
      %v5171 = vrot.slane %v5157, %v5170
      %v5172 = vcombine.low %v4791, %v4799
      %v5173 = vcombine.high %v4791, %v4799
      %v5175 = vunpack.c.l.s4 1983009808
      %v5176 = vunpack.c.0.s8 %v5175
      %v5177 = vlaneseq
      %v5178 = vshrl.u32 %v5177, 7
      %v5179 = vsub.s32 %v5176, %v5178
      %v5180 = vrot.slane %v5172, %v5179
      %v5182 = vunpack.c.l.s4 1983009808
      %v5183 = vunpack.c.0.s8 %v5182
      %v5184 = vlaneseq
      %v5185 = vshrl.u32 %v5184, 7
      %v5186 = vsub.s32 %v5183, %v5185
      %v5187 = vrot.slane %v5173, %v5186
      %v5188 = vcombine.low %v4795, %v4803
      %v5189 = vcombine.high %v4795, %v4803
      %v5191 = vunpack.c.l.s4 1983009808
      %v5192 = vunpack.c.0.s8 %v5191
      %v5193 = vlaneseq
      %v5194 = vshrl.u32 %v5193, 7
      %v5195 = vsub.s32 %v5192, %v5194
      %v5196 = vrot.slane %v5188, %v5195
      %v5198 = vunpack.c.l.s4 1983009808
      %v5199 = vunpack.c.0.s8 %v5198
      %v5200 = vlaneseq
      %v5201 = vshrl.u32 %v5200, 7
      %v5202 = vsub.s32 %v5199, %v5201
      %v5203 = vrot.slane %v5189, %v5202
      %v5204 = vcombine.low %v5148, %v5164
      %v5205 = vcombine.high %v5148, %v5164
      %v5207 = vunpack.c.l.s4 1934713408
      %v5208 = vunpack.c.0.s8 %v5207
      %v5209 = vlaneseq
      %v5210 = vshrl.u32 %v5209, 7
      %v5211 = vsub.s32 %v5208, %v5210
      %v5212 = vrot.slane %v5204, %v5211
      %v5214 = vunpack.c.l.s4 1934713408
      %v5215 = vunpack.c.0.s8 %v5214
      %v5216 = vlaneseq
      %v5217 = vshrl.u32 %v5216, 7
      %v5218 = vsub.s32 %v5215, %v5217
      %v5219 = vrot.slane %v5205, %v5218
      %v5220 = vcombine.low %v5155, %v5171
      %v5222 = vunpack.c.l.s4 1934713408
      %v5223 = vunpack.c.0.s8 %v5222
      %v5224 = vlaneseq
      %v5225 = vshrl.u32 %v5224, 7
      %v5226 = vsub.s32 %v5223, %v5225
      %v5227 = vrot.slane %v5220, %v5226
      %v5228 = vcombine.low %v5180, %v5196
      %v5229 = vcombine.high %v5180, %v5196
      %v5231 = vunpack.c.l.s4 1934713408
      %v5232 = vunpack.c.0.s8 %v5231
      %v5233 = vlaneseq
      %v5234 = vshrl.u32 %v5233, 7
      %v5235 = vsub.s32 %v5232, %v5234
      %v5236 = vrot.slane %v5228, %v5235
      %v5238 = vunpack.c.l.s4 1934713408
      %v5239 = vunpack.c.0.s8 %v5238
      %v5240 = vlaneseq
      %v5241 = vshrl.u32 %v5240, 7
      %v5242 = vsub.s32 %v5239, %v5241
      %v5243 = vrot.slane %v5229, %v5242
      %v5244 = vcombine.low %v5187, %v5203
      %v5246 = vunpack.c.l.s4 1934713408
      %v5247 = vunpack.c.0.s8 %v5246
      %v5248 = vlaneseq
      %v5249 = vshrl.u32 %v5248, 7
      %v5250 = vsub.s32 %v5247, %v5249
      %v5251 = vrot.slane %v5244, %v5250
      %v5252 = vcombine.low %v5212, %v5236
      %v5253 = vcombine.high %v5212, %v5236
      %v5254 = vcombine.low %v5219, %v5243
      %v5255 = vcombine.high %v5219, %v5243
      %v5256 = vcombine.low %v5227, %v5251
      %v5257 = vcombine.high %v5227, %v5251
      %v5258 = vcombine.low %v4807, %v4815
      %v5259 = vcombine.high %v4807, %v4815
      %v5261 = vunpack.c.l.s4 1983009808
      %v5262 = vunpack.c.0.s8 %v5261
      %v5263 = vlaneseq
      %v5264 = vshrl.u32 %v5263, 7
      %v5265 = vsub.s32 %v5262, %v5264
      %v5266 = vrot.slane %v5258, %v5265
      %v5268 = vunpack.c.l.s4 1983009808
      %v5269 = vunpack.c.0.s8 %v5268
      %v5270 = vlaneseq
      %v5271 = vshrl.u32 %v5270, 7
      %v5272 = vsub.s32 %v5269, %v5271
      %v5273 = vrot.slane %v5259, %v5272
      %v5274 = vcombine.low %v4811, %v4819
      %v5275 = vcombine.high %v4811, %v4819
      %v5277 = vunpack.c.l.s4 1983009808
      %v5278 = vunpack.c.0.s8 %v5277
      %v5279 = vlaneseq
      %v5280 = vshrl.u32 %v5279, 7
      %v5281 = vsub.s32 %v5278, %v5280
      %v5282 = vrot.slane %v5274, %v5281
      %v5284 = vunpack.c.l.s4 1983009808
      %v5285 = vunpack.c.0.s8 %v5284
      %v5286 = vlaneseq
      %v5287 = vshrl.u32 %v5286, 7
      %v5288 = vsub.s32 %v5285, %v5287
      %v5289 = vrot.slane %v5275, %v5288
      %v5290 = vcombine.low %v4823, %v4831
      %v5291 = vcombine.high %v4823, %v4831
      %v5293 = vunpack.c.l.s4 1983009808
      %v5294 = vunpack.c.0.s8 %v5293
      %v5295 = vlaneseq
      %v5296 = vshrl.u32 %v5295, 7
      %v5297 = vsub.s32 %v5294, %v5296
      %v5298 = vrot.slane %v5290, %v5297
      %v5300 = vunpack.c.l.s4 1983009808
      %v5301 = vunpack.c.0.s8 %v5300
      %v5302 = vlaneseq
      %v5303 = vshrl.u32 %v5302, 7
      %v5304 = vsub.s32 %v5301, %v5303
      %v5305 = vrot.slane %v5291, %v5304
      %v5306 = vcombine.low %v4827, %v4835
      %v5307 = vcombine.high %v4827, %v4835
      %v5309 = vunpack.c.l.s4 1983009808
      %v5310 = vunpack.c.0.s8 %v5309
      %v5311 = vlaneseq
      %v5312 = vshrl.u32 %v5311, 7
      %v5313 = vsub.s32 %v5310, %v5312
      %v5314 = vrot.slane %v5306, %v5313
      %v5316 = vunpack.c.l.s4 1983009808
      %v5317 = vunpack.c.0.s8 %v5316
      %v5318 = vlaneseq
      %v5319 = vshrl.u32 %v5318, 7
      %v5320 = vsub.s32 %v5317, %v5319
      %v5321 = vrot.slane %v5307, %v5320
      %v5322 = vcombine.low %v5266, %v5282
      %v5323 = vcombine.high %v5266, %v5282
      %v5325 = vunpack.c.l.s4 1934713408
      %v5326 = vunpack.c.0.s8 %v5325
      %v5327 = vlaneseq
      %v5328 = vshrl.u32 %v5327, 7
      %v5329 = vsub.s32 %v5326, %v5328
      %v5330 = vrot.slane %v5322, %v5329
      %v5332 = vunpack.c.l.s4 1934713408
      %v5333 = vunpack.c.0.s8 %v5332
      %v5334 = vlaneseq
      %v5335 = vshrl.u32 %v5334, 7
      %v5336 = vsub.s32 %v5333, %v5335
      %v5337 = vrot.slane %v5323, %v5336
      %v5338 = vcombine.low %v5273, %v5289
      %v5340 = vunpack.c.l.s4 1934713408
      %v5341 = vunpack.c.0.s8 %v5340
      %v5342 = vlaneseq
      %v5343 = vshrl.u32 %v5342, 7
      %v5344 = vsub.s32 %v5341, %v5343
      %v5345 = vrot.slane %v5338, %v5344
      %v5346 = vcombine.low %v5298, %v5314
      %v5347 = vcombine.high %v5298, %v5314
      %v5349 = vunpack.c.l.s4 1934713408
      %v5350 = vunpack.c.0.s8 %v5349
      %v5351 = vlaneseq
      %v5352 = vshrl.u32 %v5351, 7
      %v5353 = vsub.s32 %v5350, %v5352
      %v5354 = vrot.slane %v5346, %v5353
      %v5356 = vunpack.c.l.s4 1934713408
      %v5357 = vunpack.c.0.s8 %v5356
      %v5358 = vlaneseq
      %v5359 = vshrl.u32 %v5358, 7
      %v5360 = vsub.s32 %v5357, %v5359
      %v5361 = vrot.slane %v5347, %v5360
      %v5362 = vcombine.low %v5305, %v5321
      %v5364 = vunpack.c.l.s4 1934713408
      %v5365 = vunpack.c.0.s8 %v5364
      %v5366 = vlaneseq
      %v5367 = vshrl.u32 %v5366, 7
      %v5368 = vsub.s32 %v5365, %v5367
      %v5369 = vrot.slane %v5362, %v5368
      %v5370 = vcombine.low %v5330, %v5354
      %v5371 = vcombine.high %v5330, %v5354
      %v5372 = vcombine.low %v5337, %v5361
      %v5373 = vcombine.high %v5337, %v5361
      %v5374 = vcombine.low %v5345, %v5369
      %v5375 = vcombine.high %v5345, %v5369
      %5378 = vrot.lane.b32.xlu0 %v4997, 14
      %v5379 = vpop.permute.xlu0 %5378
      %5380 = vrot.lane.b32.xlu0 %v5133, 14
      %v5381 = vpop.permute.xlu0 %5380
      %5386 = vrot.lane.b32.xlu0 %v4998, 28
      %v5387 = vpop.permute.xlu0 %5386
      %5388 = vrot.lane.b32.xlu0 %v5134, 28
      %v5389 = vpop.permute.xlu0 %5388
      %5394 = vrot.lane.b32.xlu0 %v4999, 42
      %v5395 = vpop.permute.xlu0 %5394
      %5396 = vrot.lane.b32.xlu0 %v5135, 42
      %v5397 = vpop.permute.xlu0 %5396
      %5402 = vrot.lane.b32.xlu0 %v5000, 56
      %v5403 = vpop.permute.xlu0 %5402
      %5404 = vrot.lane.b32.xlu0 %v5136, 56
      %v5405 = vpop.permute.xlu0 %5404
      %5410 = vrot.lane.b32.xlu0 %v5001, 70
      %v5411 = vpop.permute.xlu0 %5410
      %5412 = vrot.lane.b32.xlu0 %v5137, 70
      %v5413 = vpop.permute.xlu0 %5412
      %5418 = vrot.lane.b32.xlu0 %v5002, 84
      %v5419 = vpop.permute.xlu0 %5418
      %5420 = vrot.lane.b32.xlu0 %v5138, 84
      %v5421 = vpop.permute.xlu0 %5420
      %5426 = vrot.lane.b32.xlu0 %v5003, 98
      %v5427 = vpop.permute.xlu0 %5426
      %5428 = vrot.lane.b32.xlu0 %v5139, 98
      %v5429 = vpop.permute.xlu0 %5428
      %5434 = vrot.lane.b32.xlu0 %v5252, 112
      %v5435 = vpop.permute.xlu0 %5434
      %5436 = vrot.lane.b32.xlu0 %v5370, 112
      %v5437 = vpop.permute.xlu0 %5436
      %5442 = vrot.lane.b32.xlu0 %v5253, 126
      %v5443 = vpop.permute.xlu0 %5442
      %5444 = vrot.lane.b32.xlu0 %v5371, 126
      %v5445 = vpop.permute.xlu0 %5444
      %5450 = vrot.lane.b32.xlu0 %v5254, 12
      %v5451 = vpop.permute.xlu0 %5450
      %5452 = vrot.lane.b32.xlu0 %v5372, 12
      %v5453 = vpop.permute.xlu0 %5452
      %5458 = vrot.lane.b32.xlu0 %v5255, 26
      %v5459 = vpop.permute.xlu0 %5458
      %5460 = vrot.lane.b32.xlu0 %v5373, 26
      %v5461 = vpop.permute.xlu0 %5460
      %5466 = vrot.lane.b32.xlu0 %v5256, 40
      %v5467 = vpop.permute.xlu0 %5466
      %5468 = vrot.lane.b32.xlu0 %v5374, 40
      %v5469 = vpop.permute.xlu0 %5468
      %5474 = vrot.lane.b32.xlu0 %v5257, 54
      %v5475 = vpop.permute.xlu0 %5474
      %5476 = vrot.lane.b32.xlu0 %v5375, 54
      %v5477 = vpop.permute.xlu0 %5476
      %v5480 = vsel %vm1201, %v4996, %v5379
      %v5481 = vsel %vm1201, %v5132, %v5381
      %v5482 = vsel %vm1204, %v5480, %v5387
      %v5483 = vsel %vm1204, %v5481, %v5389
      %v5484 = vsel %vm1207, %v5482, %v5395
      %v5485 = vsel %vm1207, %v5483, %v5397
      %v5486 = vsel %vm1210, %v5484, %v5403
      %v5487 = vsel %vm1210, %v5485, %v5405
      %v5488 = vsel %vm1213, %v5486, %v5411
      %v5489 = vsel %vm1213, %v5487, %v5413
      %v5490 = vsel %vm1216, %v5488, %v5419
      %v5491 = vsel %vm1216, %v5489, %v5421
      %v5492 = vsel %vm1219, %v5490, %v5427
      %v5493 = vsel %vm1219, %v5491, %v5429
      %v5494 = vsel %vm1222, %v5492, %v5435
      %v5495 = vsel %vm1222, %v5493, %v5437
      %v5496 = vsel %vm1225, %v5494, %v5443
      %v5497 = vsel %vm1225, %v5495, %v5445
      %v5498 = vsel %vm1228, %v5443, %v5451
      %v5499 = vsel %vm1228, %v5445, %v5453
      %v5500 = vsel %vm1231, %v5498, %v5459
      %v5501 = vsel %vm1231, %v5499, %v5461
      %v5502 = vsel %vm1234, %v5500, %v5467
      %v5503 = vsel %vm1234, %v5501, %v5469
      %v5504 = vsel %vm1237, %v5502, %v5475
      %v5505 = vsel %vm1237, %v5503, %v5477
      %5506 = vrot.lane.b32.xlu0 %v553, 48
      %v5507 = vpop.permute.xlu0 %5506
      %5508 = vrot.lane.b32.xlu0 %v555, 48
      %v5509 = vpop.permute.xlu0 %5508
      %v5510 = vsel %vm2012, %v5507, 0
      %v5512 = vsel %vm2012, %v5509, 0
      %5514 = vmatprep.subr.mxu0 %v5504
      %5515 = vmatpush1.msra.mxu0 %v5496
      %5516 = vmatprep.subr.mxu0 %v5505
      %5517 = vmatpush1.msra.mxu0 %v5497
      %5518 = vmatprep.subr.mxu0 0.0
      %5519 = vmatpush1.msra.mxu0 0.0
      %5520 = vmatprep.subr.mxu0 0.0
      %5521 = vmatpush1.msra.mxu0 0.0
      %5522 = vmatprep.subr.mxu0 0.0
      %5523 = vmatpush1.msra.mxu0 0.0
      %5524 = vmatprep.subr.mxu0 0.0
      %5525 = vmatpush1.msra.mxu0 0.0
      %5526 = vmatprep.subr.mxu0 0.0
      %5527 = vmatpush1.msra.mxu0 0.0
      %5528 = vmatprep.subr.mxu0 0.0
      %5529 = vmatpush1.msra.mxu0 0.0
      %5530 = vmatprep.subr.mxu0 0.0
      %5531 = vmatpush1.msra.mxu0 0.0
      %5532 = vmatprep.subr.mxu0 0.0
      %5533 = vmatpush1.msra.mxu0 0.0
      %5534 = vmatprep.subr.mxu0 0.0
      %5535 = vmatpush1.msra.mxu0 0.0
      %5536 = vmatprep.subr.mxu0 0.0
      %5537 = vmatpush1.msra.mxu0 0.0
      %5538 = vmatprep.subr.mxu0 0.0
      %5539 = vmatpush1.msra.mxu0 0.0
      %5540 = vmatprep.subr.mxu0 0.0
      %5541 = vmatpush1.msra.mxu0 0.0
      %5542 = vmatprep.subr.mxu0 0.0
      %5543 = vmatpush1.msra.mxu0 0.0
      %5544 = vmatprep.subr.mxu0 0.0
      %5545 = vmatpush1.msra.mxu0 0.0
      %5546 = vmatprep.subr.mxu0 0.0
      %5547 = vmatpush1.msra.mxu0 0.0
      %5548 = vmatprep.subr.mxu0 0.0
      %5549 = vmatpush1.msra.mxu0 0.0
      %5550 = vmatprep.subr.mxu0 0.0
      %5551 = vmatpush1.msra.mxu0 0.0
      %5552 = vmatprep.subr.mxu0 0.0
      %5553 = vmatpush1.msra.mxu0 0.0
      %5554 = vmatprep.subr.mxu0 0.0
      %5555 = vmatpush1.msra.mxu0 0.0
      %5556 = vmatprep.subr.mxu0 0.0
      %5557 = vmatpush1.msra.mxu0 0.0
      %5558 = vmatprep.subr.mxu0 0.0
      %5559 = vmatpush1.msra.mxu0 0.0
      %5560 = vmatprep.subr.mxu0 0.0
      %5561 = vmatpush1.msra.mxu0 0.0
      %5562 = vmatprep.subr.mxu0 0.0
      %5563 = vmatpush1.msra.mxu0 0.0
      %5564 = vmatprep.subr.mxu0 0.0
      %5565 = vmatpush1.msra.mxu0 0.0
      %5566 = vmatprep.subr.mxu0 0.0
      %5567 = vmatpush1.msra.mxu0 0.0
      %5568 = vmatprep.subr.mxu0 0.0
      %5569 = vmatpush1.msra.mxu0 0.0
      %5570 = vmatprep.subr.mxu0 0.0
      %5571 = vmatpush1.msra.mxu0 0.0
      %5572 = vmatprep.subr.mxu0 0.0
      %5573 = vmatpush1.msra.mxu0 0.0
      %5574 = vmatprep.subr.mxu0 0.0
      %5575 = vmatpush1.msra.mxu0 0.0
      %5576 = vmatprep.subr.mxu0 0.0
      %5577 = vmatpush1.msra.mxu0 0.0
      %5578 = vmatprep.mubr.f32.mxu0 0.0
      %5579 = vmatmul.mubr.f32.gmra.mrb[0].mxu0 %v5510
      %v5580 = vpop.f32.mrb[0].mxu0
      %v5581 = vadd.f32 0.0, %v5580
      %v5582 = vpop.f32.mrb[0].mxu0
      %v5583 = vadd.f32 0.0, %v5582
      %5584 = vmatprep.mubr.f32.mxu0 0.0
      %5585 = vmatmul.mubr.f32.gmra.mrb[0].mxu0 %v5512
      %v5586 = vpop.f32.mrb[0].mxu0
      %v5587 = vadd.f32 0.0, %v5586
      %v5588 = vpop.f32.mrb[0].mxu0
      %v5589 = vadd.f32 0.0, %v5588
      %5590 = vdwg.mxu0
      %v5591 = vadd.f32 %v4704, %v5581
      %v5592 = vadd.f32 %v4705, %v5583
      %v5593 = vadd.f32 %v4706, %v5587
      %v5594 = vadd.f32 %v4707, %v5589
      %v5595 = vld [vmem:[#allocation2 + $0x2] sm:$0xff]
      %v5596 = vld [vmem:[#allocation2 + $0xa] sm:$0x3f]
      %v5597 = vld [vmem:[#allocation2 + $0x12] sm:$0xff]
      %v5598 = vld [vmem:[#allocation2 + $0x1a] sm:$0x3f]
      %v5599 = vld [vmem:[#allocation2 + $0x22] sm:$0xff]
      %v5600 = vld [vmem:[#allocation2 + $0x2a] sm:$0x3f]
      %v5601 = vld [vmem:[#allocation2 + $0x32] sm:$0xff]
      %v5602 = vld [vmem:[#allocation2 + $0x3a] sm:$0x3f]
      %v5603 = vld [vmem:[#allocation2 + $0x42] sm:$0xff]
      %v5604 = vld [vmem:[#allocation2 + $0x4a] sm:$0x3f]
      %v5605 = vld [vmem:[#allocation2 + $0x52] sm:$0xff]
      %v5606 = vld [vmem:[#allocation2 + $0x5a] sm:$0x3f]
      %v5607 = vld [vmem:[#allocation2 + $0x62] sm:$0xff]
      %v5608 = vld [vmem:[#allocation2 + $0x6a] sm:$0x3f]
      %v5609 = vld [vmem:[#allocation2 + $0x72] sm:$0xff]
      %v5610 = vld [vmem:[#allocation2 + $0x7a] sm:$0x3f]
      %v5611 = vld [vmem:[#allocation2 + $0x82] sm:$0xff]
      %v5612 = vld [vmem:[#allocation2 + $0x8a] sm:$0x3f]
      %v5613 = vld [vmem:[#allocation2 + $0x92] sm:$0xff]
      %v5614 = vld [vmem:[#allocation2 + $0x9a] sm:$0x3f]
      %v5615 = vld [vmem:[#allocation2 + $0xa2] sm:$0xff]
      %v5616 = vld [vmem:[#allocation2 + $0xaa] sm:$0x3f]
      %v5617 = vld [vmem:[#allocation2 + $0xb2] sm:$0xff]
      %v5618 = vld [vmem:[#allocation2 + $0xba] sm:$0x3f]
      %v5619 = vld [vmem:[#allocation2 + $0xc2] sm:$0xff]
      %v5620 = vld [vmem:[#allocation2 + $0xca] sm:$0x3f]
      %v5621 = vld [vmem:[#allocation2 + $0xd2] sm:$0xff]
      %v5622 = vld [vmem:[#allocation2 + $0xda] sm:$0x3f]
      %v5623 = vld [vmem:[#allocation2 + $0xe2] sm:$0xff]
      %v5624 = vld [vmem:[#allocation2 + $0xea] sm:$0x3f]
      %v5625 = vld [vmem:[#allocation2 + $0xf2] sm:$0xff]
      %v5626 = vld [vmem:[#allocation2 + $0xfa] sm:$0x3f]
      %v5627 = vcombine.low %v5595, %v5599
      %v5628 = vcombine.high %v5595, %v5599
      %v5630 = vunpack.c.l.s4 1983009808
      %v5631 = vunpack.c.0.s8 %v5630
      %v5632 = vlaneseq
      %v5633 = vshrl.u32 %v5632, 7
      %v5634 = vsub.s32 %v5631, %v5633
      %v5635 = vrot.slane %v5627, %v5634
      %v5637 = vunpack.c.l.s4 1983009808
      %v5638 = vunpack.c.0.s8 %v5637
      %v5639 = vlaneseq
      %v5640 = vshrl.u32 %v5639, 7
      %v5641 = vsub.s32 %v5638, %v5640
      %v5642 = vrot.slane %v5628, %v5641
      %v5643 = vcombine.low %v5597, %v5601
      %v5644 = vcombine.high %v5597, %v5601
      %v5646 = vunpack.c.l.s4 1983009808
      %v5647 = vunpack.c.0.s8 %v5646
      %v5648 = vlaneseq
      %v5649 = vshrl.u32 %v5648, 7
      %v5650 = vsub.s32 %v5647, %v5649
      %v5651 = vrot.slane %v5643, %v5650
      %v5653 = vunpack.c.l.s4 1983009808
      %v5654 = vunpack.c.0.s8 %v5653
      %v5655 = vlaneseq
      %v5656 = vshrl.u32 %v5655, 7
      %v5657 = vsub.s32 %v5654, %v5656
      %v5658 = vrot.slane %v5644, %v5657
      %v5659 = vcombine.low %v5603, %v5607
      %v5660 = vcombine.high %v5603, %v5607
      %v5662 = vunpack.c.l.s4 1983009808
      %v5663 = vunpack.c.0.s8 %v5662
      %v5664 = vlaneseq
      %v5665 = vshrl.u32 %v5664, 7
      %v5666 = vsub.s32 %v5663, %v5665
      %v5667 = vrot.slane %v5659, %v5666
      %v5669 = vunpack.c.l.s4 1983009808
      %v5670 = vunpack.c.0.s8 %v5669
      %v5671 = vlaneseq
      %v5672 = vshrl.u32 %v5671, 7
      %v5673 = vsub.s32 %v5670, %v5672
      %v5674 = vrot.slane %v5660, %v5673
      %v5675 = vcombine.low %v5605, %v5609
      %v5676 = vcombine.high %v5605, %v5609
      %v5678 = vunpack.c.l.s4 1983009808
      %v5679 = vunpack.c.0.s8 %v5678
      %v5680 = vlaneseq
      %v5681 = vshrl.u32 %v5680, 7
      %v5682 = vsub.s32 %v5679, %v5681
      %v5683 = vrot.slane %v5675, %v5682
      %v5685 = vunpack.c.l.s4 1983009808
      %v5686 = vunpack.c.0.s8 %v5685
      %v5687 = vlaneseq
      %v5688 = vshrl.u32 %v5687, 7
      %v5689 = vsub.s32 %v5686, %v5688
      %v5690 = vrot.slane %v5676, %v5689
      %v5691 = vcombine.low %v5635, %v5651
      %v5692 = vcombine.high %v5635, %v5651
      %v5694 = vunpack.c.l.s4 1934713408
      %v5695 = vunpack.c.0.s8 %v5694
      %v5696 = vlaneseq
      %v5697 = vshrl.u32 %v5696, 7
      %v5698 = vsub.s32 %v5695, %v5697
      %v5699 = vrot.slane %v5691, %v5698
      %v5701 = vunpack.c.l.s4 1934713408
      %v5702 = vunpack.c.0.s8 %v5701
      %v5703 = vlaneseq
      %v5704 = vshrl.u32 %v5703, 7
      %v5705 = vsub.s32 %v5702, %v5704
      %v5706 = vrot.slane %v5692, %v5705
      %v5707 = vcombine.low %v5642, %v5658
      %v5708 = vcombine.high %v5642, %v5658
      %v5710 = vunpack.c.l.s4 1934713408
      %v5711 = vunpack.c.0.s8 %v5710
      %v5712 = vlaneseq
      %v5713 = vshrl.u32 %v5712, 7
      %v5714 = vsub.s32 %v5711, %v5713
      %v5715 = vrot.slane %v5707, %v5714
      %v5717 = vunpack.c.l.s4 1934713408
      %v5718 = vunpack.c.0.s8 %v5717
      %v5719 = vlaneseq
      %v5720 = vshrl.u32 %v5719, 7
      %v5721 = vsub.s32 %v5718, %v5720
      %v5722 = vrot.slane %v5708, %v5721
      %v5723 = vcombine.low %v5667, %v5683
      %v5724 = vcombine.high %v5667, %v5683
      %v5726 = vunpack.c.l.s4 1934713408
      %v5727 = vunpack.c.0.s8 %v5726
      %v5728 = vlaneseq
      %v5729 = vshrl.u32 %v5728, 7
      %v5730 = vsub.s32 %v5727, %v5729
      %v5731 = vrot.slane %v5723, %v5730
      %v5733 = vunpack.c.l.s4 1934713408
      %v5734 = vunpack.c.0.s8 %v5733
      %v5735 = vlaneseq
      %v5736 = vshrl.u32 %v5735, 7
      %v5737 = vsub.s32 %v5734, %v5736
      %v5738 = vrot.slane %v5724, %v5737
      %v5739 = vcombine.low %v5674, %v5690
      %v5740 = vcombine.high %v5674, %v5690
      %v5742 = vunpack.c.l.s4 1934713408
      %v5743 = vunpack.c.0.s8 %v5742
      %v5744 = vlaneseq
      %v5745 = vshrl.u32 %v5744, 7
      %v5746 = vsub.s32 %v5743, %v5745
      %v5747 = vrot.slane %v5739, %v5746
      %v5749 = vunpack.c.l.s4 1934713408
      %v5750 = vunpack.c.0.s8 %v5749
      %v5751 = vlaneseq
      %v5752 = vshrl.u32 %v5751, 7
      %v5753 = vsub.s32 %v5750, %v5752
      %v5754 = vrot.slane %v5740, %v5753
      %v5755 = vcombine.low %v5699, %v5731
      %v5756 = vcombine.high %v5699, %v5731
      %v5757 = vcombine.low %v5706, %v5738
      %v5758 = vcombine.high %v5706, %v5738
      %v5759 = vcombine.low %v5715, %v5747
      %v5760 = vcombine.high %v5715, %v5747
      %v5761 = vcombine.low %v5722, %v5754
      %v5762 = vcombine.high %v5722, %v5754
      %v5763 = vcombine.low %v5611, %v5615
      %v5764 = vcombine.high %v5611, %v5615
      %v5766 = vunpack.c.l.s4 1983009808
      %v5767 = vunpack.c.0.s8 %v5766
      %v5768 = vlaneseq
      %v5769 = vshrl.u32 %v5768, 7
      %v5770 = vsub.s32 %v5767, %v5769
      %v5771 = vrot.slane %v5763, %v5770
      %v5773 = vunpack.c.l.s4 1983009808
      %v5774 = vunpack.c.0.s8 %v5773
      %v5775 = vlaneseq
      %v5776 = vshrl.u32 %v5775, 7
      %v5777 = vsub.s32 %v5774, %v5776
      %v5778 = vrot.slane %v5764, %v5777
      %v5779 = vcombine.low %v5613, %v5617
      %v5780 = vcombine.high %v5613, %v5617
      %v5782 = vunpack.c.l.s4 1983009808
      %v5783 = vunpack.c.0.s8 %v5782
      %v5784 = vlaneseq
      %v5785 = vshrl.u32 %v5784, 7
      %v5786 = vsub.s32 %v5783, %v5785
      %v5787 = vrot.slane %v5779, %v5786
      %v5789 = vunpack.c.l.s4 1983009808
      %v5790 = vunpack.c.0.s8 %v5789
      %v5791 = vlaneseq
      %v5792 = vshrl.u32 %v5791, 7
      %v5793 = vsub.s32 %v5790, %v5792
      %v5794 = vrot.slane %v5780, %v5793
      %v5795 = vcombine.low %v5619, %v5623
      %v5796 = vcombine.high %v5619, %v5623
      %v5798 = vunpack.c.l.s4 1983009808
      %v5799 = vunpack.c.0.s8 %v5798
      %v5800 = vlaneseq
      %v5801 = vshrl.u32 %v5800, 7
      %v5802 = vsub.s32 %v5799, %v5801
      %v5803 = vrot.slane %v5795, %v5802
      %v5805 = vunpack.c.l.s4 1983009808
      %v5806 = vunpack.c.0.s8 %v5805
      %v5807 = vlaneseq
      %v5808 = vshrl.u32 %v5807, 7
      %v5809 = vsub.s32 %v5806, %v5808
      %v5810 = vrot.slane %v5796, %v5809
      %v5811 = vcombine.low %v5621, %v5625
      %v5812 = vcombine.high %v5621, %v5625
      %v5814 = vunpack.c.l.s4 1983009808
      %v5815 = vunpack.c.0.s8 %v5814
      %v5816 = vlaneseq
      %v5817 = vshrl.u32 %v5816, 7
      %v5818 = vsub.s32 %v5815, %v5817
      %v5819 = vrot.slane %v5811, %v5818
      %v5821 = vunpack.c.l.s4 1983009808
      %v5822 = vunpack.c.0.s8 %v5821
      %v5823 = vlaneseq
      %v5824 = vshrl.u32 %v5823, 7
      %v5825 = vsub.s32 %v5822, %v5824
      %v5826 = vrot.slane %v5812, %v5825
      %v5827 = vcombine.low %v5771, %v5787
      %v5828 = vcombine.high %v5771, %v5787
      %v5830 = vunpack.c.l.s4 1934713408
      %v5831 = vunpack.c.0.s8 %v5830
      %v5832 = vlaneseq
      %v5833 = vshrl.u32 %v5832, 7
      %v5834 = vsub.s32 %v5831, %v5833
      %v5835 = vrot.slane %v5827, %v5834
      %v5837 = vunpack.c.l.s4 1934713408
      %v5838 = vunpack.c.0.s8 %v5837
      %v5839 = vlaneseq
      %v5840 = vshrl.u32 %v5839, 7
      %v5841 = vsub.s32 %v5838, %v5840
      %v5842 = vrot.slane %v5828, %v5841
      %v5843 = vcombine.low %v5778, %v5794
      %v5844 = vcombine.high %v5778, %v5794
      %v5846 = vunpack.c.l.s4 1934713408
      %v5847 = vunpack.c.0.s8 %v5846
      %v5848 = vlaneseq
      %v5849 = vshrl.u32 %v5848, 7
      %v5850 = vsub.s32 %v5847, %v5849
      %v5851 = vrot.slane %v5843, %v5850
      %v5853 = vunpack.c.l.s4 1934713408
      %v5854 = vunpack.c.0.s8 %v5853
      %v5855 = vlaneseq
      %v5856 = vshrl.u32 %v5855, 7
      %v5857 = vsub.s32 %v5854, %v5856
      %v5858 = vrot.slane %v5844, %v5857
      %v5859 = vcombine.low %v5803, %v5819
      %v5860 = vcombine.high %v5803, %v5819
      %v5862 = vunpack.c.l.s4 1934713408
      %v5863 = vunpack.c.0.s8 %v5862
      %v5864 = vlaneseq
      %v5865 = vshrl.u32 %v5864, 7
      %v5866 = vsub.s32 %v5863, %v5865
      %v5867 = vrot.slane %v5859, %v5866
      %v5869 = vunpack.c.l.s4 1934713408
      %v5870 = vunpack.c.0.s8 %v5869
      %v5871 = vlaneseq
      %v5872 = vshrl.u32 %v5871, 7
      %v5873 = vsub.s32 %v5870, %v5872
      %v5874 = vrot.slane %v5860, %v5873
      %v5875 = vcombine.low %v5810, %v5826
      %v5876 = vcombine.high %v5810, %v5826
      %v5878 = vunpack.c.l.s4 1934713408
      %v5879 = vunpack.c.0.s8 %v5878
      %v5880 = vlaneseq
      %v5881 = vshrl.u32 %v5880, 7
      %v5882 = vsub.s32 %v5879, %v5881
      %v5883 = vrot.slane %v5875, %v5882
      %v5885 = vunpack.c.l.s4 1934713408
      %v5886 = vunpack.c.0.s8 %v5885
      %v5887 = vlaneseq
      %v5888 = vshrl.u32 %v5887, 7
      %v5889 = vsub.s32 %v5886, %v5888
      %v5890 = vrot.slane %v5876, %v5889
      %v5891 = vcombine.low %v5835, %v5867
      %v5892 = vcombine.high %v5835, %v5867
      %v5893 = vcombine.low %v5842, %v5874
      %v5894 = vcombine.high %v5842, %v5874
      %v5895 = vcombine.low %v5851, %v5883
      %v5896 = vcombine.high %v5851, %v5883
      %v5897 = vcombine.low %v5858, %v5890
      %v5898 = vcombine.high %v5858, %v5890
      %v5899 = vcombine.low %v5596, %v5600
      %v5900 = vcombine.high %v5596, %v5600
      %v5902 = vunpack.c.l.s4 1983009808
      %v5903 = vunpack.c.0.s8 %v5902
      %v5904 = vlaneseq
      %v5905 = vshrl.u32 %v5904, 7
      %v5906 = vsub.s32 %v5903, %v5905
      %v5907 = vrot.slane %v5899, %v5906
      %v5909 = vunpack.c.l.s4 1983009808
      %v5910 = vunpack.c.0.s8 %v5909
      %v5911 = vlaneseq
      %v5912 = vshrl.u32 %v5911, 7
      %v5913 = vsub.s32 %v5910, %v5912
      %v5914 = vrot.slane %v5900, %v5913
      %v5915 = vcombine.low %v5598, %v5602
      %v5916 = vcombine.high %v5598, %v5602
      %v5918 = vunpack.c.l.s4 1983009808
      %v5919 = vunpack.c.0.s8 %v5918
      %v5920 = vlaneseq
      %v5921 = vshrl.u32 %v5920, 7
      %v5922 = vsub.s32 %v5919, %v5921
      %v5923 = vrot.slane %v5915, %v5922
      %v5925 = vunpack.c.l.s4 1983009808
      %v5926 = vunpack.c.0.s8 %v5925
      %v5927 = vlaneseq
      %v5928 = vshrl.u32 %v5927, 7
      %v5929 = vsub.s32 %v5926, %v5928
      %v5930 = vrot.slane %v5916, %v5929
      %v5931 = vcombine.low %v5604, %v5608
      %v5932 = vcombine.high %v5604, %v5608
      %v5934 = vunpack.c.l.s4 1983009808
      %v5935 = vunpack.c.0.s8 %v5934
      %v5936 = vlaneseq
      %v5937 = vshrl.u32 %v5936, 7
      %v5938 = vsub.s32 %v5935, %v5937
      %v5939 = vrot.slane %v5931, %v5938
      %v5941 = vunpack.c.l.s4 1983009808
      %v5942 = vunpack.c.0.s8 %v5941
      %v5943 = vlaneseq
      %v5944 = vshrl.u32 %v5943, 7
      %v5945 = vsub.s32 %v5942, %v5944
      %v5946 = vrot.slane %v5932, %v5945
      %v5947 = vcombine.low %v5606, %v5610
      %v5948 = vcombine.high %v5606, %v5610
      %v5950 = vunpack.c.l.s4 1983009808
      %v5951 = vunpack.c.0.s8 %v5950
      %v5952 = vlaneseq
      %v5953 = vshrl.u32 %v5952, 7
      %v5954 = vsub.s32 %v5951, %v5953
      %v5955 = vrot.slane %v5947, %v5954
      %v5957 = vunpack.c.l.s4 1983009808
      %v5958 = vunpack.c.0.s8 %v5957
      %v5959 = vlaneseq
      %v5960 = vshrl.u32 %v5959, 7
      %v5961 = vsub.s32 %v5958, %v5960
      %v5962 = vrot.slane %v5948, %v5961
      %v5963 = vcombine.low %v5907, %v5923
      %v5964 = vcombine.high %v5907, %v5923
      %v5966 = vunpack.c.l.s4 1934713408
      %v5967 = vunpack.c.0.s8 %v5966
      %v5968 = vlaneseq
      %v5969 = vshrl.u32 %v5968, 7
      %v5970 = vsub.s32 %v5967, %v5969
      %v5971 = vrot.slane %v5963, %v5970
      %v5973 = vunpack.c.l.s4 1934713408
      %v5974 = vunpack.c.0.s8 %v5973
      %v5975 = vlaneseq
      %v5976 = vshrl.u32 %v5975, 7
      %v5977 = vsub.s32 %v5974, %v5976
      %v5978 = vrot.slane %v5964, %v5977
      %v5979 = vcombine.low %v5914, %v5930
      %v5981 = vunpack.c.l.s4 1934713408
      %v5982 = vunpack.c.0.s8 %v5981
      %v5983 = vlaneseq
      %v5984 = vshrl.u32 %v5983, 7
      %v5985 = vsub.s32 %v5982, %v5984
      %v5986 = vrot.slane %v5979, %v5985
      %v5987 = vcombine.low %v5939, %v5955
      %v5988 = vcombine.high %v5939, %v5955
      %v5990 = vunpack.c.l.s4 1934713408
      %v5991 = vunpack.c.0.s8 %v5990
      %v5992 = vlaneseq
      %v5993 = vshrl.u32 %v5992, 7
      %v5994 = vsub.s32 %v5991, %v5993
      %v5995 = vrot.slane %v5987, %v5994
      %v5997 = vunpack.c.l.s4 1934713408
      %v5998 = vunpack.c.0.s8 %v5997
      %v5999 = vlaneseq
      %v6000 = vshrl.u32 %v5999, 7
      %v6001 = vsub.s32 %v5998, %v6000
      %v6002 = vrot.slane %v5988, %v6001
      %v6003 = vcombine.low %v5946, %v5962
      %v6005 = vunpack.c.l.s4 1934713408
      %v6006 = vunpack.c.0.s8 %v6005
      %v6007 = vlaneseq
      %v6008 = vshrl.u32 %v6007, 7
      %v6009 = vsub.s32 %v6006, %v6008
      %v6010 = vrot.slane %v6003, %v6009
      %v6011 = vcombine.low %v5971, %v5995
      %v6012 = vcombine.high %v5971, %v5995
      %v6013 = vcombine.low %v5978, %v6002
      %v6014 = vcombine.high %v5978, %v6002
      %v6015 = vcombine.low %v5986, %v6010
      %v6016 = vcombine.high %v5986, %v6010
      %v6017 = vcombine.low %v5612, %v5616
      %v6018 = vcombine.high %v5612, %v5616
      %v6020 = vunpack.c.l.s4 1983009808
      %v6021 = vunpack.c.0.s8 %v6020
      %v6022 = vlaneseq
      %v6023 = vshrl.u32 %v6022, 7
      %v6024 = vsub.s32 %v6021, %v6023
      %v6025 = vrot.slane %v6017, %v6024
      %v6027 = vunpack.c.l.s4 1983009808
      %v6028 = vunpack.c.0.s8 %v6027
      %v6029 = vlaneseq
      %v6030 = vshrl.u32 %v6029, 7
      %v6031 = vsub.s32 %v6028, %v6030
      %v6032 = vrot.slane %v6018, %v6031
      %v6033 = vcombine.low %v5614, %v5618
      %v6034 = vcombine.high %v5614, %v5618
      %v6036 = vunpack.c.l.s4 1983009808
      %v6037 = vunpack.c.0.s8 %v6036
      %v6038 = vlaneseq
      %v6039 = vshrl.u32 %v6038, 7
      %v6040 = vsub.s32 %v6037, %v6039
      %v6041 = vrot.slane %v6033, %v6040
      %v6043 = vunpack.c.l.s4 1983009808
      %v6044 = vunpack.c.0.s8 %v6043
      %v6045 = vlaneseq
      %v6046 = vshrl.u32 %v6045, 7
      %v6047 = vsub.s32 %v6044, %v6046
      %v6048 = vrot.slane %v6034, %v6047
      %v6049 = vcombine.low %v5620, %v5624
      %v6050 = vcombine.high %v5620, %v5624
      %v6052 = vunpack.c.l.s4 1983009808
      %v6053 = vunpack.c.0.s8 %v6052
      %v6054 = vlaneseq
      %v6055 = vshrl.u32 %v6054, 7
      %v6056 = vsub.s32 %v6053, %v6055
      %v6057 = vrot.slane %v6049, %v6056
      %v6059 = vunpack.c.l.s4 1983009808
      %v6060 = vunpack.c.0.s8 %v6059
      %v6061 = vlaneseq
      %v6062 = vshrl.u32 %v6061, 7
      %v6063 = vsub.s32 %v6060, %v6062
      %v6064 = vrot.slane %v6050, %v6063
      %v6065 = vcombine.low %v5622, %v5626
      %v6066 = vcombine.high %v5622, %v5626
      %v6068 = vunpack.c.l.s4 1983009808
      %v6069 = vunpack.c.0.s8 %v6068
      %v6070 = vlaneseq
      %v6071 = vshrl.u32 %v6070, 7
      %v6072 = vsub.s32 %v6069, %v6071
      %v6073 = vrot.slane %v6065, %v6072
      %v6075 = vunpack.c.l.s4 1983009808
      %v6076 = vunpack.c.0.s8 %v6075
      %v6077 = vlaneseq
      %v6078 = vshrl.u32 %v6077, 7
      %v6079 = vsub.s32 %v6076, %v6078
      %v6080 = vrot.slane %v6066, %v6079
      %v6081 = vcombine.low %v6025, %v6041
      %v6082 = vcombine.high %v6025, %v6041
      %v6084 = vunpack.c.l.s4 1934713408
      %v6085 = vunpack.c.0.s8 %v6084
      %v6086 = vlaneseq
      %v6087 = vshrl.u32 %v6086, 7
      %v6088 = vsub.s32 %v6085, %v6087
      %v6089 = vrot.slane %v6081, %v6088
      %v6091 = vunpack.c.l.s4 1934713408
      %v6092 = vunpack.c.0.s8 %v6091
      %v6093 = vlaneseq
      %v6094 = vshrl.u32 %v6093, 7
      %v6095 = vsub.s32 %v6092, %v6094
      %v6096 = vrot.slane %v6082, %v6095
      %v6097 = vcombine.low %v6032, %v6048
      %v6099 = vunpack.c.l.s4 1934713408
      %v6100 = vunpack.c.0.s8 %v6099
      %v6101 = vlaneseq
      %v6102 = vshrl.u32 %v6101, 7
      %v6103 = vsub.s32 %v6100, %v6102
      %v6104 = vrot.slane %v6097, %v6103
      %v6105 = vcombine.low %v6057, %v6073
      %v6106 = vcombine.high %v6057, %v6073
      %v6108 = vunpack.c.l.s4 1934713408
      %v6109 = vunpack.c.0.s8 %v6108
      %v6110 = vlaneseq
      %v6111 = vshrl.u32 %v6110, 7
      %v6112 = vsub.s32 %v6109, %v6111
      %v6113 = vrot.slane %v6105, %v6112
      %v6115 = vunpack.c.l.s4 1934713408
      %v6116 = vunpack.c.0.s8 %v6115
      %v6117 = vlaneseq
      %v6118 = vshrl.u32 %v6117, 7
      %v6119 = vsub.s32 %v6116, %v6118
      %v6120 = vrot.slane %v6106, %v6119
      %v6121 = vcombine.low %v6064, %v6080
      %v6123 = vunpack.c.l.s4 1934713408
      %v6124 = vunpack.c.0.s8 %v6123
      %v6125 = vlaneseq
      %v6126 = vshrl.u32 %v6125, 7
      %v6127 = vsub.s32 %v6124, %v6126
      %v6128 = vrot.slane %v6121, %v6127
      %v6129 = vcombine.low %v6089, %v6113
      %v6130 = vcombine.high %v6089, %v6113
      %v6131 = vcombine.low %v6096, %v6120
      %v6132 = vcombine.high %v6096, %v6120
      %v6133 = vcombine.low %v6104, %v6128
      %v6134 = vcombine.high %v6104, %v6128
      %6137 = vrot.lane.b32.xlu0 %v5756, 14
      %v6138 = vpop.permute.xlu0 %6137
      %6139 = vrot.lane.b32.xlu0 %v5892, 14
      %v6140 = vpop.permute.xlu0 %6139
      %6145 = vrot.lane.b32.xlu0 %v5757, 28
      %v6146 = vpop.permute.xlu0 %6145
      %6147 = vrot.lane.b32.xlu0 %v5893, 28
      %v6148 = vpop.permute.xlu0 %6147
      %6153 = vrot.lane.b32.xlu0 %v5758, 42
      %v6154 = vpop.permute.xlu0 %6153
      %6155 = vrot.lane.b32.xlu0 %v5894, 42
      %v6156 = vpop.permute.xlu0 %6155
      %6161 = vrot.lane.b32.xlu0 %v5759, 56
      %v6162 = vpop.permute.xlu0 %6161
      %6163 = vrot.lane.b32.xlu0 %v5895, 56
      %v6164 = vpop.permute.xlu0 %6163
      %6169 = vrot.lane.b32.xlu0 %v5760, 70
      %v6170 = vpop.permute.xlu0 %6169
      %6171 = vrot.lane.b32.xlu0 %v5896, 70
      %v6172 = vpop.permute.xlu0 %6171
      %6177 = vrot.lane.b32.xlu0 %v5761, 84
      %v6178 = vpop.permute.xlu0 %6177
      %6179 = vrot.lane.b32.xlu0 %v5897, 84
      %v6180 = vpop.permute.xlu0 %6179
      %6185 = vrot.lane.b32.xlu0 %v5762, 98
      %v6186 = vpop.permute.xlu0 %6185
      %6187 = vrot.lane.b32.xlu0 %v5898, 98
      %v6188 = vpop.permute.xlu0 %6187
      %6193 = vrot.lane.b32.xlu0 %v6011, 112
      %v6194 = vpop.permute.xlu0 %6193
      %6195 = vrot.lane.b32.xlu0 %v6129, 112
      %v6196 = vpop.permute.xlu0 %6195
      %6201 = vrot.lane.b32.xlu0 %v6012, 126
      %v6202 = vpop.permute.xlu0 %6201
      %6203 = vrot.lane.b32.xlu0 %v6130, 126
      %v6204 = vpop.permute.xlu0 %6203
      %6209 = vrot.lane.b32.xlu0 %v6013, 12
      %v6210 = vpop.permute.xlu0 %6209
      %6211 = vrot.lane.b32.xlu0 %v6131, 12
      %v6212 = vpop.permute.xlu0 %6211
      %6217 = vrot.lane.b32.xlu0 %v6014, 26
      %v6218 = vpop.permute.xlu0 %6217
      %6219 = vrot.lane.b32.xlu0 %v6132, 26
      %v6220 = vpop.permute.xlu0 %6219
      %6225 = vrot.lane.b32.xlu0 %v6015, 40
      %v6226 = vpop.permute.xlu0 %6225
      %6227 = vrot.lane.b32.xlu0 %v6133, 40
      %v6228 = vpop.permute.xlu0 %6227
      %6233 = vrot.lane.b32.xlu0 %v6016, 54
      %v6234 = vpop.permute.xlu0 %6233
      %6235 = vrot.lane.b32.xlu0 %v6134, 54
      %v6236 = vpop.permute.xlu0 %6235
      %v6239 = vsel %vm1201, %v5755, %v6138
      %v6240 = vsel %vm1201, %v5891, %v6140
      %v6241 = vsel %vm1204, %v6239, %v6146
      %v6242 = vsel %vm1204, %v6240, %v6148
      %v6243 = vsel %vm1207, %v6241, %v6154
      %v6244 = vsel %vm1207, %v6242, %v6156
      %v6245 = vsel %vm1210, %v6243, %v6162
      %v6246 = vsel %vm1210, %v6244, %v6164
      %v6247 = vsel %vm1213, %v6245, %v6170
      %v6248 = vsel %vm1213, %v6246, %v6172
      %v6249 = vsel %vm1216, %v6247, %v6178
      %v6250 = vsel %vm1216, %v6248, %v6180
      %v6251 = vsel %vm1219, %v6249, %v6186
      %v6252 = vsel %vm1219, %v6250, %v6188
      %v6253 = vsel %vm1222, %v6251, %v6194
      %v6254 = vsel %vm1222, %v6252, %v6196
      %v6255 = vsel %vm1225, %v6253, %v6202
      %v6256 = vsel %vm1225, %v6254, %v6204
      %v6257 = vsel %vm1228, %v6202, %v6210
      %v6258 = vsel %vm1228, %v6204, %v6212
      %v6259 = vsel %vm1231, %v6257, %v6218
      %v6260 = vsel %vm1231, %v6258, %v6220
      %v6261 = vsel %vm1234, %v6259, %v6226
      %v6262 = vsel %vm1234, %v6260, %v6228
      %v6263 = vsel %vm1237, %v6261, %v6234
      %v6264 = vsel %vm1237, %v6262, %v6236
      %6265 = vrot.lane.b32.xlu0 %v553, 32
      %v6266 = vpop.permute.xlu0 %6265
      %6267 = vrot.lane.b32.xlu0 %v555, 32
      %v6268 = vpop.permute.xlu0 %6267
      %v6269 = vsel %vm2012, %v6266, 0
      %v6271 = vsel %vm2012, %v6268, 0
      %6273 = vmatprep.subr.mxu0 %v6263
      %6274 = vmatpush1.msra.mxu0 %v6255
      %6275 = vmatprep.subr.mxu0 %v6264
      %6276 = vmatpush1.msra.mxu0 %v6256
      %6277 = vmatprep.subr.mxu0 0.0
      %6278 = vmatpush1.msra.mxu0 0.0
      %6279 = vmatprep.subr.mxu0 0.0
      %6280 = vmatpush1.msra.mxu0 0.0
      %6281 = vmatprep.subr.mxu0 0.0
      %6282 = vmatpush1.msra.mxu0 0.0
      %6283 = vmatprep.subr.mxu0 0.0
      %6284 = vmatpush1.msra.mxu0 0.0
      %6285 = vmatprep.subr.mxu0 0.0
      %6286 = vmatpush1.msra.mxu0 0.0
      %6287 = vmatprep.subr.mxu0 0.0
      %6288 = vmatpush1.msra.mxu0 0.0
      %6289 = vmatprep.subr.mxu0 0.0
      %6290 = vmatpush1.msra.mxu0 0.0
      %6291 = vmatprep.subr.mxu0 0.0
      %6292 = vmatpush1.msra.mxu0 0.0
      %6293 = vmatprep.subr.mxu0 0.0
      %6294 = vmatpush1.msra.mxu0 0.0
      %6295 = vmatprep.subr.mxu0 0.0
      %6296 = vmatpush1.msra.mxu0 0.0
      %6297 = vmatprep.subr.mxu0 0.0
      %6298 = vmatpush1.msra.mxu0 0.0
      %6299 = vmatprep.subr.mxu0 0.0
      %6300 = vmatpush1.msra.mxu0 0.0
      %6301 = vmatprep.subr.mxu0 0.0
      %6302 = vmatpush1.msra.mxu0 0.0
      %6303 = vmatprep.subr.mxu0 0.0
      %6304 = vmatpush1.msra.mxu0 0.0
      %6305 = vmatprep.subr.mxu0 0.0
      %6306 = vmatpush1.msra.mxu0 0.0
      %6307 = vmatprep.subr.mxu0 0.0
      %6308 = vmatpush1.msra.mxu0 0.0
      %6309 = vmatprep.subr.mxu0 0.0
      %6310 = vmatpush1.msra.mxu0 0.0
      %6311 = vmatprep.subr.mxu0 0.0
      %6312 = vmatpush1.msra.mxu0 0.0
      %6313 = vmatprep.subr.mxu0 0.0
      %6314 = vmatpush1.msra.mxu0 0.0
      %6315 = vmatprep.subr.mxu0 0.0
      %6316 = vmatpush1.msra.mxu0 0.0
      %6317 = vmatprep.subr.mxu0 0.0
      %6318 = vmatpush1.msra.mxu0 0.0
      %6319 = vmatprep.subr.mxu0 0.0
      %6320 = vmatpush1.msra.mxu0 0.0
      %6321 = vmatprep.subr.mxu0 0.0
      %6322 = vmatpush1.msra.mxu0 0.0
      %6323 = vmatprep.subr.mxu0 0.0
      %6324 = vmatpush1.msra.mxu0 0.0
      %6325 = vmatprep.subr.mxu0 0.0
      %6326 = vmatpush1.msra.mxu0 0.0
      %6327 = vmatprep.subr.mxu0 0.0
      %6328 = vmatpush1.msra.mxu0 0.0
      %6329 = vmatprep.subr.mxu0 0.0
      %6330 = vmatpush1.msra.mxu0 0.0
      %6331 = vmatprep.subr.mxu0 0.0
      %6332 = vmatpush1.msra.mxu0 0.0
      %6333 = vmatprep.subr.mxu0 0.0
      %6334 = vmatpush1.msra.mxu0 0.0
      %6335 = vmatprep.subr.mxu0 0.0
      %6336 = vmatpush1.msra.mxu0 0.0
      %6337 = vmatprep.mubr.f32.mxu0 0.0
      %6338 = vmatmul.mubr.f32.gmra.mrb[0].mxu0 %v6269
      %v6339 = vpop.f32.mrb[0].mxu0
      %v6340 = vadd.f32 0.0, %v6339
      %v6341 = vpop.f32.mrb[0].mxu0
      %v6342 = vadd.f32 0.0, %v6341
      %6343 = vmatprep.mubr.f32.mxu0 0.0
      %6344 = vmatmul.mubr.f32.gmra.mrb[0].mxu0 %v6271
      %v6345 = vpop.f32.mrb[0].mxu0
      %v6346 = vadd.f32 0.0, %v6345
      %v6347 = vpop.f32.mrb[0].mxu0
      %v6348 = vadd.f32 0.0, %v6347
      %6349 = vdwg.mxu0
      %v6350 = vadd.f32 %v5591, %v6340
      %v6351 = vadd.f32 %v5592, %v6342
      %v6352 = vadd.f32 %v5593, %v6346
      %v6353 = vadd.f32 %v5594, %v6348
      %v6354 = vld [vmem:[#allocation2 + $0x2] sm:$0xff]
      %v6355 = vld [vmem:[#allocation2 + $0xa] sm:$0x3f]
      %v6356 = vld [vmem:[#allocation2 + $0x12] sm:$0xff]
      %v6357 = vld [vmem:[#allocation2 + $0x1a] sm:$0x3f]
      %v6358 = vld [vmem:[#allocation2 + $0x22] sm:$0xff]
      %v6359 = vld [vmem:[#allocation2 + $0x2a] sm:$0x3f]
      %v6360 = vld [vmem:[#allocation2 + $0x32] sm:$0xff]
      %v6361 = vld [vmem:[#allocation2 + $0x3a] sm:$0x3f]
      %v6362 = vld [vmem:[#allocation2 + $0x42] sm:$0xff]
      %v6363 = vld [vmem:[#allocation2 + $0x4a] sm:$0x3f]
      %v6364 = vld [vmem:[#allocation2 + $0x52] sm:$0xff]
      %v6365 = vld [vmem:[#allocation2 + $0x5a] sm:$0x3f]
      %v6366 = vld [vmem:[#allocation2 + $0x62] sm:$0xff]
      %v6367 = vld [vmem:[#allocation2 + $0x6a] sm:$0x3f]
      %v6368 = vld [vmem:[#allocation2 + $0x72] sm:$0xff]
      %v6369 = vld [vmem:[#allocation2 + $0x7a] sm:$0x3f]
      %v6370 = vld [vmem:[#allocation2 + $0x82] sm:$0xff]
      %v6371 = vld [vmem:[#allocation2 + $0x8a] sm:$0x3f]
      %v6372 = vld [vmem:[#allocation2 + $0x92] sm:$0xff]
      %v6373 = vld [vmem:[#allocation2 + $0x9a] sm:$0x3f]
      %v6374 = vld [vmem:[#allocation2 + $0xa2] sm:$0xff]
      %v6375 = vld [vmem:[#allocation2 + $0xaa] sm:$0x3f]
      %v6376 = vld [vmem:[#allocation2 + $0xb2] sm:$0xff]
      %v6377 = vld [vmem:[#allocation2 + $0xba] sm:$0x3f]
      %v6378 = vld [vmem:[#allocation2 + $0xc2] sm:$0xff]
      %v6379 = vld [vmem:[#allocation2 + $0xca] sm:$0x3f]
      %v6380 = vld [vmem:[#allocation2 + $0xd2] sm:$0xff]
      %v6381 = vld [vmem:[#allocation2 + $0xda] sm:$0x3f]
      %v6382 = vld [vmem:[#allocation2 + $0xe2] sm:$0xff]
      %v6383 = vld [vmem:[#allocation2 + $0xea] sm:$0x3f]
      %v6384 = vld [vmem:[#allocation2 + $0xf2] sm:$0xff]
      %v6385 = vld [vmem:[#allocation2 + $0xfa] sm:$0x3f]
      %6418 = vrot.lane.b32.xlu0 %v6354, 127
      %v6419 = vpop.permute.xlu0 %6418
      %6420 = vrot.lane.b32.xlu0 %v6355, 127
      %v6421 = vpop.permute.xlu0 %6420
      %6422 = vrot.lane.b32.xlu0 %v6356, 127
      %v6423 = vpop.permute.xlu0 %6422
      %6424 = vrot.lane.b32.xlu0 %v6357, 127
      %v6425 = vpop.permute.xlu0 %6424
      %6426 = vrot.lane.b32.xlu0 %v6358, 127
      %v6427 = vpop.permute.xlu0 %6426
      %6428 = vrot.lane.b32.xlu0 %v6359, 127
      %v6429 = vpop.permute.xlu0 %6428
      %6430 = vrot.lane.b32.xlu0 %v6360, 127
      %v6431 = vpop.permute.xlu0 %6430
      %6432 = vrot.lane.b32.xlu0 %v6361, 127
      %v6433 = vpop.permute.xlu0 %6432
      %6434 = vrot.lane.b32.xlu0 %v6362, 127
      %v6435 = vpop.permute.xlu0 %6434
      %6436 = vrot.lane.b32.xlu0 %v6363, 127
      %v6437 = vpop.permute.xlu0 %6436
      %6438 = vrot.lane.b32.xlu0 %v6364, 127
      %v6439 = vpop.permute.xlu0 %6438
      %6440 = vrot.lane.b32.xlu0 %v6365, 127
      %v6441 = vpop.permute.xlu0 %6440
      %6442 = vrot.lane.b32.xlu0 %v6366, 127
      %v6443 = vpop.permute.xlu0 %6442
      %6444 = vrot.lane.b32.xlu0 %v6367, 127
      %v6445 = vpop.permute.xlu0 %6444
      %6446 = vrot.lane.b32.xlu0 %v6368, 127
      %v6447 = vpop.permute.xlu0 %6446
      %6448 = vrot.lane.b32.xlu0 %v6369, 127
      %v6449 = vpop.permute.xlu0 %6448
      %6450 = vrot.lane.b32.xlu0 %v6370, 127
      %v6451 = vpop.permute.xlu0 %6450
      %6452 = vrot.lane.b32.xlu0 %v6371, 127
      %v6453 = vpop.permute.xlu0 %6452
      %6454 = vrot.lane.b32.xlu0 %v6372, 127
      %v6455 = vpop.permute.xlu0 %6454
      %6456 = vrot.lane.b32.xlu0 %v6373, 127
      %v6457 = vpop.permute.xlu0 %6456
      %6458 = vrot.lane.b32.xlu0 %v6374, 127
      %v6459 = vpop.permute.xlu0 %6458
      %6460 = vrot.lane.b32.xlu0 %v6375, 127
      %v6461 = vpop.permute.xlu0 %6460
      %6462 = vrot.lane.b32.xlu0 %v6376, 127
      %v6463 = vpop.permute.xlu0 %6462
      %6464 = vrot.lane.b32.xlu0 %v6377, 127
      %v6465 = vpop.permute.xlu0 %6464
      %6466 = vrot.lane.b32.xlu0 %v6378, 127
      %v6467 = vpop.permute.xlu0 %6466
      %6468 = vrot.lane.b32.xlu0 %v6379, 127
      %v6469 = vpop.permute.xlu0 %6468
      %6470 = vrot.lane.b32.xlu0 %v6380, 127
      %v6471 = vpop.permute.xlu0 %6470
      %6472 = vrot.lane.b32.xlu0 %v6381, 127
      %v6473 = vpop.permute.xlu0 %6472
      %6474 = vrot.lane.b32.xlu0 %v6382, 127
      %v6475 = vpop.permute.xlu0 %6474
      %6476 = vrot.lane.b32.xlu0 %v6383, 127
      %v6477 = vpop.permute.xlu0 %6476
      %6478 = vrot.lane.b32.xlu0 %v6384, 127
      %v6479 = vpop.permute.xlu0 %6478
      %6480 = vrot.lane.b32.xlu0 %v6385, 127
      %v6481 = vpop.permute.xlu0 %6480
      %v6514 = vcombine.low %v6419, %v6427
      %v6515 = vcombine.high %v6419, %v6427
      %v6517 = vunpack.c.l.s4 1983009808
      %v6518 = vunpack.c.0.s8 %v6517
      %v6519 = vlaneseq
      %v6520 = vshrl.u32 %v6519, 7
      %v6521 = vsub.s32 %v6518, %v6520
      %v6522 = vrot.slane %v6514, %v6521
      %v6524 = vunpack.c.l.s4 1983009808
      %v6525 = vunpack.c.0.s8 %v6524
      %v6526 = vlaneseq
      %v6527 = vshrl.u32 %v6526, 7
      %v6528 = vsub.s32 %v6525, %v6527
      %v6529 = vrot.slane %v6515, %v6528
      %v6530 = vcombine.low %v6423, %v6431
      %v6531 = vcombine.high %v6423, %v6431
      %v6533 = vunpack.c.l.s4 1983009808
      %v6534 = vunpack.c.0.s8 %v6533
      %v6535 = vlaneseq
      %v6536 = vshrl.u32 %v6535, 7
      %v6537 = vsub.s32 %v6534, %v6536
      %v6538 = vrot.slane %v6530, %v6537
      %v6540 = vunpack.c.l.s4 1983009808
      %v6541 = vunpack.c.0.s8 %v6540
      %v6542 = vlaneseq
      %v6543 = vshrl.u32 %v6542, 7
      %v6544 = vsub.s32 %v6541, %v6543
      %v6545 = vrot.slane %v6531, %v6544
      %v6546 = vcombine.low %v6435, %v6443
      %v6547 = vcombine.high %v6435, %v6443
      %v6549 = vunpack.c.l.s4 1983009808
      %v6550 = vunpack.c.0.s8 %v6549
      %v6551 = vlaneseq
      %v6552 = vshrl.u32 %v6551, 7
      %v6553 = vsub.s32 %v6550, %v6552
      %v6554 = vrot.slane %v6546, %v6553
      %v6556 = vunpack.c.l.s4 1983009808
      %v6557 = vunpack.c.0.s8 %v6556
      %v6558 = vlaneseq
      %v6559 = vshrl.u32 %v6558, 7
      %v6560 = vsub.s32 %v6557, %v6559
      %v6561 = vrot.slane %v6547, %v6560
      %v6562 = vcombine.low %v6439, %v6447
      %v6563 = vcombine.high %v6439, %v6447
      %v6565 = vunpack.c.l.s4 1983009808
      %v6566 = vunpack.c.0.s8 %v6565
      %v6567 = vlaneseq
      %v6568 = vshrl.u32 %v6567, 7
      %v6569 = vsub.s32 %v6566, %v6568
      %v6570 = vrot.slane %v6562, %v6569
      %v6572 = vunpack.c.l.s4 1983009808
      %v6573 = vunpack.c.0.s8 %v6572
      %v6574 = vlaneseq
      %v6575 = vshrl.u32 %v6574, 7
      %v6576 = vsub.s32 %v6573, %v6575
      %v6577 = vrot.slane %v6563, %v6576
      %v6578 = vcombine.low %v6522, %v6538
      %v6579 = vcombine.high %v6522, %v6538
      %v6581 = vunpack.c.l.s4 1934713408
      %v6582 = vunpack.c.0.s8 %v6581
      %v6583 = vlaneseq
      %v6584 = vshrl.u32 %v6583, 7
      %v6585 = vsub.s32 %v6582, %v6584
      %v6586 = vrot.slane %v6578, %v6585
      %v6588 = vunpack.c.l.s4 1934713408
      %v6589 = vunpack.c.0.s8 %v6588
      %v6590 = vlaneseq
      %v6591 = vshrl.u32 %v6590, 7
      %v6592 = vsub.s32 %v6589, %v6591
      %v6593 = vrot.slane %v6579, %v6592
      %v6594 = vcombine.low %v6529, %v6545
      %v6595 = vcombine.high %v6529, %v6545
      %v6597 = vunpack.c.l.s4 1934713408
      %v6598 = vunpack.c.0.s8 %v6597
      %v6599 = vlaneseq
      %v6600 = vshrl.u32 %v6599, 7
      %v6601 = vsub.s32 %v6598, %v6600
      %v6602 = vrot.slane %v6594, %v6601
      %v6604 = vunpack.c.l.s4 1934713408
      %v6605 = vunpack.c.0.s8 %v6604
      %v6606 = vlaneseq
      %v6607 = vshrl.u32 %v6606, 7
      %v6608 = vsub.s32 %v6605, %v6607
      %v6609 = vrot.slane %v6595, %v6608
      %v6610 = vcombine.low %v6554, %v6570
      %v6611 = vcombine.high %v6554, %v6570
      %v6613 = vunpack.c.l.s4 1934713408
      %v6614 = vunpack.c.0.s8 %v6613
      %v6615 = vlaneseq
      %v6616 = vshrl.u32 %v6615, 7
      %v6617 = vsub.s32 %v6614, %v6616
      %v6618 = vrot.slane %v6610, %v6617
      %v6620 = vunpack.c.l.s4 1934713408
      %v6621 = vunpack.c.0.s8 %v6620
      %v6622 = vlaneseq
      %v6623 = vshrl.u32 %v6622, 7
      %v6624 = vsub.s32 %v6621, %v6623
      %v6625 = vrot.slane %v6611, %v6624
      %v6626 = vcombine.low %v6561, %v6577
      %v6627 = vcombine.high %v6561, %v6577
      %v6629 = vunpack.c.l.s4 1934713408
      %v6630 = vunpack.c.0.s8 %v6629
      %v6631 = vlaneseq
      %v6632 = vshrl.u32 %v6631, 7
      %v6633 = vsub.s32 %v6630, %v6632
      %v6634 = vrot.slane %v6626, %v6633
      %v6636 = vunpack.c.l.s4 1934713408
      %v6637 = vunpack.c.0.s8 %v6636
      %v6638 = vlaneseq
      %v6639 = vshrl.u32 %v6638, 7
      %v6640 = vsub.s32 %v6637, %v6639
      %v6641 = vrot.slane %v6627, %v6640
      %v6642 = vcombine.low %v6586, %v6618
      %v6643 = vcombine.high %v6586, %v6618
      %v6644 = vcombine.low %v6593, %v6625
      %v6645 = vcombine.high %v6593, %v6625
      %v6646 = vcombine.low %v6602, %v6634
      %v6647 = vcombine.high %v6602, %v6634
      %v6648 = vcombine.low %v6609, %v6641
      %v6649 = vcombine.high %v6609, %v6641
      %v6650 = vcombine.low %v6451, %v6459
      %v6651 = vcombine.high %v6451, %v6459
      %v6653 = vunpack.c.l.s4 1983009808
      %v6654 = vunpack.c.0.s8 %v6653
      %v6655 = vlaneseq
      %v6656 = vshrl.u32 %v6655, 7
      %v6657 = vsub.s32 %v6654, %v6656
      %v6658 = vrot.slane %v6650, %v6657
      %v6660 = vunpack.c.l.s4 1983009808
      %v6661 = vunpack.c.0.s8 %v6660
      %v6662 = vlaneseq
      %v6663 = vshrl.u32 %v6662, 7
      %v6664 = vsub.s32 %v6661, %v6663
      %v6665 = vrot.slane %v6651, %v6664
      %v6666 = vcombine.low %v6455, %v6463
      %v6667 = vcombine.high %v6455, %v6463
      %v6669 = vunpack.c.l.s4 1983009808
      %v6670 = vunpack.c.0.s8 %v6669
      %v6671 = vlaneseq
      %v6672 = vshrl.u32 %v6671, 7
      %v6673 = vsub.s32 %v6670, %v6672
      %v6674 = vrot.slane %v6666, %v6673
      %v6676 = vunpack.c.l.s4 1983009808
      %v6677 = vunpack.c.0.s8 %v6676
      %v6678 = vlaneseq
      %v6679 = vshrl.u32 %v6678, 7
      %v6680 = vsub.s32 %v6677, %v6679
      %v6681 = vrot.slane %v6667, %v6680
      %v6682 = vcombine.low %v6467, %v6475
      %v6683 = vcombine.high %v6467, %v6475
      %v6685 = vunpack.c.l.s4 1983009808
      %v6686 = vunpack.c.0.s8 %v6685
      %v6687 = vlaneseq
      %v6688 = vshrl.u32 %v6687, 7
      %v6689 = vsub.s32 %v6686, %v6688
      %v6690 = vrot.slane %v6682, %v6689
      %v6692 = vunpack.c.l.s4 1983009808
      %v6693 = vunpack.c.0.s8 %v6692
      %v6694 = vlaneseq
      %v6695 = vshrl.u32 %v6694, 7
      %v6696 = vsub.s32 %v6693, %v6695
      %v6697 = vrot.slane %v6683, %v6696
      %v6698 = vcombine.low %v6471, %v6479
      %v6699 = vcombine.high %v6471, %v6479
      %v6701 = vunpack.c.l.s4 1983009808
      %v6702 = vunpack.c.0.s8 %v6701
      %v6703 = vlaneseq
      %v6704 = vshrl.u32 %v6703, 7
      %v6705 = vsub.s32 %v6702, %v6704
      %v6706 = vrot.slane %v6698, %v6705
      %v6708 = vunpack.c.l.s4 1983009808
      %v6709 = vunpack.c.0.s8 %v6708
      %v6710 = vlaneseq
      %v6711 = vshrl.u32 %v6710, 7
      %v6712 = vsub.s32 %v6709, %v6711
      %v6713 = vrot.slane %v6699, %v6712
      %v6714 = vcombine.low %v6658, %v6674
      %v6715 = vcombine.high %v6658, %v6674
      %v6717 = vunpack.c.l.s4 1934713408
      %v6718 = vunpack.c.0.s8 %v6717
      %v6719 = vlaneseq
      %v6720 = vshrl.u32 %v6719, 7
      %v6721 = vsub.s32 %v6718, %v6720
      %v6722 = vrot.slane %v6714, %v6721
      %v6724 = vunpack.c.l.s4 1934713408
      %v6725 = vunpack.c.0.s8 %v6724
      %v6726 = vlaneseq
      %v6727 = vshrl.u32 %v6726, 7
      %v6728 = vsub.s32 %v6725, %v6727
      %v6729 = vrot.slane %v6715, %v6728
      %v6730 = vcombine.low %v6665, %v6681
      %v6731 = vcombine.high %v6665, %v6681
      %v6733 = vunpack.c.l.s4 1934713408
      %v6734 = vunpack.c.0.s8 %v6733
      %v6735 = vlaneseq
      %v6736 = vshrl.u32 %v6735, 7
      %v6737 = vsub.s32 %v6734, %v6736
      %v6738 = vrot.slane %v6730, %v6737
      %v6740 = vunpack.c.l.s4 1934713408
      %v6741 = vunpack.c.0.s8 %v6740
      %v6742 = vlaneseq
      %v6743 = vshrl.u32 %v6742, 7
      %v6744 = vsub.s32 %v6741, %v6743
      %v6745 = vrot.slane %v6731, %v6744
      %v6746 = vcombine.low %v6690, %v6706
      %v6747 = vcombine.high %v6690, %v6706
      %v6749 = vunpack.c.l.s4 1934713408
      %v6750 = vunpack.c.0.s8 %v6749
      %v6751 = vlaneseq
      %v6752 = vshrl.u32 %v6751, 7
      %v6753 = vsub.s32 %v6750, %v6752
      %v6754 = vrot.slane %v6746, %v6753
      %v6756 = vunpack.c.l.s4 1934713408
      %v6757 = vunpack.c.0.s8 %v6756
      %v6758 = vlaneseq
      %v6759 = vshrl.u32 %v6758, 7
      %v6760 = vsub.s32 %v6757, %v6759
      %v6761 = vrot.slane %v6747, %v6760
      %v6762 = vcombine.low %v6697, %v6713
      %v6763 = vcombine.high %v6697, %v6713
      %v6765 = vunpack.c.l.s4 1934713408
      %v6766 = vunpack.c.0.s8 %v6765
      %v6767 = vlaneseq
      %v6768 = vshrl.u32 %v6767, 7
      %v6769 = vsub.s32 %v6766, %v6768
      %v6770 = vrot.slane %v6762, %v6769
      %v6772 = vunpack.c.l.s4 1934713408
      %v6773 = vunpack.c.0.s8 %v6772
      %v6774 = vlaneseq
      %v6775 = vshrl.u32 %v6774, 7
      %v6776 = vsub.s32 %v6773, %v6775
      %v6777 = vrot.slane %v6763, %v6776
      %v6778 = vcombine.low %v6722, %v6754
      %v6779 = vcombine.high %v6722, %v6754
      %v6780 = vcombine.low %v6729, %v6761
      %v6781 = vcombine.high %v6729, %v6761
      %v6782 = vcombine.low %v6738, %v6770
      %v6783 = vcombine.high %v6738, %v6770
      %v6784 = vcombine.low %v6745, %v6777
      %v6785 = vcombine.high %v6745, %v6777
      %v6786 = vcombine.low %v6421, %v6429
      %v6787 = vcombine.high %v6421, %v6429
      %v6789 = vunpack.c.l.s4 1983009808
      %v6790 = vunpack.c.0.s8 %v6789
      %v6791 = vlaneseq
      %v6792 = vshrl.u32 %v6791, 7
      %v6793 = vsub.s32 %v6790, %v6792
      %v6794 = vrot.slane %v6786, %v6793
      %v6796 = vunpack.c.l.s4 1983009808
      %v6797 = vunpack.c.0.s8 %v6796
      %v6798 = vlaneseq
      %v6799 = vshrl.u32 %v6798, 7
      %v6800 = vsub.s32 %v6797, %v6799
      %v6801 = vrot.slane %v6787, %v6800
      %v6802 = vcombine.low %v6425, %v6433
      %v6803 = vcombine.high %v6425, %v6433
      %v6805 = vunpack.c.l.s4 1983009808
      %v6806 = vunpack.c.0.s8 %v6805
      %v6807 = vlaneseq
      %v6808 = vshrl.u32 %v6807, 7
      %v6809 = vsub.s32 %v6806, %v6808
      %v6810 = vrot.slane %v6802, %v6809
      %v6812 = vunpack.c.l.s4 1983009808
      %v6813 = vunpack.c.0.s8 %v6812
      %v6814 = vlaneseq
      %v6815 = vshrl.u32 %v6814, 7
      %v6816 = vsub.s32 %v6813, %v6815
      %v6817 = vrot.slane %v6803, %v6816
      %v6818 = vcombine.low %v6437, %v6445
      %v6819 = vcombine.high %v6437, %v6445
      %v6821 = vunpack.c.l.s4 1983009808
      %v6822 = vunpack.c.0.s8 %v6821
      %v6823 = vlaneseq
      %v6824 = vshrl.u32 %v6823, 7
      %v6825 = vsub.s32 %v6822, %v6824
      %v6826 = vrot.slane %v6818, %v6825
      %v6828 = vunpack.c.l.s4 1983009808
      %v6829 = vunpack.c.0.s8 %v6828
      %v6830 = vlaneseq
      %v6831 = vshrl.u32 %v6830, 7
      %v6832 = vsub.s32 %v6829, %v6831
      %v6833 = vrot.slane %v6819, %v6832
      %v6834 = vcombine.low %v6441, %v6449
      %v6835 = vcombine.high %v6441, %v6449
      %v6837 = vunpack.c.l.s4 1983009808
      %v6838 = vunpack.c.0.s8 %v6837
      %v6839 = vlaneseq
      %v6840 = vshrl.u32 %v6839, 7
      %v6841 = vsub.s32 %v6838, %v6840
      %v6842 = vrot.slane %v6834, %v6841
      %v6844 = vunpack.c.l.s4 1983009808
      %v6845 = vunpack.c.0.s8 %v6844
      %v6846 = vlaneseq
      %v6847 = vshrl.u32 %v6846, 7
      %v6848 = vsub.s32 %v6845, %v6847
      %v6849 = vrot.slane %v6835, %v6848
      %v6850 = vcombine.low %v6794, %v6810
      %v6851 = vcombine.high %v6794, %v6810
      %v6853 = vunpack.c.l.s4 1934713408
      %v6854 = vunpack.c.0.s8 %v6853
      %v6855 = vlaneseq
      %v6856 = vshrl.u32 %v6855, 7
      %v6857 = vsub.s32 %v6854, %v6856
      %v6858 = vrot.slane %v6850, %v6857
      %v6860 = vunpack.c.l.s4 1934713408
      %v6861 = vunpack.c.0.s8 %v6860
      %v6862 = vlaneseq
      %v6863 = vshrl.u32 %v6862, 7
      %v6864 = vsub.s32 %v6861, %v6863
      %v6865 = vrot.slane %v6851, %v6864
      %v6866 = vcombine.low %v6801, %v6817
      %v6868 = vunpack.c.l.s4 1934713408
      %v6869 = vunpack.c.0.s8 %v6868
      %v6870 = vlaneseq
      %v6871 = vshrl.u32 %v6870, 7
      %v6872 = vsub.s32 %v6869, %v6871
      %v6873 = vrot.slane %v6866, %v6872
      %v6874 = vcombine.low %v6826, %v6842
      %v6875 = vcombine.high %v6826, %v6842
      %v6877 = vunpack.c.l.s4 1934713408
      %v6878 = vunpack.c.0.s8 %v6877
      %v6879 = vlaneseq
      %v6880 = vshrl.u32 %v6879, 7
      %v6881 = vsub.s32 %v6878, %v6880
      %v6882 = vrot.slane %v6874, %v6881
      %v6884 = vunpack.c.l.s4 1934713408
      %v6885 = vunpack.c.0.s8 %v6884
      %v6886 = vlaneseq
      %v6887 = vshrl.u32 %v6886, 7
      %v6888 = vsub.s32 %v6885, %v6887
      %v6889 = vrot.slane %v6875, %v6888
      %v6890 = vcombine.low %v6833, %v6849
      %v6892 = vunpack.c.l.s4 1934713408
      %v6893 = vunpack.c.0.s8 %v6892
      %v6894 = vlaneseq
      %v6895 = vshrl.u32 %v6894, 7
      %v6896 = vsub.s32 %v6893, %v6895
      %v6897 = vrot.slane %v6890, %v6896
      %v6898 = vcombine.low %v6858, %v6882
      %v6899 = vcombine.high %v6858, %v6882
      %v6900 = vcombine.low %v6865, %v6889
      %v6901 = vcombine.high %v6865, %v6889
      %v6902 = vcombine.low %v6873, %v6897
      %v6903 = vcombine.high %v6873, %v6897
      %v6904 = vcombine.low %v6453, %v6461
      %v6905 = vcombine.high %v6453, %v6461
      %v6907 = vunpack.c.l.s4 1983009808
      %v6908 = vunpack.c.0.s8 %v6907
      %v6909 = vlaneseq
      %v6910 = vshrl.u32 %v6909, 7
      %v6911 = vsub.s32 %v6908, %v6910
      %v6912 = vrot.slane %v6904, %v6911
      %v6914 = vunpack.c.l.s4 1983009808
      %v6915 = vunpack.c.0.s8 %v6914
      %v6916 = vlaneseq
      %v6917 = vshrl.u32 %v6916, 7
      %v6918 = vsub.s32 %v6915, %v6917
      %v6919 = vrot.slane %v6905, %v6918
      %v6920 = vcombine.low %v6457, %v6465
      %v6921 = vcombine.high %v6457, %v6465
      %v6923 = vunpack.c.l.s4 1983009808
      %v6924 = vunpack.c.0.s8 %v6923
      %v6925 = vlaneseq
      %v6926 = vshrl.u32 %v6925, 7
      %v6927 = vsub.s32 %v6924, %v6926
      %v6928 = vrot.slane %v6920, %v6927
      %v6930 = vunpack.c.l.s4 1983009808
      %v6931 = vunpack.c.0.s8 %v6930
      %v6932 = vlaneseq
      %v6933 = vshrl.u32 %v6932, 7
      %v6934 = vsub.s32 %v6931, %v6933
      %v6935 = vrot.slane %v6921, %v6934
      %v6936 = vcombine.low %v6469, %v6477
      %v6937 = vcombine.high %v6469, %v6477
      %v6939 = vunpack.c.l.s4 1983009808
      %v6940 = vunpack.c.0.s8 %v6939
      %v6941 = vlaneseq
      %v6942 = vshrl.u32 %v6941, 7
      %v6943 = vsub.s32 %v6940, %v6942
      %v6944 = vrot.slane %v6936, %v6943
      %v6946 = vunpack.c.l.s4 1983009808
      %v6947 = vunpack.c.0.s8 %v6946
      %v6948 = vlaneseq
      %v6949 = vshrl.u32 %v6948, 7
      %v6950 = vsub.s32 %v6947, %v6949
      %v6951 = vrot.slane %v6937, %v6950
      %v6952 = vcombine.low %v6473, %v6481
      %v6953 = vcombine.high %v6473, %v6481
      %v6955 = vunpack.c.l.s4 1983009808
      %v6956 = vunpack.c.0.s8 %v6955
      %v6957 = vlaneseq
      %v6958 = vshrl.u32 %v6957, 7
      %v6959 = vsub.s32 %v6956, %v6958
      %v6960 = vrot.slane %v6952, %v6959
      %v6962 = vunpack.c.l.s4 1983009808
      %v6963 = vunpack.c.0.s8 %v6962
      %v6964 = vlaneseq
      %v6965 = vshrl.u32 %v6964, 7
      %v6966 = vsub.s32 %v6963, %v6965
      %v6967 = vrot.slane %v6953, %v6966
      %v6968 = vcombine.low %v6912, %v6928
      %v6969 = vcombine.high %v6912, %v6928
      %v6971 = vunpack.c.l.s4 1934713408
      %v6972 = vunpack.c.0.s8 %v6971
      %v6973 = vlaneseq
      %v6974 = vshrl.u32 %v6973, 7
      %v6975 = vsub.s32 %v6972, %v6974
      %v6976 = vrot.slane %v6968, %v6975
      %v6978 = vunpack.c.l.s4 1934713408
      %v6979 = vunpack.c.0.s8 %v6978
      %v6980 = vlaneseq
      %v6981 = vshrl.u32 %v6980, 7
      %v6982 = vsub.s32 %v6979, %v6981
      %v6983 = vrot.slane %v6969, %v6982
      %v6984 = vcombine.low %v6919, %v6935
      %v6986 = vunpack.c.l.s4 1934713408
      %v6987 = vunpack.c.0.s8 %v6986
      %v6988 = vlaneseq
      %v6989 = vshrl.u32 %v6988, 7
      %v6990 = vsub.s32 %v6987, %v6989
      %v6991 = vrot.slane %v6984, %v6990
      %v6992 = vcombine.low %v6944, %v6960
      %v6993 = vcombine.high %v6944, %v6960
      %v6995 = vunpack.c.l.s4 1934713408
      %v6996 = vunpack.c.0.s8 %v6995
      %v6997 = vlaneseq
      %v6998 = vshrl.u32 %v6997, 7
      %v6999 = vsub.s32 %v6996, %v6998
      %v7000 = vrot.slane %v6992, %v6999
      %v7002 = vunpack.c.l.s4 1934713408
      %v7003 = vunpack.c.0.s8 %v7002
      %v7004 = vlaneseq
      %v7005 = vshrl.u32 %v7004, 7
      %v7006 = vsub.s32 %v7003, %v7005
      %v7007 = vrot.slane %v6993, %v7006
      %v7008 = vcombine.low %v6951, %v6967
      %v7010 = vunpack.c.l.s4 1934713408
      %v7011 = vunpack.c.0.s8 %v7010
      %v7012 = vlaneseq
      %v7013 = vshrl.u32 %v7012, 7
      %v7014 = vsub.s32 %v7011, %v7013
      %v7015 = vrot.slane %v7008, %v7014
      %v7016 = vcombine.low %v6976, %v7000
      %v7017 = vcombine.high %v6976, %v7000
      %v7018 = vcombine.low %v6983, %v7007
      %v7019 = vcombine.high %v6983, %v7007
      %v7020 = vcombine.low %v6991, %v7015
      %v7021 = vcombine.high %v6991, %v7015
      %7024 = vrot.lane.b32.xlu0 %v6643, 14
      %v7025 = vpop.permute.xlu0 %7024
      %7026 = vrot.lane.b32.xlu0 %v6779, 14
      %v7027 = vpop.permute.xlu0 %7026
      %7032 = vrot.lane.b32.xlu0 %v6644, 28
      %v7033 = vpop.permute.xlu0 %7032
      %7034 = vrot.lane.b32.xlu0 %v6780, 28
      %v7035 = vpop.permute.xlu0 %7034
      %7040 = vrot.lane.b32.xlu0 %v6645, 42
      %v7041 = vpop.permute.xlu0 %7040
      %7042 = vrot.lane.b32.xlu0 %v6781, 42
      %v7043 = vpop.permute.xlu0 %7042
      %7048 = vrot.lane.b32.xlu0 %v6646, 56
      %v7049 = vpop.permute.xlu0 %7048
      %7050 = vrot.lane.b32.xlu0 %v6782, 56
      %v7051 = vpop.permute.xlu0 %7050
      %7056 = vrot.lane.b32.xlu0 %v6647, 70
      %v7057 = vpop.permute.xlu0 %7056
      %7058 = vrot.lane.b32.xlu0 %v6783, 70
      %v7059 = vpop.permute.xlu0 %7058
      %7064 = vrot.lane.b32.xlu0 %v6648, 84
      %v7065 = vpop.permute.xlu0 %7064
      %7066 = vrot.lane.b32.xlu0 %v6784, 84
      %v7067 = vpop.permute.xlu0 %7066
      %7072 = vrot.lane.b32.xlu0 %v6649, 98
      %v7073 = vpop.permute.xlu0 %7072
      %7074 = vrot.lane.b32.xlu0 %v6785, 98
      %v7075 = vpop.permute.xlu0 %7074
      %7080 = vrot.lane.b32.xlu0 %v6898, 112
      %v7081 = vpop.permute.xlu0 %7080
      %7082 = vrot.lane.b32.xlu0 %v7016, 112
      %v7083 = vpop.permute.xlu0 %7082
      %7088 = vrot.lane.b32.xlu0 %v6899, 126
      %v7089 = vpop.permute.xlu0 %7088
      %7090 = vrot.lane.b32.xlu0 %v7017, 126
      %v7091 = vpop.permute.xlu0 %7090
      %7096 = vrot.lane.b32.xlu0 %v6900, 12
      %v7097 = vpop.permute.xlu0 %7096
      %7098 = vrot.lane.b32.xlu0 %v7018, 12
      %v7099 = vpop.permute.xlu0 %7098
      %7104 = vrot.lane.b32.xlu0 %v6901, 26
      %v7105 = vpop.permute.xlu0 %7104
      %7106 = vrot.lane.b32.xlu0 %v7019, 26
      %v7107 = vpop.permute.xlu0 %7106
      %7112 = vrot.lane.b32.xlu0 %v6902, 40
      %v7113 = vpop.permute.xlu0 %7112
      %7114 = vrot.lane.b32.xlu0 %v7020, 40
      %v7115 = vpop.permute.xlu0 %7114
      %7120 = vrot.lane.b32.xlu0 %v6903, 54
      %v7121 = vpop.permute.xlu0 %7120
      %7122 = vrot.lane.b32.xlu0 %v7021, 54
      %v7123 = vpop.permute.xlu0 %7122
      %v7126 = vsel %vm1201, %v6642, %v7025
      %v7127 = vsel %vm1201, %v6778, %v7027
      %v7128 = vsel %vm1204, %v7126, %v7033
      %v7129 = vsel %vm1204, %v7127, %v7035
      %v7130 = vsel %vm1207, %v7128, %v7041
      %v7131 = vsel %vm1207, %v7129, %v7043
      %v7132 = vsel %vm1210, %v7130, %v7049
      %v7133 = vsel %vm1210, %v7131, %v7051
      %v7134 = vsel %vm1213, %v7132, %v7057
      %v7135 = vsel %vm1213, %v7133, %v7059
      %v7136 = vsel %vm1216, %v7134, %v7065
      %v7137 = vsel %vm1216, %v7135, %v7067
      %v7138 = vsel %vm1219, %v7136, %v7073
      %v7139 = vsel %vm1219, %v7137, %v7075
      %v7140 = vsel %vm1222, %v7138, %v7081
      %v7141 = vsel %vm1222, %v7139, %v7083
      %v7142 = vsel %vm1225, %v7140, %v7089
      %v7143 = vsel %vm1225, %v7141, %v7091
      %v7144 = vsel %vm1228, %v7089, %v7097
      %v7145 = vsel %vm1228, %v7091, %v7099
      %v7146 = vsel %vm1231, %v7144, %v7105
      %v7147 = vsel %vm1231, %v7145, %v7107
      %v7148 = vsel %vm1234, %v7146, %v7113
      %v7149 = vsel %vm1234, %v7147, %v7115
      %v7150 = vsel %vm1237, %v7148, %v7121
      %v7151 = vsel %vm1237, %v7149, %v7123
      %7152 = vrot.lane.b32.xlu0 %v553, 16
      %v7153 = vpop.permute.xlu0 %7152
      %7154 = vrot.lane.b32.xlu0 %v555, 16
      %v7155 = vpop.permute.xlu0 %7154
      %v7156 = vsel %vm2012, %v7153, 0
      %v7158 = vsel %vm2012, %v7155, 0
      %7160 = vmatprep.subr.mxu0 %v7150
      %7161 = vmatpush1.msra.mxu0 %v7142
      %7162 = vmatprep.subr.mxu0 %v7151
      %7163 = vmatpush1.msra.mxu0 %v7143
      %7164 = vmatprep.subr.mxu0 0.0
      %7165 = vmatpush1.msra.mxu0 0.0
      %7166 = vmatprep.subr.mxu0 0.0
      %7167 = vmatpush1.msra.mxu0 0.0
      %7168 = vmatprep.subr.mxu0 0.0
      %7169 = vmatpush1.msra.mxu0 0.0
      %7170 = vmatprep.subr.mxu0 0.0
      %7171 = vmatpush1.msra.mxu0 0.0
      %7172 = vmatprep.subr.mxu0 0.0
      %7173 = vmatpush1.msra.mxu0 0.0
      %7174 = vmatprep.subr.mxu0 0.0
      %7175 = vmatpush1.msra.mxu0 0.0
      %7176 = vmatprep.subr.mxu0 0.0
      %7177 = vmatpush1.msra.mxu0 0.0
      %7178 = vmatprep.subr.mxu0 0.0
      %7179 = vmatpush1.msra.mxu0 0.0
      %7180 = vmatprep.subr.mxu0 0.0
      %7181 = vmatpush1.msra.mxu0 0.0
      %7182 = vmatprep.subr.mxu0 0.0
      %7183 = vmatpush1.msra.mxu0 0.0
      %7184 = vmatprep.subr.mxu0 0.0
      %7185 = vmatpush1.msra.mxu0 0.0
      %7186 = vmatprep.subr.mxu0 0.0
      %7187 = vmatpush1.msra.mxu0 0.0
      %7188 = vmatprep.subr.mxu0 0.0
      %7189 = vmatpush1.msra.mxu0 0.0
      %7190 = vmatprep.subr.mxu0 0.0
      %7191 = vmatpush1.msra.mxu0 0.0
      %7192 = vmatprep.subr.mxu0 0.0
      %7193 = vmatpush1.msra.mxu0 0.0
      %7194 = vmatprep.subr.mxu0 0.0
      %7195 = vmatpush1.msra.mxu0 0.0
      %7196 = vmatprep.subr.mxu0 0.0
      %7197 = vmatpush1.msra.mxu0 0.0
      %7198 = vmatprep.subr.mxu0 0.0
      %7199 = vmatpush1.msra.mxu0 0.0
      %7200 = vmatprep.subr.mxu0 0.0
      %7201 = vmatpush1.msra.mxu0 0.0
      %7202 = vmatprep.subr.mxu0 0.0
      %7203 = vmatpush1.msra.mxu0 0.0
      %7204 = vmatprep.subr.mxu0 0.0
      %7205 = vmatpush1.msra.mxu0 0.0
      %7206 = vmatprep.subr.mxu0 0.0
      %7207 = vmatpush1.msra.mxu0 0.0
      %7208 = vmatprep.subr.mxu0 0.0
      %7209 = vmatpush1.msra.mxu0 0.0
      %7210 = vmatprep.subr.mxu0 0.0
      %7211 = vmatpush1.msra.mxu0 0.0
      %7212 = vmatprep.subr.mxu0 0.0
      %7213 = vmatpush1.msra.mxu0 0.0
      %7214 = vmatprep.subr.mxu0 0.0
      %7215 = vmatpush1.msra.mxu0 0.0
      %7216 = vmatprep.subr.mxu0 0.0
      %7217 = vmatpush1.msra.mxu0 0.0
      %7218 = vmatprep.subr.mxu0 0.0
      %7219 = vmatpush1.msra.mxu0 0.0
      %7220 = vmatprep.subr.mxu0 0.0
      %7221 = vmatpush1.msra.mxu0 0.0
      %7222 = vmatprep.subr.mxu0 0.0
      %7223 = vmatpush1.msra.mxu0 0.0
      %7224 = vmatprep.mubr.f32.mxu0 0.0
      %7225 = vmatmul.mubr.f32.gmra.mrb[0].mxu0 %v7156
      %v7226 = vpop.f32.mrb[0].mxu0
      %v7227 = vadd.f32 0.0, %v7226
      %v7228 = vpop.f32.mrb[0].mxu0
      %v7229 = vadd.f32 0.0, %v7228
      %7230 = vmatprep.mubr.f32.mxu0 0.0
      %7231 = vmatmul.mubr.f32.gmra.mrb[0].mxu0 %v7158
      %v7232 = vpop.f32.mrb[0].mxu0
      %v7233 = vadd.f32 0.0, %v7232
      %v7234 = vpop.f32.mrb[0].mxu0
      %v7235 = vadd.f32 0.0, %v7234
      %7236 = vdwg.mxu0
      %v7237 = vadd.f32 %v6350, %v7227
      %v7238 = vadd.f32 %v6351, %v7229
      %v7239 = vadd.f32 %v6352, %v7233
      %v7240 = vadd.f32 %v6353, %v7235
      %v7241 = vld [vmem:[#allocation2 + $0x2] sm:$0xff]
      %v7242 = vld [vmem:[#allocation2 + $0xa] sm:$0x3f]
      %v7243 = vld [vmem:[#allocation2 + $0x12] sm:$0xff]
      %v7244 = vld [vmem:[#allocation2 + $0x1a] sm:$0x3f]
      %v7245 = vld [vmem:[#allocation2 + $0x22] sm:$0xff]
      %v7246 = vld [vmem:[#allocation2 + $0x2a] sm:$0x3f]
      %v7247 = vld [vmem:[#allocation2 + $0x32] sm:$0xff]
      %v7248 = vld [vmem:[#allocation2 + $0x3a] sm:$0x3f]
      %v7249 = vld [vmem:[#allocation2 + $0x42] sm:$0xff]
      %v7250 = vld [vmem:[#allocation2 + $0x4a] sm:$0x3f]
      %v7251 = vld [vmem:[#allocation2 + $0x52] sm:$0xff]
      %v7252 = vld [vmem:[#allocation2 + $0x5a] sm:$0x3f]
      %v7253 = vld [vmem:[#allocation2 + $0x62] sm:$0xff]
      %v7254 = vld [vmem:[#allocation2 + $0x6a] sm:$0x3f]
      %v7255 = vld [vmem:[#allocation2 + $0x72] sm:$0xff]
      %v7256 = vld [vmem:[#allocation2 + $0x7a] sm:$0x3f]
      %v7257 = vld [vmem:[#allocation2 + $0x82] sm:$0xff]
      %v7258 = vld [vmem:[#allocation2 + $0x8a] sm:$0x3f]
      %v7259 = vld [vmem:[#allocation2 + $0x92] sm:$0xff]
      %v7260 = vld [vmem:[#allocation2 + $0x9a] sm:$0x3f]
      %v7261 = vld [vmem:[#allocation2 + $0xa2] sm:$0xff]
      %v7262 = vld [vmem:[#allocation2 + $0xaa] sm:$0x3f]
      %v7263 = vld [vmem:[#allocation2 + $0xb2] sm:$0xff]
      %v7264 = vld [vmem:[#allocation2 + $0xba] sm:$0x3f]
      %v7265 = vld [vmem:[#allocation2 + $0xc2] sm:$0xff]
      %v7266 = vld [vmem:[#allocation2 + $0xca] sm:$0x3f]
      %v7267 = vld [vmem:[#allocation2 + $0xd2] sm:$0xff]
      %v7268 = vld [vmem:[#allocation2 + $0xda] sm:$0x3f]
      %v7269 = vld [vmem:[#allocation2 + $0xe2] sm:$0xff]
      %v7270 = vld [vmem:[#allocation2 + $0xea] sm:$0x3f]
      %v7271 = vld [vmem:[#allocation2 + $0xf2] sm:$0xff]
      %v7272 = vld [vmem:[#allocation2 + $0xfa] sm:$0x3f]
      %7305 = vrot.lane.b32.xlu0 %v7241, 126
      %v7306 = vpop.permute.xlu0 %7305
      %7307 = vrot.lane.b32.xlu0 %v7242, 126
      %v7308 = vpop.permute.xlu0 %7307
      %7309 = vrot.lane.b32.xlu0 %v7243, 126
      %v7310 = vpop.permute.xlu0 %7309
      %7311 = vrot.lane.b32.xlu0 %v7244, 126
      %v7312 = vpop.permute.xlu0 %7311
      %7313 = vrot.lane.b32.xlu0 %v7245, 126
      %v7314 = vpop.permute.xlu0 %7313
      %7315 = vrot.lane.b32.xlu0 %v7246, 126
      %v7316 = vpop.permute.xlu0 %7315
      %7317 = vrot.lane.b32.xlu0 %v7247, 126
      %v7318 = vpop.permute.xlu0 %7317
      %7319 = vrot.lane.b32.xlu0 %v7248, 126
      %v7320 = vpop.permute.xlu0 %7319
      %7321 = vrot.lane.b32.xlu0 %v7249, 126
      %v7322 = vpop.permute.xlu0 %7321
      %7323 = vrot.lane.b32.xlu0 %v7250, 126
      %v7324 = vpop.permute.xlu0 %7323
      %7325 = vrot.lane.b32.xlu0 %v7251, 126
      %v7326 = vpop.permute.xlu0 %7325
      %7327 = vrot.lane.b32.xlu0 %v7252, 126
      %v7328 = vpop.permute.xlu0 %7327
      %7329 = vrot.lane.b32.xlu0 %v7253, 126
      %v7330 = vpop.permute.xlu0 %7329
      %7331 = vrot.lane.b32.xlu0 %v7254, 126
      %v7332 = vpop.permute.xlu0 %7331
      %7333 = vrot.lane.b32.xlu0 %v7255, 126
      %v7334 = vpop.permute.xlu0 %7333
      %7335 = vrot.lane.b32.xlu0 %v7256, 126
      %v7336 = vpop.permute.xlu0 %7335
      %7337 = vrot.lane.b32.xlu0 %v7257, 126
      %v7338 = vpop.permute.xlu0 %7337
      %7339 = vrot.lane.b32.xlu0 %v7258, 126
      %v7340 = vpop.permute.xlu0 %7339
      %7341 = vrot.lane.b32.xlu0 %v7259, 126
      %v7342 = vpop.permute.xlu0 %7341
      %7343 = vrot.lane.b32.xlu0 %v7260, 126
      %v7344 = vpop.permute.xlu0 %7343
      %7345 = vrot.lane.b32.xlu0 %v7261, 126
      %v7346 = vpop.permute.xlu0 %7345
      %7347 = vrot.lane.b32.xlu0 %v7262, 126
      %v7348 = vpop.permute.xlu0 %7347
      %7349 = vrot.lane.b32.xlu0 %v7263, 126
      %v7350 = vpop.permute.xlu0 %7349
      %7351 = vrot.lane.b32.xlu0 %v7264, 126
      %v7352 = vpop.permute.xlu0 %7351
      %7353 = vrot.lane.b32.xlu0 %v7265, 126
      %v7354 = vpop.permute.xlu0 %7353
      %7355 = vrot.lane.b32.xlu0 %v7266, 126
      %v7356 = vpop.permute.xlu0 %7355
      %7357 = vrot.lane.b32.xlu0 %v7267, 126
      %v7358 = vpop.permute.xlu0 %7357
      %7359 = vrot.lane.b32.xlu0 %v7268, 126
      %v7360 = vpop.permute.xlu0 %7359
      %7361 = vrot.lane.b32.xlu0 %v7269, 126
      %v7362 = vpop.permute.xlu0 %7361
      %7363 = vrot.lane.b32.xlu0 %v7270, 126
      %v7364 = vpop.permute.xlu0 %7363
      %7365 = vrot.lane.b32.xlu0 %v7271, 126
      %v7366 = vpop.permute.xlu0 %7365
      %7367 = vrot.lane.b32.xlu0 %v7272, 126
      %v7368 = vpop.permute.xlu0 %7367
      %v7401 = vcombine.low %v7306, %v7314
      %v7402 = vcombine.high %v7306, %v7314
      %v7404 = vunpack.c.l.s4 1983009808
      %v7405 = vunpack.c.0.s8 %v7404
      %v7406 = vlaneseq
      %v7407 = vshrl.u32 %v7406, 7
      %v7408 = vsub.s32 %v7405, %v7407
      %v7409 = vrot.slane %v7401, %v7408
      %v7411 = vunpack.c.l.s4 1983009808
      %v7412 = vunpack.c.0.s8 %v7411
      %v7413 = vlaneseq
      %v7414 = vshrl.u32 %v7413, 7
      %v7415 = vsub.s32 %v7412, %v7414
      %v7416 = vrot.slane %v7402, %v7415
      %v7417 = vcombine.low %v7310, %v7318
      %v7418 = vcombine.high %v7310, %v7318
      %v7420 = vunpack.c.l.s4 1983009808
      %v7421 = vunpack.c.0.s8 %v7420
      %v7422 = vlaneseq
      %v7423 = vshrl.u32 %v7422, 7
      %v7424 = vsub.s32 %v7421, %v7423
      %v7425 = vrot.slane %v7417, %v7424
      %v7427 = vunpack.c.l.s4 1983009808
      %v7428 = vunpack.c.0.s8 %v7427
      %v7429 = vlaneseq
      %v7430 = vshrl.u32 %v7429, 7
      %v7431 = vsub.s32 %v7428, %v7430
      %v7432 = vrot.slane %v7418, %v7431
      %v7433 = vcombine.low %v7322, %v7330
      %v7434 = vcombine.high %v7322, %v7330
      %v7436 = vunpack.c.l.s4 1983009808
      %v7437 = vunpack.c.0.s8 %v7436
      %v7438 = vlaneseq
      %v7439 = vshrl.u32 %v7438, 7
      %v7440 = vsub.s32 %v7437, %v7439
      %v7441 = vrot.slane %v7433, %v7440
      %v7443 = vunpack.c.l.s4 1983009808
      %v7444 = vunpack.c.0.s8 %v7443
      %v7445 = vlaneseq
      %v7446 = vshrl.u32 %v7445, 7
      %v7447 = vsub.s32 %v7444, %v7446
      %v7448 = vrot.slane %v7434, %v7447
      %v7449 = vcombine.low %v7326, %v7334
      %v7450 = vcombine.high %v7326, %v7334
      %v7452 = vunpack.c.l.s4 1983009808
      %v7453 = vunpack.c.0.s8 %v7452
      %v7454 = vlaneseq
      %v7455 = vshrl.u32 %v7454, 7
      %v7456 = vsub.s32 %v7453, %v7455
      %v7457 = vrot.slane %v7449, %v7456
      %v7459 = vunpack.c.l.s4 1983009808
      %v7460 = vunpack.c.0.s8 %v7459
      %v7461 = vlaneseq
      %v7462 = vshrl.u32 %v7461, 7
      %v7463 = vsub.s32 %v7460, %v7462
      %v7464 = vrot.slane %v7450, %v7463
      %v7465 = vcombine.low %v7409, %v7425
      %v7466 = vcombine.high %v7409, %v7425
      %v7468 = vunpack.c.l.s4 1934713408
      %v7469 = vunpack.c.0.s8 %v7468
      %v7470 = vlaneseq
      %v7471 = vshrl.u32 %v7470, 7
      %v7472 = vsub.s32 %v7469, %v7471
      %v7473 = vrot.slane %v7465, %v7472
      %v7475 = vunpack.c.l.s4 1934713408
      %v7476 = vunpack.c.0.s8 %v7475
      %v7477 = vlaneseq
      %v7478 = vshrl.u32 %v7477, 7
      %v7479 = vsub.s32 %v7476, %v7478
      %v7480 = vrot.slane %v7466, %v7479
      %v7481 = vcombine.low %v7416, %v7432
      %v7482 = vcombine.high %v7416, %v7432
      %v7484 = vunpack.c.l.s4 1934713408
      %v7485 = vunpack.c.0.s8 %v7484
      %v7486 = vlaneseq
      %v7487 = vshrl.u32 %v7486, 7
      %v7488 = vsub.s32 %v7485, %v7487
      %v7489 = vrot.slane %v7481, %v7488
      %v7491 = vunpack.c.l.s4 1934713408
      %v7492 = vunpack.c.0.s8 %v7491
      %v7493 = vlaneseq
      %v7494 = vshrl.u32 %v7493, 7
      %v7495 = vsub.s32 %v7492, %v7494
      %v7496 = vrot.slane %v7482, %v7495
      %v7497 = vcombine.low %v7441, %v7457
      %v7498 = vcombine.high %v7441, %v7457
      %v7500 = vunpack.c.l.s4 1934713408
      %v7501 = vunpack.c.0.s8 %v7500
      %v7502 = vlaneseq
      %v7503 = vshrl.u32 %v7502, 7
      %v7504 = vsub.s32 %v7501, %v7503
      %v7505 = vrot.slane %v7497, %v7504
      %v7507 = vunpack.c.l.s4 1934713408
      %v7508 = vunpack.c.0.s8 %v7507
      %v7509 = vlaneseq
      %v7510 = vshrl.u32 %v7509, 7
      %v7511 = vsub.s32 %v7508, %v7510
      %v7512 = vrot.slane %v7498, %v7511
      %v7513 = vcombine.low %v7448, %v7464
      %v7514 = vcombine.high %v7448, %v7464
      %v7516 = vunpack.c.l.s4 1934713408
      %v7517 = vunpack.c.0.s8 %v7516
      %v7518 = vlaneseq
      %v7519 = vshrl.u32 %v7518, 7
      %v7520 = vsub.s32 %v7517, %v7519
      %v7521 = vrot.slane %v7513, %v7520
      %v7523 = vunpack.c.l.s4 1934713408
      %v7524 = vunpack.c.0.s8 %v7523
      %v7525 = vlaneseq
      %v7526 = vshrl.u32 %v7525, 7
      %v7527 = vsub.s32 %v7524, %v7526
      %v7528 = vrot.slane %v7514, %v7527
      %v7529 = vcombine.low %v7473, %v7505
      %v7530 = vcombine.high %v7473, %v7505
      %v7531 = vcombine.low %v7480, %v7512
      %v7532 = vcombine.high %v7480, %v7512
      %v7533 = vcombine.low %v7489, %v7521
      %v7534 = vcombine.high %v7489, %v7521
      %v7535 = vcombine.low %v7496, %v7528
      %v7536 = vcombine.high %v7496, %v7528
      %v7537 = vcombine.low %v7338, %v7346
      %v7538 = vcombine.high %v7338, %v7346
      %v7540 = vunpack.c.l.s4 1983009808
      %v7541 = vunpack.c.0.s8 %v7540
      %v7542 = vlaneseq
      %v7543 = vshrl.u32 %v7542, 7
      %v7544 = vsub.s32 %v7541, %v7543
      %v7545 = vrot.slane %v7537, %v7544
      %v7547 = vunpack.c.l.s4 1983009808
      %v7548 = vunpack.c.0.s8 %v7547
      %v7549 = vlaneseq
      %v7550 = vshrl.u32 %v7549, 7
      %v7551 = vsub.s32 %v7548, %v7550
      %v7552 = vrot.slane %v7538, %v7551
      %v7553 = vcombine.low %v7342, %v7350
      %v7554 = vcombine.high %v7342, %v7350
      %v7556 = vunpack.c.l.s4 1983009808
      %v7557 = vunpack.c.0.s8 %v7556
      %v7558 = vlaneseq
      %v7559 = vshrl.u32 %v7558, 7
      %v7560 = vsub.s32 %v7557, %v7559
      %v7561 = vrot.slane %v7553, %v7560
      %v7563 = vunpack.c.l.s4 1983009808
      %v7564 = vunpack.c.0.s8 %v7563
      %v7565 = vlaneseq
      %v7566 = vshrl.u32 %v7565, 7
      %v7567 = vsub.s32 %v7564, %v7566
      %v7568 = vrot.slane %v7554, %v7567
      %v7569 = vcombine.low %v7354, %v7362
      %v7570 = vcombine.high %v7354, %v7362
      %v7572 = vunpack.c.l.s4 1983009808
      %v7573 = vunpack.c.0.s8 %v7572
      %v7574 = vlaneseq
      %v7575 = vshrl.u32 %v7574, 7
      %v7576 = vsub.s32 %v7573, %v7575
      %v7577 = vrot.slane %v7569, %v7576
      %v7579 = vunpack.c.l.s4 1983009808
      %v7580 = vunpack.c.0.s8 %v7579
      %v7581 = vlaneseq
      %v7582 = vshrl.u32 %v7581, 7
      %v7583 = vsub.s32 %v7580, %v7582
      %v7584 = vrot.slane %v7570, %v7583
      %v7585 = vcombine.low %v7358, %v7366
      %v7586 = vcombine.high %v7358, %v7366
      %v7588 = vunpack.c.l.s4 1983009808
      %v7589 = vunpack.c.0.s8 %v7588
      %v7590 = vlaneseq
      %v7591 = vshrl.u32 %v7590, 7
      %v7592 = vsub.s32 %v7589, %v7591
      %v7593 = vrot.slane %v7585, %v7592
      %v7595 = vunpack.c.l.s4 1983009808
      %v7596 = vunpack.c.0.s8 %v7595
      %v7597 = vlaneseq
      %v7598 = vshrl.u32 %v7597, 7
      %v7599 = vsub.s32 %v7596, %v7598
      %v7600 = vrot.slane %v7586, %v7599
      %v7601 = vcombine.low %v7545, %v7561
      %v7602 = vcombine.high %v7545, %v7561
      %v7604 = vunpack.c.l.s4 1934713408
      %v7605 = vunpack.c.0.s8 %v7604
      %v7606 = vlaneseq
      %v7607 = vshrl.u32 %v7606, 7
      %v7608 = vsub.s32 %v7605, %v7607
      %v7609 = vrot.slane %v7601, %v7608
      %v7611 = vunpack.c.l.s4 1934713408
      %v7612 = vunpack.c.0.s8 %v7611
      %v7613 = vlaneseq
      %v7614 = vshrl.u32 %v7613, 7
      %v7615 = vsub.s32 %v7612, %v7614
      %v7616 = vrot.slane %v7602, %v7615
      %v7617 = vcombine.low %v7552, %v7568
      %v7618 = vcombine.high %v7552, %v7568
      %v7620 = vunpack.c.l.s4 1934713408
      %v7621 = vunpack.c.0.s8 %v7620
      %v7622 = vlaneseq
      %v7623 = vshrl.u32 %v7622, 7
      %v7624 = vsub.s32 %v7621, %v7623
      %v7625 = vrot.slane %v7617, %v7624
      %v7627 = vunpack.c.l.s4 1934713408
      %v7628 = vunpack.c.0.s8 %v7627
      %v7629 = vlaneseq
      %v7630 = vshrl.u32 %v7629, 7
      %v7631 = vsub.s32 %v7628, %v7630
      %v7632 = vrot.slane %v7618, %v7631
      %v7633 = vcombine.low %v7577, %v7593
      %v7634 = vcombine.high %v7577, %v7593
      %v7636 = vunpack.c.l.s4 1934713408
      %v7637 = vunpack.c.0.s8 %v7636
      %v7638 = vlaneseq
      %v7639 = vshrl.u32 %v7638, 7
      %v7640 = vsub.s32 %v7637, %v7639
      %v7641 = vrot.slane %v7633, %v7640
      %v7643 = vunpack.c.l.s4 1934713408
      %v7644 = vunpack.c.0.s8 %v7643
      %v7645 = vlaneseq
      %v7646 = vshrl.u32 %v7645, 7
      %v7647 = vsub.s32 %v7644, %v7646
      %v7648 = vrot.slane %v7634, %v7647
      %v7649 = vcombine.low %v7584, %v7600
      %v7650 = vcombine.high %v7584, %v7600
      %v7652 = vunpack.c.l.s4 1934713408
      %v7653 = vunpack.c.0.s8 %v7652
      %v7654 = vlaneseq
      %v7655 = vshrl.u32 %v7654, 7
      %v7656 = vsub.s32 %v7653, %v7655
      %v7657 = vrot.slane %v7649, %v7656
      %v7659 = vunpack.c.l.s4 1934713408
      %v7660 = vunpack.c.0.s8 %v7659
      %v7661 = vlaneseq
      %v7662 = vshrl.u32 %v7661, 7
      %v7663 = vsub.s32 %v7660, %v7662
      %v7664 = vrot.slane %v7650, %v7663
      %v7665 = vcombine.low %v7609, %v7641
      %v7666 = vcombine.high %v7609, %v7641
      %v7667 = vcombine.low %v7616, %v7648
      %v7668 = vcombine.high %v7616, %v7648
      %v7669 = vcombine.low %v7625, %v7657
      %v7670 = vcombine.high %v7625, %v7657
      %v7671 = vcombine.low %v7632, %v7664
      %v7672 = vcombine.high %v7632, %v7664
      %v7673 = vcombine.low %v7308, %v7316
      %v7674 = vcombine.high %v7308, %v7316
      %v7676 = vunpack.c.l.s4 1983009808
      %v7677 = vunpack.c.0.s8 %v7676
      %v7678 = vlaneseq
      %v7679 = vshrl.u32 %v7678, 7
      %v7680 = vsub.s32 %v7677, %v7679
      %v7681 = vrot.slane %v7673, %v7680
      %v7683 = vunpack.c.l.s4 1983009808
      %v7684 = vunpack.c.0.s8 %v7683
      %v7685 = vlaneseq
      %v7686 = vshrl.u32 %v7685, 7
      %v7687 = vsub.s32 %v7684, %v7686
      %v7688 = vrot.slane %v7674, %v7687
      %v7689 = vcombine.low %v7312, %v7320
      %v7690 = vcombine.high %v7312, %v7320
      %v7692 = vunpack.c.l.s4 1983009808
      %v7693 = vunpack.c.0.s8 %v7692
      %v7694 = vlaneseq
      %v7695 = vshrl.u32 %v7694, 7
      %v7696 = vsub.s32 %v7693, %v7695
      %v7697 = vrot.slane %v7689, %v7696
      %v7699 = vunpack.c.l.s4 1983009808
      %v7700 = vunpack.c.0.s8 %v7699
      %v7701 = vlaneseq
      %v7702 = vshrl.u32 %v7701, 7
      %v7703 = vsub.s32 %v7700, %v7702
      %v7704 = vrot.slane %v7690, %v7703
      %v7705 = vcombine.low %v7324, %v7332
      %v7706 = vcombine.high %v7324, %v7332
      %v7708 = vunpack.c.l.s4 1983009808
      %v7709 = vunpack.c.0.s8 %v7708
      %v7710 = vlaneseq
      %v7711 = vshrl.u32 %v7710, 7
      %v7712 = vsub.s32 %v7709, %v7711
      %v7713 = vrot.slane %v7705, %v7712
      %v7715 = vunpack.c.l.s4 1983009808
      %v7716 = vunpack.c.0.s8 %v7715
      %v7717 = vlaneseq
      %v7718 = vshrl.u32 %v7717, 7
      %v7719 = vsub.s32 %v7716, %v7718
      %v7720 = vrot.slane %v7706, %v7719
      %v7721 = vcombine.low %v7328, %v7336
      %v7722 = vcombine.high %v7328, %v7336
      %v7724 = vunpack.c.l.s4 1983009808
      %v7725 = vunpack.c.0.s8 %v7724
      %v7726 = vlaneseq
      %v7727 = vshrl.u32 %v7726, 7
      %v7728 = vsub.s32 %v7725, %v7727
      %v7729 = vrot.slane %v7721, %v7728
      %v7731 = vunpack.c.l.s4 1983009808
      %v7732 = vunpack.c.0.s8 %v7731
      %v7733 = vlaneseq
      %v7734 = vshrl.u32 %v7733, 7
      %v7735 = vsub.s32 %v7732, %v7734
      %v7736 = vrot.slane %v7722, %v7735
      %v7737 = vcombine.low %v7681, %v7697
      %v7738 = vcombine.high %v7681, %v7697
      %v7740 = vunpack.c.l.s4 1934713408
      %v7741 = vunpack.c.0.s8 %v7740
      %v7742 = vlaneseq
      %v7743 = vshrl.u32 %v7742, 7
      %v7744 = vsub.s32 %v7741, %v7743
      %v7745 = vrot.slane %v7737, %v7744
      %v7747 = vunpack.c.l.s4 1934713408
      %v7748 = vunpack.c.0.s8 %v7747
      %v7749 = vlaneseq
      %v7750 = vshrl.u32 %v7749, 7
      %v7751 = vsub.s32 %v7748, %v7750
      %v7752 = vrot.slane %v7738, %v7751
      %v7753 = vcombine.low %v7688, %v7704
      %v7755 = vunpack.c.l.s4 1934713408
      %v7756 = vunpack.c.0.s8 %v7755
      %v7757 = vlaneseq
      %v7758 = vshrl.u32 %v7757, 7
      %v7759 = vsub.s32 %v7756, %v7758
      %v7760 = vrot.slane %v7753, %v7759
      %v7761 = vcombine.low %v7713, %v7729
      %v7762 = vcombine.high %v7713, %v7729
      %v7764 = vunpack.c.l.s4 1934713408
      %v7765 = vunpack.c.0.s8 %v7764
      %v7766 = vlaneseq
      %v7767 = vshrl.u32 %v7766, 7
      %v7768 = vsub.s32 %v7765, %v7767
      %v7769 = vrot.slane %v7761, %v7768
      %v7771 = vunpack.c.l.s4 1934713408
      %v7772 = vunpack.c.0.s8 %v7771
      %v7773 = vlaneseq
      %v7774 = vshrl.u32 %v7773, 7
      %v7775 = vsub.s32 %v7772, %v7774
      %v7776 = vrot.slane %v7762, %v7775
      %v7777 = vcombine.low %v7720, %v7736
      %v7779 = vunpack.c.l.s4 1934713408
      %v7780 = vunpack.c.0.s8 %v7779
      %v7781 = vlaneseq
      %v7782 = vshrl.u32 %v7781, 7
      %v7783 = vsub.s32 %v7780, %v7782
      %v7784 = vrot.slane %v7777, %v7783
      %v7785 = vcombine.low %v7745, %v7769
      %v7786 = vcombine.high %v7745, %v7769
      %v7787 = vcombine.low %v7752, %v7776
      %v7788 = vcombine.high %v7752, %v7776
      %v7789 = vcombine.low %v7760, %v7784
      %v7790 = vcombine.high %v7760, %v7784
      %v7791 = vcombine.low %v7340, %v7348
      %v7792 = vcombine.high %v7340, %v7348
      %v7794 = vunpack.c.l.s4 1983009808
      %v7795 = vunpack.c.0.s8 %v7794
      %v7796 = vlaneseq
      %v7797 = vshrl.u32 %v7796, 7
      %v7798 = vsub.s32 %v7795, %v7797
      %v7799 = vrot.slane %v7791, %v7798
      %v7801 = vunpack.c.l.s4 1983009808
      %v7802 = vunpack.c.0.s8 %v7801
      %v7803 = vlaneseq
      %v7804 = vshrl.u32 %v7803, 7
      %v7805 = vsub.s32 %v7802, %v7804
      %v7806 = vrot.slane %v7792, %v7805
      %v7807 = vcombine.low %v7344, %v7352
      %v7808 = vcombine.high %v7344, %v7352
      %v7810 = vunpack.c.l.s4 1983009808
      %v7811 = vunpack.c.0.s8 %v7810
      %v7812 = vlaneseq
      %v7813 = vshrl.u32 %v7812, 7
      %v7814 = vsub.s32 %v7811, %v7813
      %v7815 = vrot.slane %v7807, %v7814
      %v7817 = vunpack.c.l.s4 1983009808
      %v7818 = vunpack.c.0.s8 %v7817
      %v7819 = vlaneseq
      %v7820 = vshrl.u32 %v7819, 7
      %v7821 = vsub.s32 %v7818, %v7820
      %v7822 = vrot.slane %v7808, %v7821
      %v7823 = vcombine.low %v7356, %v7364
      %v7824 = vcombine.high %v7356, %v7364
      %v7826 = vunpack.c.l.s4 1983009808
      %v7827 = vunpack.c.0.s8 %v7826
      %v7828 = vlaneseq
      %v7829 = vshrl.u32 %v7828, 7
      %v7830 = vsub.s32 %v7827, %v7829
      %v7831 = vrot.slane %v7823, %v7830
      %v7833 = vunpack.c.l.s4 1983009808
      %v7834 = vunpack.c.0.s8 %v7833
      %v7835 = vlaneseq
      %v7836 = vshrl.u32 %v7835, 7
      %v7837 = vsub.s32 %v7834, %v7836
      %v7838 = vrot.slane %v7824, %v7837
      %v7839 = vcombine.low %v7360, %v7368
      %v7840 = vcombine.high %v7360, %v7368
      %v7842 = vunpack.c.l.s4 1983009808
      %v7843 = vunpack.c.0.s8 %v7842
      %v7844 = vlaneseq
      %v7845 = vshrl.u32 %v7844, 7
      %v7846 = vsub.s32 %v7843, %v7845
      %v7847 = vrot.slane %v7839, %v7846
      %v7849 = vunpack.c.l.s4 1983009808
      %v7850 = vunpack.c.0.s8 %v7849
      %v7851 = vlaneseq
      %v7852 = vshrl.u32 %v7851, 7
      %v7853 = vsub.s32 %v7850, %v7852
      %v7854 = vrot.slane %v7840, %v7853
      %v7855 = vcombine.low %v7799, %v7815
      %v7856 = vcombine.high %v7799, %v7815
      %v7858 = vunpack.c.l.s4 1934713408
      %v7859 = vunpack.c.0.s8 %v7858
      %v7860 = vlaneseq
      %v7861 = vshrl.u32 %v7860, 7
      %v7862 = vsub.s32 %v7859, %v7861
      %v7863 = vrot.slane %v7855, %v7862
      %v7865 = vunpack.c.l.s4 1934713408
      %v7866 = vunpack.c.0.s8 %v7865
      %v7867 = vlaneseq
      %v7868 = vshrl.u32 %v7867, 7
      %v7869 = vsub.s32 %v7866, %v7868
      %v7870 = vrot.slane %v7856, %v7869
      %v7871 = vcombine.low %v7806, %v7822
      %v7873 = vunpack.c.l.s4 1934713408
      %v7874 = vunpack.c.0.s8 %v7873
      %v7875 = vlaneseq
      %v7876 = vshrl.u32 %v7875, 7
      %v7877 = vsub.s32 %v7874, %v7876
      %v7878 = vrot.slane %v7871, %v7877
      %v7879 = vcombine.low %v7831, %v7847
      %v7880 = vcombine.high %v7831, %v7847
      %v7882 = vunpack.c.l.s4 1934713408
      %v7883 = vunpack.c.0.s8 %v7882
      %v7884 = vlaneseq
      %v7885 = vshrl.u32 %v7884, 7
      %v7886 = vsub.s32 %v7883, %v7885
      %v7887 = vrot.slane %v7879, %v7886
      %v7889 = vunpack.c.l.s4 1934713408
      %v7890 = vunpack.c.0.s8 %v7889
      %v7891 = vlaneseq
      %v7892 = vshrl.u32 %v7891, 7
      %v7893 = vsub.s32 %v7890, %v7892
      %v7894 = vrot.slane %v7880, %v7893
      %v7895 = vcombine.low %v7838, %v7854
      %v7897 = vunpack.c.l.s4 1934713408
      %v7898 = vunpack.c.0.s8 %v7897
      %v7899 = vlaneseq
      %v7900 = vshrl.u32 %v7899, 7
      %v7901 = vsub.s32 %v7898, %v7900
      %v7902 = vrot.slane %v7895, %v7901
      %v7903 = vcombine.low %v7863, %v7887
      %v7904 = vcombine.high %v7863, %v7887
      %v7905 = vcombine.low %v7870, %v7894
      %v7906 = vcombine.high %v7870, %v7894
      %v7907 = vcombine.low %v7878, %v7902
      %v7908 = vcombine.high %v7878, %v7902
      %7911 = vrot.lane.b32.xlu0 %v7530, 14
      %v7912 = vpop.permute.xlu0 %7911
      %7913 = vrot.lane.b32.xlu0 %v7666, 14
      %v7914 = vpop.permute.xlu0 %7913
      %7919 = vrot.lane.b32.xlu0 %v7531, 28
      %v7920 = vpop.permute.xlu0 %7919
      %7921 = vrot.lane.b32.xlu0 %v7667, 28
      %v7922 = vpop.permute.xlu0 %7921
      %7927 = vrot.lane.b32.xlu0 %v7532, 42
      %v7928 = vpop.permute.xlu0 %7927
      %7929 = vrot.lane.b32.xlu0 %v7668, 42
      %v7930 = vpop.permute.xlu0 %7929
      %7935 = vrot.lane.b32.xlu0 %v7533, 56
      %v7936 = vpop.permute.xlu0 %7935
      %7937 = vrot.lane.b32.xlu0 %v7669, 56
      %v7938 = vpop.permute.xlu0 %7937
      %7943 = vrot.lane.b32.xlu0 %v7534, 70
      %v7944 = vpop.permute.xlu0 %7943
      %7945 = vrot.lane.b32.xlu0 %v7670, 70
      %v7946 = vpop.permute.xlu0 %7945
      %7951 = vrot.lane.b32.xlu0 %v7535, 84
      %v7952 = vpop.permute.xlu0 %7951
      %7953 = vrot.lane.b32.xlu0 %v7671, 84
      %v7954 = vpop.permute.xlu0 %7953
      %7959 = vrot.lane.b32.xlu0 %v7536, 98
      %v7960 = vpop.permute.xlu0 %7959
      %7961 = vrot.lane.b32.xlu0 %v7672, 98
      %v7962 = vpop.permute.xlu0 %7961
      %7967 = vrot.lane.b32.xlu0 %v7785, 112
      %v7968 = vpop.permute.xlu0 %7967
      %7969 = vrot.lane.b32.xlu0 %v7903, 112
      %v7970 = vpop.permute.xlu0 %7969
      %7975 = vrot.lane.b32.xlu0 %v7786, 126
      %v7976 = vpop.permute.xlu0 %7975
      %7977 = vrot.lane.b32.xlu0 %v7904, 126
      %v7978 = vpop.permute.xlu0 %7977
      %7983 = vrot.lane.b32.xlu0 %v7787, 12
      %v7984 = vpop.permute.xlu0 %7983
      %7985 = vrot.lane.b32.xlu0 %v7905, 12
      %v7986 = vpop.permute.xlu0 %7985
      %7991 = vrot.lane.b32.xlu0 %v7788, 26
      %v7992 = vpop.permute.xlu0 %7991
      %7993 = vrot.lane.b32.xlu0 %v7906, 26
      %v7994 = vpop.permute.xlu0 %7993
      %7999 = vrot.lane.b32.xlu0 %v7789, 40
      %v8000 = vpop.permute.xlu0 %7999
      %8001 = vrot.lane.b32.xlu0 %v7907, 40
      %v8002 = vpop.permute.xlu0 %8001
      %8007 = vrot.lane.b32.xlu0 %v7790, 54
      %v8008 = vpop.permute.xlu0 %8007
      %8009 = vrot.lane.b32.xlu0 %v7908, 54
      %v8010 = vpop.permute.xlu0 %8009
      %v8013 = vsel %vm1201, %v7529, %v7912
      %v8014 = vsel %vm1201, %v7665, %v7914
      %v8015 = vsel %vm1204, %v8013, %v7920
      %v8016 = vsel %vm1204, %v8014, %v7922
      %v8017 = vsel %vm1207, %v8015, %v7928
      %v8018 = vsel %vm1207, %v8016, %v7930
      %v8019 = vsel %vm1210, %v8017, %v7936
      %v8020 = vsel %vm1210, %v8018, %v7938
      %v8021 = vsel %vm1213, %v8019, %v7944
      %v8022 = vsel %vm1213, %v8020, %v7946
      %v8023 = vsel %vm1216, %v8021, %v7952
      %v8024 = vsel %vm1216, %v8022, %v7954
      %v8025 = vsel %vm1219, %v8023, %v7960
      %v8026 = vsel %vm1219, %v8024, %v7962
      %v8027 = vsel %vm1222, %v8025, %v7968
      %v8028 = vsel %vm1222, %v8026, %v7970
      %v8029 = vsel %vm1225, %v8027, %v7976
      %v8030 = vsel %vm1225, %v8028, %v7978
      %v8031 = vsel %vm1228, %v7976, %v7984
      %v8032 = vsel %vm1228, %v7978, %v7986
      %v8033 = vsel %vm1231, %v8031, %v7992
      %v8034 = vsel %vm1231, %v8032, %v7994
      %v8035 = vsel %vm1234, %v8033, %v8000
      %v8036 = vsel %vm1234, %v8034, %v8002
      %v8037 = vsel %vm1237, %v8035, %v8008
      %v8038 = vsel %vm1237, %v8036, %v8010
      %v8040 = vsel %vm2012, %v554, 0
      %v8043 = vsel %vm2012, %v556, 0
      %8045 = vmatprep.subr.mxu0 %v8037
      %8046 = vmatpush1.msra.mxu0 %v8029
      %8047 = vmatprep.subr.mxu0 %v8038
      %8048 = vmatpush1.msra.mxu0 %v8030
      %8049 = vmatprep.subr.mxu0 0.0
      %8050 = vmatpush1.msra.mxu0 0.0
      %8051 = vmatprep.subr.mxu0 0.0
      %8052 = vmatpush1.msra.mxu0 0.0
      %8053 = vmatprep.subr.mxu0 0.0
      %8054 = vmatpush1.msra.mxu0 0.0
      %8055 = vmatprep.subr.mxu0 0.0
      %8056 = vmatpush1.msra.mxu0 0.0
      %8057 = vmatprep.subr.mxu0 0.0
      %8058 = vmatpush1.msra.mxu0 0.0
      %8059 = vmatprep.subr.mxu0 0.0
      %8060 = vmatpush1.msra.mxu0 0.0
      %8061 = vmatprep.subr.mxu0 0.0
      %8062 = vmatpush1.msra.mxu0 0.0
      %8063 = vmatprep.subr.mxu0 0.0
      %8064 = vmatpush1.msra.mxu0 0.0
      %8065 = vmatprep.subr.mxu0 0.0
      %8066 = vmatpush1.msra.mxu0 0.0
      %8067 = vmatprep.subr.mxu0 0.0
      %8068 = vmatpush1.msra.mxu0 0.0
      %8069 = vmatprep.subr.mxu0 0.0
      %8070 = vmatpush1.msra.mxu0 0.0
      %8071 = vmatprep.subr.mxu0 0.0
      %8072 = vmatpush1.msra.mxu0 0.0
      %8073 = vmatprep.subr.mxu0 0.0
      %8074 = vmatpush1.msra.mxu0 0.0
      %8075 = vmatprep.subr.mxu0 0.0
      %8076 = vmatpush1.msra.mxu0 0.0
      %8077 = vmatprep.subr.mxu0 0.0
      %8078 = vmatpush1.msra.mxu0 0.0
      %8079 = vmatprep.subr.mxu0 0.0
      %8080 = vmatpush1.msra.mxu0 0.0
      %8081 = vmatprep.subr.mxu0 0.0
      %8082 = vmatpush1.msra.mxu0 0.0
      %8083 = vmatprep.subr.mxu0 0.0
      %8084 = vmatpush1.msra.mxu0 0.0
      %8085 = vmatprep.subr.mxu0 0.0
      %8086 = vmatpush1.msra.mxu0 0.0
      %8087 = vmatprep.subr.mxu0 0.0
      %8088 = vmatpush1.msra.mxu0 0.0
      %8089 = vmatprep.subr.mxu0 0.0
      %8090 = vmatpush1.msra.mxu0 0.0
      %8091 = vmatprep.subr.mxu0 0.0
      %8092 = vmatpush1.msra.mxu0 0.0
      %8093 = vmatprep.subr.mxu0 0.0
      %8094 = vmatpush1.msra.mxu0 0.0
      %8095 = vmatprep.subr.mxu0 0.0
      %8096 = vmatpush1.msra.mxu0 0.0
      %8097 = vmatprep.subr.mxu0 0.0
      %8098 = vmatpush1.msra.mxu0 0.0
      %8099 = vmatprep.subr.mxu0 0.0
      %8100 = vmatpush1.msra.mxu0 0.0
      %8101 = vmatprep.subr.mxu0 0.0
      %8102 = vmatpush1.msra.mxu0 0.0
      %8103 = vmatprep.subr.mxu0 0.0
      %8104 = vmatpush1.msra.mxu0 0.0
      %8105 = vmatprep.subr.mxu0 0.0
      %8106 = vmatpush1.msra.mxu0 0.0
      %8107 = vmatprep.subr.mxu0 0.0
      %8108 = vmatpush1.msra.mxu0 0.0
      %8109 = vmatprep.mubr.f32.mxu0 0.0
      %8110 = vmatmul.mubr.f32.gmra.mrb[0].mxu0 %v8040
      %v8111 = vpop.f32.mrb[0].mxu0
      %v8112 = vadd.f32 0.0, %v8111
      %v8113 = vpop.f32.mrb[0].mxu0
      %v8114 = vadd.f32 0.0, %v8113
      %8115 = vmatprep.mubr.f32.mxu0 0.0
      %8116 = vmatmul.mubr.f32.gmra.mrb[0].mxu0 %v8043
      %v8117 = vpop.f32.mrb[0].mxu0
      %v8118 = vadd.f32 0.0, %v8117
      %v8119 = vpop.f32.mrb[0].mxu0
      %v8120 = vadd.f32 0.0, %v8119
      %8121 = vdwg.mxu0
      %v8122 = vadd.f32 %v7237, %v8112
      %v8123 = vadd.f32 %v7238, %v8114
      %v8124 = vadd.f32 %v7239, %v8118
      %v8125 = vadd.f32 %v7240, %v8120
      %vm8126 = vcmask 556032
      %v8127 = vsel %vm8126, %v8123, 0.0
      %v8128 = vadd.f32 %v8122, %v8127
      %8129 = vadd.xlane.f32.xlu0 %v8128
      %v8130 = vpop.xlane.xlu0 %8129
      %v8131 = vsel %vm8126, %v8125, 0.0
      %v8132 = vadd.f32 %v8124, %v8131
      %8133 = vadd.xlane.f32.xlu0 %v8132
      %v8134 = vpop.xlane.xlu0 %8133
      %v8135 = vadd.f32 %v8130, 0.0
      %v8136 = vadd.f32 %v8134, 0.0
      %v8137 = vmul.f32 %v8135, 0.0051020407
      %v8138 = vmul.f32 %v8136, 0.0051020407
      %v8139 = vsub.f32 %v8122, %v8137
      %v8140 = vsub.f32 %v8123, %v8137
      %v8141 = vsub.f32 %v8124, %v8138
      %v8142 = vsub.f32 %v8125, %v8138
      %v8143 = vmul.f32 %v8139, %v8139
      %v8144 = vmul.f32 %v8140, %v8140
      %v8145 = vmul.f32 %v8141, %v8141
      %v8146 = vmul.f32 %v8142, %v8142
      %v8147 = vsel %vm8126, %v8144, 0.0
      %v8148 = vadd.f32 %v8143, %v8147
      %8149 = vadd.xlane.f32.xlu0 %v8148
      %v8150 = vpop.xlane.xlu0 %8149
      %v8151 = vsel %vm8126, %v8146, 0.0
      %v8152 = vadd.f32 %v8145, %v8151
      %8153 = vadd.xlane.f32.xlu0 %v8152
      %v8154 = vpop.xlane.xlu0 %8153
      %v8155 = vadd.f32 %v8150, 0.0
      %v8156 = vadd.f32 %v8154, 0.0
      %v8157 = vmul.f32 %v8155, 0.0051020407
      %v8158 = vmul.f32 %v8156, 0.0051020407
      %v8159 = vadd.f32 %v8157, 1e-05
      %v8160 = vadd.f32 %v8158, 1e-05
      %v8161 = vrsqrt.pop %v8159
      %v8162 = vrsqrt.pop %v8160
      %v8163 = vld [vmem:[%s247] sm:$0xff]
      %v8164 = vld [vmem:[%s247 + $0x8] sm:$0xff]
      %v8165 = vmul.f32 %v8161, %v8163
      %v8166 = vmul.f32 %v8162, %v8164
      %v8167 = vld [vmem:[%s252] sm:$0xff]
      %v8168 = vld [vmem:[%s252 + $0x8] sm:$0xff]
      %v8169 = vmul.f32 %v8137, %v8165
      %v8170 = vmul.f32 %v8138, %v8166
      %v8171 = vsub.f32 %v8167, %v8169
      %v8172 = vsub.f32 %v8168, %v8170
      %8174 = vset.pattern.permute.xlu0 0
      %8175 = vperm.xlu0 %8174, %v8165
      %v8176 = vpop.permute.xlu0 %8175
      %8179 = vset.pattern.permute.xlu0 0
      %8180 = vperm.xlu0 %8179, %v8166
      %v8181 = vpop.permute.xlu0 %8180
      %v8183 = vmul.f32 %v8122, %v8176
      %v8184 = vmul.f32 %v8123, %v8176
      %v8185 = vmul.f32 %v8124, %v8181
      %v8186 = vmul.f32 %v8125, %v8181
      %8188 = vset.pattern.permute.xlu0 0
      %8189 = vperm.xlu0 %8188, %v8171
      %v8190 = vpop.permute.xlu0 %8189
      %8193 = vset.pattern.permute.xlu0 0
      %8194 = vperm.xlu0 %8193, %v8172
      %v8195 = vpop.permute.xlu0 %8194
      %v8197 = vadd.f32 %v8183, %v8190
      %v8198 = vadd.f32 %v8184, %v8190
      %v8199 = vadd.f32 %v8185, %v8195
      %v8200 = vadd.f32 %v8186, %v8195
      %v8201 = vmax.f32 %v8197, 0.0
      %v8202 = vmax.f32 %v8198, 0.0
      %v8203 = vmax.f32 %v8199, 0.0
      %v8204 = vmax.f32 %v8200, 0.0
      %8205 = vst [vmem:[%s257] sm:$0xff] %v8201
      %8206 = vst.msk [vmem:[%s257 + $0x8] sm:$0xff] %vm8126, %v8202
      %8207 = vst [vmem:[%s257 + $0x10] sm:$0xff] %v8203
      %8208 = vst.msk [vmem:[%s257 + $0x18] sm:$0xff] %vm8126, %v8204
      %p8209 = scmp.lt.s32.totalorder %s15, 10
      %s8210 = scalar_select %p8209, %s15, 10
      %s8211 = smul.addr %s8210, 4
      %s8212 = smul.addr %s8211, 8
      %s8213 = scalar_lea.vmem %s4, %s8212
      // Predicated region
      $region37: #{conv_bn_relu.1} parent=35 // pred_check
        %p8214 = pneg %p137
      $region38: #{conv_bn_relu.1} parent=35 // pred_check_branch
        %8216 = sbr.rel (%p8214) target = $region40
      $region39: #{conv_bn_relu.1} parent=35 // pred_region
        _
      $region40: #{conv_bn_relu.1} parent=35 // pred_fallthru
        _
    $region36: #{conv_bn_relu.1} parent=5 // pred_fallthru
      _
    %p8217 = scmp.le.s32.totalorder 2, %s10
    // Predicated region
    $region41: #{conv_bn_relu.1} parent=5 // pred_check
      %p8218 = pneg %p8217
    $region42: #{conv_bn_relu.1} parent=5 // pred_check_branch
      %8220 = sbr.rel (%p8218) target = $region44
    $region43: #{conv_bn_relu.1} parent=5 // pred_region
      %s8221 = ssub.s32 %s10, 2
      // Predicated region
      $region45: #{conv_bn_relu.1} parent=43 // pred_check
        %p8222 = pneg %p143
      $region46: #{conv_bn_relu.1} parent=43 // pred_check_branch
        %8224 = sbr.rel (%p8222) target = $region48
      $region47: #{conv_bn_relu.1} parent=43 // pred_region
        %p8225 = scmp.lt.s32.totalorder %s16, 10
        %s8226 = scalar_select %p8225, %s16, 10
        %s8227 = smul.addr %s8226, 4
        %s8228 = smul.addr %s8227, 8
        %s8229 = scalar_lea.vmem %s4, %s8228
      $region48: #{conv_bn_relu.1} parent=43 // pred_fallthru
        _
    $region44: #{conv_bn_relu.1} parent=5 // pred_fallthru
      _
  $region6: #{conv_bn_relu.1} parent=0 // loop_footer
    %s14 = sadd.s32 1, %s10
  $region7: #{conv_bn_relu.1} parent=0 // loop_footer_branch
    %9 = sbr.rel target = $region3
  $region8: #{conv_bn_relu.1} parent=0 // loop_exit
    _

</llo_original>
